<compile_context>
chip_gen: v5e
topology: v5e:2x2
jax: 0.10.0
libtpu: 0.0.40
codegen_flags: <defaults>
</compile_context>

<pallas_src>
import functools

import jax
import jax.numpy as jnp
from jax.experimental import pallas as pl
from jax.experimental.pallas import tpu as pltpu

MAX_WEIGHT = 10.0
_PALLAS_MIN_BYTES = 1 << 20   # below this, XLA fusion beats the pallas_call fixed cost


def _device_vmem_capacity_bytes():
    """Physical VMEM of the local TPU generation (fallback: v7x's 64 MiB, the smallest)."""
    try:
        info = pltpu.get_tpu_info()
        cap = getattr(info, "vmem_capacity_bytes", None)
        if cap:
            return int(cap)
    except Exception:
        pass
    return 64 << 20


_VMEM_CAP = _device_vmem_capacity_bytes()
# Budget for the double-buffered logits block (both buffers together).
_TILE_BUDGET = int(min(_VMEM_CAP // 4, 24 << 20))
# Scoped VMEM limit: budget + headroom for the small side inputs/outputs.
_VMEM_LIMIT = int(max(16 << 20, min(_VMEM_CAP - (8 << 20), _TILE_BUDGET + (8 << 20))))


def compute_weights_from_frequencies(token_frequencies, alpha=0.5, max_weight=MAX_WEIGHT):
    """w_i = (1/p_i)^alpha, clamped, renormalized so mean weight == 1."""
    weights = (1.0 / token_frequencies) ** alpha
    weights = jnp.minimum(weights, max_weight)
    s = weights.sum()
    weights = jnp.where(s > 0, weights * (weights.shape[0] / s), weights)
    return weights.astype(jnp.float32)


def _wce_kernel(logits_ref, targets_ref, mask_ref, wmask_ref, ce_ref, wce_ref, *, n_rows):
    """Per tile: ce = logsumexp(logits) - logits[target]; emit two per-tile partial sums."""
    logits = logits_ref[...].astype(jnp.float32)          # (TN, C), f32 math everywhere
    tgt = targets_ref[...]                                 # (TN, 1) int32
    tn = logits.shape[0]

    # numerically-stable logsumexp per row, target selected from the SHIFTED values so
    # only one (TN,C) strip stays live (identical result: lse - tgt_logit).
    row_max = jnp.max(logits, axis=-1, keepdims=True)
    shifted = logits - row_max
    sum_exp = jnp.sum(jnp.exp(shifted), axis=-1, keepdims=True)
    col = jax.lax.broadcasted_iota(jnp.int32, shifted.shape, 1)
    tgt_shift = jnp.sum(jnp.where(col == tgt, shifted, 0.0), axis=-1, keepdims=True)
    ce = jnp.log(sum_exp) - tgt_shift                      # (TN, 1) per-sample CE

    ce_m = ce * mask_ref[...]                              # CE * mask
    wce_m = ce * wmask_ref[...]                            # CE * class_weight[target] * mask

    # Partial last tile (grid = cdiv(N, TN)): zero out rows past N. The `where` is a
    # select, so any garbage (inf/nan) read from the truncated block is discarded.
    if n_rows % tn != 0:
        row = (jax.lax.broadcasted_iota(jnp.int32, (tn, 1), 0)
               + pl.program_id(0) * tn)
        valid = row < n_rows
        ce_m = jnp.where(valid, ce_m, 0.0)
        wce_m = jnp.where(valid, wce_m, 0.0)

    # Per-tile partial sums, written as lane-dense (1,8,128) blocks (unmasked stores).
    s_ce = jnp.sum(ce_m, keepdims=True)                    # (1, 1)
    s_wce = jnp.sum(wce_m, keepdims=True)
    ce_ref[...] = jnp.broadcast_to(s_ce, (1, 8, 128))
    wce_ref[...] = jnp.broadcast_to(s_wce, (1, 8, 128))


def _choose_tile_n(n, c, itemsize, budget_bytes, cap=8192):
    """Largest aligned row-tile whose double-buffered logits block fits the budget."""
    align = max(8, 32 // itemsize)                         # 8 rows f32, 16 rows bf16
    max_rows = max(align, budget_bytes // (2 * c * itemsize))
    tile = int(min(cap, max_rows))
    tile = max(align, (tile // align) * align)
    if tile >= n:
        return n                                           # single full-array block (legal)
    return tile


@functools.partial(jax.jit, static_argnames=("tile_n", "vmem_limit_bytes"))
def _weighted_ce_sums(logits, targets2, mask2, wmask2, tile_n, vmem_limit_bytes):
    """Returns (sum of masked CE, sum of masked weighted CE) as f32 scalars."""
    n, c = logits.shape
    num_tiles = pl.cdiv(n, tile_n)
    itemsize = jnp.dtype(logits.dtype).itemsize

    cost = pl.CostEstimate(
        flops=6 * n * c,
        transcendentals=n * c,
        bytes_accessed=n * c * itemsize + 12 * n + num_tiles * 2 * 8 * 128 * 4,
    )

    kernel = functools.partial(_wce_kernel, n_rows=n)

    ce_t, wce_t = pl.pallas_call(
        kernel,
        out_shape=(
            jax.ShapeDtypeStruct((num_tiles, 8, 128), jnp.float32),
            jax.ShapeDtypeStruct((num_tiles, 8, 128), jnp.float32),
        ),
        grid_spec=pltpu.PrefetchScalarGridSpec(
            num_scalar_prefetch=0,
            grid=(num_tiles,),
            in_specs=[
                pl.BlockSpec((tile_n, c), lambda i: (i, 0)),   # logits tile (native dtype)
                pl.BlockSpec((tile_n, 1), lambda i: (i, 0)),   # targets
                pl.BlockSpec((tile_n, 1), lambda i: (i, 0)),   # mask
                pl.BlockSpec((tile_n, 1), lambda i: (i, 0)),   # class_weight[target] * mask
            ],
            out_specs=[
                pl.BlockSpec((1, 8, 128), lambda i: (i, 0, 0)),
                pl.BlockSpec((1, 8, 128), lambda i: (i, 0, 0)),
            ],
        ),
        compiler_params=pltpu.CompilerParams(
            dimension_semantics=("parallel",),     # independent row tiles -> megacore OK
            vmem_limit_bytes=vmem_limit_bytes,     # generation-aware scoped-VMEM limit
        ),
        cost_estimate=cost,
    )(logits, targets2, mask2, wmask2)

    return jnp.sum(ce_t[:, 0, 0]), jnp.sum(wce_t[:, 0, 0])


class WeightedCrossEntropyLoss:
    """JAX/Pallas port of the PyTorch WeightedCrossEntropyLoss forward."""

    def __init__(self, token_frequencies, alpha=0.5, kl_lambda=0.1):
        self.weights = compute_weights_from_frequencies(token_frequencies, alpha)
        self.kl_lambda = kl_lambda

    def __call__(self, logits, targets, mask=None, tile_n=None):
        n, c = logits.shape
        tgt = targets.astype(jnp.int32)
        mask_arr = jnp.ones((n,), jnp.float32) if mask is None else mask.astype(jnp.float32)
        # NOTE: if targets may contain an ignore index (e.g. -100), callers must zero
        # those rows via `mask` — the in-kernel boolean select would otherwise yield
        # ce = logsumexp for them.
        w_per = jnp.take(self.weights, tgt, axis=0).astype(jnp.float32)
        wmask = w_per * mask_arr

        itemsize = jnp.dtype(logits.dtype).itemsize
        use_pallas = (tile_n is not None) or (n * c * itemsize >= _PALLAS_MIN_BYTES)

        if use_pallas:
            if tile_n is None:
                tile_n = _choose_tile_n(n, c, itemsize, _TILE_BUDGET)
            s_ce, s_wce = _weighted_ce_sums(
                logits,
                tgt.reshape(n, 1),
                mask_arr.reshape(n, 1),
                wmask.reshape(n, 1),
                tile_n,
                _VMEM_LIMIT,
            )
        else:
            # Tiny-input fallback: pallas_call fixed overhead would dominate; let XLA fuse.
            logp = jax.nn.log_softmax(logits.astype(jnp.float32), axis=-1)
            ce = -jnp.take_along_axis(logp, tgt[:, None], axis=-1)[:, 0]
            s_ce = jnp.sum(ce * mask_arr)
            s_wce = jnp.sum(ce * wmask)

        if mask is None:
            denom = jnp.float32(n)                   # matches .mean()
        else:
            denom = jnp.sum(mask_arr) + 1e-9         # matches mask.sum() + 1e-9

        standard_ce = s_ce / denom
        weighted_ce = s_wce / denom
        ce_diff = jnp.abs(weighted_ce - standard_ce)
        total_loss = weighted_ce + self.kl_lambda * ce_diff
        return total_loss, weighted_ce, ce_diff


def _reference(weights, kl_lambda, logits, targets, mask=None):
    """Pure-JAX reference mirroring the PyTorch forward, for verification."""
    logp = jax.nn.log_softmax(logits.astype(jnp.float32), axis=-1)
    ce = -jnp.take_along_axis(logp, targets[:, None], axis=-1)[:, 0]
    wce = ce * weights[targets]
    if mask is not None:
        m = mask.astype(jnp.float32)
        denom = m.sum() + 1e-9
        sce = (ce * m).sum() / denom
        swce = (wce * m).sum() / denom
    else:
        sce = ce.mean()
        swce = wce.mean()
    diff = jnp.abs(swce - sce)
    return swce + kl_lambda * diff, swce, diff


if __name__ == "__main__":
    key = jax.random.PRNGKey(0)
    B, T, C = 2, 1024, 256            # hyperparams: batch_size=2, block_size=1024, vocab=256
    N = B * T

    k1, k2, k3 = jax.random.split(key, 3)
    # deterministic synthetic token frequencies (positive, sum to 1)
    freqs = jnp.arange(1, C + 1, dtype=jnp.float32)
    freqs = freqs / freqs.sum()

    logits = jax.random.normal(k1, (N, C), dtype=jnp.float32)
    targets = jax.random.randint(k2, (N,), 0, C, dtype=jnp.int32)
    mask = (jax.random.uniform(k3, (N,)) > 0.2).astype(jnp.float32)

    loss_fn = WeightedCrossEntropyLoss(freqs, alpha=0.5, kl_lambda=0.1)

    def check(got, want, rtol=1e-4, atol=1e-3):
        assert jnp.allclose(got, want, rtol=rtol, atol=atol), (got, want)

    # 1) masked, f32 logits, auto tile (single full-size tile)
    total, wce, diff = loss_fn(logits, targets, mask)
    jax.block_until_ready(total)
    rt, rw, rd = _reference(loss_fn.weights, loss_fn.kl_lambda, logits, targets, mask)
    check(total, rt); check(wce, rw); check(diff, rd)

    # 2) unmasked path (mean reduction)
    total2, wce2, diff2 = loss_fn(logits, targets, None)
    rt2, rw2, rd2 = _reference(loss_fn.weights, loss_fn.kl_lambda, logits, targets, None)
    check(total2, rt2); check(wce2, rw2); check(diff2, rd2)

    # 3) bf16 logits streamed natively from HBM (half the DMA bytes; f32 math in-kernel)
    logits_bf16 = logits.astype(jnp.bfloat16)
    total3, wce3, diff3 = loss_fn(logits_bf16, targets, mask)
    rt3, rw3, rd3 = _reference(loss_fn.weights, loss_fn.kl_lambda,
                               logits_bf16.astype(jnp.float32), targets, mask)
    check(total3, rt3); check(wce3, rw3); check(diff3, rd3)

    # 4) multi-tile grid coverage (force tile_n < N so the grid actually iterates)
    total4, _, _ = loss_fn(logits, targets, mask, tile_n=256)
    check(total4, rt)

    # 5) non-divisible N: cdiv grid with a partial last tile, handled by the in-kernel
    #    row-validity mask (no wrapper-side padding copy)
    Np = 1000
    total5, wce5, diff5 = loss_fn(logits[:Np], targets[:Np], mask[:Np], tile_n=256)
    rt5, rw5, rd5 = _reference(loss_fn.weights, loss_fn.kl_lambda,
                               logits[:Np], targets[:Np], mask[:Np])
    check(total5, rt5); check(wce5, rw5); check(diff5, rd5)

    jax.block_until_ready(total5)
    print("KERNEL_OK")
</pallas_src>

<mosaic_0001>
module attributes {stable_mosaic.version = 11 : i64} {
  func.func @_wce_kernel(%arg0: i32, %arg1: memref<2048x256xf32, #tpu.memory_space<vmem>>, %arg2: memref<2048x1xi32, #tpu.memory_space<vmem>>, %arg3: memref<2048x1xf32, #tpu.memory_space<vmem>>, %arg4: memref<2048x1xf32, #tpu.memory_space<vmem>>, %arg5: memref<1x8x128xf32, #tpu.memory_space<vmem>>, %arg6: memref<1x8x128xf32, #tpu.memory_space<vmem>>) attributes {dimension_semantics = [#tpu.dimension_semantics<parallel>], iteration_bounds = array<i64: 1>, scalar_prefetch = 0 : i64, scratch_operands = 0 : i64, tpu.core_type = #tpu.core_type<tc>, window_params = [{transform_indices = @transform_0, window_bounds = array<i64: 2048, 256>}, {transform_indices = @transform_1, window_bounds = array<i64: 2048, 1>}, {transform_indices = @transform_2, window_bounds = array<i64: 2048, 1>}, {transform_indices = @transform_3, window_bounds = array<i64: 2048, 1>}, {transform_indices = @transform_4, window_bounds = array<i64: 1, 8, 128>}, {transform_indices = @transform_5, window_bounds = array<i64: 1, 8, 128>}]} {
    %c0 = arith.constant 0 : index
    %c0_0 = arith.constant 0 : index
    %0 = vector.load %arg1[%c0, %c0_0] : memref<2048x256xf32, #tpu.memory_space<vmem>>, vector<2048x256xf32>
    %c0_1 = arith.constant 0 : index
    %c0_2 = arith.constant 0 : index
    %1 = vector.load %arg2[%c0_1, %c0_2] : memref<2048x1xi32, #tpu.memory_space<vmem>>, vector<2048x1xi32>
    %cst = arith.constant dense<0xFF800000> : vector<2048xf32>
    %2 = vector.multi_reduction <maximumf>, %0, %cst [1] : vector<2048x256xf32> to vector<2048xf32>
    %3 = vector.shape_cast %2 : vector<2048xf32> to vector<2048x1xf32>
    %4 = vector.broadcast %3 : vector<2048x1xf32> to vector<2048x256xf32>
    %5 = arith.subf %0, %4 : vector<2048x256xf32>
    %6 = math.exp %5 : vector<2048x256xf32>
    %cst_3 = arith.constant dense<0.000000e+00> : vector<2048xf32>
    %7 = vector.multi_reduction <add>, %6, %cst_3 [1] : vector<2048x256xf32> to vector<2048xf32>
    %8 = vector.shape_cast %7 : vector<2048xf32> to vector<2048x1xf32>
    %9 = tpu.iota {dimensions = array<i32: 1>} : vector<2048x256xi32>
    %10 = vector.broadcast %1 : vector<2048x1xi32> to vector<2048x256xi32>
    %11 = arith.cmpi eq, %9, %10 : vector<2048x256xi32>
    %cst_4 = arith.constant 0.000000e+00 : f32
    %12 = vector.broadcast %cst_4 : f32 to vector<2048x256xf32>
    %13 = arith.select %11, %5, %12 : vector<2048x256xi1>, vector<2048x256xf32>
    %cst_5 = arith.constant dense<0.000000e+00> : vector<2048xf32>
    %14 = vector.multi_reduction <add>, %13, %cst_5 [1] : vector<2048x256xf32> to vector<2048xf32>
    %15 = vector.shape_cast %14 : vector<2048xf32> to vector<2048x1xf32>
    %16 = math.log %8 : vector<2048x1xf32>
    %17 = arith.subf %16, %15 : vector<2048x1xf32>
    %c0_6 = arith.constant 0 : index
    %c0_7 = arith.constant 0 : index
    %18 = vector.load %arg3[%c0_6, %c0_7] : memref<2048x1xf32, #tpu.memory_space<vmem>>, vector<2048x1xf32>
    %19 = arith.mulf %17, %18 : vector<2048x1xf32>
    %c0_8 = arith.constant 0 : index
    %c0_9 = arith.constant 0 : index
    %20 = vector.load %arg4[%c0_8, %c0_9] : memref<2048x1xf32, #tpu.memory_space<vmem>>, vector<2048x1xf32>
    %21 = arith.mulf %17, %20 : vector<2048x1xf32>
    %22 = vector.shape_cast %19 : vector<2048x1xf32> to vector<1x2048x1xf32>
    %cst_10 = arith.constant dense<0.000000e+00> : vector<1xf32>
    %23 = vector.multi_reduction <add>, %22, %cst_10 [1, 2] : vector<1x2048x1xf32> to vector<1xf32>
    %24 = vector.shape_cast %23 : vector<1xf32> to vector<1x1x1xf32>
    %25 = vector.extract %24[0, 0, 0] : f32 from vector<1x1x1xf32>
    %26 = vector.broadcast %25 : f32 to vector<1x1xf32>
    %27 = vector.shape_cast %21 : vector<2048x1xf32> to vector<1x2048x1xf32>
    %cst_11 = arith.constant dense<0.000000e+00> : vector<1xf32>
    %28 = vector.multi_reduction <add>, %27, %cst_11 [1, 2] : vector<1x2048x1xf32> to vector<1xf32>
    %29 = vector.shape_cast %28 : vector<1xf32> to vector<1x1x1xf32>
    %30 = vector.extract %29[0, 0, 0] : f32 from vector<1x1x1xf32>
    %31 = vector.broadcast %30 : f32 to vector<1x1xf32>
    %32 = vector.shape_cast %26 : vector<1x1xf32> to vector<1x1x1xf32>
    %33 = vector.broadcast %32 : vector<1x1x1xf32> to vector<1x8x128xf32>
    %c0_12 = arith.constant 0 : index
    %c0_13 = arith.constant 0 : index
    %c0_14 = arith.constant 0 : index
    %34 = vector.load %arg5[%c0_12, %c0_13, %c0_14] : memref<1x8x128xf32, #tpu.memory_space<vmem>>, vector<1x8x128xf32>
    tpu.vector_store %arg5[%c0_12, %c0_13, %c0_14], %33 {strides = array<i32>} : memref<1x8x128xf32, #tpu.memory_space<vmem>>, vector<1x8x128xf32>,
    %35 = vector.shape_cast %31 : vector<1x1xf32> to vector<1x1x1xf32>
    %36 = vector.broadcast %35 : vector<1x1x1xf32> to vector<1x8x128xf32>
    %c0_15 = arith.constant 0 : index
    %c0_16 = arith.constant 0 : index
    %c0_17 = arith.constant 0 : index
    %37 = vector.load %arg6[%c0_15, %c0_16, %c0_17] : memref<1x8x128xf32, #tpu.memory_space<vmem>>, vector<1x8x128xf32>
    tpu.vector_store %arg6[%c0_15, %c0_16, %c0_17], %36 {strides = array<i32>} : memref<1x8x128xf32, #tpu.memory_space<vmem>>, vector<1x8x128xf32>,
    return
  }
  func.func @transform_0(%arg0: i32) -> (i32, i32) {
    %c0_i32 = arith.constant 0 : i32
    %c0_i32_0 = arith.constant 0 : i32
    return %arg0, %c0_i32 : i32, i32
  }
  func.func @transform_1(%arg0: i32) -> (i32, i32) {
    %c0_i32 = arith.constant 0 : i32
    %c0_i32_0 = arith.constant 0 : i32
    return %arg0, %c0_i32 : i32, i32
  }
  func.func @transform_2(%arg0: i32) -> (i32, i32) {
    %c0_i32 = arith.constant 0 : i32
    %c0_i32_0 = arith.constant 0 : i32
    return %arg0, %c0_i32 : i32, i32
  }
  func.func @transform_3(%arg0: i32) -> (i32, i32) {
    %c0_i32 = arith.constant 0 : i32
    %c0_i32_0 = arith.constant 0 : i32
    return %arg0, %c0_i32 : i32, i32
  }
  func.func @transform_4(%arg0: i32) -> (i32, i32, i32) {
    %c0_i32 = arith.constant 0 : i32
    %c0_i32_0 = arith.constant 0 : i32
    %c0_i32_1 = arith.constant 0 : i32
    return %arg0, %c0_i32, %c0_i32_0 : i32, i32, i32
  }
  func.func @transform_5(%arg0: i32) -> (i32, i32, i32) {
    %c0_i32 = arith.constant 0 : i32
    %c0_i32_0 = arith.constant 0 : i32
    %c0_i32_1 = arith.constant 0 : i32
    return %arg0, %c0_i32, %c0_i32_0 : i32, i32, i32
  }
}

</mosaic_0001>

<llo_original>
// kernel: _weighted_ce_sums.1
$region0: #{_weighted_ce_sums.1}
  #allocation0 [shape = 'u32[]', space=smem, size = 0x4, offset = 0x4, fixed_abs, tag = 'smem constant byte address 0x4 - core index']
  #allocation1 [shape = 'u32[72,128]{1,0:T(1,128)}', space=vmem, size = 0x9000, scoped, tag = 'internal scratch']
  %s0 = inlined_call_operand.vmem [shape: f32[2048,256], index: 0, kind: input, shape index: {}]
  %s1 = inlined_call_operand.vmem [shape: s32[2048,1], index: 1, kind: input, shape index: {}]
  %s2 = inlined_call_operand.vmem [shape: f32[2048,1], index: 2, kind: input, shape index: {}]
  %s3 = inlined_call_operand.vmem [shape: f32[2048,1], index: 3, kind: input, shape index: {}]
  %s4 = inlined_call_operand.vmem [shape: f32[1,8,128], index: 4, kind: output, shape index: {0}]
  %s5 = inlined_call_operand.vmem [shape: f32[1,8,128], index: 5, kind: output, shape index: {1}]
  %6 = xla_tuple %s4, %s5
  %s7 = sld [smem:[#allocation0]]
  $region34: #{_weighted_ce_sums.1} parent=0
    _
  %s9 = ssub.s32 1, %s7
  %s10 = scalar_select 0, %s9, %s7
  // Predicated region
  $region2: #{_weighted_ce_sums.1} parent=0 // pred_check
    _
  $region3: #{_weighted_ce_sums.1} parent=0 // pred_check_branch
    %12 = sbr.rel (0) target = $region5
  $region4: #{_weighted_ce_sums.1} parent=0 // pred_region
    _
  $region5: #{_weighted_ce_sums.1} parent=0 // pred_fallthru
    _
  // Predicated region
  $region6: #{_weighted_ce_sums.1} parent=0 // pred_check
    _
  $region7: #{_weighted_ce_sums.1} parent=0 // pred_check_branch
    %14 = sbr.rel (0) target = $region9
  $region8: #{_weighted_ce_sums.1} parent=0 // pred_region
    _
  $region9: #{_weighted_ce_sums.1} parent=0 // pred_fallthru
    _
  // Predicated region
  $region10: #{_weighted_ce_sums.1} parent=0 // pred_check
    _
  $region11: #{_weighted_ce_sums.1} parent=0 // pred_check_branch
    %16 = sbr.rel (0) target = $region13
  $region12: #{_weighted_ce_sums.1} parent=0 // pred_region
    _
  $region13: #{_weighted_ce_sums.1} parent=0 // pred_fallthru
    _
  // Predicated region
  $region14: #{_weighted_ce_sums.1} parent=0 // pred_check
    _
  $region15: #{_weighted_ce_sums.1} parent=0 // pred_check_branch
    %18 = sbr.rel (0) target = $region17
  $region16: #{_weighted_ce_sums.1} parent=0 // pred_region
    _
  $region17: #{_weighted_ce_sums.1} parent=0 // pred_fallthru
    _
  %v19 = vld [vmem:[%s0] sm:$0xff]
  %v20 = vld [vmem:[%s0 + $0x8] sm:$0xff]
  %v21 = vld [vmem:[%s0 + $0x10] sm:$0xff]
  %v22 = vld [vmem:[%s0 + $0x18] sm:$0xff]
  %v23 = vld [vmem:[%s0 + $0x20] sm:$0xff]
  %v24 = vld [vmem:[%s0 + $0x28] sm:$0xff]
  %v25 = vld [vmem:[%s0 + $0x30] sm:$0xff]
  %v26 = vld [vmem:[%s0 + $0x38] sm:$0xff]
  %v27 = vld [vmem:[%s0 + $0x40] sm:$0xff]
  %v28 = vld [vmem:[%s0 + $0x48] sm:$0xff]
  %v29 = vld [vmem:[%s0 + $0x50] sm:$0xff]
  %v30 = vld [vmem:[%s0 + $0x58] sm:$0xff]
  %v31 = vld [vmem:[%s0 + $0x60] sm:$0xff]
  %v32 = vld [vmem:[%s0 + $0x68] sm:$0xff]
  %v33 = vld [vmem:[%s0 + $0x70] sm:$0xff]
  %v34 = vld [vmem:[%s0 + $0x78] sm:$0xff]
  %v35 = vld [vmem:[%s0 + $0x80] sm:$0xff]
  %v36 = vld [vmem:[%s0 + $0x88] sm:$0xff]
  %v37 = vld [vmem:[%s0 + $0x90] sm:$0xff]
  %v38 = vld [vmem:[%s0 + $0x98] sm:$0xff]
  %v39 = vld [vmem:[%s0 + $0xa0] sm:$0xff]
  %v40 = vld [vmem:[%s0 + $0xa8] sm:$0xff]
  %v41 = vld [vmem:[%s0 + $0xb0] sm:$0xff]
  %v42 = vld [vmem:[%s0 + $0xb8] sm:$0xff]
  %v43 = vld [vmem:[%s0 + $0xc0] sm:$0xff]
  %v44 = vld [vmem:[%s0 + $0xc8] sm:$0xff]
  %v45 = vld [vmem:[%s0 + $0xd0] sm:$0xff]
  %v46 = vld [vmem:[%s0 + $0xd8] sm:$0xff]
  %v47 = vld [vmem:[%s0 + $0xe0] sm:$0xff]
  %v48 = vld [vmem:[%s0 + $0xe8] sm:$0xff]
  %v49 = vld [vmem:[%s0 + $0xf0] sm:$0xff]
  %v50 = vld [vmem:[%s0 + $0xf8] sm:$0xff]
  %v51 = vld [vmem:[%s0 + $0x100] sm:$0xff]
  %v52 = vld [vmem:[%s0 + $0x108] sm:$0xff]
  %v53 = vld [vmem:[%s0 + $0x110] sm:$0xff]
  %v54 = vld [vmem:[%s0 + $0x118] sm:$0xff]
  %v55 = vld [vmem:[%s0 + $0x120] sm:$0xff]
  %v56 = vld [vmem:[%s0 + $0x128] sm:$0xff]
  %v57 = vld [vmem:[%s0 + $0x130] sm:$0xff]
  %v58 = vld [vmem:[%s0 + $0x138] sm:$0xff]
  %v59 = vld [vmem:[%s0 + $0x140] sm:$0xff]
  %v60 = vld [vmem:[%s0 + $0x148] sm:$0xff]
  %v61 = vld [vmem:[%s0 + $0x150] sm:$0xff]
  %v62 = vld [vmem:[%s0 + $0x158] sm:$0xff]
  %v63 = vld [vmem:[%s0 + $0x160] sm:$0xff]
  %v64 = vld [vmem:[%s0 + $0x168] sm:$0xff]
  %v65 = vld [vmem:[%s0 + $0x170] sm:$0xff]
  %v66 = vld [vmem:[%s0 + $0x178] sm:$0xff]
  %v67 = vld [vmem:[%s0 + $0x180] sm:$0xff]
  %v68 = vld [vmem:[%s0 + $0x188] sm:$0xff]
  %v69 = vld [vmem:[%s0 + $0x190] sm:$0xff]
  %v70 = vld [vmem:[%s0 + $0x198] sm:$0xff]
  %v71 = vld [vmem:[%s0 + $0x1a0] sm:$0xff]
  %v72 = vld [vmem:[%s0 + $0x1a8] sm:$0xff]
  %v73 = vld [vmem:[%s0 + $0x1b0] sm:$0xff]
  %v74 = vld [vmem:[%s0 + $0x1b8] sm:$0xff]
  %v75 = vld [vmem:[%s0 + $0x1c0] sm:$0xff]
  %v76 = vld [vmem:[%s0 + $0x1c8] sm:$0xff]
  %v77 = vld [vmem:[%s0 + $0x1d0] sm:$0xff]
  %v78 = vld [vmem:[%s0 + $0x1d8] sm:$0xff]
  %v79 = vld [vmem:[%s0 + $0x1e0] sm:$0xff]
  %v80 = vld [vmem:[%s0 + $0x1e8] sm:$0xff]
  %v81 = vld [vmem:[%s0 + $0x1f0] sm:$0xff]
  %v82 = vld [vmem:[%s0 + $0x1f8] sm:$0xff]
  %v83 = vld [vmem:[%s0 + $0x200] sm:$0xff]
  %v84 = vld [vmem:[%s0 + $0x208] sm:$0xff]
  %v85 = vld [vmem:[%s0 + $0x210] sm:$0xff]
  %v86 = vld [vmem:[%s0 + $0x218] sm:$0xff]
  %v87 = vld [vmem:[%s0 + $0x220] sm:$0xff]
  %v88 = vld [vmem:[%s0 + $0x228] sm:$0xff]
  %v89 = vld [vmem:[%s0 + $0x230] sm:$0xff]
  %v90 = vld [vmem:[%s0 + $0x238] sm:$0xff]
  %v91 = vld [vmem:[%s0 + $0x240] sm:$0xff]
  %v92 = vld [vmem:[%s0 + $0x248] sm:$0xff]
  %v93 = vld [vmem:[%s0 + $0x250] sm:$0xff]
  %v94 = vld [vmem:[%s0 + $0x258] sm:$0xff]
  %v95 = vld [vmem:[%s0 + $0x260] sm:$0xff]
  %v96 = vld [vmem:[%s0 + $0x268] sm:$0xff]
  %v97 = vld [vmem:[%s0 + $0x270] sm:$0xff]
  %v98 = vld [vmem:[%s0 + $0x278] sm:$0xff]
  %v99 = vld [vmem:[%s0 + $0x280] sm:$0xff]
  %v100 = vld [vmem:[%s0 + $0x288] sm:$0xff]
  %v101 = vld [vmem:[%s0 + $0x290] sm:$0xff]
  %v102 = vld [vmem:[%s0 + $0x298] sm:$0xff]
  %v103 = vld [vmem:[%s0 + $0x2a0] sm:$0xff]
  %v104 = vld [vmem:[%s0 + $0x2a8] sm:$0xff]
  %v105 = vld [vmem:[%s0 + $0x2b0] sm:$0xff]
  %v106 = vld [vmem:[%s0 + $0x2b8] sm:$0xff]
  %v107 = vld [vmem:[%s0 + $0x2c0] sm:$0xff]
  %v108 = vld [vmem:[%s0 + $0x2c8] sm:$0xff]
  %v109 = vld [vmem:[%s0 + $0x2d0] sm:$0xff]
  %v110 = vld [vmem:[%s0 + $0x2d8] sm:$0xff]
  %v111 = vld [vmem:[%s0 + $0x2e0] sm:$0xff]
  %v112 = vld [vmem:[%s0 + $0x2e8] sm:$0xff]
  %v113 = vld [vmem:[%s0 + $0x2f0] sm:$0xff]
  %v114 = vld [vmem:[%s0 + $0x2f8] sm:$0xff]
  %v115 = vld [vmem:[%s0 + $0x300] sm:$0xff]
  %v116 = vld [vmem:[%s0 + $0x308] sm:$0xff]
  %v117 = vld [vmem:[%s0 + $0x310] sm:$0xff]
  %v118 = vld [vmem:[%s0 + $0x318] sm:$0xff]
  %v119 = vld [vmem:[%s0 + $0x320] sm:$0xff]
  %v120 = vld [vmem:[%s0 + $0x328] sm:$0xff]
  %v121 = vld [vmem:[%s0 + $0x330] sm:$0xff]
  %v122 = vld [vmem:[%s0 + $0x338] sm:$0xff]
  %v123 = vld [vmem:[%s0 + $0x340] sm:$0xff]
  %v124 = vld [vmem:[%s0 + $0x348] sm:$0xff]
  %v125 = vld [vmem:[%s0 + $0x350] sm:$0xff]
  %v126 = vld [vmem:[%s0 + $0x358] sm:$0xff]
  %v127 = vld [vmem:[%s0 + $0x360] sm:$0xff]
  %v128 = vld [vmem:[%s0 + $0x368] sm:$0xff]
  %v129 = vld [vmem:[%s0 + $0x370] sm:$0xff]
  %v130 = vld [vmem:[%s0 + $0x378] sm:$0xff]
  %v131 = vld [vmem:[%s0 + $0x380] sm:$0xff]
  %v132 = vld [vmem:[%s0 + $0x388] sm:$0xff]
  %v133 = vld [vmem:[%s0 + $0x390] sm:$0xff]
  %v134 = vld [vmem:[%s0 + $0x398] sm:$0xff]
  %v135 = vld [vmem:[%s0 + $0x3a0] sm:$0xff]
  %v136 = vld [vmem:[%s0 + $0x3a8] sm:$0xff]
  %v137 = vld [vmem:[%s0 + $0x3b0] sm:$0xff]
  %v138 = vld [vmem:[%s0 + $0x3b8] sm:$0xff]
  %v139 = vld [vmem:[%s0 + $0x3c0] sm:$0xff]
  %v140 = vld [vmem:[%s0 + $0x3c8] sm:$0xff]
  %v141 = vld [vmem:[%s0 + $0x3d0] sm:$0xff]
  %v142 = vld [vmem:[%s0 + $0x3d8] sm:$0xff]
  %v143 = vld [vmem:[%s0 + $0x3e0] sm:$0xff]
  %v144 = vld [vmem:[%s0 + $0x3e8] sm:$0xff]
  %v145 = vld [vmem:[%s0 + $0x3f0] sm:$0xff]
  %v146 = vld [vmem:[%s0 + $0x3f8] sm:$0xff]
  %v147 = vld [vmem:[%s0 + $0x400] sm:$0xff]
  %v148 = vld [vmem:[%s0 + $0x408] sm:$0xff]
  %v149 = vld [vmem:[%s0 + $0x410] sm:$0xff]
  %v150 = vld [vmem:[%s0 + $0x418] sm:$0xff]
  %v151 = vld [vmem:[%s0 + $0x420] sm:$0xff]
  %v152 = vld [vmem:[%s0 + $0x428] sm:$0xff]
  %v153 = vld [vmem:[%s0 + $0x430] sm:$0xff]
  %v154 = vld [vmem:[%s0 + $0x438] sm:$0xff]
  %v155 = vld [vmem:[%s0 + $0x440] sm:$0xff]
  %v156 = vld [vmem:[%s0 + $0x448] sm:$0xff]
  %v157 = vld [vmem:[%s0 + $0x450] sm:$0xff]
  %v158 = vld [vmem:[%s0 + $0x458] sm:$0xff]
  %v159 = vld [vmem:[%s0 + $0x460] sm:$0xff]
  %v160 = vld [vmem:[%s0 + $0x468] sm:$0xff]
  %v161 = vld [vmem:[%s0 + $0x470] sm:$0xff]
  %v162 = vld [vmem:[%s0 + $0x478] sm:$0xff]
  %v163 = vld [vmem:[%s0 + $0x480] sm:$0xff]
  %v164 = vld [vmem:[%s0 + $0x488] sm:$0xff]
  %v165 = vld [vmem:[%s0 + $0x490] sm:$0xff]
  %v166 = vld [vmem:[%s0 + $0x498] sm:$0xff]
  %v167 = vld [vmem:[%s0 + $0x4a0] sm:$0xff]
  %v168 = vld [vmem:[%s0 + $0x4a8] sm:$0xff]
  %v169 = vld [vmem:[%s0 + $0x4b0] sm:$0xff]
  %v170 = vld [vmem:[%s0 + $0x4b8] sm:$0xff]
  %v171 = vld [vmem:[%s0 + $0x4c0] sm:$0xff]
  %v172 = vld [vmem:[%s0 + $0x4c8] sm:$0xff]
  %v173 = vld [vmem:[%s0 + $0x4d0] sm:$0xff]
  %v174 = vld [vmem:[%s0 + $0x4d8] sm:$0xff]
  %v175 = vld [vmem:[%s0 + $0x4e0] sm:$0xff]
  %v176 = vld [vmem:[%s0 + $0x4e8] sm:$0xff]
  %v177 = vld [vmem:[%s0 + $0x4f0] sm:$0xff]
  %v178 = vld [vmem:[%s0 + $0x4f8] sm:$0xff]
  %v179 = vld [vmem:[%s0 + $0x500] sm:$0xff]
  %v180 = vld [vmem:[%s0 + $0x508] sm:$0xff]
  %v181 = vld [vmem:[%s0 + $0x510] sm:$0xff]
  %v182 = vld [vmem:[%s0 + $0x518] sm:$0xff]
  %v183 = vld [vmem:[%s0 + $0x520] sm:$0xff]
  %v184 = vld [vmem:[%s0 + $0x528] sm:$0xff]
  %v185 = vld [vmem:[%s0 + $0x530] sm:$0xff]
  %v186 = vld [vmem:[%s0 + $0x538] sm:$0xff]
  %v187 = vld [vmem:[%s0 + $0x540] sm:$0xff]
  %v188 = vld [vmem:[%s0 + $0x548] sm:$0xff]
  %v189 = vld [vmem:[%s0 + $0x550] sm:$0xff]
  %v190 = vld [vmem:[%s0 + $0x558] sm:$0xff]
  %v191 = vld [vmem:[%s0 + $0x560] sm:$0xff]
  %v192 = vld [vmem:[%s0 + $0x568] sm:$0xff]
  %v193 = vld [vmem:[%s0 + $0x570] sm:$0xff]
  %v194 = vld [vmem:[%s0 + $0x578] sm:$0xff]
  %v195 = vld [vmem:[%s0 + $0x580] sm:$0xff]
  %v196 = vld [vmem:[%s0 + $0x588] sm:$0xff]
  %v197 = vld [vmem:[%s0 + $0x590] sm:$0xff]
  %v198 = vld [vmem:[%s0 + $0x598] sm:$0xff]
  %v199 = vld [vmem:[%s0 + $0x5a0] sm:$0xff]
  %v200 = vld [vmem:[%s0 + $0x5a8] sm:$0xff]
  %v201 = vld [vmem:[%s0 + $0x5b0] sm:$0xff]
  %v202 = vld [vmem:[%s0 + $0x5b8] sm:$0xff]
  %v203 = vld [vmem:[%s0 + $0x5c0] sm:$0xff]
  %v204 = vld [vmem:[%s0 + $0x5c8] sm:$0xff]
  %v205 = vld [vmem:[%s0 + $0x5d0] sm:$0xff]
  %v206 = vld [vmem:[%s0 + $0x5d8] sm:$0xff]
  %v207 = vld [vmem:[%s0 + $0x5e0] sm:$0xff]
  %v208 = vld [vmem:[%s0 + $0x5e8] sm:$0xff]
  %v209 = vld [vmem:[%s0 + $0x5f0] sm:$0xff]
  %v210 = vld [vmem:[%s0 + $0x5f8] sm:$0xff]
  %v211 = vld [vmem:[%s0 + $0x600] sm:$0xff]
  %v212 = vld [vmem:[%s0 + $0x608] sm:$0xff]
  %v213 = vld [vmem:[%s0 + $0x610] sm:$0xff]
  %v214 = vld [vmem:[%s0 + $0x618] sm:$0xff]
  %v215 = vld [vmem:[%s0 + $0x620] sm:$0xff]
  %v216 = vld [vmem:[%s0 + $0x628] sm:$0xff]
  %v217 = vld [vmem:[%s0 + $0x630] sm:$0xff]
  %v218 = vld [vmem:[%s0 + $0x638] sm:$0xff]
  %v219 = vld [vmem:[%s0 + $0x640] sm:$0xff]
  %v220 = vld [vmem:[%s0 + $0x648] sm:$0xff]
  %v221 = vld [vmem:[%s0 + $0x650] sm:$0xff]
  %v222 = vld [vmem:[%s0 + $0x658] sm:$0xff]
  %v223 = vld [vmem:[%s0 + $0x660] sm:$0xff]
  %v224 = vld [vmem:[%s0 + $0x668] sm:$0xff]
  %v225 = vld [vmem:[%s0 + $0x670] sm:$0xff]
  %v226 = vld [vmem:[%s0 + $0x678] sm:$0xff]
  %v227 = vld [vmem:[%s0 + $0x680] sm:$0xff]
  %v228 = vld [vmem:[%s0 + $0x688] sm:$0xff]
  %v229 = vld [vmem:[%s0 + $0x690] sm:$0xff]
  %v230 = vld [vmem:[%s0 + $0x698] sm:$0xff]
  %v231 = vld [vmem:[%s0 + $0x6a0] sm:$0xff]
  %v232 = vld [vmem:[%s0 + $0x6a8] sm:$0xff]
  %v233 = vld [vmem:[%s0 + $0x6b0] sm:$0xff]
  %v234 = vld [vmem:[%s0 + $0x6b8] sm:$0xff]
  %v235 = vld [vmem:[%s0 + $0x6c0] sm:$0xff]
  %v236 = vld [vmem:[%s0 + $0x6c8] sm:$0xff]
  %v237 = vld [vmem:[%s0 + $0x6d0] sm:$0xff]
  %v238 = vld [vmem:[%s0 + $0x6d8] sm:$0xff]
  %v239 = vld [vmem:[%s0 + $0x6e0] sm:$0xff]
  %v240 = vld [vmem:[%s0 + $0x6e8] sm:$0xff]
  %v241 = vld [vmem:[%s0 + $0x6f0] sm:$0xff]
  %v242 = vld [vmem:[%s0 + $0x6f8] sm:$0xff]
  %v243 = vld [vmem:[%s0 + $0x700] sm:$0xff]
  %v244 = vld [vmem:[%s0 + $0x708] sm:$0xff]
  %v245 = vld [vmem:[%s0 + $0x710] sm:$0xff]
  %v246 = vld [vmem:[%s0 + $0x718] sm:$0xff]
  %v247 = vld [vmem:[%s0 + $0x720] sm:$0xff]
  %v248 = vld [vmem:[%s0 + $0x728] sm:$0xff]
  %v249 = vld [vmem:[%s0 + $0x730] sm:$0xff]
  %v250 = vld [vmem:[%s0 + $0x738] sm:$0xff]
  %v251 = vld [vmem:[%s0 + $0x740] sm:$0xff]
  %v252 = vld [vmem:[%s0 + $0x748] sm:$0xff]
  %v253 = vld [vmem:[%s0 + $0x750] sm:$0xff]
  %v254 = vld [vmem:[%s0 + $0x758] sm:$0xff]
  %v255 = vld [vmem:[%s0 + $0x760] sm:$0xff]
  %v256 = vld [vmem:[%s0 + $0x768] sm:$0xff]
  %v257 = vld [vmem:[%s0 + $0x770] sm:$0xff]
  %v258 = vld [vmem:[%s0 + $0x778] sm:$0xff]
  %v259 = vld [vmem:[%s0 + $0x780] sm:$0xff]
  %v260 = vld [vmem:[%s0 + $0x788] sm:$0xff]
  %v261 = vld [vmem:[%s0 + $0x790] sm:$0xff]
  %v262 = vld [vmem:[%s0 + $0x798] sm:$0xff]
  %v263 = vld [vmem:[%s0 + $0x7a0] sm:$0xff]
  %v264 = vld [vmem:[%s0 + $0x7a8] sm:$0xff]
  %v265 = vld [vmem:[%s0 + $0x7b0] sm:$0xff]
  %v266 = vld [vmem:[%s0 + $0x7b8] sm:$0xff]
  %v267 = vld [vmem:[%s0 + $0x7c0] sm:$0xff]
  %v268 = vld [vmem:[%s0 + $0x7c8] sm:$0xff]
  %v269 = vld [vmem:[%s0 + $0x7d0] sm:$0xff]
  %v270 = vld [vmem:[%s0 + $0x7d8] sm:$0xff]
  %v271 = vld [vmem:[%s0 + $0x7e0] sm:$0xff]
  %v272 = vld [vmem:[%s0 + $0x7e8] sm:$0xff]
  %v273 = vld [vmem:[%s0 + $0x7f0] sm:$0xff]
  %v274 = vld [vmem:[%s0 + $0x7f8] sm:$0xff]
  %v275 = vld [vmem:[%s0 + $0x800] sm:$0xff]
  %v276 = vld [vmem:[%s0 + $0x808] sm:$0xff]
  %v277 = vld [vmem:[%s0 + $0x810] sm:$0xff]
  %v278 = vld [vmem:[%s0 + $0x818] sm:$0xff]
  %v279 = vld [vmem:[%s0 + $0x820] sm:$0xff]
  %v280 = vld [vmem:[%s0 + $0x828] sm:$0xff]
  %v281 = vld [vmem:[%s0 + $0x830] sm:$0xff]
  %v282 = vld [vmem:[%s0 + $0x838] sm:$0xff]
  %v283 = vld [vmem:[%s0 + $0x840] sm:$0xff]
  %v284 = vld [vmem:[%s0 + $0x848] sm:$0xff]
  %v285 = vld [vmem:[%s0 + $0x850] sm:$0xff]
  %v286 = vld [vmem:[%s0 + $0x858] sm:$0xff]
  %v287 = vld [vmem:[%s0 + $0x860] sm:$0xff]
  %v288 = vld [vmem:[%s0 + $0x868] sm:$0xff]
  %v289 = vld [vmem:[%s0 + $0x870] sm:$0xff]
  %v290 = vld [vmem:[%s0 + $0x878] sm:$0xff]
  %v291 = vld [vmem:[%s0 + $0x880] sm:$0xff]
  %v292 = vld [vmem:[%s0 + $0x888] sm:$0xff]
  %v293 = vld [vmem:[%s0 + $0x890] sm:$0xff]
  %v294 = vld [vmem:[%s0 + $0x898] sm:$0xff]
  %v295 = vld [vmem:[%s0 + $0x8a0] sm:$0xff]
  %v296 = vld [vmem:[%s0 + $0x8a8] sm:$0xff]
  %v297 = vld [vmem:[%s0 + $0x8b0] sm:$0xff]
  %v298 = vld [vmem:[%s0 + $0x8b8] sm:$0xff]
  %v299 = vld [vmem:[%s0 + $0x8c0] sm:$0xff]
  %v300 = vld [vmem:[%s0 + $0x8c8] sm:$0xff]
  %v301 = vld [vmem:[%s0 + $0x8d0] sm:$0xff]
  %v302 = vld [vmem:[%s0 + $0x8d8] sm:$0xff]
  %v303 = vld [vmem:[%s0 + $0x8e0] sm:$0xff]
  %v304 = vld [vmem:[%s0 + $0x8e8] sm:$0xff]
  %v305 = vld [vmem:[%s0 + $0x8f0] sm:$0xff]
  %v306 = vld [vmem:[%s0 + $0x8f8] sm:$0xff]
  %v307 = vld [vmem:[%s0 + $0x900] sm:$0xff]
  %v308 = vld [vmem:[%s0 + $0x908] sm:$0xff]
  %v309 = vld [vmem:[%s0 + $0x910] sm:$0xff]
  %v310 = vld [vmem:[%s0 + $0x918] sm:$0xff]
  %v311 = vld [vmem:[%s0 + $0x920] sm:$0xff]
  %v312 = vld [vmem:[%s0 + $0x928] sm:$0xff]
  %v313 = vld [vmem:[%s0 + $0x930] sm:$0xff]
  %v314 = vld [vmem:[%s0 + $0x938] sm:$0xff]
  %v315 = vld [vmem:[%s0 + $0x940] sm:$0xff]
  %v316 = vld [vmem:[%s0 + $0x948] sm:$0xff]
  %v317 = vld [vmem:[%s0 + $0x950] sm:$0xff]
  %v318 = vld [vmem:[%s0 + $0x958] sm:$0xff]
  %v319 = vld [vmem:[%s0 + $0x960] sm:$0xff]
  %v320 = vld [vmem:[%s0 + $0x968] sm:$0xff]
  %v321 = vld [vmem:[%s0 + $0x970] sm:$0xff]
  %v322 = vld [vmem:[%s0 + $0x978] sm:$0xff]
  %v323 = vld [vmem:[%s0 + $0x980] sm:$0xff]
  %v324 = vld [vmem:[%s0 + $0x988] sm:$0xff]
  %v325 = vld [vmem:[%s0 + $0x990] sm:$0xff]
  %v326 = vld [vmem:[%s0 + $0x998] sm:$0xff]
  %v327 = vld [vmem:[%s0 + $0x9a0] sm:$0xff]
  %v328 = vld [vmem:[%s0 + $0x9a8] sm:$0xff]
  %v329 = vld [vmem:[%s0 + $0x9b0] sm:$0xff]
  %v330 = vld [vmem:[%s0 + $0x9b8] sm:$0xff]
  %v331 = vld [vmem:[%s0 + $0x9c0] sm:$0xff]
  %v332 = vld [vmem:[%s0 + $0x9c8] sm:$0xff]
  %v333 = vld [vmem:[%s0 + $0x9d0] sm:$0xff]
  %v334 = vld [vmem:[%s0 + $0x9d8] sm:$0xff]
  %v335 = vld [vmem:[%s0 + $0x9e0] sm:$0xff]
  %v336 = vld [vmem:[%s0 + $0x9e8] sm:$0xff]
  %v337 = vld [vmem:[%s0 + $0x9f0] sm:$0xff]
  %v338 = vld [vmem:[%s0 + $0x9f8] sm:$0xff]
  %v339 = vld [vmem:[%s0 + $0xa00] sm:$0xff]
  %v340 = vld [vmem:[%s0 + $0xa08] sm:$0xff]
  %v341 = vld [vmem:[%s0 + $0xa10] sm:$0xff]
  %v342 = vld [vmem:[%s0 + $0xa18] sm:$0xff]
  %v343 = vld [vmem:[%s0 + $0xa20] sm:$0xff]
  %v344 = vld [vmem:[%s0 + $0xa28] sm:$0xff]
  %v345 = vld [vmem:[%s0 + $0xa30] sm:$0xff]
  %v346 = vld [vmem:[%s0 + $0xa38] sm:$0xff]
  %v347 = vld [vmem:[%s0 + $0xa40] sm:$0xff]
  %v348 = vld [vmem:[%s0 + $0xa48] sm:$0xff]
  %v349 = vld [vmem:[%s0 + $0xa50] sm:$0xff]
  %v350 = vld [vmem:[%s0 + $0xa58] sm:$0xff]
  %v351 = vld [vmem:[%s0 + $0xa60] sm:$0xff]
  %v352 = vld [vmem:[%s0 + $0xa68] sm:$0xff]
  %v353 = vld [vmem:[%s0 + $0xa70] sm:$0xff]
  %v354 = vld [vmem:[%s0 + $0xa78] sm:$0xff]
  %v355 = vld [vmem:[%s0 + $0xa80] sm:$0xff]
  %v356 = vld [vmem:[%s0 + $0xa88] sm:$0xff]
  %v357 = vld [vmem:[%s0 + $0xa90] sm:$0xff]
  %v358 = vld [vmem:[%s0 + $0xa98] sm:$0xff]
  %v359 = vld [vmem:[%s0 + $0xaa0] sm:$0xff]
  %v360 = vld [vmem:[%s0 + $0xaa8] sm:$0xff]
  %v361 = vld [vmem:[%s0 + $0xab0] sm:$0xff]
  %v362 = vld [vmem:[%s0 + $0xab8] sm:$0xff]
  %v363 = vld [vmem:[%s0 + $0xac0] sm:$0xff]
  %v364 = vld [vmem:[%s0 + $0xac8] sm:$0xff]
  %v365 = vld [vmem:[%s0 + $0xad0] sm:$0xff]
  %v366 = vld [vmem:[%s0 + $0xad8] sm:$0xff]
  %v367 = vld [vmem:[%s0 + $0xae0] sm:$0xff]
  %v368 = vld [vmem:[%s0 + $0xae8] sm:$0xff]
  %v369 = vld [vmem:[%s0 + $0xaf0] sm:$0xff]
  %v370 = vld [vmem:[%s0 + $0xaf8] sm:$0xff]
  %v371 = vld [vmem:[%s0 + $0xb00] sm:$0xff]
  %v372 = vld [vmem:[%s0 + $0xb08] sm:$0xff]
  %v373 = vld [vmem:[%s0 + $0xb10] sm:$0xff]
  %v374 = vld [vmem:[%s0 + $0xb18] sm:$0xff]
  %v375 = vld [vmem:[%s0 + $0xb20] sm:$0xff]
  %v376 = vld [vmem:[%s0 + $0xb28] sm:$0xff]
  %v377 = vld [vmem:[%s0 + $0xb30] sm:$0xff]
  %v378 = vld [vmem:[%s0 + $0xb38] sm:$0xff]
  %v379 = vld [vmem:[%s0 + $0xb40] sm:$0xff]
  %v380 = vld [vmem:[%s0 + $0xb48] sm:$0xff]
  %v381 = vld [vmem:[%s0 + $0xb50] sm:$0xff]
  %v382 = vld [vmem:[%s0 + $0xb58] sm:$0xff]
  %v383 = vld [vmem:[%s0 + $0xb60] sm:$0xff]
  %v384 = vld [vmem:[%s0 + $0xb68] sm:$0xff]
  %v385 = vld [vmem:[%s0 + $0xb70] sm:$0xff]
  %v386 = vld [vmem:[%s0 + $0xb78] sm:$0xff]
  %v387 = vld [vmem:[%s0 + $0xb80] sm:$0xff]
  %v388 = vld [vmem:[%s0 + $0xb88] sm:$0xff]
  %v389 = vld [vmem:[%s0 + $0xb90] sm:$0xff]
  %v390 = vld [vmem:[%s0 + $0xb98] sm:$0xff]
  %v391 = vld [vmem:[%s0 + $0xba0] sm:$0xff]
  %v392 = vld [vmem:[%s0 + $0xba8] sm:$0xff]
  %v393 = vld [vmem:[%s0 + $0xbb0] sm:$0xff]
  %v394 = vld [vmem:[%s0 + $0xbb8] sm:$0xff]
  %v395 = vld [vmem:[%s0 + $0xbc0] sm:$0xff]
  %v396 = vld [vmem:[%s0 + $0xbc8] sm:$0xff]
  %v397 = vld [vmem:[%s0 + $0xbd0] sm:$0xff]
  %v398 = vld [vmem:[%s0 + $0xbd8] sm:$0xff]
  %v399 = vld [vmem:[%s0 + $0xbe0] sm:$0xff]
  %v400 = vld [vmem:[%s0 + $0xbe8] sm:$0xff]
  %v401 = vld [vmem:[%s0 + $0xbf0] sm:$0xff]
  %v402 = vld [vmem:[%s0 + $0xbf8] sm:$0xff]
  %v403 = vld [vmem:[%s0 + $0xc00] sm:$0xff]
  %v404 = vld [vmem:[%s0 + $0xc08] sm:$0xff]
  %v405 = vld [vmem:[%s0 + $0xc10] sm:$0xff]
  %v406 = vld [vmem:[%s0 + $0xc18] sm:$0xff]
  %v407 = vld [vmem:[%s0 + $0xc20] sm:$0xff]
  %v408 = vld [vmem:[%s0 + $0xc28] sm:$0xff]
  %v409 = vld [vmem:[%s0 + $0xc30] sm:$0xff]
  %v410 = vld [vmem:[%s0 + $0xc38] sm:$0xff]
  %v411 = vld [vmem:[%s0 + $0xc40] sm:$0xff]
  %v412 = vld [vmem:[%s0 + $0xc48] sm:$0xff]
  %v413 = vld [vmem:[%s0 + $0xc50] sm:$0xff]
  %v414 = vld [vmem:[%s0 + $0xc58] sm:$0xff]
  %v415 = vld [vmem:[%s0 + $0xc60] sm:$0xff]
  %v416 = vld [vmem:[%s0 + $0xc68] sm:$0xff]
  %v417 = vld [vmem:[%s0 + $0xc70] sm:$0xff]
  %v418 = vld [vmem:[%s0 + $0xc78] sm:$0xff]
  %v419 = vld [vmem:[%s0 + $0xc80] sm:$0xff]
  %v420 = vld [vmem:[%s0 + $0xc88] sm:$0xff]
  %v421 = vld [vmem:[%s0 + $0xc90] sm:$0xff]
  %v422 = vld [vmem:[%s0 + $0xc98] sm:$0xff]
  %v423 = vld [vmem:[%s0 + $0xca0] sm:$0xff]
  %v424 = vld [vmem:[%s0 + $0xca8] sm:$0xff]
  %v425 = vld [vmem:[%s0 + $0xcb0] sm:$0xff]
  %v426 = vld [vmem:[%s0 + $0xcb8] sm:$0xff]
  %v427 = vld [vmem:[%s0 + $0xcc0] sm:$0xff]
  %v428 = vld [vmem:[%s0 + $0xcc8] sm:$0xff]
  %v429 = vld [vmem:[%s0 + $0xcd0] sm:$0xff]
  %v430 = vld [vmem:[%s0 + $0xcd8] sm:$0xff]
  %v431 = vld [vmem:[%s0 + $0xce0] sm:$0xff]
  %v432 = vld [vmem:[%s0 + $0xce8] sm:$0xff]
  %v433 = vld [vmem:[%s0 + $0xcf0] sm:$0xff]
  %v434 = vld [vmem:[%s0 + $0xcf8] sm:$0xff]
  %v435 = vld [vmem:[%s0 + $0xd00] sm:$0xff]
  %v436 = vld [vmem:[%s0 + $0xd08] sm:$0xff]
  %v437 = vld [vmem:[%s0 + $0xd10] sm:$0xff]
  %v438 = vld [vmem:[%s0 + $0xd18] sm:$0xff]
  %v439 = vld [vmem:[%s0 + $0xd20] sm:$0xff]
  %v440 = vld [vmem:[%s0 + $0xd28] sm:$0xff]
  %v441 = vld [vmem:[%s0 + $0xd30] sm:$0xff]
  %v442 = vld [vmem:[%s0 + $0xd38] sm:$0xff]
  %v443 = vld [vmem:[%s0 + $0xd40] sm:$0xff]
  %v444 = vld [vmem:[%s0 + $0xd48] sm:$0xff]
  %v445 = vld [vmem:[%s0 + $0xd50] sm:$0xff]
  %v446 = vld [vmem:[%s0 + $0xd58] sm:$0xff]
  %v447 = vld [vmem:[%s0 + $0xd60] sm:$0xff]
  %v448 = vld [vmem:[%s0 + $0xd68] sm:$0xff]
  %v449 = vld [vmem:[%s0 + $0xd70] sm:$0xff]
  %v450 = vld [vmem:[%s0 + $0xd78] sm:$0xff]
  %v451 = vld [vmem:[%s0 + $0xd80] sm:$0xff]
  %v452 = vld [vmem:[%s0 + $0xd88] sm:$0xff]
  %v453 = vld [vmem:[%s0 + $0xd90] sm:$0xff]
  %v454 = vld [vmem:[%s0 + $0xd98] sm:$0xff]
  %v455 = vld [vmem:[%s0 + $0xda0] sm:$0xff]
  %v456 = vld [vmem:[%s0 + $0xda8] sm:$0xff]
  %v457 = vld [vmem:[%s0 + $0xdb0] sm:$0xff]
  %v458 = vld [vmem:[%s0 + $0xdb8] sm:$0xff]
  %v459 = vld [vmem:[%s0 + $0xdc0] sm:$0xff]
  %v460 = vld [vmem:[%s0 + $0xdc8] sm:$0xff]
  %v461 = vld [vmem:[%s0 + $0xdd0] sm:$0xff]
  %v462 = vld [vmem:[%s0 + $0xdd8] sm:$0xff]
  %v463 = vld [vmem:[%s0 + $0xde0] sm:$0xff]
  %v464 = vld [vmem:[%s0 + $0xde8] sm:$0xff]
  %v465 = vld [vmem:[%s0 + $0xdf0] sm:$0xff]
  %v466 = vld [vmem:[%s0 + $0xdf8] sm:$0xff]
  %v467 = vld [vmem:[%s0 + $0xe00] sm:$0xff]
  %v468 = vld [vmem:[%s0 + $0xe08] sm:$0xff]
  %v469 = vld [vmem:[%s0 + $0xe10] sm:$0xff]
  %v470 = vld [vmem:[%s0 + $0xe18] sm:$0xff]
  %v471 = vld [vmem:[%s0 + $0xe20] sm:$0xff]
  %v472 = vld [vmem:[%s0 + $0xe28] sm:$0xff]
  %v473 = vld [vmem:[%s0 + $0xe30] sm:$0xff]
  %v474 = vld [vmem:[%s0 + $0xe38] sm:$0xff]
  %v475 = vld [vmem:[%s0 + $0xe40] sm:$0xff]
  %v476 = vld [vmem:[%s0 + $0xe48] sm:$0xff]
  %v477 = vld [vmem:[%s0 + $0xe50] sm:$0xff]
  %v478 = vld [vmem:[%s0 + $0xe58] sm:$0xff]
  %v479 = vld [vmem:[%s0 + $0xe60] sm:$0xff]
  %v480 = vld [vmem:[%s0 + $0xe68] sm:$0xff]
  %v481 = vld [vmem:[%s0 + $0xe70] sm:$0xff]
  %v482 = vld [vmem:[%s0 + $0xe78] sm:$0xff]
  %v483 = vld [vmem:[%s0 + $0xe80] sm:$0xff]
  %v484 = vld [vmem:[%s0 + $0xe88] sm:$0xff]
  %v485 = vld [vmem:[%s0 + $0xe90] sm:$0xff]
  %v486 = vld [vmem:[%s0 + $0xe98] sm:$0xff]
  %v487 = vld [vmem:[%s0 + $0xea0] sm:$0xff]
  %v488 = vld [vmem:[%s0 + $0xea8] sm:$0xff]
  %v489 = vld [vmem:[%s0 + $0xeb0] sm:$0xff]
  %v490 = vld [vmem:[%s0 + $0xeb8] sm:$0xff]
  %v491 = vld [vmem:[%s0 + $0xec0] sm:$0xff]
  %v492 = vld [vmem:[%s0 + $0xec8] sm:$0xff]
  %v493 = vld [vmem:[%s0 + $0xed0] sm:$0xff]
  %v494 = vld [vmem:[%s0 + $0xed8] sm:$0xff]
  %v495 = vld [vmem:[%s0 + $0xee0] sm:$0xff]
  %v496 = vld [vmem:[%s0 + $0xee8] sm:$0xff]
  %v497 = vld [vmem:[%s0 + $0xef0] sm:$0xff]
  %v498 = vld [vmem:[%s0 + $0xef8] sm:$0xff]
  %v499 = vld [vmem:[%s0 + $0xf00] sm:$0xff]
  %v500 = vld [vmem:[%s0 + $0xf08] sm:$0xff]
  %v501 = vld [vmem:[%s0 + $0xf10] sm:$0xff]
  %v502 = vld [vmem:[%s0 + $0xf18] sm:$0xff]
  %v503 = vld [vmem:[%s0 + $0xf20] sm:$0xff]
  %v504 = vld [vmem:[%s0 + $0xf28] sm:$0xff]
  %v505 = vld [vmem:[%s0 + $0xf30] sm:$0xff]
  %v506 = vld [vmem:[%s0 + $0xf38] sm:$0xff]
  %v507 = vld [vmem:[%s0 + $0xf40] sm:$0xff]
  %v508 = vld [vmem:[%s0 + $0xf48] sm:$0xff]
  %v509 = vld [vmem:[%s0 + $0xf50] sm:$0xff]
  %v510 = vld [vmem:[%s0 + $0xf58] sm:$0xff]
  %v511 = vld [vmem:[%s0 + $0xf60] sm:$0xff]
  %v512 = vld [vmem:[%s0 + $0xf68] sm:$0xff]
  %v513 = vld [vmem:[%s0 + $0xf70] sm:$0xff]
  %v514 = vld [vmem:[%s0 + $0xf78] sm:$0xff]
  %v515 = vld [vmem:[%s0 + $0xf80] sm:$0xff]
  %v516 = vld [vmem:[%s0 + $0xf88] sm:$0xff]
  %v517 = vld [vmem:[%s0 + $0xf90] sm:$0xff]
  %v518 = vld [vmem:[%s0 + $0xf98] sm:$0xff]
  %v519 = vld [vmem:[%s0 + $0xfa0] sm:$0xff]
  %v520 = vld [vmem:[%s0 + $0xfa8] sm:$0xff]
  %v521 = vld [vmem:[%s0 + $0xfb0] sm:$0xff]
  %v522 = vld [vmem:[%s0 + $0xfb8] sm:$0xff]
  %v523 = vld [vmem:[%s0 + $0xfc0] sm:$0xff]
  %v524 = vld [vmem:[%s0 + $0xfc8] sm:$0xff]
  %v525 = vld [vmem:[%s0 + $0xfd0] sm:$0xff]
  %v526 = vld [vmem:[%s0 + $0xfd8] sm:$0xff]
  %v527 = vld [vmem:[%s0 + $0xfe0] sm:$0xff]
  %v528 = vld [vmem:[%s0 + $0xfe8] sm:$0xff]
  %v529 = vld [vmem:[%s0 + $0xff0] sm:$0xff]
  %v530 = vld [vmem:[%s0 + $0xff8] sm:$0xff]
  %v531 = vld [vmem:[%s1] sm:$0xff]
  %v532 = vld [vmem:[%s1 + $0x8] sm:$0xff]
  %v533 = vld [vmem:[%s1 + $0x10] sm:$0xff]
  %v534 = vld [vmem:[%s1 + $0x18] sm:$0xff]
  %v535 = vld [vmem:[%s1 + $0x20] sm:$0xff]
  %v536 = vld [vmem:[%s1 + $0x28] sm:$0xff]
  %v537 = vld [vmem:[%s1 + $0x30] sm:$0xff]
  %v538 = vld [vmem:[%s1 + $0x38] sm:$0xff]
  %v539 = vld [vmem:[%s1 + $0x40] sm:$0xff]
  %v540 = vld [vmem:[%s1 + $0x48] sm:$0xff]
  %v541 = vld [vmem:[%s1 + $0x50] sm:$0xff]
  %v542 = vld [vmem:[%s1 + $0x58] sm:$0xff]
  %v543 = vld [vmem:[%s1 + $0x60] sm:$0xff]
  %v544 = vld [vmem:[%s1 + $0x68] sm:$0xff]
  %v545 = vld [vmem:[%s1 + $0x70] sm:$0xff]
  %v546 = vld [vmem:[%s1 + $0x78] sm:$0xff]
  %v547 = vld [vmem:[%s1 + $0x80] sm:$0xff]
  %v548 = vld [vmem:[%s1 + $0x88] sm:$0xff]
  %v549 = vld [vmem:[%s1 + $0x90] sm:$0xff]
  %v550 = vld [vmem:[%s1 + $0x98] sm:$0xff]
  %v551 = vld [vmem:[%s1 + $0xa0] sm:$0xff]
  %v552 = vld [vmem:[%s1 + $0xa8] sm:$0xff]
  %v553 = vld [vmem:[%s1 + $0xb0] sm:$0xff]
  %v554 = vld [vmem:[%s1 + $0xb8] sm:$0xff]
  %v555 = vld [vmem:[%s1 + $0xc0] sm:$0xff]
  %v556 = vld [vmem:[%s1 + $0xc8] sm:$0xff]
  %v557 = vld [vmem:[%s1 + $0xd0] sm:$0xff]
  %v558 = vld [vmem:[%s1 + $0xd8] sm:$0xff]
  %v559 = vld [vmem:[%s1 + $0xe0] sm:$0xff]
  %v560 = vld [vmem:[%s1 + $0xe8] sm:$0xff]
  %v561 = vld [vmem:[%s1 + $0xf0] sm:$0xff]
  %v562 = vld [vmem:[%s1 + $0xf8] sm:$0xff]
  %v563 = vld [vmem:[%s1 + $0x100] sm:$0xff]
  %v564 = vld [vmem:[%s1 + $0x108] sm:$0xff]
  %v565 = vld [vmem:[%s1 + $0x110] sm:$0xff]
  %v566 = vld [vmem:[%s1 + $0x118] sm:$0xff]
  %v567 = vld [vmem:[%s1 + $0x120] sm:$0xff]
  %v568 = vld [vmem:[%s1 + $0x128] sm:$0xff]
  %v569 = vld [vmem:[%s1 + $0x130] sm:$0xff]
  %v570 = vld [vmem:[%s1 + $0x138] sm:$0xff]
  %v571 = vld [vmem:[%s1 + $0x140] sm:$0xff]
  %v572 = vld [vmem:[%s1 + $0x148] sm:$0xff]
  %v573 = vld [vmem:[%s1 + $0x150] sm:$0xff]
  %v574 = vld [vmem:[%s1 + $0x158] sm:$0xff]
  %v575 = vld [vmem:[%s1 + $0x160] sm:$0xff]
  %v576 = vld [vmem:[%s1 + $0x168] sm:$0xff]
  %v577 = vld [vmem:[%s1 + $0x170] sm:$0xff]
  %v578 = vld [vmem:[%s1 + $0x178] sm:$0xff]
  %v579 = vld [vmem:[%s1 + $0x180] sm:$0xff]
  %v580 = vld [vmem:[%s1 + $0x188] sm:$0xff]
  %v581 = vld [vmem:[%s1 + $0x190] sm:$0xff]
  %v582 = vld [vmem:[%s1 + $0x198] sm:$0xff]
  %v583 = vld [vmem:[%s1 + $0x1a0] sm:$0xff]
  %v584 = vld [vmem:[%s1 + $0x1a8] sm:$0xff]
  %v585 = vld [vmem:[%s1 + $0x1b0] sm:$0xff]
  %v586 = vld [vmem:[%s1 + $0x1b8] sm:$0xff]
  %v587 = vld [vmem:[%s1 + $0x1c0] sm:$0xff]
  %v588 = vld [vmem:[%s1 + $0x1c8] sm:$0xff]
  %v589 = vld [vmem:[%s1 + $0x1d0] sm:$0xff]
  %v590 = vld [vmem:[%s1 + $0x1d8] sm:$0xff]
  %v591 = vld [vmem:[%s1 + $0x1e0] sm:$0xff]
  %v592 = vld [vmem:[%s1 + $0x1e8] sm:$0xff]
  %v593 = vld [vmem:[%s1 + $0x1f0] sm:$0xff]
  %v594 = vld [vmem:[%s1 + $0x1f8] sm:$0xff]
  %v595 = vld [vmem:[%s1 + $0x200] sm:$0xff]
  %v596 = vld [vmem:[%s1 + $0x208] sm:$0xff]
  %v597 = vld [vmem:[%s1 + $0x210] sm:$0xff]
  %v598 = vld [vmem:[%s1 + $0x218] sm:$0xff]
  %v599 = vld [vmem:[%s1 + $0x220] sm:$0xff]
  %v600 = vld [vmem:[%s1 + $0x228] sm:$0xff]
  %v601 = vld [vmem:[%s1 + $0x230] sm:$0xff]
  %v602 = vld [vmem:[%s1 + $0x238] sm:$0xff]
  %v603 = vld [vmem:[%s1 + $0x240] sm:$0xff]
  %v604 = vld [vmem:[%s1 + $0x248] sm:$0xff]
  %v605 = vld [vmem:[%s1 + $0x250] sm:$0xff]
  %v606 = vld [vmem:[%s1 + $0x258] sm:$0xff]
  %v607 = vld [vmem:[%s1 + $0x260] sm:$0xff]
  %v608 = vld [vmem:[%s1 + $0x268] sm:$0xff]
  %v609 = vld [vmem:[%s1 + $0x270] sm:$0xff]
  %v610 = vld [vmem:[%s1 + $0x278] sm:$0xff]
  %v611 = vld [vmem:[%s1 + $0x280] sm:$0xff]
  %v612 = vld [vmem:[%s1 + $0x288] sm:$0xff]
  %v613 = vld [vmem:[%s1 + $0x290] sm:$0xff]
  %v614 = vld [vmem:[%s1 + $0x298] sm:$0xff]
  %v615 = vld [vmem:[%s1 + $0x2a0] sm:$0xff]
  %v616 = vld [vmem:[%s1 + $0x2a8] sm:$0xff]
  %v617 = vld [vmem:[%s1 + $0x2b0] sm:$0xff]
  %v618 = vld [vmem:[%s1 + $0x2b8] sm:$0xff]
  %v619 = vld [vmem:[%s1 + $0x2c0] sm:$0xff]
  %v620 = vld [vmem:[%s1 + $0x2c8] sm:$0xff]
  %v621 = vld [vmem:[%s1 + $0x2d0] sm:$0xff]
  %v622 = vld [vmem:[%s1 + $0x2d8] sm:$0xff]
  %v623 = vld [vmem:[%s1 + $0x2e0] sm:$0xff]
  %v624 = vld [vmem:[%s1 + $0x2e8] sm:$0xff]
  %v625 = vld [vmem:[%s1 + $0x2f0] sm:$0xff]
  %v626 = vld [vmem:[%s1 + $0x2f8] sm:$0xff]
  %v627 = vld [vmem:[%s1 + $0x300] sm:$0xff]
  %v628 = vld [vmem:[%s1 + $0x308] sm:$0xff]
  %v629 = vld [vmem:[%s1 + $0x310] sm:$0xff]
  %v630 = vld [vmem:[%s1 + $0x318] sm:$0xff]
  %v631 = vld [vmem:[%s1 + $0x320] sm:$0xff]
  %v632 = vld [vmem:[%s1 + $0x328] sm:$0xff]
  %v633 = vld [vmem:[%s1 + $0x330] sm:$0xff]
  %v634 = vld [vmem:[%s1 + $0x338] sm:$0xff]
  %v635 = vld [vmem:[%s1 + $0x340] sm:$0xff]
  %v636 = vld [vmem:[%s1 + $0x348] sm:$0xff]
  %v637 = vld [vmem:[%s1 + $0x350] sm:$0xff]
  %v638 = vld [vmem:[%s1 + $0x358] sm:$0xff]
  %v639 = vld [vmem:[%s1 + $0x360] sm:$0xff]
  %v640 = vld [vmem:[%s1 + $0x368] sm:$0xff]
  %v641 = vld [vmem:[%s1 + $0x370] sm:$0xff]
  %v642 = vld [vmem:[%s1 + $0x378] sm:$0xff]
  %v643 = vld [vmem:[%s1 + $0x380] sm:$0xff]
  %v644 = vld [vmem:[%s1 + $0x388] sm:$0xff]
  %v645 = vld [vmem:[%s1 + $0x390] sm:$0xff]
  %v646 = vld [vmem:[%s1 + $0x398] sm:$0xff]
  %v647 = vld [vmem:[%s1 + $0x3a0] sm:$0xff]
  %v648 = vld [vmem:[%s1 + $0x3a8] sm:$0xff]
  %v649 = vld [vmem:[%s1 + $0x3b0] sm:$0xff]
  %v650 = vld [vmem:[%s1 + $0x3b8] sm:$0xff]
  %v651 = vld [vmem:[%s1 + $0x3c0] sm:$0xff]
  %v652 = vld [vmem:[%s1 + $0x3c8] sm:$0xff]
  %v653 = vld [vmem:[%s1 + $0x3d0] sm:$0xff]
  %v654 = vld [vmem:[%s1 + $0x3d8] sm:$0xff]
  %v655 = vld [vmem:[%s1 + $0x3e0] sm:$0xff]
  %v656 = vld [vmem:[%s1 + $0x3e8] sm:$0xff]
  %v657 = vld [vmem:[%s1 + $0x3f0] sm:$0xff]
  %v658 = vld [vmem:[%s1 + $0x3f8] sm:$0xff]
  %v659 = vld [vmem:[%s1 + $0x400] sm:$0xff]
  %v660 = vld [vmem:[%s1 + $0x408] sm:$0xff]
  %v661 = vld [vmem:[%s1 + $0x410] sm:$0xff]
  %v662 = vld [vmem:[%s1 + $0x418] sm:$0xff]
  %v663 = vld [vmem:[%s1 + $0x420] sm:$0xff]
  %v664 = vld [vmem:[%s1 + $0x428] sm:$0xff]
  %v665 = vld [vmem:[%s1 + $0x430] sm:$0xff]
  %v666 = vld [vmem:[%s1 + $0x438] sm:$0xff]
  %v667 = vld [vmem:[%s1 + $0x440] sm:$0xff]
  %v668 = vld [vmem:[%s1 + $0x448] sm:$0xff]
  %v669 = vld [vmem:[%s1 + $0x450] sm:$0xff]
  %v670 = vld [vmem:[%s1 + $0x458] sm:$0xff]
  %v671 = vld [vmem:[%s1 + $0x460] sm:$0xff]
  %v672 = vld [vmem:[%s1 + $0x468] sm:$0xff]
  %v673 = vld [vmem:[%s1 + $0x470] sm:$0xff]
  %v674 = vld [vmem:[%s1 + $0x478] sm:$0xff]
  %v675 = vld [vmem:[%s1 + $0x480] sm:$0xff]
  %v676 = vld [vmem:[%s1 + $0x488] sm:$0xff]
  %v677 = vld [vmem:[%s1 + $0x490] sm:$0xff]
  %v678 = vld [vmem:[%s1 + $0x498] sm:$0xff]
  %v679 = vld [vmem:[%s1 + $0x4a0] sm:$0xff]
  %v680 = vld [vmem:[%s1 + $0x4a8] sm:$0xff]
  %v681 = vld [vmem:[%s1 + $0x4b0] sm:$0xff]
  %v682 = vld [vmem:[%s1 + $0x4b8] sm:$0xff]
  %v683 = vld [vmem:[%s1 + $0x4c0] sm:$0xff]
  %v684 = vld [vmem:[%s1 + $0x4c8] sm:$0xff]
  %v685 = vld [vmem:[%s1 + $0x4d0] sm:$0xff]
  %v686 = vld [vmem:[%s1 + $0x4d8] sm:$0xff]
  %v687 = vld [vmem:[%s1 + $0x4e0] sm:$0xff]
  %v688 = vld [vmem:[%s1 + $0x4e8] sm:$0xff]
  %v689 = vld [vmem:[%s1 + $0x4f0] sm:$0xff]
  %v690 = vld [vmem:[%s1 + $0x4f8] sm:$0xff]
  %v691 = vld [vmem:[%s1 + $0x500] sm:$0xff]
  %v692 = vld [vmem:[%s1 + $0x508] sm:$0xff]
  %v693 = vld [vmem:[%s1 + $0x510] sm:$0xff]
  %v694 = vld [vmem:[%s1 + $0x518] sm:$0xff]
  %v695 = vld [vmem:[%s1 + $0x520] sm:$0xff]
  %v696 = vld [vmem:[%s1 + $0x528] sm:$0xff]
  %v697 = vld [vmem:[%s1 + $0x530] sm:$0xff]
  %v698 = vld [vmem:[%s1 + $0x538] sm:$0xff]
  %v699 = vld [vmem:[%s1 + $0x540] sm:$0xff]
  %v700 = vld [vmem:[%s1 + $0x548] sm:$0xff]
  %v701 = vld [vmem:[%s1 + $0x550] sm:$0xff]
  %v702 = vld [vmem:[%s1 + $0x558] sm:$0xff]
  %v703 = vld [vmem:[%s1 + $0x560] sm:$0xff]
  %v704 = vld [vmem:[%s1 + $0x568] sm:$0xff]
  %v705 = vld [vmem:[%s1 + $0x570] sm:$0xff]
  %v706 = vld [vmem:[%s1 + $0x578] sm:$0xff]
  %v707 = vld [vmem:[%s1 + $0x580] sm:$0xff]
  %v708 = vld [vmem:[%s1 + $0x588] sm:$0xff]
  %v709 = vld [vmem:[%s1 + $0x590] sm:$0xff]
  %v710 = vld [vmem:[%s1 + $0x598] sm:$0xff]
  %v711 = vld [vmem:[%s1 + $0x5a0] sm:$0xff]
  %v712 = vld [vmem:[%s1 + $0x5a8] sm:$0xff]
  %v713 = vld [vmem:[%s1 + $0x5b0] sm:$0xff]
  %v714 = vld [vmem:[%s1 + $0x5b8] sm:$0xff]
  %v715 = vld [vmem:[%s1 + $0x5c0] sm:$0xff]
  %v716 = vld [vmem:[%s1 + $0x5c8] sm:$0xff]
  %v717 = vld [vmem:[%s1 + $0x5d0] sm:$0xff]
  %v718 = vld [vmem:[%s1 + $0x5d8] sm:$0xff]
  %v719 = vld [vmem:[%s1 + $0x5e0] sm:$0xff]
  %v720 = vld [vmem:[%s1 + $0x5e8] sm:$0xff]
  %v721 = vld [vmem:[%s1 + $0x5f0] sm:$0xff]
  %v722 = vld [vmem:[%s1 + $0x5f8] sm:$0xff]
  %v723 = vld [vmem:[%s1 + $0x600] sm:$0xff]
  %v724 = vld [vmem:[%s1 + $0x608] sm:$0xff]
  %v725 = vld [vmem:[%s1 + $0x610] sm:$0xff]
  %v726 = vld [vmem:[%s1 + $0x618] sm:$0xff]
  %v727 = vld [vmem:[%s1 + $0x620] sm:$0xff]
  %v728 = vld [vmem:[%s1 + $0x628] sm:$0xff]
  %v729 = vld [vmem:[%s1 + $0x630] sm:$0xff]
  %v730 = vld [vmem:[%s1 + $0x638] sm:$0xff]
  %v731 = vld [vmem:[%s1 + $0x640] sm:$0xff]
  %v732 = vld [vmem:[%s1 + $0x648] sm:$0xff]
  %v733 = vld [vmem:[%s1 + $0x650] sm:$0xff]
  %v734 = vld [vmem:[%s1 + $0x658] sm:$0xff]
  %v735 = vld [vmem:[%s1 + $0x660] sm:$0xff]
  %v736 = vld [vmem:[%s1 + $0x668] sm:$0xff]
  %v737 = vld [vmem:[%s1 + $0x670] sm:$0xff]
  %v738 = vld [vmem:[%s1 + $0x678] sm:$0xff]
  %v739 = vld [vmem:[%s1 + $0x680] sm:$0xff]
  %v740 = vld [vmem:[%s1 + $0x688] sm:$0xff]
  %v741 = vld [vmem:[%s1 + $0x690] sm:$0xff]
  %v742 = vld [vmem:[%s1 + $0x698] sm:$0xff]
  %v743 = vld [vmem:[%s1 + $0x6a0] sm:$0xff]
  %v744 = vld [vmem:[%s1 + $0x6a8] sm:$0xff]
  %v745 = vld [vmem:[%s1 + $0x6b0] sm:$0xff]
  %v746 = vld [vmem:[%s1 + $0x6b8] sm:$0xff]
  %v747 = vld [vmem:[%s1 + $0x6c0] sm:$0xff]
  %v748 = vld [vmem:[%s1 + $0x6c8] sm:$0xff]
  %v749 = vld [vmem:[%s1 + $0x6d0] sm:$0xff]
  %v750 = vld [vmem:[%s1 + $0x6d8] sm:$0xff]
  %v751 = vld [vmem:[%s1 + $0x6e0] sm:$0xff]
  %v752 = vld [vmem:[%s1 + $0x6e8] sm:$0xff]
  %v753 = vld [vmem:[%s1 + $0x6f0] sm:$0xff]
  %v754 = vld [vmem:[%s1 + $0x6f8] sm:$0xff]
  %v755 = vld [vmem:[%s1 + $0x700] sm:$0xff]
  %v756 = vld [vmem:[%s1 + $0x708] sm:$0xff]
  %v757 = vld [vmem:[%s1 + $0x710] sm:$0xff]
  %v758 = vld [vmem:[%s1 + $0x718] sm:$0xff]
  %v759 = vld [vmem:[%s1 + $0x720] sm:$0xff]
  %v760 = vld [vmem:[%s1 + $0x728] sm:$0xff]
  %v761 = vld [vmem:[%s1 + $0x730] sm:$0xff]
  %v762 = vld [vmem:[%s1 + $0x738] sm:$0xff]
  %v763 = vld [vmem:[%s1 + $0x740] sm:$0xff]
  %v764 = vld [vmem:[%s1 + $0x748] sm:$0xff]
  %v765 = vld [vmem:[%s1 + $0x750] sm:$0xff]
  %v766 = vld [vmem:[%s1 + $0x758] sm:$0xff]
  %v767 = vld [vmem:[%s1 + $0x760] sm:$0xff]
  %v768 = vld [vmem:[%s1 + $0x768] sm:$0xff]
  %v769 = vld [vmem:[%s1 + $0x770] sm:$0xff]
  %v770 = vld [vmem:[%s1 + $0x778] sm:$0xff]
  %v771 = vld [vmem:[%s1 + $0x780] sm:$0xff]
  %v772 = vld [vmem:[%s1 + $0x788] sm:$0xff]
  %v773 = vld [vmem:[%s1 + $0x790] sm:$0xff]
  %v774 = vld [vmem:[%s1 + $0x798] sm:$0xff]
  %v775 = vld [vmem:[%s1 + $0x7a0] sm:$0xff]
  %v776 = vld [vmem:[%s1 + $0x7a8] sm:$0xff]
  %v777 = vld [vmem:[%s1 + $0x7b0] sm:$0xff]
  %v778 = vld [vmem:[%s1 + $0x7b8] sm:$0xff]
  %v779 = vld [vmem:[%s1 + $0x7c0] sm:$0xff]
  %v780 = vld [vmem:[%s1 + $0x7c8] sm:$0xff]
  %v781 = vld [vmem:[%s1 + $0x7d0] sm:$0xff]
  %v782 = vld [vmem:[%s1 + $0x7d8] sm:$0xff]
  %v783 = vld [vmem:[%s1 + $0x7e0] sm:$0xff]
  %v784 = vld [vmem:[%s1 + $0x7e8] sm:$0xff]
  %v785 = vld [vmem:[%s1 + $0x7f0] sm:$0xff]
  %v786 = vld [vmem:[%s1 + $0x7f8] sm:$0xff]
  %v787 = vmax.f32 %v19, %v20
  %788 = vmax.xlane.f32.xlu0 %v787
  %v789 = vpop.xlane.xlu0 %788
  %v790 = vmax.f32 %v21, %v22
  %791 = vmax.xlane.f32.xlu0 %v790
  %v792 = vpop.xlane.xlu0 %791
  %v793 = vmax.f32 %v23, %v24
  %794 = vmax.xlane.f32.xlu0 %v793
  %v795 = vpop.xlane.xlu0 %794
  %v796 = vmax.f32 %v25, %v26
  %797 = vmax.xlane.f32.xlu0 %v796
  %v798 = vpop.xlane.xlu0 %797
  %v799 = vmax.f32 %v27, %v28
  %800 = vmax.xlane.f32.xlu0 %v799
  %v801 = vpop.xlane.xlu0 %800
  %v802 = vmax.f32 %v29, %v30
  %803 = vmax.xlane.f32.xlu0 %v802
  %v804 = vpop.xlane.xlu0 %803
  %v805 = vmax.f32 %v31, %v32
  %806 = vmax.xlane.f32.xlu0 %v805
  %v807 = vpop.xlane.xlu0 %806
  %v808 = vmax.f32 %v33, %v34
  %809 = vmax.xlane.f32.xlu0 %v808
  %v810 = vpop.xlane.xlu0 %809
  %v811 = vmax.f32 %v35, %v36
  %812 = vmax.xlane.f32.xlu0 %v811
  %v813 = vpop.xlane.xlu0 %812
  %v814 = vmax.f32 %v37, %v38
  %815 = vmax.xlane.f32.xlu0 %v814
  %v816 = vpop.xlane.xlu0 %815
  %v817 = vmax.f32 %v39, %v40
  %818 = vmax.xlane.f32.xlu0 %v817
  %v819 = vpop.xlane.xlu0 %818
  %v820 = vmax.f32 %v41, %v42
  %821 = vmax.xlane.f32.xlu0 %v820
  %v822 = vpop.xlane.xlu0 %821
  %v823 = vmax.f32 %v43, %v44
  %824 = vmax.xlane.f32.xlu0 %v823
  %v825 = vpop.xlane.xlu0 %824
  %v826 = vmax.f32 %v45, %v46
  %827 = vmax.xlane.f32.xlu0 %v826
  %v828 = vpop.xlane.xlu0 %827
  %v829 = vmax.f32 %v47, %v48
  %830 = vmax.xlane.f32.xlu0 %v829
  %v831 = vpop.xlane.xlu0 %830
  %v832 = vmax.f32 %v49, %v50
  %833 = vmax.xlane.f32.xlu0 %v832
  %v834 = vpop.xlane.xlu0 %833
  %v835 = vmax.f32 %v51, %v52
  %836 = vmax.xlane.f32.xlu0 %v835
  %v837 = vpop.xlane.xlu0 %836
  %v838 = vmax.f32 %v53, %v54
  %839 = vmax.xlane.f32.xlu0 %v838
  %v840 = vpop.xlane.xlu0 %839
  %v841 = vmax.f32 %v55, %v56
  %842 = vmax.xlane.f32.xlu0 %v841
  %v843 = vpop.xlane.xlu0 %842
  %v844 = vmax.f32 %v57, %v58
  %845 = vmax.xlane.f32.xlu0 %v844
  %v846 = vpop.xlane.xlu0 %845
  %v847 = vmax.f32 %v59, %v60
  %848 = vmax.xlane.f32.xlu0 %v847
  %v849 = vpop.xlane.xlu0 %848
  %v850 = vmax.f32 %v61, %v62
  %851 = vmax.xlane.f32.xlu0 %v850
  %v852 = vpop.xlane.xlu0 %851
  %v853 = vmax.f32 %v63, %v64
  %854 = vmax.xlane.f32.xlu0 %v853
  %v855 = vpop.xlane.xlu0 %854
  %v856 = vmax.f32 %v65, %v66
  %857 = vmax.xlane.f32.xlu0 %v856
  %v858 = vpop.xlane.xlu0 %857
  %v859 = vmax.f32 %v67, %v68
  %860 = vmax.xlane.f32.xlu0 %v859
  %v861 = vpop.xlane.xlu0 %860
  %v862 = vmax.f32 %v69, %v70
  %863 = vmax.xlane.f32.xlu0 %v862
  %v864 = vpop.xlane.xlu0 %863
  %v865 = vmax.f32 %v71, %v72
  %866 = vmax.xlane.f32.xlu0 %v865
  %v867 = vpop.xlane.xlu0 %866
  %v868 = vmax.f32 %v73, %v74
  %869 = vmax.xlane.f32.xlu0 %v868
  %v870 = vpop.xlane.xlu0 %869
  %v871 = vmax.f32 %v75, %v76
  %872 = vmax.xlane.f32.xlu0 %v871
  %v873 = vpop.xlane.xlu0 %872
  %v874 = vmax.f32 %v77, %v78
  %875 = vmax.xlane.f32.xlu0 %v874
  %v876 = vpop.xlane.xlu0 %875
  %v877 = vmax.f32 %v79, %v80
  %878 = vmax.xlane.f32.xlu0 %v877
  %v879 = vpop.xlane.xlu0 %878
  %v880 = vmax.f32 %v81, %v82
  %881 = vmax.xlane.f32.xlu0 %v880
  %v882 = vpop.xlane.xlu0 %881
  %v883 = vmax.f32 %v83, %v84
  %884 = vmax.xlane.f32.xlu0 %v883
  %v885 = vpop.xlane.xlu0 %884
  %v886 = vmax.f32 %v85, %v86
  %887 = vmax.xlane.f32.xlu0 %v886
  %v888 = vpop.xlane.xlu0 %887
  %v889 = vmax.f32 %v87, %v88
  %890 = vmax.xlane.f32.xlu0 %v889
  %v891 = vpop.xlane.xlu0 %890
  %v892 = vmax.f32 %v89, %v90
  %893 = vmax.xlane.f32.xlu0 %v892
  %v894 = vpop.xlane.xlu0 %893
  %v895 = vmax.f32 %v91, %v92
  %896 = vmax.xlane.f32.xlu0 %v895
  %v897 = vpop.xlane.xlu0 %896
  %v898 = vmax.f32 %v93, %v94
  %899 = vmax.xlane.f32.xlu0 %v898
  %v900 = vpop.xlane.xlu0 %899
  %v901 = vmax.f32 %v95, %v96
  %902 = vmax.xlane.f32.xlu0 %v901
  %v903 = vpop.xlane.xlu0 %902
  %v904 = vmax.f32 %v97, %v98
  %905 = vmax.xlane.f32.xlu0 %v904
  %v906 = vpop.xlane.xlu0 %905
  %v907 = vmax.f32 %v99, %v100
  %908 = vmax.xlane.f32.xlu0 %v907
  %v909 = vpop.xlane.xlu0 %908
  %v910 = vmax.f32 %v101, %v102
  %911 = vmax.xlane.f32.xlu0 %v910
  %v912 = vpop.xlane.xlu0 %911
  %v913 = vmax.f32 %v103, %v104
  %914 = vmax.xlane.f32.xlu0 %v913
  %v915 = vpop.xlane.xlu0 %914
  %v916 = vmax.f32 %v105, %v106
  %917 = vmax.xlane.f32.xlu0 %v916
  %v918 = vpop.xlane.xlu0 %917
  %v919 = vmax.f32 %v107, %v108
  %920 = vmax.xlane.f32.xlu0 %v919
  %v921 = vpop.xlane.xlu0 %920
  %v922 = vmax.f32 %v109, %v110
  %923 = vmax.xlane.f32.xlu0 %v922
  %v924 = vpop.xlane.xlu0 %923
  %v925 = vmax.f32 %v111, %v112
  %926 = vmax.xlane.f32.xlu0 %v925
  %v927 = vpop.xlane.xlu0 %926
  %v928 = vmax.f32 %v113, %v114
  %929 = vmax.xlane.f32.xlu0 %v928
  %v930 = vpop.xlane.xlu0 %929
  %v931 = vmax.f32 %v115, %v116
  %932 = vmax.xlane.f32.xlu0 %v931
  %v933 = vpop.xlane.xlu0 %932
  %v934 = vmax.f32 %v117, %v118
  %935 = vmax.xlane.f32.xlu0 %v934
  %v936 = vpop.xlane.xlu0 %935
  %v937 = vmax.f32 %v119, %v120
  %938 = vmax.xlane.f32.xlu0 %v937
  %v939 = vpop.xlane.xlu0 %938
  %v940 = vmax.f32 %v121, %v122
  %941 = vmax.xlane.f32.xlu0 %v940
  %v942 = vpop.xlane.xlu0 %941
  %v943 = vmax.f32 %v123, %v124
  %944 = vmax.xlane.f32.xlu0 %v943
  %v945 = vpop.xlane.xlu0 %944
  %v946 = vmax.f32 %v125, %v126
  %947 = vmax.xlane.f32.xlu0 %v946
  %v948 = vpop.xlane.xlu0 %947
  %v949 = vmax.f32 %v127, %v128
  %950 = vmax.xlane.f32.xlu0 %v949
  %v951 = vpop.xlane.xlu0 %950
  %v952 = vmax.f32 %v129, %v130
  %953 = vmax.xlane.f32.xlu0 %v952
  %v954 = vpop.xlane.xlu0 %953
  %v955 = vmax.f32 %v131, %v132
  %956 = vmax.xlane.f32.xlu0 %v955
  %v957 = vpop.xlane.xlu0 %956
  %v958 = vmax.f32 %v133, %v134
  %959 = vmax.xlane.f32.xlu0 %v958
  %v960 = vpop.xlane.xlu0 %959
  %v961 = vmax.f32 %v135, %v136
  %962 = vmax.xlane.f32.xlu0 %v961
  %v963 = vpop.xlane.xlu0 %962
  %v964 = vmax.f32 %v137, %v138
  %965 = vmax.xlane.f32.xlu0 %v964
  %v966 = vpop.xlane.xlu0 %965
  %v967 = vmax.f32 %v139, %v140
  %968 = vmax.xlane.f32.xlu0 %v967
  %v969 = vpop.xlane.xlu0 %968
  %v970 = vmax.f32 %v141, %v142
  %971 = vmax.xlane.f32.xlu0 %v970
  %v972 = vpop.xlane.xlu0 %971
  %v973 = vmax.f32 %v143, %v144
  %974 = vmax.xlane.f32.xlu0 %v973
  %v975 = vpop.xlane.xlu0 %974
  %v976 = vmax.f32 %v145, %v146
  %977 = vmax.xlane.f32.xlu0 %v976
  %v978 = vpop.xlane.xlu0 %977
  %v979 = vmax.f32 %v147, %v148
  %980 = vmax.xlane.f32.xlu0 %v979
  %v981 = vpop.xlane.xlu0 %980
  %v982 = vmax.f32 %v149, %v150
  %983 = vmax.xlane.f32.xlu0 %v982
  %v984 = vpop.xlane.xlu0 %983
  %v985 = vmax.f32 %v151, %v152
  %986 = vmax.xlane.f32.xlu0 %v985
  %v987 = vpop.xlane.xlu0 %986
  %v988 = vmax.f32 %v153, %v154
  %989 = vmax.xlane.f32.xlu0 %v988
  %v990 = vpop.xlane.xlu0 %989
  %v991 = vmax.f32 %v155, %v156
  %992 = vmax.xlane.f32.xlu0 %v991
  %v993 = vpop.xlane.xlu0 %992
  %v994 = vmax.f32 %v157, %v158
  %995 = vmax.xlane.f32.xlu0 %v994
  %v996 = vpop.xlane.xlu0 %995
  %v997 = vmax.f32 %v159, %v160
  %998 = vmax.xlane.f32.xlu0 %v997
  %v999 = vpop.xlane.xlu0 %998
  %v1000 = vmax.f32 %v161, %v162
  %1001 = vmax.xlane.f32.xlu0 %v1000
  %v1002 = vpop.xlane.xlu0 %1001
  %v1003 = vmax.f32 %v163, %v164
  %1004 = vmax.xlane.f32.xlu0 %v1003
  %v1005 = vpop.xlane.xlu0 %1004
  %v1006 = vmax.f32 %v165, %v166
  %1007 = vmax.xlane.f32.xlu0 %v1006
  %v1008 = vpop.xlane.xlu0 %1007
  %v1009 = vmax.f32 %v167, %v168
  %1010 = vmax.xlane.f32.xlu0 %v1009
  %v1011 = vpop.xlane.xlu0 %1010
  %v1012 = vmax.f32 %v169, %v170
  %1013 = vmax.xlane.f32.xlu0 %v1012
  %v1014 = vpop.xlane.xlu0 %1013
  %v1015 = vmax.f32 %v171, %v172
  %1016 = vmax.xlane.f32.xlu0 %v1015
  %v1017 = vpop.xlane.xlu0 %1016
  %v1018 = vmax.f32 %v173, %v174
  %1019 = vmax.xlane.f32.xlu0 %v1018
  %v1020 = vpop.xlane.xlu0 %1019
  %v1021 = vmax.f32 %v175, %v176
  %1022 = vmax.xlane.f32.xlu0 %v1021
  %v1023 = vpop.xlane.xlu0 %1022
  %v1024 = vmax.f32 %v177, %v178
  %1025 = vmax.xlane.f32.xlu0 %v1024
  %v1026 = vpop.xlane.xlu0 %1025
  %v1027 = vmax.f32 %v179, %v180
  %1028 = vmax.xlane.f32.xlu0 %v1027
  %v1029 = vpop.xlane.xlu0 %1028
  %v1030 = vmax.f32 %v181, %v182
  %1031 = vmax.xlane.f32.xlu0 %v1030
  %v1032 = vpop.xlane.xlu0 %1031
  %v1033 = vmax.f32 %v183, %v184
  %1034 = vmax.xlane.f32.xlu0 %v1033
  %v1035 = vpop.xlane.xlu0 %1034
  %v1036 = vmax.f32 %v185, %v186
  %1037 = vmax.xlane.f32.xlu0 %v1036
  %v1038 = vpop.xlane.xlu0 %1037
  %v1039 = vmax.f32 %v187, %v188
  %1040 = vmax.xlane.f32.xlu0 %v1039
  %v1041 = vpop.xlane.xlu0 %1040
  %v1042 = vmax.f32 %v189, %v190
  %1043 = vmax.xlane.f32.xlu0 %v1042
  %v1044 = vpop.xlane.xlu0 %1043
  %v1045 = vmax.f32 %v191, %v192
  %1046 = vmax.xlane.f32.xlu0 %v1045
  %v1047 = vpop.xlane.xlu0 %1046
  %v1048 = vmax.f32 %v193, %v194
  %1049 = vmax.xlane.f32.xlu0 %v1048
  %v1050 = vpop.xlane.xlu0 %1049
  %v1051 = vmax.f32 %v195, %v196
  %1052 = vmax.xlane.f32.xlu0 %v1051
  %v1053 = vpop.xlane.xlu0 %1052
  %v1054 = vmax.f32 %v197, %v198
  %1055 = vmax.xlane.f32.xlu0 %v1054
  %v1056 = vpop.xlane.xlu0 %1055
  %v1057 = vmax.f32 %v199, %v200
  %1058 = vmax.xlane.f32.xlu0 %v1057
  %v1059 = vpop.xlane.xlu0 %1058
  %v1060 = vmax.f32 %v201, %v202
  %1061 = vmax.xlane.f32.xlu0 %v1060
  %v1062 = vpop.xlane.xlu0 %1061
  %v1063 = vmax.f32 %v203, %v204
  %1064 = vmax.xlane.f32.xlu0 %v1063
  %v1065 = vpop.xlane.xlu0 %1064
  %v1066 = vmax.f32 %v205, %v206
  %1067 = vmax.xlane.f32.xlu0 %v1066
  %v1068 = vpop.xlane.xlu0 %1067
  %v1069 = vmax.f32 %v207, %v208
  %1070 = vmax.xlane.f32.xlu0 %v1069
  %v1071 = vpop.xlane.xlu0 %1070
  %v1072 = vmax.f32 %v209, %v210
  %1073 = vmax.xlane.f32.xlu0 %v1072
  %v1074 = vpop.xlane.xlu0 %1073
  %v1075 = vmax.f32 %v211, %v212
  %1076 = vmax.xlane.f32.xlu0 %v1075
  %v1077 = vpop.xlane.xlu0 %1076
  %v1078 = vmax.f32 %v213, %v214
  %1079 = vmax.xlane.f32.xlu0 %v1078
  %v1080 = vpop.xlane.xlu0 %1079
  %v1081 = vmax.f32 %v215, %v216
  %1082 = vmax.xlane.f32.xlu0 %v1081
  %v1083 = vpop.xlane.xlu0 %1082
  %v1084 = vmax.f32 %v217, %v218
  %1085 = vmax.xlane.f32.xlu0 %v1084
  %v1086 = vpop.xlane.xlu0 %1085
  %v1087 = vmax.f32 %v219, %v220
  %1088 = vmax.xlane.f32.xlu0 %v1087
  %v1089 = vpop.xlane.xlu0 %1088
  %v1090 = vmax.f32 %v221, %v222
  %1091 = vmax.xlane.f32.xlu0 %v1090
  %v1092 = vpop.xlane.xlu0 %1091
  %v1093 = vmax.f32 %v223, %v224
  %1094 = vmax.xlane.f32.xlu0 %v1093
  %v1095 = vpop.xlane.xlu0 %1094
  %v1096 = vmax.f32 %v225, %v226
  %1097 = vmax.xlane.f32.xlu0 %v1096
  %v1098 = vpop.xlane.xlu0 %1097
  %v1099 = vmax.f32 %v227, %v228
  %1100 = vmax.xlane.f32.xlu0 %v1099
  %v1101 = vpop.xlane.xlu0 %1100
  %v1102 = vmax.f32 %v229, %v230
  %1103 = vmax.xlane.f32.xlu0 %v1102
  %v1104 = vpop.xlane.xlu0 %1103
  %v1105 = vmax.f32 %v231, %v232
  %1106 = vmax.xlane.f32.xlu0 %v1105
  %v1107 = vpop.xlane.xlu0 %1106
  %v1108 = vmax.f32 %v233, %v234
  %1109 = vmax.xlane.f32.xlu0 %v1108
  %v1110 = vpop.xlane.xlu0 %1109
  %v1111 = vmax.f32 %v235, %v236
  %1112 = vmax.xlane.f32.xlu0 %v1111
  %v1113 = vpop.xlane.xlu0 %1112
  %v1114 = vmax.f32 %v237, %v238
  %1115 = vmax.xlane.f32.xlu0 %v1114
  %v1116 = vpop.xlane.xlu0 %1115
  %v1117 = vmax.f32 %v239, %v240
  %1118 = vmax.xlane.f32.xlu0 %v1117
  %v1119 = vpop.xlane.xlu0 %1118
  %v1120 = vmax.f32 %v241, %v242
  %1121 = vmax.xlane.f32.xlu0 %v1120
  %v1122 = vpop.xlane.xlu0 %1121
  %v1123 = vmax.f32 %v243, %v244
  %1124 = vmax.xlane.f32.xlu0 %v1123
  %v1125 = vpop.xlane.xlu0 %1124
  %v1126 = vmax.f32 %v245, %v246
  %1127 = vmax.xlane.f32.xlu0 %v1126
  %v1128 = vpop.xlane.xlu0 %1127
  %v1129 = vmax.f32 %v247, %v248
  %1130 = vmax.xlane.f32.xlu0 %v1129
  %v1131 = vpop.xlane.xlu0 %1130
  %v1132 = vmax.f32 %v249, %v250
  %1133 = vmax.xlane.f32.xlu0 %v1132
  %v1134 = vpop.xlane.xlu0 %1133
  %v1135 = vmax.f32 %v251, %v252
  %1136 = vmax.xlane.f32.xlu0 %v1135
  %v1137 = vpop.xlane.xlu0 %1136
  %v1138 = vmax.f32 %v253, %v254
  %1139 = vmax.xlane.f32.xlu0 %v1138
  %v1140 = vpop.xlane.xlu0 %1139
  %v1141 = vmax.f32 %v255, %v256
  %1142 = vmax.xlane.f32.xlu0 %v1141
  %v1143 = vpop.xlane.xlu0 %1142
  %v1144 = vmax.f32 %v257, %v258
  %1145 = vmax.xlane.f32.xlu0 %v1144
  %v1146 = vpop.xlane.xlu0 %1145
  %v1147 = vmax.f32 %v259, %v260
  %1148 = vmax.xlane.f32.xlu0 %v1147
  %v1149 = vpop.xlane.xlu0 %1148
  %v1150 = vmax.f32 %v261, %v262
  %1151 = vmax.xlane.f32.xlu0 %v1150
  %v1152 = vpop.xlane.xlu0 %1151
  %v1153 = vmax.f32 %v263, %v264
  %1154 = vmax.xlane.f32.xlu0 %v1153
  %v1155 = vpop.xlane.xlu0 %1154
  %v1156 = vmax.f32 %v265, %v266
  %1157 = vmax.xlane.f32.xlu0 %v1156
  %v1158 = vpop.xlane.xlu0 %1157
  %v1159 = vmax.f32 %v267, %v268
  %1160 = vmax.xlane.f32.xlu0 %v1159
  %v1161 = vpop.xlane.xlu0 %1160
  %v1162 = vmax.f32 %v269, %v270
  %1163 = vmax.xlane.f32.xlu0 %v1162
  %v1164 = vpop.xlane.xlu0 %1163
  %v1165 = vmax.f32 %v271, %v272
  %1166 = vmax.xlane.f32.xlu0 %v1165
  %v1167 = vpop.xlane.xlu0 %1166
  %v1168 = vmax.f32 %v273, %v274
  %1169 = vmax.xlane.f32.xlu0 %v1168
  %v1170 = vpop.xlane.xlu0 %1169
  %v1171 = vmax.f32 %v275, %v276
  %1172 = vmax.xlane.f32.xlu0 %v1171
  %v1173 = vpop.xlane.xlu0 %1172
  %v1174 = vmax.f32 %v277, %v278
  %1175 = vmax.xlane.f32.xlu0 %v1174
  %v1176 = vpop.xlane.xlu0 %1175
  %v1177 = vmax.f32 %v279, %v280
  %1178 = vmax.xlane.f32.xlu0 %v1177
  %v1179 = vpop.xlane.xlu0 %1178
  %v1180 = vmax.f32 %v281, %v282
  %1181 = vmax.xlane.f32.xlu0 %v1180
  %v1182 = vpop.xlane.xlu0 %1181
  %v1183 = vmax.f32 %v283, %v284
  %1184 = vmax.xlane.f32.xlu0 %v1183
  %v1185 = vpop.xlane.xlu0 %1184
  %v1186 = vmax.f32 %v285, %v286
  %1187 = vmax.xlane.f32.xlu0 %v1186
  %v1188 = vpop.xlane.xlu0 %1187
  %v1189 = vmax.f32 %v287, %v288
  %1190 = vmax.xlane.f32.xlu0 %v1189
  %v1191 = vpop.xlane.xlu0 %1190
  %v1192 = vmax.f32 %v289, %v290
  %1193 = vmax.xlane.f32.xlu0 %v1192
  %v1194 = vpop.xlane.xlu0 %1193
  %v1195 = vmax.f32 %v291, %v292
  %1196 = vmax.xlane.f32.xlu0 %v1195
  %v1197 = vpop.xlane.xlu0 %1196
  %v1198 = vmax.f32 %v293, %v294
  %1199 = vmax.xlane.f32.xlu0 %v1198
  %v1200 = vpop.xlane.xlu0 %1199
  %v1201 = vmax.f32 %v295, %v296
  %1202 = vmax.xlane.f32.xlu0 %v1201
  %v1203 = vpop.xlane.xlu0 %1202
  %v1204 = vmax.f32 %v297, %v298
  %1205 = vmax.xlane.f32.xlu0 %v1204
  %v1206 = vpop.xlane.xlu0 %1205
  %v1207 = vmax.f32 %v299, %v300
  %1208 = vmax.xlane.f32.xlu0 %v1207
  %v1209 = vpop.xlane.xlu0 %1208
  %v1210 = vmax.f32 %v301, %v302
  %1211 = vmax.xlane.f32.xlu0 %v1210
  %v1212 = vpop.xlane.xlu0 %1211
  %v1213 = vmax.f32 %v303, %v304
  %1214 = vmax.xlane.f32.xlu0 %v1213
  %v1215 = vpop.xlane.xlu0 %1214
  %v1216 = vmax.f32 %v305, %v306
  %1217 = vmax.xlane.f32.xlu0 %v1216
  %v1218 = vpop.xlane.xlu0 %1217
  %v1219 = vmax.f32 %v307, %v308
  %1220 = vmax.xlane.f32.xlu0 %v1219
  %v1221 = vpop.xlane.xlu0 %1220
  %v1222 = vmax.f32 %v309, %v310
  %1223 = vmax.xlane.f32.xlu0 %v1222
  %v1224 = vpop.xlane.xlu0 %1223
  %v1225 = vmax.f32 %v311, %v312
  %1226 = vmax.xlane.f32.xlu0 %v1225
  %v1227 = vpop.xlane.xlu0 %1226
  %v1228 = vmax.f32 %v313, %v314
  %1229 = vmax.xlane.f32.xlu0 %v1228
  %v1230 = vpop.xlane.xlu0 %1229
  %v1231 = vmax.f32 %v315, %v316
  %1232 = vmax.xlane.f32.xlu0 %v1231
  %v1233 = vpop.xlane.xlu0 %1232
  %v1234 = vmax.f32 %v317, %v318
  %1235 = vmax.xlane.f32.xlu0 %v1234
  %v1236 = vpop.xlane.xlu0 %1235
  %v1237 = vmax.f32 %v319, %v320
  %1238 = vmax.xlane.f32.xlu0 %v1237
  %v1239 = vpop.xlane.xlu0 %1238
  %v1240 = vmax.f32 %v321, %v322
  %1241 = vmax.xlane.f32.xlu0 %v1240
  %v1242 = vpop.xlane.xlu0 %1241
  %v1243 = vmax.f32 %v323, %v324
  %1244 = vmax.xlane.f32.xlu0 %v1243
  %v1245 = vpop.xlane.xlu0 %1244
  %v1246 = vmax.f32 %v325, %v326
  %1247 = vmax.xlane.f32.xlu0 %v1246
  %v1248 = vpop.xlane.xlu0 %1247
  %v1249 = vmax.f32 %v327, %v328
  %1250 = vmax.xlane.f32.xlu0 %v1249
  %v1251 = vpop.xlane.xlu0 %1250
  %v1252 = vmax.f32 %v329, %v330
  %1253 = vmax.xlane.f32.xlu0 %v1252
  %v1254 = vpop.xlane.xlu0 %1253
  %v1255 = vmax.f32 %v331, %v332
  %1256 = vmax.xlane.f32.xlu0 %v1255
  %v1257 = vpop.xlane.xlu0 %1256
  %v1258 = vmax.f32 %v333, %v334
  %1259 = vmax.xlane.f32.xlu0 %v1258
  %v1260 = vpop.xlane.xlu0 %1259
  %v1261 = vmax.f32 %v335, %v336
  %1262 = vmax.xlane.f32.xlu0 %v1261
  %v1263 = vpop.xlane.xlu0 %1262
  %v1264 = vmax.f32 %v337, %v338
  %1265 = vmax.xlane.f32.xlu0 %v1264
  %v1266 = vpop.xlane.xlu0 %1265
  %v1267 = vmax.f32 %v339, %v340
  %1268 = vmax.xlane.f32.xlu0 %v1267
  %v1269 = vpop.xlane.xlu0 %1268
  %v1270 = vmax.f32 %v341, %v342
  %1271 = vmax.xlane.f32.xlu0 %v1270
  %v1272 = vpop.xlane.xlu0 %1271
  %v1273 = vmax.f32 %v343, %v344
  %1274 = vmax.xlane.f32.xlu0 %v1273
  %v1275 = vpop.xlane.xlu0 %1274
  %v1276 = vmax.f32 %v345, %v346
  %1277 = vmax.xlane.f32.xlu0 %v1276
  %v1278 = vpop.xlane.xlu0 %1277
  %v1279 = vmax.f32 %v347, %v348
  %1280 = vmax.xlane.f32.xlu0 %v1279
  %v1281 = vpop.xlane.xlu0 %1280
  %v1282 = vmax.f32 %v349, %v350
  %1283 = vmax.xlane.f32.xlu0 %v1282
  %v1284 = vpop.xlane.xlu0 %1283
  %v1285 = vmax.f32 %v351, %v352
  %1286 = vmax.xlane.f32.xlu0 %v1285
  %v1287 = vpop.xlane.xlu0 %1286
  %v1288 = vmax.f32 %v353, %v354
  %1289 = vmax.xlane.f32.xlu0 %v1288
  %v1290 = vpop.xlane.xlu0 %1289
  %v1291 = vmax.f32 %v355, %v356
  %1292 = vmax.xlane.f32.xlu0 %v1291
  %v1293 = vpop.xlane.xlu0 %1292
  %v1294 = vmax.f32 %v357, %v358
  %1295 = vmax.xlane.f32.xlu0 %v1294
  %v1296 = vpop.xlane.xlu0 %1295
  %v1297 = vmax.f32 %v359, %v360
  %1298 = vmax.xlane.f32.xlu0 %v1297
  %v1299 = vpop.xlane.xlu0 %1298
  %v1300 = vmax.f32 %v361, %v362
  %1301 = vmax.xlane.f32.xlu0 %v1300
  %v1302 = vpop.xlane.xlu0 %1301
  %v1303 = vmax.f32 %v363, %v364
  %1304 = vmax.xlane.f32.xlu0 %v1303
  %v1305 = vpop.xlane.xlu0 %1304
  %v1306 = vmax.f32 %v365, %v366
  %1307 = vmax.xlane.f32.xlu0 %v1306
  %v1308 = vpop.xlane.xlu0 %1307
  %v1309 = vmax.f32 %v367, %v368
  %1310 = vmax.xlane.f32.xlu0 %v1309
  %v1311 = vpop.xlane.xlu0 %1310
  %v1312 = vmax.f32 %v369, %v370
  %1313 = vmax.xlane.f32.xlu0 %v1312
  %v1314 = vpop.xlane.xlu0 %1313
  %v1315 = vmax.f32 %v371, %v372
  %1316 = vmax.xlane.f32.xlu0 %v1315
  %v1317 = vpop.xlane.xlu0 %1316
  %v1318 = vmax.f32 %v373, %v374
  %1319 = vmax.xlane.f32.xlu0 %v1318
  %v1320 = vpop.xlane.xlu0 %1319
  %v1321 = vmax.f32 %v375, %v376
  %1322 = vmax.xlane.f32.xlu0 %v1321
  %v1323 = vpop.xlane.xlu0 %1322
  %v1324 = vmax.f32 %v377, %v378
  %1325 = vmax.xlane.f32.xlu0 %v1324
  %v1326 = vpop.xlane.xlu0 %1325
  %v1327 = vmax.f32 %v379, %v380
  %1328 = vmax.xlane.f32.xlu0 %v1327
  %v1329 = vpop.xlane.xlu0 %1328
  %v1330 = vmax.f32 %v381, %v382
  %1331 = vmax.xlane.f32.xlu0 %v1330
  %v1332 = vpop.xlane.xlu0 %1331
  %v1333 = vmax.f32 %v383, %v384
  %1334 = vmax.xlane.f32.xlu0 %v1333
  %v1335 = vpop.xlane.xlu0 %1334
  %v1336 = vmax.f32 %v385, %v386
  %1337 = vmax.xlane.f32.xlu0 %v1336
  %v1338 = vpop.xlane.xlu0 %1337
  %v1339 = vmax.f32 %v387, %v388
  %1340 = vmax.xlane.f32.xlu0 %v1339
  %v1341 = vpop.xlane.xlu0 %1340
  %v1342 = vmax.f32 %v389, %v390
  %1343 = vmax.xlane.f32.xlu0 %v1342
  %v1344 = vpop.xlane.xlu0 %1343
  %v1345 = vmax.f32 %v391, %v392
  %1346 = vmax.xlane.f32.xlu0 %v1345
  %v1347 = vpop.xlane.xlu0 %1346
  %v1348 = vmax.f32 %v393, %v394
  %1349 = vmax.xlane.f32.xlu0 %v1348
  %v1350 = vpop.xlane.xlu0 %1349
  %v1351 = vmax.f32 %v395, %v396
  %1352 = vmax.xlane.f32.xlu0 %v1351
  %v1353 = vpop.xlane.xlu0 %1352
  %v1354 = vmax.f32 %v397, %v398
  %1355 = vmax.xlane.f32.xlu0 %v1354
  %v1356 = vpop.xlane.xlu0 %1355
  %v1357 = vmax.f32 %v399, %v400
  %1358 = vmax.xlane.f32.xlu0 %v1357
  %v1359 = vpop.xlane.xlu0 %1358
  %v1360 = vmax.f32 %v401, %v402
  %1361 = vmax.xlane.f32.xlu0 %v1360
  %v1362 = vpop.xlane.xlu0 %1361
  %v1363 = vmax.f32 %v403, %v404
  %1364 = vmax.xlane.f32.xlu0 %v1363
  %v1365 = vpop.xlane.xlu0 %1364
  %v1366 = vmax.f32 %v405, %v406
  %1367 = vmax.xlane.f32.xlu0 %v1366
  %v1368 = vpop.xlane.xlu0 %1367
  %v1369 = vmax.f32 %v407, %v408
  %1370 = vmax.xlane.f32.xlu0 %v1369
  %v1371 = vpop.xlane.xlu0 %1370
  %v1372 = vmax.f32 %v409, %v410
  %1373 = vmax.xlane.f32.xlu0 %v1372
  %v1374 = vpop.xlane.xlu0 %1373
  %v1375 = vmax.f32 %v411, %v412
  %1376 = vmax.xlane.f32.xlu0 %v1375
  %v1377 = vpop.xlane.xlu0 %1376
  %v1378 = vmax.f32 %v413, %v414
  %1379 = vmax.xlane.f32.xlu0 %v1378
  %v1380 = vpop.xlane.xlu0 %1379
  %v1381 = vmax.f32 %v415, %v416
  %1382 = vmax.xlane.f32.xlu0 %v1381
  %v1383 = vpop.xlane.xlu0 %1382
  %v1384 = vmax.f32 %v417, %v418
  %1385 = vmax.xlane.f32.xlu0 %v1384
  %v1386 = vpop.xlane.xlu0 %1385
  %v1387 = vmax.f32 %v419, %v420
  %1388 = vmax.xlane.f32.xlu0 %v1387
  %v1389 = vpop.xlane.xlu0 %1388
  %v1390 = vmax.f32 %v421, %v422
  %1391 = vmax.xlane.f32.xlu0 %v1390
  %v1392 = vpop.xlane.xlu0 %1391
  %v1393 = vmax.f32 %v423, %v424
  %1394 = vmax.xlane.f32.xlu0 %v1393
  %v1395 = vpop.xlane.xlu0 %1394
  %v1396 = vmax.f32 %v425, %v426
  %1397 = vmax.xlane.f32.xlu0 %v1396
  %v1398 = vpop.xlane.xlu0 %1397
  %v1399 = vmax.f32 %v427, %v428
  %1400 = vmax.xlane.f32.xlu0 %v1399
  %v1401 = vpop.xlane.xlu0 %1400
  %v1402 = vmax.f32 %v429, %v430
  %1403 = vmax.xlane.f32.xlu0 %v1402
  %v1404 = vpop.xlane.xlu0 %1403
  %v1405 = vmax.f32 %v431, %v432
  %1406 = vmax.xlane.f32.xlu0 %v1405
  %v1407 = vpop.xlane.xlu0 %1406
  %v1408 = vmax.f32 %v433, %v434
  %1409 = vmax.xlane.f32.xlu0 %v1408
  %v1410 = vpop.xlane.xlu0 %1409
  %v1411 = vmax.f32 %v435, %v436
  %1412 = vmax.xlane.f32.xlu0 %v1411
  %v1413 = vpop.xlane.xlu0 %1412
  %v1414 = vmax.f32 %v437, %v438
  %1415 = vmax.xlane.f32.xlu0 %v1414
  %v1416 = vpop.xlane.xlu0 %1415
  %v1417 = vmax.f32 %v439, %v440
  %1418 = vmax.xlane.f32.xlu0 %v1417
  %v1419 = vpop.xlane.xlu0 %1418
  %v1420 = vmax.f32 %v441, %v442
  %1421 = vmax.xlane.f32.xlu0 %v1420
  %v1422 = vpop.xlane.xlu0 %1421
  %v1423 = vmax.f32 %v443, %v444
  %1424 = vmax.xlane.f32.xlu0 %v1423
  %v1425 = vpop.xlane.xlu0 %1424
  %v1426 = vmax.f32 %v445, %v446
  %1427 = vmax.xlane.f32.xlu0 %v1426
  %v1428 = vpop.xlane.xlu0 %1427
  %v1429 = vmax.f32 %v447, %v448
  %1430 = vmax.xlane.f32.xlu0 %v1429
  %v1431 = vpop.xlane.xlu0 %1430
  %v1432 = vmax.f32 %v449, %v450
  %1433 = vmax.xlane.f32.xlu0 %v1432
  %v1434 = vpop.xlane.xlu0 %1433
  %v1435 = vmax.f32 %v451, %v452
  %1436 = vmax.xlane.f32.xlu0 %v1435
  %v1437 = vpop.xlane.xlu0 %1436
  %v1438 = vmax.f32 %v453, %v454
  %1439 = vmax.xlane.f32.xlu0 %v1438
  %v1440 = vpop.xlane.xlu0 %1439
  %v1441 = vmax.f32 %v455, %v456
  %1442 = vmax.xlane.f32.xlu0 %v1441
  %v1443 = vpop.xlane.xlu0 %1442
  %v1444 = vmax.f32 %v457, %v458
  %1445 = vmax.xlane.f32.xlu0 %v1444
  %v1446 = vpop.xlane.xlu0 %1445
  %v1447 = vmax.f32 %v459, %v460
  %1448 = vmax.xlane.f32.xlu0 %v1447
  %v1449 = vpop.xlane.xlu0 %1448
  %v1450 = vmax.f32 %v461, %v462
  %1451 = vmax.xlane.f32.xlu0 %v1450
  %v1452 = vpop.xlane.xlu0 %1451
  %v1453 = vmax.f32 %v463, %v464
  %1454 = vmax.xlane.f32.xlu0 %v1453
  %v1455 = vpop.xlane.xlu0 %1454
  %v1456 = vmax.f32 %v465, %v466
  %1457 = vmax.xlane.f32.xlu0 %v1456
  %v1458 = vpop.xlane.xlu0 %1457
  %v1459 = vmax.f32 %v467, %v468
  %1460 = vmax.xlane.f32.xlu0 %v1459
  %v1461 = vpop.xlane.xlu0 %1460
  %v1462 = vmax.f32 %v469, %v470
  %1463 = vmax.xlane.f32.xlu0 %v1462
  %v1464 = vpop.xlane.xlu0 %1463
  %v1465 = vmax.f32 %v471, %v472
  %1466 = vmax.xlane.f32.xlu0 %v1465
  %v1467 = vpop.xlane.xlu0 %1466
  %v1468 = vmax.f32 %v473, %v474
  %1469 = vmax.xlane.f32.xlu0 %v1468
  %v1470 = vpop.xlane.xlu0 %1469
  %v1471 = vmax.f32 %v475, %v476
  %1472 = vmax.xlane.f32.xlu0 %v1471
  %v1473 = vpop.xlane.xlu0 %1472
  %v1474 = vmax.f32 %v477, %v478
  %1475 = vmax.xlane.f32.xlu0 %v1474
  %v1476 = vpop.xlane.xlu0 %1475
  %v1477 = vmax.f32 %v479, %v480
  %1478 = vmax.xlane.f32.xlu0 %v1477
  %v1479 = vpop.xlane.xlu0 %1478
  %v1480 = vmax.f32 %v481, %v482
  %1481 = vmax.xlane.f32.xlu0 %v1480
  %v1482 = vpop.xlane.xlu0 %1481
  %v1483 = vmax.f32 %v483, %v484
  %1484 = vmax.xlane.f32.xlu0 %v1483
  %v1485 = vpop.xlane.xlu0 %1484
  %v1486 = vmax.f32 %v485, %v486
  %1487 = vmax.xlane.f32.xlu0 %v1486
  %v1488 = vpop.xlane.xlu0 %1487
  %v1489 = vmax.f32 %v487, %v488
  %1490 = vmax.xlane.f32.xlu0 %v1489
  %v1491 = vpop.xlane.xlu0 %1490
  %v1492 = vmax.f32 %v489, %v490
  %1493 = vmax.xlane.f32.xlu0 %v1492
  %v1494 = vpop.xlane.xlu0 %1493
  %v1495 = vmax.f32 %v491, %v492
  %1496 = vmax.xlane.f32.xlu0 %v1495
  %v1497 = vpop.xlane.xlu0 %1496
  %v1498 = vmax.f32 %v493, %v494
  %1499 = vmax.xlane.f32.xlu0 %v1498
  %v1500 = vpop.xlane.xlu0 %1499
  %v1501 = vmax.f32 %v495, %v496
  %1502 = vmax.xlane.f32.xlu0 %v1501
  %v1503 = vpop.xlane.xlu0 %1502
  %v1504 = vmax.f32 %v497, %v498
  %1505 = vmax.xlane.f32.xlu0 %v1504
  %v1506 = vpop.xlane.xlu0 %1505
  %v1507 = vmax.f32 %v499, %v500
  %1508 = vmax.xlane.f32.xlu0 %v1507
  %v1509 = vpop.xlane.xlu0 %1508
  %v1510 = vmax.f32 %v501, %v502
  %1511 = vmax.xlane.f32.xlu0 %v1510
  %v1512 = vpop.xlane.xlu0 %1511
  %v1513 = vmax.f32 %v503, %v504
  %1514 = vmax.xlane.f32.xlu0 %v1513
  %v1515 = vpop.xlane.xlu0 %1514
  %v1516 = vmax.f32 %v505, %v506
  %1517 = vmax.xlane.f32.xlu0 %v1516
  %v1518 = vpop.xlane.xlu0 %1517
  %v1519 = vmax.f32 %v507, %v508
  %1520 = vmax.xlane.f32.xlu0 %v1519
  %v1521 = vpop.xlane.xlu0 %1520
  %v1522 = vmax.f32 %v509, %v510
  %1523 = vmax.xlane.f32.xlu0 %v1522
  %v1524 = vpop.xlane.xlu0 %1523
  %v1525 = vmax.f32 %v511, %v512
  %1526 = vmax.xlane.f32.xlu0 %v1525
  %v1527 = vpop.xlane.xlu0 %1526
  %v1528 = vmax.f32 %v513, %v514
  %1529 = vmax.xlane.f32.xlu0 %v1528
  %v1530 = vpop.xlane.xlu0 %1529
  %v1531 = vmax.f32 %v515, %v516
  %1532 = vmax.xlane.f32.xlu0 %v1531
  %v1533 = vpop.xlane.xlu0 %1532
  %v1534 = vmax.f32 %v517, %v518
  %1535 = vmax.xlane.f32.xlu0 %v1534
  %v1536 = vpop.xlane.xlu0 %1535
  %v1537 = vmax.f32 %v519, %v520
  %1538 = vmax.xlane.f32.xlu0 %v1537
  %v1539 = vpop.xlane.xlu0 %1538
  %v1540 = vmax.f32 %v521, %v522
  %1541 = vmax.xlane.f32.xlu0 %v1540
  %v1542 = vpop.xlane.xlu0 %1541
  %v1543 = vmax.f32 %v523, %v524
  %1544 = vmax.xlane.f32.xlu0 %v1543
  %v1545 = vpop.xlane.xlu0 %1544
  %v1546 = vmax.f32 %v525, %v526
  %1547 = vmax.xlane.f32.xlu0 %v1546
  %v1548 = vpop.xlane.xlu0 %1547
  %v1549 = vmax.f32 %v527, %v528
  %1550 = vmax.xlane.f32.xlu0 %v1549
  %v1551 = vpop.xlane.xlu0 %1550
  %v1552 = vmax.f32 %v529, %v530
  %1553 = vmax.xlane.f32.xlu0 %v1552
  %v1554 = vpop.xlane.xlu0 %1553
  %v1555 = vsub.f32 %v19, %v789
  %v1556 = vsub.f32 %v20, %v789
  %v1557 = vsub.f32 %v21, %v792
  %v1558 = vsub.f32 %v22, %v792
  %v1559 = vsub.f32 %v23, %v795
  %v1560 = vsub.f32 %v24, %v795
  %v1561 = vsub.f32 %v25, %v798
  %v1562 = vsub.f32 %v26, %v798
  %v1563 = vsub.f32 %v27, %v801
  %v1564 = vsub.f32 %v28, %v801
  %v1565 = vsub.f32 %v29, %v804
  %v1566 = vsub.f32 %v30, %v804
  %v1567 = vsub.f32 %v31, %v807
  %v1568 = vsub.f32 %v32, %v807
  %v1569 = vsub.f32 %v33, %v810
  %v1570 = vsub.f32 %v34, %v810
  %v1571 = vsub.f32 %v35, %v813
  %v1572 = vsub.f32 %v36, %v813
  %v1573 = vsub.f32 %v37, %v816
  %v1574 = vsub.f32 %v38, %v816
  %v1575 = vsub.f32 %v39, %v819
  %v1576 = vsub.f32 %v40, %v819
  %v1577 = vsub.f32 %v41, %v822
  %v1578 = vsub.f32 %v42, %v822
  %v1579 = vsub.f32 %v43, %v825
  %v1580 = vsub.f32 %v44, %v825
  %v1581 = vsub.f32 %v45, %v828
  %v1582 = vsub.f32 %v46, %v828
  %v1583 = vsub.f32 %v47, %v831
  %v1584 = vsub.f32 %v48, %v831
  %v1585 = vsub.f32 %v49, %v834
  %v1586 = vsub.f32 %v50, %v834
  %v1587 = vsub.f32 %v51, %v837
  %v1588 = vsub.f32 %v52, %v837
  %v1589 = vsub.f32 %v53, %v840
  %v1590 = vsub.f32 %v54, %v840
  %v1591 = vsub.f32 %v55, %v843
  %v1592 = vsub.f32 %v56, %v843
  %v1593 = vsub.f32 %v57, %v846
  %v1594 = vsub.f32 %v58, %v846
  %v1595 = vsub.f32 %v59, %v849
  %v1596 = vsub.f32 %v60, %v849
  %v1597 = vsub.f32 %v61, %v852
  %v1598 = vsub.f32 %v62, %v852
  %v1599 = vsub.f32 %v63, %v855
  %v1600 = vsub.f32 %v64, %v855
  %v1601 = vsub.f32 %v65, %v858
  %v1602 = vsub.f32 %v66, %v858
  %v1603 = vsub.f32 %v67, %v861
  %v1604 = vsub.f32 %v68, %v861
  %v1605 = vsub.f32 %v69, %v864
  %v1606 = vsub.f32 %v70, %v864
  %v1607 = vsub.f32 %v71, %v867
  %v1608 = vsub.f32 %v72, %v867
  %v1609 = vsub.f32 %v73, %v870
  %v1610 = vsub.f32 %v74, %v870
  %v1611 = vsub.f32 %v75, %v873
  %v1612 = vsub.f32 %v76, %v873
  %v1613 = vsub.f32 %v77, %v876
  %v1614 = vsub.f32 %v78, %v876
  %v1615 = vsub.f32 %v79, %v879
  %v1616 = vsub.f32 %v80, %v879
  %v1617 = vsub.f32 %v81, %v882
  %v1618 = vsub.f32 %v82, %v882
  %v1619 = vsub.f32 %v83, %v885
  %v1620 = vsub.f32 %v84, %v885
  %v1621 = vsub.f32 %v85, %v888
  %v1622 = vsub.f32 %v86, %v888
  %v1623 = vsub.f32 %v87, %v891
  %v1624 = vsub.f32 %v88, %v891
  %v1625 = vsub.f32 %v89, %v894
  %v1626 = vsub.f32 %v90, %v894
  %v1627 = vsub.f32 %v91, %v897
  %v1628 = vsub.f32 %v92, %v897
  %v1629 = vsub.f32 %v93, %v900
  %v1630 = vsub.f32 %v94, %v900
  %v1631 = vsub.f32 %v95, %v903
  %v1632 = vsub.f32 %v96, %v903
  %v1633 = vsub.f32 %v97, %v906
  %v1634 = vsub.f32 %v98, %v906
  %v1635 = vsub.f32 %v99, %v909
  %v1636 = vsub.f32 %v100, %v909
  %v1637 = vsub.f32 %v101, %v912
  %v1638 = vsub.f32 %v102, %v912
  %v1639 = vsub.f32 %v103, %v915
  %v1640 = vsub.f32 %v104, %v915
  %v1641 = vsub.f32 %v105, %v918
  %v1642 = vsub.f32 %v106, %v918
  %v1643 = vsub.f32 %v107, %v921
  %v1644 = vsub.f32 %v108, %v921
  %v1645 = vsub.f32 %v109, %v924
  %v1646 = vsub.f32 %v110, %v924
  %v1647 = vsub.f32 %v111, %v927
  %v1648 = vsub.f32 %v112, %v927
  %v1649 = vsub.f32 %v113, %v930
  %v1650 = vsub.f32 %v114, %v930
  %v1651 = vsub.f32 %v115, %v933
  %v1652 = vsub.f32 %v116, %v933
  %v1653 = vsub.f32 %v117, %v936
  %v1654 = vsub.f32 %v118, %v936
  %v1655 = vsub.f32 %v119, %v939
  %v1656 = vsub.f32 %v120, %v939
  %v1657 = vsub.f32 %v121, %v942
  %v1658 = vsub.f32 %v122, %v942
  %v1659 = vsub.f32 %v123, %v945
  %v1660 = vsub.f32 %v124, %v945
  %v1661 = vsub.f32 %v125, %v948
  %v1662 = vsub.f32 %v126, %v948
  %v1663 = vsub.f32 %v127, %v951
  %v1664 = vsub.f32 %v128, %v951
  %v1665 = vsub.f32 %v129, %v954
  %v1666 = vsub.f32 %v130, %v954
  %v1667 = vsub.f32 %v131, %v957
  %v1668 = vsub.f32 %v132, %v957
  %v1669 = vsub.f32 %v133, %v960
  %v1670 = vsub.f32 %v134, %v960
  %v1671 = vsub.f32 %v135, %v963
  %v1672 = vsub.f32 %v136, %v963
  %v1673 = vsub.f32 %v137, %v966
  %v1674 = vsub.f32 %v138, %v966
  %v1675 = vsub.f32 %v139, %v969
  %v1676 = vsub.f32 %v140, %v969
  %v1677 = vsub.f32 %v141, %v972
  %v1678 = vsub.f32 %v142, %v972
  %v1679 = vsub.f32 %v143, %v975
  %v1680 = vsub.f32 %v144, %v975
  %v1681 = vsub.f32 %v145, %v978
  %v1682 = vsub.f32 %v146, %v978
  %v1683 = vsub.f32 %v147, %v981
  %v1684 = vsub.f32 %v148, %v981
  %v1685 = vsub.f32 %v149, %v984
  %v1686 = vsub.f32 %v150, %v984
  %v1687 = vsub.f32 %v151, %v987
  %v1688 = vsub.f32 %v152, %v987
  %v1689 = vsub.f32 %v153, %v990
  %v1690 = vsub.f32 %v154, %v990
  %v1691 = vsub.f32 %v155, %v993
  %v1692 = vsub.f32 %v156, %v993
  %v1693 = vsub.f32 %v157, %v996
  %v1694 = vsub.f32 %v158, %v996
  %v1695 = vsub.f32 %v159, %v999
  %v1696 = vsub.f32 %v160, %v999
  %v1697 = vsub.f32 %v161, %v1002
  %v1698 = vsub.f32 %v162, %v1002
  %v1699 = vsub.f32 %v163, %v1005
  %v1700 = vsub.f32 %v164, %v1005
  %v1701 = vsub.f32 %v165, %v1008
  %v1702 = vsub.f32 %v166, %v1008
  %v1703 = vsub.f32 %v167, %v1011
  %v1704 = vsub.f32 %v168, %v1011
  %v1705 = vsub.f32 %v169, %v1014
  %v1706 = vsub.f32 %v170, %v1014
  %v1707 = vsub.f32 %v171, %v1017
  %v1708 = vsub.f32 %v172, %v1017
  %v1709 = vsub.f32 %v173, %v1020
  %v1710 = vsub.f32 %v174, %v1020
  %v1711 = vsub.f32 %v175, %v1023
  %v1712 = vsub.f32 %v176, %v1023
  %v1713 = vsub.f32 %v177, %v1026
  %v1714 = vsub.f32 %v178, %v1026
  %v1715 = vsub.f32 %v179, %v1029
  %v1716 = vsub.f32 %v180, %v1029
  %v1717 = vsub.f32 %v181, %v1032
  %v1718 = vsub.f32 %v182, %v1032
  %v1719 = vsub.f32 %v183, %v1035
  %v1720 = vsub.f32 %v184, %v1035
  %v1721 = vsub.f32 %v185, %v1038
  %v1722 = vsub.f32 %v186, %v1038
  %v1723 = vsub.f32 %v187, %v1041
  %v1724 = vsub.f32 %v188, %v1041
  %v1725 = vsub.f32 %v189, %v1044
  %v1726 = vsub.f32 %v190, %v1044
  %v1727 = vsub.f32 %v191, %v1047
  %v1728 = vsub.f32 %v192, %v1047
  %v1729 = vsub.f32 %v193, %v1050
  %v1730 = vsub.f32 %v194, %v1050
  %v1731 = vsub.f32 %v195, %v1053
  %v1732 = vsub.f32 %v196, %v1053
  %v1733 = vsub.f32 %v197, %v1056
  %v1734 = vsub.f32 %v198, %v1056
  %v1735 = vsub.f32 %v199, %v1059
  %v1736 = vsub.f32 %v200, %v1059
  %v1737 = vsub.f32 %v201, %v1062
  %v1738 = vsub.f32 %v202, %v1062
  %v1739 = vsub.f32 %v203, %v1065
  %v1740 = vsub.f32 %v204, %v1065
  %v1741 = vsub.f32 %v205, %v1068
  %v1742 = vsub.f32 %v206, %v1068
  %v1743 = vsub.f32 %v207, %v1071
  %v1744 = vsub.f32 %v208, %v1071
  %v1745 = vsub.f32 %v209, %v1074
  %v1746 = vsub.f32 %v210, %v1074
  %v1747 = vsub.f32 %v211, %v1077
  %v1748 = vsub.f32 %v212, %v1077
  %v1749 = vsub.f32 %v213, %v1080
  %v1750 = vsub.f32 %v214, %v1080
  %v1751 = vsub.f32 %v215, %v1083
  %v1752 = vsub.f32 %v216, %v1083
  %v1753 = vsub.f32 %v217, %v1086
  %v1754 = vsub.f32 %v218, %v1086
  %v1755 = vsub.f32 %v219, %v1089
  %v1756 = vsub.f32 %v220, %v1089
  %v1757 = vsub.f32 %v221, %v1092
  %v1758 = vsub.f32 %v222, %v1092
  %v1759 = vsub.f32 %v223, %v1095
  %v1760 = vsub.f32 %v224, %v1095
  %v1761 = vsub.f32 %v225, %v1098
  %v1762 = vsub.f32 %v226, %v1098
  %v1763 = vsub.f32 %v227, %v1101
  %v1764 = vsub.f32 %v228, %v1101
  %v1765 = vsub.f32 %v229, %v1104
  %v1766 = vsub.f32 %v230, %v1104
  %v1767 = vsub.f32 %v231, %v1107
  %v1768 = vsub.f32 %v232, %v1107
  %v1769 = vsub.f32 %v233, %v1110
  %v1770 = vsub.f32 %v234, %v1110
  %v1771 = vsub.f32 %v235, %v1113
  %v1772 = vsub.f32 %v236, %v1113
  %v1773 = vsub.f32 %v237, %v1116
  %v1774 = vsub.f32 %v238, %v1116
  %v1775 = vsub.f32 %v239, %v1119
  %v1776 = vsub.f32 %v240, %v1119
  %v1777 = vsub.f32 %v241, %v1122
  %v1778 = vsub.f32 %v242, %v1122
  %v1779 = vsub.f32 %v243, %v1125
  %v1780 = vsub.f32 %v244, %v1125
  %v1781 = vsub.f32 %v245, %v1128
  %v1782 = vsub.f32 %v246, %v1128
  %v1783 = vsub.f32 %v247, %v1131
  %v1784 = vsub.f32 %v248, %v1131
  %v1785 = vsub.f32 %v249, %v1134
  %v1786 = vsub.f32 %v250, %v1134
  %v1787 = vsub.f32 %v251, %v1137
  %v1788 = vsub.f32 %v252, %v1137
  %v1789 = vsub.f32 %v253, %v1140
  %v1790 = vsub.f32 %v254, %v1140
  %v1791 = vsub.f32 %v255, %v1143
  %v1792 = vsub.f32 %v256, %v1143
  %v1793 = vsub.f32 %v257, %v1146
  %v1794 = vsub.f32 %v258, %v1146
  %v1795 = vsub.f32 %v259, %v1149
  %v1796 = vsub.f32 %v260, %v1149
  %v1797 = vsub.f32 %v261, %v1152
  %v1798 = vsub.f32 %v262, %v1152
  %v1799 = vsub.f32 %v263, %v1155
  %v1800 = vsub.f32 %v264, %v1155
  %v1801 = vsub.f32 %v265, %v1158
  %v1802 = vsub.f32 %v266, %v1158
  %v1803 = vsub.f32 %v267, %v1161
  %v1804 = vsub.f32 %v268, %v1161
  %v1805 = vsub.f32 %v269, %v1164
  %v1806 = vsub.f32 %v270, %v1164
  %v1807 = vsub.f32 %v271, %v1167
  %v1808 = vsub.f32 %v272, %v1167
  %v1809 = vsub.f32 %v273, %v1170
  %v1810 = vsub.f32 %v274, %v1170
  %v1811 = vsub.f32 %v275, %v1173
  %v1812 = vsub.f32 %v276, %v1173
  %v1813 = vsub.f32 %v277, %v1176
  %v1814 = vsub.f32 %v278, %v1176
  %v1815 = vsub.f32 %v279, %v1179
  %v1816 = vsub.f32 %v280, %v1179
  %v1817 = vsub.f32 %v281, %v1182
  %v1818 = vsub.f32 %v282, %v1182
  %v1819 = vsub.f32 %v283, %v1185
  %v1820 = vsub.f32 %v284, %v1185
  %v1821 = vsub.f32 %v285, %v1188
  %v1822 = vsub.f32 %v286, %v1188
  %v1823 = vsub.f32 %v287, %v1191
  %v1824 = vsub.f32 %v288, %v1191
  %v1825 = vsub.f32 %v289, %v1194
  %v1826 = vsub.f32 %v290, %v1194
  %v1827 = vsub.f32 %v291, %v1197
  %v1828 = vsub.f32 %v292, %v1197
  %v1829 = vsub.f32 %v293, %v1200
  %v1830 = vsub.f32 %v294, %v1200
  %v1831 = vsub.f32 %v295, %v1203
  %v1832 = vsub.f32 %v296, %v1203
  %v1833 = vsub.f32 %v297, %v1206
  %v1834 = vsub.f32 %v298, %v1206
  %v1835 = vsub.f32 %v299, %v1209
  %v1836 = vsub.f32 %v300, %v1209
  %v1837 = vsub.f32 %v301, %v1212
  %v1838 = vsub.f32 %v302, %v1212
  %v1839 = vsub.f32 %v303, %v1215
  %v1840 = vsub.f32 %v304, %v1215
  %v1841 = vsub.f32 %v305, %v1218
  %v1842 = vsub.f32 %v306, %v1218
  %v1843 = vsub.f32 %v307, %v1221
  %v1844 = vsub.f32 %v308, %v1221
  %v1845 = vsub.f32 %v309, %v1224
  %v1846 = vsub.f32 %v310, %v1224
  %v1847 = vsub.f32 %v311, %v1227
  %v1848 = vsub.f32 %v312, %v1227
  %v1849 = vsub.f32 %v313, %v1230
  %v1850 = vsub.f32 %v314, %v1230
  %v1851 = vsub.f32 %v315, %v1233
  %v1852 = vsub.f32 %v316, %v1233
  %v1853 = vsub.f32 %v317, %v1236
  %v1854 = vsub.f32 %v318, %v1236
  %v1855 = vsub.f32 %v319, %v1239
  %v1856 = vsub.f32 %v320, %v1239
  %v1857 = vsub.f32 %v321, %v1242
  %v1858 = vsub.f32 %v322, %v1242
  %v1859 = vsub.f32 %v323, %v1245
  %v1860 = vsub.f32 %v324, %v1245
  %v1861 = vsub.f32 %v325, %v1248
  %v1862 = vsub.f32 %v326, %v1248
  %v1863 = vsub.f32 %v327, %v1251
  %v1864 = vsub.f32 %v328, %v1251
  %v1865 = vsub.f32 %v329, %v1254
  %v1866 = vsub.f32 %v330, %v1254
  %v1867 = vsub.f32 %v331, %v1257
  %v1868 = vsub.f32 %v332, %v1257
  %v1869 = vsub.f32 %v333, %v1260
  %v1870 = vsub.f32 %v334, %v1260
  %v1871 = vsub.f32 %v335, %v1263
  %v1872 = vsub.f32 %v336, %v1263
  %v1873 = vsub.f32 %v337, %v1266
  %v1874 = vsub.f32 %v338, %v1266
  %v1875 = vsub.f32 %v339, %v1269
  %v1876 = vsub.f32 %v340, %v1269
  %v1877 = vsub.f32 %v341, %v1272
  %v1878 = vsub.f32 %v342, %v1272
  %v1879 = vsub.f32 %v343, %v1275
  %v1880 = vsub.f32 %v344, %v1275
  %v1881 = vsub.f32 %v345, %v1278
  %v1882 = vsub.f32 %v346, %v1278
  %v1883 = vsub.f32 %v347, %v1281
  %v1884 = vsub.f32 %v348, %v1281
  %v1885 = vsub.f32 %v349, %v1284
  %v1886 = vsub.f32 %v350, %v1284
  %v1887 = vsub.f32 %v351, %v1287
  %v1888 = vsub.f32 %v352, %v1287
  %v1889 = vsub.f32 %v353, %v1290
  %v1890 = vsub.f32 %v354, %v1290
  %v1891 = vsub.f32 %v355, %v1293
  %v1892 = vsub.f32 %v356, %v1293
  %v1893 = vsub.f32 %v357, %v1296
  %v1894 = vsub.f32 %v358, %v1296
  %v1895 = vsub.f32 %v359, %v1299
  %v1896 = vsub.f32 %v360, %v1299
  %v1897 = vsub.f32 %v361, %v1302
  %v1898 = vsub.f32 %v362, %v1302
  %v1899 = vsub.f32 %v363, %v1305
  %v1900 = vsub.f32 %v364, %v1305
  %v1901 = vsub.f32 %v365, %v1308
  %v1902 = vsub.f32 %v366, %v1308
  %v1903 = vsub.f32 %v367, %v1311
  %v1904 = vsub.f32 %v368, %v1311
  %v1905 = vsub.f32 %v369, %v1314
  %v1906 = vsub.f32 %v370, %v1314
  %v1907 = vsub.f32 %v371, %v1317
  %v1908 = vsub.f32 %v372, %v1317
  %v1909 = vsub.f32 %v373, %v1320
  %v1910 = vsub.f32 %v374, %v1320
  %v1911 = vsub.f32 %v375, %v1323
  %v1912 = vsub.f32 %v376, %v1323
  %v1913 = vsub.f32 %v377, %v1326
  %v1914 = vsub.f32 %v378, %v1326
  %v1915 = vsub.f32 %v379, %v1329
  %v1916 = vsub.f32 %v380, %v1329
  %v1917 = vsub.f32 %v381, %v1332
  %v1918 = vsub.f32 %v382, %v1332
  %v1919 = vsub.f32 %v383, %v1335
  %v1920 = vsub.f32 %v384, %v1335
  %v1921 = vsub.f32 %v385, %v1338
  %v1922 = vsub.f32 %v386, %v1338
  %v1923 = vsub.f32 %v387, %v1341
  %v1924 = vsub.f32 %v388, %v1341
  %v1925 = vsub.f32 %v389, %v1344
  %v1926 = vsub.f32 %v390, %v1344
  %v1927 = vsub.f32 %v391, %v1347
  %v1928 = vsub.f32 %v392, %v1347
  %v1929 = vsub.f32 %v393, %v1350
  %v1930 = vsub.f32 %v394, %v1350
  %v1931 = vsub.f32 %v395, %v1353
  %v1932 = vsub.f32 %v396, %v1353
  %v1933 = vsub.f32 %v397, %v1356
  %v1934 = vsub.f32 %v398, %v1356
  %v1935 = vsub.f32 %v399, %v1359
  %v1936 = vsub.f32 %v400, %v1359
  %v1937 = vsub.f32 %v401, %v1362
  %v1938 = vsub.f32 %v402, %v1362
  %v1939 = vsub.f32 %v403, %v1365
  %v1940 = vsub.f32 %v404, %v1365
  %v1941 = vsub.f32 %v405, %v1368
  %v1942 = vsub.f32 %v406, %v1368
  %v1943 = vsub.f32 %v407, %v1371
  %v1944 = vsub.f32 %v408, %v1371
  %v1945 = vsub.f32 %v409, %v1374
  %v1946 = vsub.f32 %v410, %v1374
  %v1947 = vsub.f32 %v411, %v1377
  %v1948 = vsub.f32 %v412, %v1377
  %v1949 = vsub.f32 %v413, %v1380
  %v1950 = vsub.f32 %v414, %v1380
  %v1951 = vsub.f32 %v415, %v1383
  %v1952 = vsub.f32 %v416, %v1383
  %v1953 = vsub.f32 %v417, %v1386
  %v1954 = vsub.f32 %v418, %v1386
  %v1955 = vsub.f32 %v419, %v1389
  %v1956 = vsub.f32 %v420, %v1389
  %v1957 = vsub.f32 %v421, %v1392
  %v1958 = vsub.f32 %v422, %v1392
  %v1959 = vsub.f32 %v423, %v1395
  %v1960 = vsub.f32 %v424, %v1395
  %v1961 = vsub.f32 %v425, %v1398
  %v1962 = vsub.f32 %v426, %v1398
  %v1963 = vsub.f32 %v427, %v1401
  %v1964 = vsub.f32 %v428, %v1401
  %v1965 = vsub.f32 %v429, %v1404
  %v1966 = vsub.f32 %v430, %v1404
  %v1967 = vsub.f32 %v431, %v1407
  %v1968 = vsub.f32 %v432, %v1407
  %v1969 = vsub.f32 %v433, %v1410
  %v1970 = vsub.f32 %v434, %v1410
  %v1971 = vsub.f32 %v435, %v1413
  %v1972 = vsub.f32 %v436, %v1413
  %v1973 = vsub.f32 %v437, %v1416
  %v1974 = vsub.f32 %v438, %v1416
  %v1975 = vsub.f32 %v439, %v1419
  %v1976 = vsub.f32 %v440, %v1419
  %v1977 = vsub.f32 %v441, %v1422
  %v1978 = vsub.f32 %v442, %v1422
  %v1979 = vsub.f32 %v443, %v1425
  %v1980 = vsub.f32 %v444, %v1425
  %v1981 = vsub.f32 %v445, %v1428
  %v1982 = vsub.f32 %v446, %v1428
  %v1983 = vsub.f32 %v447, %v1431
  %v1984 = vsub.f32 %v448, %v1431
  %v1985 = vsub.f32 %v449, %v1434
  %v1986 = vsub.f32 %v450, %v1434
  %v1987 = vsub.f32 %v451, %v1437
  %v1988 = vsub.f32 %v452, %v1437
  %v1989 = vsub.f32 %v453, %v1440
  %v1990 = vsub.f32 %v454, %v1440
  %v1991 = vsub.f32 %v455, %v1443
  %v1992 = vsub.f32 %v456, %v1443
  %v1993 = vsub.f32 %v457, %v1446
  %v1994 = vsub.f32 %v458, %v1446
  %v1995 = vsub.f32 %v459, %v1449
  %v1996 = vsub.f32 %v460, %v1449
  %v1997 = vsub.f32 %v461, %v1452
  %v1998 = vsub.f32 %v462, %v1452
  %v1999 = vsub.f32 %v463, %v1455
  %v2000 = vsub.f32 %v464, %v1455
  %v2001 = vsub.f32 %v465, %v1458
  %v2002 = vsub.f32 %v466, %v1458
  %v2003 = vsub.f32 %v467, %v1461
  %v2004 = vsub.f32 %v468, %v1461
  %v2005 = vsub.f32 %v469, %v1464
  %v2006 = vsub.f32 %v470, %v1464
  %v2007 = vsub.f32 %v471, %v1467
  %v2008 = vsub.f32 %v472, %v1467
  %v2009 = vsub.f32 %v473, %v1470
  %v2010 = vsub.f32 %v474, %v1470
  %v2011 = vsub.f32 %v475, %v1473
  %v2012 = vsub.f32 %v476, %v1473
  %v2013 = vsub.f32 %v477, %v1476
  %v2014 = vsub.f32 %v478, %v1476
  %v2015 = vsub.f32 %v479, %v1479
  %v2016 = vsub.f32 %v480, %v1479
  %v2017 = vsub.f32 %v481, %v1482
  %v2018 = vsub.f32 %v482, %v1482
  %v2019 = vsub.f32 %v483, %v1485
  %v2020 = vsub.f32 %v484, %v1485
  %v2021 = vsub.f32 %v485, %v1488
  %v2022 = vsub.f32 %v486, %v1488
  %v2023 = vsub.f32 %v487, %v1491
  %v2024 = vsub.f32 %v488, %v1491
  %v2025 = vsub.f32 %v489, %v1494
  %v2026 = vsub.f32 %v490, %v1494
  %v2027 = vsub.f32 %v491, %v1497
  %v2028 = vsub.f32 %v492, %v1497
  %v2029 = vsub.f32 %v493, %v1500
  %v2030 = vsub.f32 %v494, %v1500
  %v2031 = vsub.f32 %v495, %v1503
  %v2032 = vsub.f32 %v496, %v1503
  %v2033 = vsub.f32 %v497, %v1506
  %v2034 = vsub.f32 %v498, %v1506
  %v2035 = vsub.f32 %v499, %v1509
  %v2036 = vsub.f32 %v500, %v1509
  %v2037 = vsub.f32 %v501, %v1512
  %v2038 = vsub.f32 %v502, %v1512
  %v2039 = vsub.f32 %v503, %v1515
  %v2040 = vsub.f32 %v504, %v1515
  %v2041 = vsub.f32 %v505, %v1518
  %v2042 = vsub.f32 %v506, %v1518
  %v2043 = vsub.f32 %v507, %v1521
  %v2044 = vsub.f32 %v508, %v1521
  %v2045 = vsub.f32 %v509, %v1524
  %v2046 = vsub.f32 %v510, %v1524
  %v2047 = vsub.f32 %v511, %v1527
  %v2048 = vsub.f32 %v512, %v1527
  %v2049 = vsub.f32 %v513, %v1530
  %v2050 = vsub.f32 %v514, %v1530
  %v2051 = vsub.f32 %v515, %v1533
  %v2052 = vsub.f32 %v516, %v1533
  %v2053 = vsub.f32 %v517, %v1536
  %v2054 = vsub.f32 %v518, %v1536
  %v2055 = vsub.f32 %v519, %v1539
  %v2056 = vsub.f32 %v520, %v1539
  %v2057 = vsub.f32 %v521, %v1542
  %v2058 = vsub.f32 %v522, %v1542
  %v2059 = vsub.f32 %v523, %v1545
  %v2060 = vsub.f32 %v524, %v1545
  %v2061 = vsub.f32 %v525, %v1548
  %v2062 = vsub.f32 %v526, %v1548
  %v2063 = vsub.f32 %v527, %v1551
  %v2064 = vsub.f32 %v528, %v1551
  %v2065 = vsub.f32 %v529, %v1554
  %v2066 = vsub.f32 %v530, %v1554
  %v2067 = vmul.f32 %v1555, 1.442695
  %v2068 = vpow.pop %v2067
  %v2069 = vmul.f32 %v1556, 1.442695
  %v2070 = vpow.pop %v2069
  %v2071 = vmul.f32 %v1557, 1.442695
  %v2072 = vpow.pop %v2071
  %v2073 = vmul.f32 %v1558, 1.442695
  %v2074 = vpow.pop %v2073
  %v2075 = vmul.f32 %v1559, 1.442695
  %v2076 = vpow.pop %v2075
  %v2077 = vmul.f32 %v1560, 1.442695
  %v2078 = vpow.pop %v2077
  %v2079 = vmul.f32 %v1561, 1.442695
  %v2080 = vpow.pop %v2079
  %v2081 = vmul.f32 %v1562, 1.442695
  %v2082 = vpow.pop %v2081
  %v2083 = vmul.f32 %v1563, 1.442695
  %v2084 = vpow.pop %v2083
  %v2085 = vmul.f32 %v1564, 1.442695
  %v2086 = vpow.pop %v2085
  %v2087 = vmul.f32 %v1565, 1.442695
  %v2088 = vpow.pop %v2087
  %v2089 = vmul.f32 %v1566, 1.442695
  %v2090 = vpow.pop %v2089
  %v2091 = vmul.f32 %v1567, 1.442695
  %v2092 = vpow.pop %v2091
  %v2093 = vmul.f32 %v1568, 1.442695
  %v2094 = vpow.pop %v2093
  %v2095 = vmul.f32 %v1569, 1.442695
  %v2096 = vpow.pop %v2095
  %v2097 = vmul.f32 %v1570, 1.442695
  %v2098 = vpow.pop %v2097
  %v2099 = vmul.f32 %v1571, 1.442695
  %v2100 = vpow.pop %v2099
  %v2101 = vmul.f32 %v1572, 1.442695
  %v2102 = vpow.pop %v2101
  %v2103 = vmul.f32 %v1573, 1.442695
  %v2104 = vpow.pop %v2103
  %v2105 = vmul.f32 %v1574, 1.442695
  %v2106 = vpow.pop %v2105
  %v2107 = vmul.f32 %v1575, 1.442695
  %v2108 = vpow.pop %v2107
  %v2109 = vmul.f32 %v1576, 1.442695
  %v2110 = vpow.pop %v2109
  %v2111 = vmul.f32 %v1577, 1.442695
  %v2112 = vpow.pop %v2111
  %v2113 = vmul.f32 %v1578, 1.442695
  %v2114 = vpow.pop %v2113
  %v2115 = vmul.f32 %v1579, 1.442695
  %v2116 = vpow.pop %v2115
  %v2117 = vmul.f32 %v1580, 1.442695
  %v2118 = vpow.pop %v2117
  %v2119 = vmul.f32 %v1581, 1.442695
  %v2120 = vpow.pop %v2119
  %v2121 = vmul.f32 %v1582, 1.442695
  %v2122 = vpow.pop %v2121
  %v2123 = vmul.f32 %v1583, 1.442695
  %v2124 = vpow.pop %v2123
  %v2125 = vmul.f32 %v1584, 1.442695
  %v2126 = vpow.pop %v2125
  %v2127 = vmul.f32 %v1585, 1.442695
  %v2128 = vpow.pop %v2127
  %v2129 = vmul.f32 %v1586, 1.442695
  %v2130 = vpow.pop %v2129
  %v2131 = vmul.f32 %v1587, 1.442695
  %v2132 = vpow.pop %v2131
  %v2133 = vmul.f32 %v1588, 1.442695
  %v2134 = vpow.pop %v2133
  %v2135 = vmul.f32 %v1589, 1.442695
  %v2136 = vpow.pop %v2135
  %v2137 = vmul.f32 %v1590, 1.442695
  %v2138 = vpow.pop %v2137
  %v2139 = vmul.f32 %v1591, 1.442695
  %v2140 = vpow.pop %v2139
  %v2141 = vmul.f32 %v1592, 1.442695
  %v2142 = vpow.pop %v2141
  %v2143 = vmul.f32 %v1593, 1.442695
  %v2144 = vpow.pop %v2143
  %v2145 = vmul.f32 %v1594, 1.442695
  %v2146 = vpow.pop %v2145
  %v2147 = vmul.f32 %v1595, 1.442695
  %v2148 = vpow.pop %v2147
  %v2149 = vmul.f32 %v1596, 1.442695
  %v2150 = vpow.pop %v2149
  %v2151 = vmul.f32 %v1597, 1.442695
  %v2152 = vpow.pop %v2151
  %v2153 = vmul.f32 %v1598, 1.442695
  %v2154 = vpow.pop %v2153
  %v2155 = vmul.f32 %v1599, 1.442695
  %v2156 = vpow.pop %v2155
  %v2157 = vmul.f32 %v1600, 1.442695
  %v2158 = vpow.pop %v2157
  %v2159 = vmul.f32 %v1601, 1.442695
  %v2160 = vpow.pop %v2159
  %v2161 = vmul.f32 %v1602, 1.442695
  %v2162 = vpow.pop %v2161
  %v2163 = vmul.f32 %v1603, 1.442695
  %v2164 = vpow.pop %v2163
  %v2165 = vmul.f32 %v1604, 1.442695
  %v2166 = vpow.pop %v2165
  %v2167 = vmul.f32 %v1605, 1.442695
  %v2168 = vpow.pop %v2167
  %v2169 = vmul.f32 %v1606, 1.442695
  %v2170 = vpow.pop %v2169
  %v2171 = vmul.f32 %v1607, 1.442695
  %v2172 = vpow.pop %v2171
  %v2173 = vmul.f32 %v1608, 1.442695
  %v2174 = vpow.pop %v2173
  %v2175 = vmul.f32 %v1609, 1.442695
  %v2176 = vpow.pop %v2175
  %v2177 = vmul.f32 %v1610, 1.442695
  %v2178 = vpow.pop %v2177
  %v2179 = vmul.f32 %v1611, 1.442695
  %v2180 = vpow.pop %v2179
  %v2181 = vmul.f32 %v1612, 1.442695
  %v2182 = vpow.pop %v2181
  %v2183 = vmul.f32 %v1613, 1.442695
  %v2184 = vpow.pop %v2183
  %v2185 = vmul.f32 %v1614, 1.442695
  %v2186 = vpow.pop %v2185
  %v2187 = vmul.f32 %v1615, 1.442695
  %v2188 = vpow.pop %v2187
  %v2189 = vmul.f32 %v1616, 1.442695
  %v2190 = vpow.pop %v2189
  %v2191 = vmul.f32 %v1617, 1.442695
  %v2192 = vpow.pop %v2191
  %v2193 = vmul.f32 %v1618, 1.442695
  %v2194 = vpow.pop %v2193
  %v2195 = vmul.f32 %v1619, 1.442695
  %v2196 = vpow.pop %v2195
  %v2197 = vmul.f32 %v1620, 1.442695
  %v2198 = vpow.pop %v2197
  %v2199 = vmul.f32 %v1621, 1.442695
  %v2200 = vpow.pop %v2199
  %v2201 = vmul.f32 %v1622, 1.442695
  %v2202 = vpow.pop %v2201
  %v2203 = vmul.f32 %v1623, 1.442695
  %v2204 = vpow.pop %v2203
  %v2205 = vmul.f32 %v1624, 1.442695
  %v2206 = vpow.pop %v2205
  %v2207 = vmul.f32 %v1625, 1.442695
  %v2208 = vpow.pop %v2207
  %v2209 = vmul.f32 %v1626, 1.442695
  %v2210 = vpow.pop %v2209
  %v2211 = vmul.f32 %v1627, 1.442695
  %v2212 = vpow.pop %v2211
  %v2213 = vmul.f32 %v1628, 1.442695
  %v2214 = vpow.pop %v2213
  %v2215 = vmul.f32 %v1629, 1.442695
  %v2216 = vpow.pop %v2215
  %v2217 = vmul.f32 %v1630, 1.442695
  %v2218 = vpow.pop %v2217
  %v2219 = vmul.f32 %v1631, 1.442695
  %v2220 = vpow.pop %v2219
  %v2221 = vmul.f32 %v1632, 1.442695
  %v2222 = vpow.pop %v2221
  %v2223 = vmul.f32 %v1633, 1.442695
  %v2224 = vpow.pop %v2223
  %v2225 = vmul.f32 %v1634, 1.442695
  %v2226 = vpow.pop %v2225
  %v2227 = vmul.f32 %v1635, 1.442695
  %v2228 = vpow.pop %v2227
  %v2229 = vmul.f32 %v1636, 1.442695
  %v2230 = vpow.pop %v2229
  %v2231 = vmul.f32 %v1637, 1.442695
  %v2232 = vpow.pop %v2231
  %v2233 = vmul.f32 %v1638, 1.442695
  %v2234 = vpow.pop %v2233
  %v2235 = vmul.f32 %v1639, 1.442695
  %v2236 = vpow.pop %v2235
  %v2237 = vmul.f32 %v1640, 1.442695
  %v2238 = vpow.pop %v2237
  %v2239 = vmul.f32 %v1641, 1.442695
  %v2240 = vpow.pop %v2239
  %v2241 = vmul.f32 %v1642, 1.442695
  %v2242 = vpow.pop %v2241
  %v2243 = vmul.f32 %v1643, 1.442695
  %v2244 = vpow.pop %v2243
  %v2245 = vmul.f32 %v1644, 1.442695
  %v2246 = vpow.pop %v2245
  %v2247 = vmul.f32 %v1645, 1.442695
  %v2248 = vpow.pop %v2247
  %v2249 = vmul.f32 %v1646, 1.442695
  %v2250 = vpow.pop %v2249
  %v2251 = vmul.f32 %v1647, 1.442695
  %v2252 = vpow.pop %v2251
  %v2253 = vmul.f32 %v1648, 1.442695
  %v2254 = vpow.pop %v2253
  %v2255 = vmul.f32 %v1649, 1.442695
  %v2256 = vpow.pop %v2255
  %v2257 = vmul.f32 %v1650, 1.442695
  %v2258 = vpow.pop %v2257
  %v2259 = vmul.f32 %v1651, 1.442695
  %v2260 = vpow.pop %v2259
  %v2261 = vmul.f32 %v1652, 1.442695
  %v2262 = vpow.pop %v2261
  %v2263 = vmul.f32 %v1653, 1.442695
  %v2264 = vpow.pop %v2263
  %v2265 = vmul.f32 %v1654, 1.442695
  %v2266 = vpow.pop %v2265
  %v2267 = vmul.f32 %v1655, 1.442695
  %v2268 = vpow.pop %v2267
  %v2269 = vmul.f32 %v1656, 1.442695
  %v2270 = vpow.pop %v2269
  %v2271 = vmul.f32 %v1657, 1.442695
  %v2272 = vpow.pop %v2271
  %v2273 = vmul.f32 %v1658, 1.442695
  %v2274 = vpow.pop %v2273
  %v2275 = vmul.f32 %v1659, 1.442695
  %v2276 = vpow.pop %v2275
  %v2277 = vmul.f32 %v1660, 1.442695
  %v2278 = vpow.pop %v2277
  %v2279 = vmul.f32 %v1661, 1.442695
  %v2280 = vpow.pop %v2279
  %v2281 = vmul.f32 %v1662, 1.442695
  %v2282 = vpow.pop %v2281
  %v2283 = vmul.f32 %v1663, 1.442695
  %v2284 = vpow.pop %v2283
  %v2285 = vmul.f32 %v1664, 1.442695
  %v2286 = vpow.pop %v2285
  %v2287 = vmul.f32 %v1665, 1.442695
  %v2288 = vpow.pop %v2287
  %v2289 = vmul.f32 %v1666, 1.442695
  %v2290 = vpow.pop %v2289
  %v2291 = vmul.f32 %v1667, 1.442695
  %v2292 = vpow.pop %v2291
  %v2293 = vmul.f32 %v1668, 1.442695
  %v2294 = vpow.pop %v2293
  %v2295 = vmul.f32 %v1669, 1.442695
  %v2296 = vpow.pop %v2295
  %v2297 = vmul.f32 %v1670, 1.442695
  %v2298 = vpow.pop %v2297
  %v2299 = vmul.f32 %v1671, 1.442695
  %v2300 = vpow.pop %v2299
  %v2301 = vmul.f32 %v1672, 1.442695
  %v2302 = vpow.pop %v2301
  %v2303 = vmul.f32 %v1673, 1.442695
  %v2304 = vpow.pop %v2303
  %v2305 = vmul.f32 %v1674, 1.442695
  %v2306 = vpow.pop %v2305
  %v2307 = vmul.f32 %v1675, 1.442695
  %v2308 = vpow.pop %v2307
  %v2309 = vmul.f32 %v1676, 1.442695
  %v2310 = vpow.pop %v2309
  %v2311 = vmul.f32 %v1677, 1.442695
  %v2312 = vpow.pop %v2311
  %v2313 = vmul.f32 %v1678, 1.442695
  %v2314 = vpow.pop %v2313
  %v2315 = vmul.f32 %v1679, 1.442695
  %v2316 = vpow.pop %v2315
  %v2317 = vmul.f32 %v1680, 1.442695
  %v2318 = vpow.pop %v2317
  %v2319 = vmul.f32 %v1681, 1.442695
  %v2320 = vpow.pop %v2319
  %v2321 = vmul.f32 %v1682, 1.442695
  %v2322 = vpow.pop %v2321
  %v2323 = vmul.f32 %v1683, 1.442695
  %v2324 = vpow.pop %v2323
  %v2325 = vmul.f32 %v1684, 1.442695
  %v2326 = vpow.pop %v2325
  %v2327 = vmul.f32 %v1685, 1.442695
  %v2328 = vpow.pop %v2327
  %v2329 = vmul.f32 %v1686, 1.442695
  %v2330 = vpow.pop %v2329
  %v2331 = vmul.f32 %v1687, 1.442695
  %v2332 = vpow.pop %v2331
  %v2333 = vmul.f32 %v1688, 1.442695
  %v2334 = vpow.pop %v2333
  %v2335 = vmul.f32 %v1689, 1.442695
  %v2336 = vpow.pop %v2335
  %v2337 = vmul.f32 %v1690, 1.442695
  %v2338 = vpow.pop %v2337
  %v2339 = vmul.f32 %v1691, 1.442695
  %v2340 = vpow.pop %v2339
  %v2341 = vmul.f32 %v1692, 1.442695
  %v2342 = vpow.pop %v2341
  %v2343 = vmul.f32 %v1693, 1.442695
  %v2344 = vpow.pop %v2343
  %v2345 = vmul.f32 %v1694, 1.442695
  %v2346 = vpow.pop %v2345
  %v2347 = vmul.f32 %v1695, 1.442695
  %v2348 = vpow.pop %v2347
  %v2349 = vmul.f32 %v1696, 1.442695
  %v2350 = vpow.pop %v2349
  %v2351 = vmul.f32 %v1697, 1.442695
  %v2352 = vpow.pop %v2351
  %v2353 = vmul.f32 %v1698, 1.442695
  %v2354 = vpow.pop %v2353
  %v2355 = vmul.f32 %v1699, 1.442695
  %v2356 = vpow.pop %v2355
  %v2357 = vmul.f32 %v1700, 1.442695
  %v2358 = vpow.pop %v2357
  %v2359 = vmul.f32 %v1701, 1.442695
  %v2360 = vpow.pop %v2359
  %v2361 = vmul.f32 %v1702, 1.442695
  %v2362 = vpow.pop %v2361
  %v2363 = vmul.f32 %v1703, 1.442695
  %v2364 = vpow.pop %v2363
  %v2365 = vmul.f32 %v1704, 1.442695
  %v2366 = vpow.pop %v2365
  %v2367 = vmul.f32 %v1705, 1.442695
  %v2368 = vpow.pop %v2367
  %v2369 = vmul.f32 %v1706, 1.442695
  %v2370 = vpow.pop %v2369
  %v2371 = vmul.f32 %v1707, 1.442695
  %v2372 = vpow.pop %v2371
  %v2373 = vmul.f32 %v1708, 1.442695
  %v2374 = vpow.pop %v2373
  %v2375 = vmul.f32 %v1709, 1.442695
  %v2376 = vpow.pop %v2375
  %v2377 = vmul.f32 %v1710, 1.442695
  %v2378 = vpow.pop %v2377
  %v2379 = vmul.f32 %v1711, 1.442695
  %v2380 = vpow.pop %v2379
  %v2381 = vmul.f32 %v1712, 1.442695
  %v2382 = vpow.pop %v2381
  %v2383 = vmul.f32 %v1713, 1.442695
  %v2384 = vpow.pop %v2383
  %v2385 = vmul.f32 %v1714, 1.442695
  %v2386 = vpow.pop %v2385
  %v2387 = vmul.f32 %v1715, 1.442695
  %v2388 = vpow.pop %v2387
  %v2389 = vmul.f32 %v1716, 1.442695
  %v2390 = vpow.pop %v2389
  %v2391 = vmul.f32 %v1717, 1.442695
  %v2392 = vpow.pop %v2391
  %v2393 = vmul.f32 %v1718, 1.442695
  %v2394 = vpow.pop %v2393
  %v2395 = vmul.f32 %v1719, 1.442695
  %v2396 = vpow.pop %v2395
  %v2397 = vmul.f32 %v1720, 1.442695
  %v2398 = vpow.pop %v2397
  %v2399 = vmul.f32 %v1721, 1.442695
  %v2400 = vpow.pop %v2399
  %v2401 = vmul.f32 %v1722, 1.442695
  %v2402 = vpow.pop %v2401
  %v2403 = vmul.f32 %v1723, 1.442695
  %v2404 = vpow.pop %v2403
  %v2405 = vmul.f32 %v1724, 1.442695
  %v2406 = vpow.pop %v2405
  %v2407 = vmul.f32 %v1725, 1.442695
  %v2408 = vpow.pop %v2407
  %v2409 = vmul.f32 %v1726, 1.442695
  %v2410 = vpow.pop %v2409
  %v2411 = vmul.f32 %v1727, 1.442695
  %v2412 = vpow.pop %v2411
  %v2413 = vmul.f32 %v1728, 1.442695
  %v2414 = vpow.pop %v2413
  %v2415 = vmul.f32 %v1729, 1.442695
  %v2416 = vpow.pop %v2415
  %v2417 = vmul.f32 %v1730, 1.442695
  %v2418 = vpow.pop %v2417
  %v2419 = vmul.f32 %v1731, 1.442695
  %v2420 = vpow.pop %v2419
  %v2421 = vmul.f32 %v1732, 1.442695
  %v2422 = vpow.pop %v2421
  %v2423 = vmul.f32 %v1733, 1.442695
  %v2424 = vpow.pop %v2423
  %v2425 = vmul.f32 %v1734, 1.442695
  %v2426 = vpow.pop %v2425
  %v2427 = vmul.f32 %v1735, 1.442695
  %v2428 = vpow.pop %v2427
  %v2429 = vmul.f32 %v1736, 1.442695
  %v2430 = vpow.pop %v2429
  %v2431 = vmul.f32 %v1737, 1.442695
  %v2432 = vpow.pop %v2431
  %v2433 = vmul.f32 %v1738, 1.442695
  %v2434 = vpow.pop %v2433
  %v2435 = vmul.f32 %v1739, 1.442695
  %v2436 = vpow.pop %v2435
  %v2437 = vmul.f32 %v1740, 1.442695
  %v2438 = vpow.pop %v2437
  %v2439 = vmul.f32 %v1741, 1.442695
  %v2440 = vpow.pop %v2439
  %v2441 = vmul.f32 %v1742, 1.442695
  %v2442 = vpow.pop %v2441
  %v2443 = vmul.f32 %v1743, 1.442695
  %v2444 = vpow.pop %v2443
  %v2445 = vmul.f32 %v1744, 1.442695
  %v2446 = vpow.pop %v2445
  %v2447 = vmul.f32 %v1745, 1.442695
  %v2448 = vpow.pop %v2447
  %v2449 = vmul.f32 %v1746, 1.442695
  %v2450 = vpow.pop %v2449
  %v2451 = vmul.f32 %v1747, 1.442695
  %v2452 = vpow.pop %v2451
  %v2453 = vmul.f32 %v1748, 1.442695
  %v2454 = vpow.pop %v2453
  %v2455 = vmul.f32 %v1749, 1.442695
  %v2456 = vpow.pop %v2455
  %v2457 = vmul.f32 %v1750, 1.442695
  %v2458 = vpow.pop %v2457
  %v2459 = vmul.f32 %v1751, 1.442695
  %v2460 = vpow.pop %v2459
  %v2461 = vmul.f32 %v1752, 1.442695
  %v2462 = vpow.pop %v2461
  %v2463 = vmul.f32 %v1753, 1.442695
  %v2464 = vpow.pop %v2463
  %v2465 = vmul.f32 %v1754, 1.442695
  %v2466 = vpow.pop %v2465
  %v2467 = vmul.f32 %v1755, 1.442695
  %v2468 = vpow.pop %v2467
  %v2469 = vmul.f32 %v1756, 1.442695
  %v2470 = vpow.pop %v2469
  %v2471 = vmul.f32 %v1757, 1.442695
  %v2472 = vpow.pop %v2471
  %v2473 = vmul.f32 %v1758, 1.442695
  %v2474 = vpow.pop %v2473
  %v2475 = vmul.f32 %v1759, 1.442695
  %v2476 = vpow.pop %v2475
  %v2477 = vmul.f32 %v1760, 1.442695
  %v2478 = vpow.pop %v2477
  %v2479 = vmul.f32 %v1761, 1.442695
  %v2480 = vpow.pop %v2479
  %v2481 = vmul.f32 %v1762, 1.442695
  %v2482 = vpow.pop %v2481
  %v2483 = vmul.f32 %v1763, 1.442695
  %v2484 = vpow.pop %v2483
  %v2485 = vmul.f32 %v1764, 1.442695
  %v2486 = vpow.pop %v2485
  %v2487 = vmul.f32 %v1765, 1.442695
  %v2488 = vpow.pop %v2487
  %v2489 = vmul.f32 %v1766, 1.442695
  %v2490 = vpow.pop %v2489
  %v2491 = vmul.f32 %v1767, 1.442695
  %v2492 = vpow.pop %v2491
  %v2493 = vmul.f32 %v1768, 1.442695
  %v2494 = vpow.pop %v2493
  %v2495 = vmul.f32 %v1769, 1.442695
  %v2496 = vpow.pop %v2495
  %v2497 = vmul.f32 %v1770, 1.442695
  %v2498 = vpow.pop %v2497
  %v2499 = vmul.f32 %v1771, 1.442695
  %v2500 = vpow.pop %v2499
  %v2501 = vmul.f32 %v1772, 1.442695
  %v2502 = vpow.pop %v2501
  %v2503 = vmul.f32 %v1773, 1.442695
  %v2504 = vpow.pop %v2503
  %v2505 = vmul.f32 %v1774, 1.442695
  %v2506 = vpow.pop %v2505
  %v2507 = vmul.f32 %v1775, 1.442695
  %v2508 = vpow.pop %v2507
  %v2509 = vmul.f32 %v1776, 1.442695
  %v2510 = vpow.pop %v2509
  %v2511 = vmul.f32 %v1777, 1.442695
  %v2512 = vpow.pop %v2511
  %v2513 = vmul.f32 %v1778, 1.442695
  %v2514 = vpow.pop %v2513
  %v2515 = vmul.f32 %v1779, 1.442695
  %v2516 = vpow.pop %v2515
  %v2517 = vmul.f32 %v1780, 1.442695
  %v2518 = vpow.pop %v2517
  %v2519 = vmul.f32 %v1781, 1.442695
  %v2520 = vpow.pop %v2519
  %v2521 = vmul.f32 %v1782, 1.442695
  %v2522 = vpow.pop %v2521
  %v2523 = vmul.f32 %v1783, 1.442695
  %v2524 = vpow.pop %v2523
  %v2525 = vmul.f32 %v1784, 1.442695
  %v2526 = vpow.pop %v2525
  %v2527 = vmul.f32 %v1785, 1.442695
  %v2528 = vpow.pop %v2527
  %v2529 = vmul.f32 %v1786, 1.442695
  %v2530 = vpow.pop %v2529
  %v2531 = vmul.f32 %v1787, 1.442695
  %v2532 = vpow.pop %v2531
  %v2533 = vmul.f32 %v1788, 1.442695
  %v2534 = vpow.pop %v2533
  %v2535 = vmul.f32 %v1789, 1.442695
  %v2536 = vpow.pop %v2535
  %v2537 = vmul.f32 %v1790, 1.442695
  %v2538 = vpow.pop %v2537
  %v2539 = vmul.f32 %v1791, 1.442695
  %v2540 = vpow.pop %v2539
  %v2541 = vmul.f32 %v1792, 1.442695
  %v2542 = vpow.pop %v2541
  %v2543 = vmul.f32 %v1793, 1.442695
  %v2544 = vpow.pop %v2543
  %v2545 = vmul.f32 %v1794, 1.442695
  %v2546 = vpow.pop %v2545
  %v2547 = vmul.f32 %v1795, 1.442695
  %v2548 = vpow.pop %v2547
  %v2549 = vmul.f32 %v1796, 1.442695
  %v2550 = vpow.pop %v2549
  %v2551 = vmul.f32 %v1797, 1.442695
  %v2552 = vpow.pop %v2551
  %v2553 = vmul.f32 %v1798, 1.442695
  %v2554 = vpow.pop %v2553
  %v2555 = vmul.f32 %v1799, 1.442695
  %v2556 = vpow.pop %v2555
  %v2557 = vmul.f32 %v1800, 1.442695
  %v2558 = vpow.pop %v2557
  %v2559 = vmul.f32 %v1801, 1.442695
  %v2560 = vpow.pop %v2559
  %v2561 = vmul.f32 %v1802, 1.442695
  %v2562 = vpow.pop %v2561
  %v2563 = vmul.f32 %v1803, 1.442695
  %v2564 = vpow.pop %v2563
  %v2565 = vmul.f32 %v1804, 1.442695
  %v2566 = vpow.pop %v2565
  %v2567 = vmul.f32 %v1805, 1.442695
  %v2568 = vpow.pop %v2567
  %v2569 = vmul.f32 %v1806, 1.442695
  %v2570 = vpow.pop %v2569
  %v2571 = vmul.f32 %v1807, 1.442695
  %v2572 = vpow.pop %v2571
  %v2573 = vmul.f32 %v1808, 1.442695
  %v2574 = vpow.pop %v2573
  %v2575 = vmul.f32 %v1809, 1.442695
  %v2576 = vpow.pop %v2575
  %v2577 = vmul.f32 %v1810, 1.442695
  %v2578 = vpow.pop %v2577
  %v2579 = vmul.f32 %v1811, 1.442695
  %v2580 = vpow.pop %v2579
  %v2581 = vmul.f32 %v1812, 1.442695
  %v2582 = vpow.pop %v2581
  %v2583 = vmul.f32 %v1813, 1.442695
  %v2584 = vpow.pop %v2583
  %v2585 = vmul.f32 %v1814, 1.442695
  %v2586 = vpow.pop %v2585
  %v2587 = vmul.f32 %v1815, 1.442695
  %v2588 = vpow.pop %v2587
  %v2589 = vmul.f32 %v1816, 1.442695
  %v2590 = vpow.pop %v2589
  %v2591 = vmul.f32 %v1817, 1.442695
  %v2592 = vpow.pop %v2591
  %v2593 = vmul.f32 %v1818, 1.442695
  %v2594 = vpow.pop %v2593
  %v2595 = vmul.f32 %v1819, 1.442695
  %v2596 = vpow.pop %v2595
  %v2597 = vmul.f32 %v1820, 1.442695
  %v2598 = vpow.pop %v2597
  %v2599 = vmul.f32 %v1821, 1.442695
  %v2600 = vpow.pop %v2599
  %v2601 = vmul.f32 %v1822, 1.442695
  %v2602 = vpow.pop %v2601
  %v2603 = vmul.f32 %v1823, 1.442695
  %v2604 = vpow.pop %v2603
  %v2605 = vmul.f32 %v1824, 1.442695
  %v2606 = vpow.pop %v2605
  %v2607 = vmul.f32 %v1825, 1.442695
  %v2608 = vpow.pop %v2607
  %v2609 = vmul.f32 %v1826, 1.442695
  %v2610 = vpow.pop %v2609
  %v2611 = vmul.f32 %v1827, 1.442695
  %v2612 = vpow.pop %v2611
  %v2613 = vmul.f32 %v1828, 1.442695
  %v2614 = vpow.pop %v2613
  %v2615 = vmul.f32 %v1829, 1.442695
  %v2616 = vpow.pop %v2615
  %v2617 = vmul.f32 %v1830, 1.442695
  %v2618 = vpow.pop %v2617
  %v2619 = vmul.f32 %v1831, 1.442695
  %v2620 = vpow.pop %v2619
  %v2621 = vmul.f32 %v1832, 1.442695
  %v2622 = vpow.pop %v2621
  %v2623 = vmul.f32 %v1833, 1.442695
  %v2624 = vpow.pop %v2623
  %v2625 = vmul.f32 %v1834, 1.442695
  %v2626 = vpow.pop %v2625
  %v2627 = vmul.f32 %v1835, 1.442695
  %v2628 = vpow.pop %v2627
  %v2629 = vmul.f32 %v1836, 1.442695
  %v2630 = vpow.pop %v2629
  %v2631 = vmul.f32 %v1837, 1.442695
  %v2632 = vpow.pop %v2631
  %v2633 = vmul.f32 %v1838, 1.442695
  %v2634 = vpow.pop %v2633
  %v2635 = vmul.f32 %v1839, 1.442695
  %v2636 = vpow.pop %v2635
  %v2637 = vmul.f32 %v1840, 1.442695
  %v2638 = vpow.pop %v2637
  %v2639 = vmul.f32 %v1841, 1.442695
  %v2640 = vpow.pop %v2639
  %v2641 = vmul.f32 %v1842, 1.442695
  %v2642 = vpow.pop %v2641
  %v2643 = vmul.f32 %v1843, 1.442695
  %v2644 = vpow.pop %v2643
  %v2645 = vmul.f32 %v1844, 1.442695
  %v2646 = vpow.pop %v2645
  %v2647 = vmul.f32 %v1845, 1.442695
  %v2648 = vpow.pop %v2647
  %v2649 = vmul.f32 %v1846, 1.442695
  %v2650 = vpow.pop %v2649
  %v2651 = vmul.f32 %v1847, 1.442695
  %v2652 = vpow.pop %v2651
  %v2653 = vmul.f32 %v1848, 1.442695
  %v2654 = vpow.pop %v2653
  %v2655 = vmul.f32 %v1849, 1.442695
  %v2656 = vpow.pop %v2655
  %v2657 = vmul.f32 %v1850, 1.442695
  %v2658 = vpow.pop %v2657
  %v2659 = vmul.f32 %v1851, 1.442695
  %v2660 = vpow.pop %v2659
  %v2661 = vmul.f32 %v1852, 1.442695
  %v2662 = vpow.pop %v2661
  %v2663 = vmul.f32 %v1853, 1.442695
  %v2664 = vpow.pop %v2663
  %v2665 = vmul.f32 %v1854, 1.442695
  %v2666 = vpow.pop %v2665
  %v2667 = vmul.f32 %v1855, 1.442695
  %v2668 = vpow.pop %v2667
  %v2669 = vmul.f32 %v1856, 1.442695
  %v2670 = vpow.pop %v2669
  %v2671 = vmul.f32 %v1857, 1.442695
  %v2672 = vpow.pop %v2671
  %v2673 = vmul.f32 %v1858, 1.442695
  %v2674 = vpow.pop %v2673
  %v2675 = vmul.f32 %v1859, 1.442695
  %v2676 = vpow.pop %v2675
  %v2677 = vmul.f32 %v1860, 1.442695
  %v2678 = vpow.pop %v2677
  %v2679 = vmul.f32 %v1861, 1.442695
  %v2680 = vpow.pop %v2679
  %v2681 = vmul.f32 %v1862, 1.442695
  %v2682 = vpow.pop %v2681
  %v2683 = vmul.f32 %v1863, 1.442695
  %v2684 = vpow.pop %v2683
  %v2685 = vmul.f32 %v1864, 1.442695
  %v2686 = vpow.pop %v2685
  %v2687 = vmul.f32 %v1865, 1.442695
  %v2688 = vpow.pop %v2687
  %v2689 = vmul.f32 %v1866, 1.442695
  %v2690 = vpow.pop %v2689
  %v2691 = vmul.f32 %v1867, 1.442695
  %v2692 = vpow.pop %v2691
  %v2693 = vmul.f32 %v1868, 1.442695
  %v2694 = vpow.pop %v2693
  %v2695 = vmul.f32 %v1869, 1.442695
  %v2696 = vpow.pop %v2695
  %v2697 = vmul.f32 %v1870, 1.442695
  %v2698 = vpow.pop %v2697
  %v2699 = vmul.f32 %v1871, 1.442695
  %v2700 = vpow.pop %v2699
  %v2701 = vmul.f32 %v1872, 1.442695
  %v2702 = vpow.pop %v2701
  %v2703 = vmul.f32 %v1873, 1.442695
  %v2704 = vpow.pop %v2703
  %v2705 = vmul.f32 %v1874, 1.442695
  %v2706 = vpow.pop %v2705
  %v2707 = vmul.f32 %v1875, 1.442695
  %v2708 = vpow.pop %v2707
  %v2709 = vmul.f32 %v1876, 1.442695
  %v2710 = vpow.pop %v2709
  %v2711 = vmul.f32 %v1877, 1.442695
  %v2712 = vpow.pop %v2711
  %v2713 = vmul.f32 %v1878, 1.442695
  %v2714 = vpow.pop %v2713
  %v2715 = vmul.f32 %v1879, 1.442695
  %v2716 = vpow.pop %v2715
  %v2717 = vmul.f32 %v1880, 1.442695
  %v2718 = vpow.pop %v2717
  %v2719 = vmul.f32 %v1881, 1.442695
  %v2720 = vpow.pop %v2719
  %v2721 = vmul.f32 %v1882, 1.442695
  %v2722 = vpow.pop %v2721
  %v2723 = vmul.f32 %v1883, 1.442695
  %v2724 = vpow.pop %v2723
  %v2725 = vmul.f32 %v1884, 1.442695
  %v2726 = vpow.pop %v2725
  %v2727 = vmul.f32 %v1885, 1.442695
  %v2728 = vpow.pop %v2727
  %v2729 = vmul.f32 %v1886, 1.442695
  %v2730 = vpow.pop %v2729
  %v2731 = vmul.f32 %v1887, 1.442695
  %v2732 = vpow.pop %v2731
  %v2733 = vmul.f32 %v1888, 1.442695
  %v2734 = vpow.pop %v2733
  %v2735 = vmul.f32 %v1889, 1.442695
  %v2736 = vpow.pop %v2735
  %v2737 = vmul.f32 %v1890, 1.442695
  %v2738 = vpow.pop %v2737
  %v2739 = vmul.f32 %v1891, 1.442695
  %v2740 = vpow.pop %v2739
  %v2741 = vmul.f32 %v1892, 1.442695
  %v2742 = vpow.pop %v2741
  %v2743 = vmul.f32 %v1893, 1.442695
  %v2744 = vpow.pop %v2743
  %v2745 = vmul.f32 %v1894, 1.442695
  %v2746 = vpow.pop %v2745
  %v2747 = vmul.f32 %v1895, 1.442695
  %v2748 = vpow.pop %v2747
  %v2749 = vmul.f32 %v1896, 1.442695
  %v2750 = vpow.pop %v2749
  %v2751 = vmul.f32 %v1897, 1.442695
  %v2752 = vpow.pop %v2751
  %v2753 = vmul.f32 %v1898, 1.442695
  %v2754 = vpow.pop %v2753
  %v2755 = vmul.f32 %v1899, 1.442695
  %v2756 = vpow.pop %v2755
  %v2757 = vmul.f32 %v1900, 1.442695
  %v2758 = vpow.pop %v2757
  %v2759 = vmul.f32 %v1901, 1.442695
  %v2760 = vpow.pop %v2759
  %v2761 = vmul.f32 %v1902, 1.442695
  %v2762 = vpow.pop %v2761
  %v2763 = vmul.f32 %v1903, 1.442695
  %v2764 = vpow.pop %v2763
  %v2765 = vmul.f32 %v1904, 1.442695
  %v2766 = vpow.pop %v2765
  %v2767 = vmul.f32 %v1905, 1.442695
  %v2768 = vpow.pop %v2767
  %v2769 = vmul.f32 %v1906, 1.442695
  %v2770 = vpow.pop %v2769
  %v2771 = vmul.f32 %v1907, 1.442695
  %v2772 = vpow.pop %v2771
  %v2773 = vmul.f32 %v1908, 1.442695
  %v2774 = vpow.pop %v2773
  %v2775 = vmul.f32 %v1909, 1.442695
  %v2776 = vpow.pop %v2775
  %v2777 = vmul.f32 %v1910, 1.442695
  %v2778 = vpow.pop %v2777
  %v2779 = vmul.f32 %v1911, 1.442695
  %v2780 = vpow.pop %v2779
  %v2781 = vmul.f32 %v1912, 1.442695
  %v2782 = vpow.pop %v2781
  %v2783 = vmul.f32 %v1913, 1.442695
  %v2784 = vpow.pop %v2783
  %v2785 = vmul.f32 %v1914, 1.442695
  %v2786 = vpow.pop %v2785
  %v2787 = vmul.f32 %v1915, 1.442695
  %v2788 = vpow.pop %v2787
  %v2789 = vmul.f32 %v1916, 1.442695
  %v2790 = vpow.pop %v2789
  %v2791 = vmul.f32 %v1917, 1.442695
  %v2792 = vpow.pop %v2791
  %v2793 = vmul.f32 %v1918, 1.442695
  %v2794 = vpow.pop %v2793
  %v2795 = vmul.f32 %v1919, 1.442695
  %v2796 = vpow.pop %v2795
  %v2797 = vmul.f32 %v1920, 1.442695
  %v2798 = vpow.pop %v2797
  %v2799 = vmul.f32 %v1921, 1.442695
  %v2800 = vpow.pop %v2799
  %v2801 = vmul.f32 %v1922, 1.442695
  %v2802 = vpow.pop %v2801
  %v2803 = vmul.f32 %v1923, 1.442695
  %v2804 = vpow.pop %v2803
  %v2805 = vmul.f32 %v1924, 1.442695
  %v2806 = vpow.pop %v2805
  %v2807 = vmul.f32 %v1925, 1.442695
  %v2808 = vpow.pop %v2807
  %v2809 = vmul.f32 %v1926, 1.442695
  %v2810 = vpow.pop %v2809
  %v2811 = vmul.f32 %v1927, 1.442695
  %v2812 = vpow.pop %v2811
  %v2813 = vmul.f32 %v1928, 1.442695
  %v2814 = vpow.pop %v2813
  %v2815 = vmul.f32 %v1929, 1.442695
  %v2816 = vpow.pop %v2815
  %v2817 = vmul.f32 %v1930, 1.442695
  %v2818 = vpow.pop %v2817
  %v2819 = vmul.f32 %v1931, 1.442695
  %v2820 = vpow.pop %v2819
  %v2821 = vmul.f32 %v1932, 1.442695
  %v2822 = vpow.pop %v2821
  %v2823 = vmul.f32 %v1933, 1.442695
  %v2824 = vpow.pop %v2823
  %v2825 = vmul.f32 %v1934, 1.442695
  %v2826 = vpow.pop %v2825
  %v2827 = vmul.f32 %v1935, 1.442695
  %v2828 = vpow.pop %v2827
  %v2829 = vmul.f32 %v1936, 1.442695
  %v2830 = vpow.pop %v2829
  %v2831 = vmul.f32 %v1937, 1.442695
  %v2832 = vpow.pop %v2831
  %v2833 = vmul.f32 %v1938, 1.442695
  %v2834 = vpow.pop %v2833
  %v2835 = vmul.f32 %v1939, 1.442695
  %v2836 = vpow.pop %v2835
  %v2837 = vmul.f32 %v1940, 1.442695
  %v2838 = vpow.pop %v2837
  %v2839 = vmul.f32 %v1941, 1.442695
  %v2840 = vpow.pop %v2839
  %v2841 = vmul.f32 %v1942, 1.442695
  %v2842 = vpow.pop %v2841
  %v2843 = vmul.f32 %v1943, 1.442695
  %v2844 = vpow.pop %v2843
  %v2845 = vmul.f32 %v1944, 1.442695
  %v2846 = vpow.pop %v2845
  %v2847 = vmul.f32 %v1945, 1.442695
  %v2848 = vpow.pop %v2847
  %v2849 = vmul.f32 %v1946, 1.442695
  %v2850 = vpow.pop %v2849
  %v2851 = vmul.f32 %v1947, 1.442695
  %v2852 = vpow.pop %v2851
  %v2853 = vmul.f32 %v1948, 1.442695
  %v2854 = vpow.pop %v2853
  %v2855 = vmul.f32 %v1949, 1.442695
  %v2856 = vpow.pop %v2855
  %v2857 = vmul.f32 %v1950, 1.442695
  %v2858 = vpow.pop %v2857
  %v2859 = vmul.f32 %v1951, 1.442695
  %v2860 = vpow.pop %v2859
  %v2861 = vmul.f32 %v1952, 1.442695
  %v2862 = vpow.pop %v2861
  %v2863 = vmul.f32 %v1953, 1.442695
  %v2864 = vpow.pop %v2863
  %v2865 = vmul.f32 %v1954, 1.442695
  %v2866 = vpow.pop %v2865
  %v2867 = vmul.f32 %v1955, 1.442695
  %v2868 = vpow.pop %v2867
  %v2869 = vmul.f32 %v1956, 1.442695
  %v2870 = vpow.pop %v2869
  %v2871 = vmul.f32 %v1957, 1.442695
  %v2872 = vpow.pop %v2871
  %v2873 = vmul.f32 %v1958, 1.442695
  %v2874 = vpow.pop %v2873
  %v2875 = vmul.f32 %v1959, 1.442695
  %v2876 = vpow.pop %v2875
  %v2877 = vmul.f32 %v1960, 1.442695
  %v2878 = vpow.pop %v2877
  %v2879 = vmul.f32 %v1961, 1.442695
  %v2880 = vpow.pop %v2879
  %v2881 = vmul.f32 %v1962, 1.442695
  %v2882 = vpow.pop %v2881
  %v2883 = vmul.f32 %v1963, 1.442695
  %v2884 = vpow.pop %v2883
  %v2885 = vmul.f32 %v1964, 1.442695
  %v2886 = vpow.pop %v2885
  %v2887 = vmul.f32 %v1965, 1.442695
  %v2888 = vpow.pop %v2887
  %v2889 = vmul.f32 %v1966, 1.442695
  %v2890 = vpow.pop %v2889
  %v2891 = vmul.f32 %v1967, 1.442695
  %v2892 = vpow.pop %v2891
  %v2893 = vmul.f32 %v1968, 1.442695
  %v2894 = vpow.pop %v2893
  %v2895 = vmul.f32 %v1969, 1.442695
  %v2896 = vpow.pop %v2895
  %v2897 = vmul.f32 %v1970, 1.442695
  %v2898 = vpow.pop %v2897
  %v2899 = vmul.f32 %v1971, 1.442695
  %v2900 = vpow.pop %v2899
  %v2901 = vmul.f32 %v1972, 1.442695
  %v2902 = vpow.pop %v2901
  %v2903 = vmul.f32 %v1973, 1.442695
  %v2904 = vpow.pop %v2903
  %v2905 = vmul.f32 %v1974, 1.442695
  %v2906 = vpow.pop %v2905
  %v2907 = vmul.f32 %v1975, 1.442695
  %v2908 = vpow.pop %v2907
  %v2909 = vmul.f32 %v1976, 1.442695
  %v2910 = vpow.pop %v2909
  %v2911 = vmul.f32 %v1977, 1.442695
  %v2912 = vpow.pop %v2911
  %v2913 = vmul.f32 %v1978, 1.442695
  %v2914 = vpow.pop %v2913
  %v2915 = vmul.f32 %v1979, 1.442695
  %v2916 = vpow.pop %v2915
  %v2917 = vmul.f32 %v1980, 1.442695
  %v2918 = vpow.pop %v2917
  %v2919 = vmul.f32 %v1981, 1.442695
  %v2920 = vpow.pop %v2919
  %v2921 = vmul.f32 %v1982, 1.442695
  %v2922 = vpow.pop %v2921
  %v2923 = vmul.f32 %v1983, 1.442695
  %v2924 = vpow.pop %v2923
  %v2925 = vmul.f32 %v1984, 1.442695
  %v2926 = vpow.pop %v2925
  %v2927 = vmul.f32 %v1985, 1.442695
  %v2928 = vpow.pop %v2927
  %v2929 = vmul.f32 %v1986, 1.442695
  %v2930 = vpow.pop %v2929
  %v2931 = vmul.f32 %v1987, 1.442695
  %v2932 = vpow.pop %v2931
  %v2933 = vmul.f32 %v1988, 1.442695
  %v2934 = vpow.pop %v2933
  %v2935 = vmul.f32 %v1989, 1.442695
  %v2936 = vpow.pop %v2935
  %v2937 = vmul.f32 %v1990, 1.442695
  %v2938 = vpow.pop %v2937
  %v2939 = vmul.f32 %v1991, 1.442695
  %v2940 = vpow.pop %v2939
  %v2941 = vmul.f32 %v1992, 1.442695
  %v2942 = vpow.pop %v2941
  %v2943 = vmul.f32 %v1993, 1.442695
  %v2944 = vpow.pop %v2943
  %v2945 = vmul.f32 %v1994, 1.442695
  %v2946 = vpow.pop %v2945
  %v2947 = vmul.f32 %v1995, 1.442695
  %v2948 = vpow.pop %v2947
  %v2949 = vmul.f32 %v1996, 1.442695
  %v2950 = vpow.pop %v2949
  %v2951 = vmul.f32 %v1997, 1.442695
  %v2952 = vpow.pop %v2951
  %v2953 = vmul.f32 %v1998, 1.442695
  %v2954 = vpow.pop %v2953
  %v2955 = vmul.f32 %v1999, 1.442695
  %v2956 = vpow.pop %v2955
  %v2957 = vmul.f32 %v2000, 1.442695
  %v2958 = vpow.pop %v2957
  %v2959 = vmul.f32 %v2001, 1.442695
  %v2960 = vpow.pop %v2959
  %v2961 = vmul.f32 %v2002, 1.442695
  %v2962 = vpow.pop %v2961
  %v2963 = vmul.f32 %v2003, 1.442695
  %v2964 = vpow.pop %v2963
  %v2965 = vmul.f32 %v2004, 1.442695
  %v2966 = vpow.pop %v2965
  %v2967 = vmul.f32 %v2005, 1.442695
  %v2968 = vpow.pop %v2967
  %v2969 = vmul.f32 %v2006, 1.442695
  %v2970 = vpow.pop %v2969
  %v2971 = vmul.f32 %v2007, 1.442695
  %v2972 = vpow.pop %v2971
  %v2973 = vmul.f32 %v2008, 1.442695
  %v2974 = vpow.pop %v2973
  %v2975 = vmul.f32 %v2009, 1.442695
  %v2976 = vpow.pop %v2975
  %v2977 = vmul.f32 %v2010, 1.442695
  %v2978 = vpow.pop %v2977
  %v2979 = vmul.f32 %v2011, 1.442695
  %v2980 = vpow.pop %v2979
  %v2981 = vmul.f32 %v2012, 1.442695
  %v2982 = vpow.pop %v2981
  %v2983 = vmul.f32 %v2013, 1.442695
  %v2984 = vpow.pop %v2983
  %v2985 = vmul.f32 %v2014, 1.442695
  %v2986 = vpow.pop %v2985
  %v2987 = vmul.f32 %v2015, 1.442695
  %v2988 = vpow.pop %v2987
  %v2989 = vmul.f32 %v2016, 1.442695
  %v2990 = vpow.pop %v2989
  %v2991 = vmul.f32 %v2017, 1.442695
  %v2992 = vpow.pop %v2991
  %v2993 = vmul.f32 %v2018, 1.442695
  %v2994 = vpow.pop %v2993
  %v2995 = vmul.f32 %v2019, 1.442695
  %v2996 = vpow.pop %v2995
  %v2997 = vmul.f32 %v2020, 1.442695
  %v2998 = vpow.pop %v2997
  %v2999 = vmul.f32 %v2021, 1.442695
  %v3000 = vpow.pop %v2999
  %v3001 = vmul.f32 %v2022, 1.442695
  %v3002 = vpow.pop %v3001
  %v3003 = vmul.f32 %v2023, 1.442695
  %v3004 = vpow.pop %v3003
  %v3005 = vmul.f32 %v2024, 1.442695
  %v3006 = vpow.pop %v3005
  %v3007 = vmul.f32 %v2025, 1.442695
  %v3008 = vpow.pop %v3007
  %v3009 = vmul.f32 %v2026, 1.442695
  %v3010 = vpow.pop %v3009
  %v3011 = vmul.f32 %v2027, 1.442695
  %v3012 = vpow.pop %v3011
  %v3013 = vmul.f32 %v2028, 1.442695
  %v3014 = vpow.pop %v3013
  %v3015 = vmul.f32 %v2029, 1.442695
  %v3016 = vpow.pop %v3015
  %v3017 = vmul.f32 %v2030, 1.442695
  %v3018 = vpow.pop %v3017
  %v3019 = vmul.f32 %v2031, 1.442695
  %v3020 = vpow.pop %v3019
  %v3021 = vmul.f32 %v2032, 1.442695
  %v3022 = vpow.pop %v3021
  %v3023 = vmul.f32 %v2033, 1.442695
  %v3024 = vpow.pop %v3023
  %v3025 = vmul.f32 %v2034, 1.442695
  %v3026 = vpow.pop %v3025
  %v3027 = vmul.f32 %v2035, 1.442695
  %v3028 = vpow.pop %v3027
  %v3029 = vmul.f32 %v2036, 1.442695
  %v3030 = vpow.pop %v3029
  %v3031 = vmul.f32 %v2037, 1.442695
  %v3032 = vpow.pop %v3031
  %v3033 = vmul.f32 %v2038, 1.442695
  %v3034 = vpow.pop %v3033
  %v3035 = vmul.f32 %v2039, 1.442695
  %v3036 = vpow.pop %v3035
  %v3037 = vmul.f32 %v2040, 1.442695
  %v3038 = vpow.pop %v3037
  %v3039 = vmul.f32 %v2041, 1.442695
  %v3040 = vpow.pop %v3039
  %v3041 = vmul.f32 %v2042, 1.442695
  %v3042 = vpow.pop %v3041
  %v3043 = vmul.f32 %v2043, 1.442695
  %v3044 = vpow.pop %v3043
  %v3045 = vmul.f32 %v2044, 1.442695
  %v3046 = vpow.pop %v3045
  %v3047 = vmul.f32 %v2045, 1.442695
  %v3048 = vpow.pop %v3047
  %v3049 = vmul.f32 %v2046, 1.442695
  %v3050 = vpow.pop %v3049
  %v3051 = vmul.f32 %v2047, 1.442695
  %v3052 = vpow.pop %v3051
  %v3053 = vmul.f32 %v2048, 1.442695
  %v3054 = vpow.pop %v3053
  %v3055 = vmul.f32 %v2049, 1.442695
  %v3056 = vpow.pop %v3055
  %v3057 = vmul.f32 %v2050, 1.442695
  %v3058 = vpow.pop %v3057
  %v3059 = vmul.f32 %v2051, 1.442695
  %v3060 = vpow.pop %v3059
  %v3061 = vmul.f32 %v2052, 1.442695
  %v3062 = vpow.pop %v3061
  %v3063 = vmul.f32 %v2053, 1.442695
  %v3064 = vpow.pop %v3063
  %v3065 = vmul.f32 %v2054, 1.442695
  %v3066 = vpow.pop %v3065
  %v3067 = vmul.f32 %v2055, 1.442695
  %v3068 = vpow.pop %v3067
  %v3069 = vmul.f32 %v2056, 1.442695
  %v3070 = vpow.pop %v3069
  %v3071 = vmul.f32 %v2057, 1.442695
  %v3072 = vpow.pop %v3071
  %v3073 = vmul.f32 %v2058, 1.442695
  %v3074 = vpow.pop %v3073
  %v3075 = vmul.f32 %v2059, 1.442695
  %v3076 = vpow.pop %v3075
  %v3077 = vmul.f32 %v2060, 1.442695
  %v3078 = vpow.pop %v3077
  %v3079 = vmul.f32 %v2061, 1.442695
  %v3080 = vpow.pop %v3079
  %v3081 = vmul.f32 %v2062, 1.442695
  %v3082 = vpow.pop %v3081
  %v3083 = vmul.f32 %v2063, 1.442695
  %v3084 = vpow.pop %v3083
  %v3085 = vmul.f32 %v2064, 1.442695
  %v3086 = vpow.pop %v3085
  %v3087 = vmul.f32 %v2065, 1.442695
  %v3088 = vpow.pop %v3087
  %v3089 = vmul.f32 %v2066, 1.442695
  %v3090 = vpow.pop %v3089
  %v3091 = vadd.f32 %v2068, %v2070
  %3092 = vadd.xlane.f32.xlu0 %v3091
  %v3093 = vpop.xlane.xlu0 %3092
  %v3094 = vadd.f32 %v2072, %v2074
  %3095 = vadd.xlane.f32.xlu0 %v3094
  %v3096 = vpop.xlane.xlu0 %3095
  %v3097 = vadd.f32 %v2076, %v2078
  %3098 = vadd.xlane.f32.xlu0 %v3097
  %v3099 = vpop.xlane.xlu0 %3098
  %v3100 = vadd.f32 %v2080, %v2082
  %3101 = vadd.xlane.f32.xlu0 %v3100
  %v3102 = vpop.xlane.xlu0 %3101
  %v3103 = vadd.f32 %v2084, %v2086
  %3104 = vadd.xlane.f32.xlu0 %v3103
  %v3105 = vpop.xlane.xlu0 %3104
  %v3106 = vadd.f32 %v2088, %v2090
  %3107 = vadd.xlane.f32.xlu0 %v3106
  %v3108 = vpop.xlane.xlu0 %3107
  %v3109 = vadd.f32 %v2092, %v2094
  %3110 = vadd.xlane.f32.xlu0 %v3109
  %v3111 = vpop.xlane.xlu0 %3110
  %v3112 = vadd.f32 %v2096, %v2098
  %3113 = vadd.xlane.f32.xlu0 %v3112
  %v3114 = vpop.xlane.xlu0 %3113
  %v3115 = vadd.f32 %v2100, %v2102
  %3116 = vadd.xlane.f32.xlu0 %v3115
  %v3117 = vpop.xlane.xlu0 %3116
  %v3118 = vadd.f32 %v2104, %v2106
  %3119 = vadd.xlane.f32.xlu0 %v3118
  %v3120 = vpop.xlane.xlu0 %3119
  %v3121 = vadd.f32 %v2108, %v2110
  %3122 = vadd.xlane.f32.xlu0 %v3121
  %v3123 = vpop.xlane.xlu0 %3122
  %v3124 = vadd.f32 %v2112, %v2114
  %3125 = vadd.xlane.f32.xlu0 %v3124
  %v3126 = vpop.xlane.xlu0 %3125
  %v3127 = vadd.f32 %v2116, %v2118
  %3128 = vadd.xlane.f32.xlu0 %v3127
  %v3129 = vpop.xlane.xlu0 %3128
  %v3130 = vadd.f32 %v2120, %v2122
  %3131 = vadd.xlane.f32.xlu0 %v3130
  %v3132 = vpop.xlane.xlu0 %3131
  %v3133 = vadd.f32 %v2124, %v2126
  %3134 = vadd.xlane.f32.xlu0 %v3133
  %v3135 = vpop.xlane.xlu0 %3134
  %v3136 = vadd.f32 %v2128, %v2130
  %3137 = vadd.xlane.f32.xlu0 %v3136
  %v3138 = vpop.xlane.xlu0 %3137
  %v3139 = vadd.f32 %v2132, %v2134
  %3140 = vadd.xlane.f32.xlu0 %v3139
  %v3141 = vpop.xlane.xlu0 %3140
  %v3142 = vadd.f32 %v2136, %v2138
  %3143 = vadd.xlane.f32.xlu0 %v3142
  %v3144 = vpop.xlane.xlu0 %3143
  %v3145 = vadd.f32 %v2140, %v2142
  %3146 = vadd.xlane.f32.xlu0 %v3145
  %v3147 = vpop.xlane.xlu0 %3146
  %v3148 = vadd.f32 %v2144, %v2146
  %3149 = vadd.xlane.f32.xlu0 %v3148
  %v3150 = vpop.xlane.xlu0 %3149
  %v3151 = vadd.f32 %v2148, %v2150
  %3152 = vadd.xlane.f32.xlu0 %v3151
  %v3153 = vpop.xlane.xlu0 %3152
  %v3154 = vadd.f32 %v2152, %v2154
  %3155 = vadd.xlane.f32.xlu0 %v3154
  %v3156 = vpop.xlane.xlu0 %3155
  %v3157 = vadd.f32 %v2156, %v2158
  %3158 = vadd.xlane.f32.xlu0 %v3157
  %v3159 = vpop.xlane.xlu0 %3158
  %v3160 = vadd.f32 %v2160, %v2162
  %3161 = vadd.xlane.f32.xlu0 %v3160
  %v3162 = vpop.xlane.xlu0 %3161
  %v3163 = vadd.f32 %v2164, %v2166
  %3164 = vadd.xlane.f32.xlu0 %v3163
  %v3165 = vpop.xlane.xlu0 %3164
  %v3166 = vadd.f32 %v2168, %v2170
  %3167 = vadd.xlane.f32.xlu0 %v3166
  %v3168 = vpop.xlane.xlu0 %3167
  %v3169 = vadd.f32 %v2172, %v2174
  %3170 = vadd.xlane.f32.xlu0 %v3169
  %v3171 = vpop.xlane.xlu0 %3170
  %v3172 = vadd.f32 %v2176, %v2178
  %3173 = vadd.xlane.f32.xlu0 %v3172
  %v3174 = vpop.xlane.xlu0 %3173
  %v3175 = vadd.f32 %v2180, %v2182
  %3176 = vadd.xlane.f32.xlu0 %v3175
  %v3177 = vpop.xlane.xlu0 %3176
  %v3178 = vadd.f32 %v2184, %v2186
  %3179 = vadd.xlane.f32.xlu0 %v3178
  %v3180 = vpop.xlane.xlu0 %3179
  %v3181 = vadd.f32 %v2188, %v2190
  %3182 = vadd.xlane.f32.xlu0 %v3181
  %v3183 = vpop.xlane.xlu0 %3182
  %v3184 = vadd.f32 %v2192, %v2194
  %3185 = vadd.xlane.f32.xlu0 %v3184
  %v3186 = vpop.xlane.xlu0 %3185
  %v3187 = vadd.f32 %v2196, %v2198
  %3188 = vadd.xlane.f32.xlu0 %v3187
  %v3189 = vpop.xlane.xlu0 %3188
  %v3190 = vadd.f32 %v2200, %v2202
  %3191 = vadd.xlane.f32.xlu0 %v3190
  %v3192 = vpop.xlane.xlu0 %3191
  %v3193 = vadd.f32 %v2204, %v2206
  %3194 = vadd.xlane.f32.xlu0 %v3193
  %v3195 = vpop.xlane.xlu0 %3194
  %v3196 = vadd.f32 %v2208, %v2210
  %3197 = vadd.xlane.f32.xlu0 %v3196
  %v3198 = vpop.xlane.xlu0 %3197
  %v3199 = vadd.f32 %v2212, %v2214
  %3200 = vadd.xlane.f32.xlu0 %v3199
  %v3201 = vpop.xlane.xlu0 %3200
  %v3202 = vadd.f32 %v2216, %v2218
  %3203 = vadd.xlane.f32.xlu0 %v3202
  %v3204 = vpop.xlane.xlu0 %3203
  %v3205 = vadd.f32 %v2220, %v2222
  %3206 = vadd.xlane.f32.xlu0 %v3205
  %v3207 = vpop.xlane.xlu0 %3206
  %v3208 = vadd.f32 %v2224, %v2226
  %3209 = vadd.xlane.f32.xlu0 %v3208
  %v3210 = vpop.xlane.xlu0 %3209
  %v3211 = vadd.f32 %v2228, %v2230
  %3212 = vadd.xlane.f32.xlu0 %v3211
  %v3213 = vpop.xlane.xlu0 %3212
  %v3214 = vadd.f32 %v2232, %v2234
  %3215 = vadd.xlane.f32.xlu0 %v3214
  %v3216 = vpop.xlane.xlu0 %3215
  %v3217 = vadd.f32 %v2236, %v2238
  %3218 = vadd.xlane.f32.xlu0 %v3217
  %v3219 = vpop.xlane.xlu0 %3218
  %v3220 = vadd.f32 %v2240, %v2242
  %3221 = vadd.xlane.f32.xlu0 %v3220
  %v3222 = vpop.xlane.xlu0 %3221
  %v3223 = vadd.f32 %v2244, %v2246
  %3224 = vadd.xlane.f32.xlu0 %v3223
  %v3225 = vpop.xlane.xlu0 %3224
  %v3226 = vadd.f32 %v2248, %v2250
  %3227 = vadd.xlane.f32.xlu0 %v3226
  %v3228 = vpop.xlane.xlu0 %3227
  %v3229 = vadd.f32 %v2252, %v2254
  %3230 = vadd.xlane.f32.xlu0 %v3229
  %v3231 = vpop.xlane.xlu0 %3230
  %v3232 = vadd.f32 %v2256, %v2258
  %3233 = vadd.xlane.f32.xlu0 %v3232
  %v3234 = vpop.xlane.xlu0 %3233
  %v3235 = vadd.f32 %v2260, %v2262
  %3236 = vadd.xlane.f32.xlu0 %v3235
  %v3237 = vpop.xlane.xlu0 %3236
  %v3238 = vadd.f32 %v2264, %v2266
  %3239 = vadd.xlane.f32.xlu0 %v3238
  %v3240 = vpop.xlane.xlu0 %3239
  %v3241 = vadd.f32 %v2268, %v2270
  %3242 = vadd.xlane.f32.xlu0 %v3241
  %v3243 = vpop.xlane.xlu0 %3242
  %v3244 = vadd.f32 %v2272, %v2274
  %3245 = vadd.xlane.f32.xlu0 %v3244
  %v3246 = vpop.xlane.xlu0 %3245
  %v3247 = vadd.f32 %v2276, %v2278
  %3248 = vadd.xlane.f32.xlu0 %v3247
  %v3249 = vpop.xlane.xlu0 %3248
  %v3250 = vadd.f32 %v2280, %v2282
  %3251 = vadd.xlane.f32.xlu0 %v3250
  %v3252 = vpop.xlane.xlu0 %3251
  %v3253 = vadd.f32 %v2284, %v2286
  %3254 = vadd.xlane.f32.xlu0 %v3253
  %v3255 = vpop.xlane.xlu0 %3254
  %v3256 = vadd.f32 %v2288, %v2290
  %3257 = vadd.xlane.f32.xlu0 %v3256
  %v3258 = vpop.xlane.xlu0 %3257
  %v3259 = vadd.f32 %v2292, %v2294
  %3260 = vadd.xlane.f32.xlu0 %v3259
  %v3261 = vpop.xlane.xlu0 %3260
  %v3262 = vadd.f32 %v2296, %v2298
  %3263 = vadd.xlane.f32.xlu0 %v3262
  %v3264 = vpop.xlane.xlu0 %3263
  %v3265 = vadd.f32 %v2300, %v2302
  %3266 = vadd.xlane.f32.xlu0 %v3265
  %v3267 = vpop.xlane.xlu0 %3266
  %v3268 = vadd.f32 %v2304, %v2306
  %3269 = vadd.xlane.f32.xlu0 %v3268
  %v3270 = vpop.xlane.xlu0 %3269
  %v3271 = vadd.f32 %v2308, %v2310
  %3272 = vadd.xlane.f32.xlu0 %v3271
  %v3273 = vpop.xlane.xlu0 %3272
  %v3274 = vadd.f32 %v2312, %v2314
  %3275 = vadd.xlane.f32.xlu0 %v3274
  %v3276 = vpop.xlane.xlu0 %3275
  %v3277 = vadd.f32 %v2316, %v2318
  %3278 = vadd.xlane.f32.xlu0 %v3277
  %v3279 = vpop.xlane.xlu0 %3278
  %v3280 = vadd.f32 %v2320, %v2322
  %3281 = vadd.xlane.f32.xlu0 %v3280
  %v3282 = vpop.xlane.xlu0 %3281
  %v3283 = vadd.f32 %v2324, %v2326
  %3284 = vadd.xlane.f32.xlu0 %v3283
  %v3285 = vpop.xlane.xlu0 %3284
  %v3286 = vadd.f32 %v2328, %v2330
  %3287 = vadd.xlane.f32.xlu0 %v3286
  %v3288 = vpop.xlane.xlu0 %3287
  %v3289 = vadd.f32 %v2332, %v2334
  %3290 = vadd.xlane.f32.xlu0 %v3289
  %v3291 = vpop.xlane.xlu0 %3290
  %v3292 = vadd.f32 %v2336, %v2338
  %3293 = vadd.xlane.f32.xlu0 %v3292
  %v3294 = vpop.xlane.xlu0 %3293
  %v3295 = vadd.f32 %v2340, %v2342
  %3296 = vadd.xlane.f32.xlu0 %v3295
  %v3297 = vpop.xlane.xlu0 %3296
  %v3298 = vadd.f32 %v2344, %v2346
  %3299 = vadd.xlane.f32.xlu0 %v3298
  %v3300 = vpop.xlane.xlu0 %3299
  %v3301 = vadd.f32 %v2348, %v2350
  %3302 = vadd.xlane.f32.xlu0 %v3301
  %v3303 = vpop.xlane.xlu0 %3302
  %v3304 = vadd.f32 %v2352, %v2354
  %3305 = vadd.xlane.f32.xlu0 %v3304
  %v3306 = vpop.xlane.xlu0 %3305
  %v3307 = vadd.f32 %v2356, %v2358
  %3308 = vadd.xlane.f32.xlu0 %v3307
  %v3309 = vpop.xlane.xlu0 %3308
  %v3310 = vadd.f32 %v2360, %v2362
  %3311 = vadd.xlane.f32.xlu0 %v3310
  %v3312 = vpop.xlane.xlu0 %3311
  %v3313 = vadd.f32 %v2364, %v2366
  %3314 = vadd.xlane.f32.xlu0 %v3313
  %v3315 = vpop.xlane.xlu0 %3314
  %v3316 = vadd.f32 %v2368, %v2370
  %3317 = vadd.xlane.f32.xlu0 %v3316
  %v3318 = vpop.xlane.xlu0 %3317
  %v3319 = vadd.f32 %v2372, %v2374
  %3320 = vadd.xlane.f32.xlu0 %v3319
  %v3321 = vpop.xlane.xlu0 %3320
  %v3322 = vadd.f32 %v2376, %v2378
  %3323 = vadd.xlane.f32.xlu0 %v3322
  %v3324 = vpop.xlane.xlu0 %3323
  %v3325 = vadd.f32 %v2380, %v2382
  %3326 = vadd.xlane.f32.xlu0 %v3325
  %v3327 = vpop.xlane.xlu0 %3326
  %v3328 = vadd.f32 %v2384, %v2386
  %3329 = vadd.xlane.f32.xlu0 %v3328
  %v3330 = vpop.xlane.xlu0 %3329
  %v3331 = vadd.f32 %v2388, %v2390
  %3332 = vadd.xlane.f32.xlu0 %v3331
  %v3333 = vpop.xlane.xlu0 %3332
  %v3334 = vadd.f32 %v2392, %v2394
  %3335 = vadd.xlane.f32.xlu0 %v3334
  %v3336 = vpop.xlane.xlu0 %3335
  %v3337 = vadd.f32 %v2396, %v2398
  %3338 = vadd.xlane.f32.xlu0 %v3337
  %v3339 = vpop.xlane.xlu0 %3338
  %v3340 = vadd.f32 %v2400, %v2402
  %3341 = vadd.xlane.f32.xlu0 %v3340
  %v3342 = vpop.xlane.xlu0 %3341
  %v3343 = vadd.f32 %v2404, %v2406
  %3344 = vadd.xlane.f32.xlu0 %v3343
  %v3345 = vpop.xlane.xlu0 %3344
  %v3346 = vadd.f32 %v2408, %v2410
  %3347 = vadd.xlane.f32.xlu0 %v3346
  %v3348 = vpop.xlane.xlu0 %3347
  %v3349 = vadd.f32 %v2412, %v2414
  %3350 = vadd.xlane.f32.xlu0 %v3349
  %v3351 = vpop.xlane.xlu0 %3350
  %v3352 = vadd.f32 %v2416, %v2418
  %3353 = vadd.xlane.f32.xlu0 %v3352
  %v3354 = vpop.xlane.xlu0 %3353
  %v3355 = vadd.f32 %v2420, %v2422
  %3356 = vadd.xlane.f32.xlu0 %v3355
  %v3357 = vpop.xlane.xlu0 %3356
  %v3358 = vadd.f32 %v2424, %v2426
  %3359 = vadd.xlane.f32.xlu0 %v3358
  %v3360 = vpop.xlane.xlu0 %3359
  %v3361 = vadd.f32 %v2428, %v2430
  %3362 = vadd.xlane.f32.xlu0 %v3361
  %v3363 = vpop.xlane.xlu0 %3362
  %v3364 = vadd.f32 %v2432, %v2434
  %3365 = vadd.xlane.f32.xlu0 %v3364
  %v3366 = vpop.xlane.xlu0 %3365
  %v3367 = vadd.f32 %v2436, %v2438
  %3368 = vadd.xlane.f32.xlu0 %v3367
  %v3369 = vpop.xlane.xlu0 %3368
  %v3370 = vadd.f32 %v2440, %v2442
  %3371 = vadd.xlane.f32.xlu0 %v3370
  %v3372 = vpop.xlane.xlu0 %3371
  %v3373 = vadd.f32 %v2444, %v2446
  %3374 = vadd.xlane.f32.xlu0 %v3373
  %v3375 = vpop.xlane.xlu0 %3374
  %v3376 = vadd.f32 %v2448, %v2450
  %3377 = vadd.xlane.f32.xlu0 %v3376
  %v3378 = vpop.xlane.xlu0 %3377
  %v3379 = vadd.f32 %v2452, %v2454
  %3380 = vadd.xlane.f32.xlu0 %v3379
  %v3381 = vpop.xlane.xlu0 %3380
  %v3382 = vadd.f32 %v2456, %v2458
  %3383 = vadd.xlane.f32.xlu0 %v3382
  %v3384 = vpop.xlane.xlu0 %3383
  %v3385 = vadd.f32 %v2460, %v2462
  %3386 = vadd.xlane.f32.xlu0 %v3385
  %v3387 = vpop.xlane.xlu0 %3386
  %v3388 = vadd.f32 %v2464, %v2466
  %3389 = vadd.xlane.f32.xlu0 %v3388
  %v3390 = vpop.xlane.xlu0 %3389
  %v3391 = vadd.f32 %v2468, %v2470
  %3392 = vadd.xlane.f32.xlu0 %v3391
  %v3393 = vpop.xlane.xlu0 %3392
  %v3394 = vadd.f32 %v2472, %v2474
  %3395 = vadd.xlane.f32.xlu0 %v3394
  %v3396 = vpop.xlane.xlu0 %3395
  %v3397 = vadd.f32 %v2476, %v2478
  %3398 = vadd.xlane.f32.xlu0 %v3397
  %v3399 = vpop.xlane.xlu0 %3398
  %v3400 = vadd.f32 %v2480, %v2482
  %3401 = vadd.xlane.f32.xlu0 %v3400
  %v3402 = vpop.xlane.xlu0 %3401
  %v3403 = vadd.f32 %v2484, %v2486
  %3404 = vadd.xlane.f32.xlu0 %v3403
  %v3405 = vpop.xlane.xlu0 %3404
  %v3406 = vadd.f32 %v2488, %v2490
  %3407 = vadd.xlane.f32.xlu0 %v3406
  %v3408 = vpop.xlane.xlu0 %3407
  %v3409 = vadd.f32 %v2492, %v2494
  %3410 = vadd.xlane.f32.xlu0 %v3409
  %v3411 = vpop.xlane.xlu0 %3410
  %v3412 = vadd.f32 %v2496, %v2498
  %3413 = vadd.xlane.f32.xlu0 %v3412
  %v3414 = vpop.xlane.xlu0 %3413
  %v3415 = vadd.f32 %v2500, %v2502
  %3416 = vadd.xlane.f32.xlu0 %v3415
  %v3417 = vpop.xlane.xlu0 %3416
  %v3418 = vadd.f32 %v2504, %v2506
  %3419 = vadd.xlane.f32.xlu0 %v3418
  %v3420 = vpop.xlane.xlu0 %3419
  %v3421 = vadd.f32 %v2508, %v2510
  %3422 = vadd.xlane.f32.xlu0 %v3421
  %v3423 = vpop.xlane.xlu0 %3422
  %v3424 = vadd.f32 %v2512, %v2514
  %3425 = vadd.xlane.f32.xlu0 %v3424
  %v3426 = vpop.xlane.xlu0 %3425
  %v3427 = vadd.f32 %v2516, %v2518
  %3428 = vadd.xlane.f32.xlu0 %v3427
  %v3429 = vpop.xlane.xlu0 %3428
  %v3430 = vadd.f32 %v2520, %v2522
  %3431 = vadd.xlane.f32.xlu0 %v3430
  %v3432 = vpop.xlane.xlu0 %3431
  %v3433 = vadd.f32 %v2524, %v2526
  %3434 = vadd.xlane.f32.xlu0 %v3433
  %v3435 = vpop.xlane.xlu0 %3434
  %v3436 = vadd.f32 %v2528, %v2530
  %3437 = vadd.xlane.f32.xlu0 %v3436
  %v3438 = vpop.xlane.xlu0 %3437
  %v3439 = vadd.f32 %v2532, %v2534
  %3440 = vadd.xlane.f32.xlu0 %v3439
  %v3441 = vpop.xlane.xlu0 %3440
  %v3442 = vadd.f32 %v2536, %v2538
  %3443 = vadd.xlane.f32.xlu0 %v3442
  %v3444 = vpop.xlane.xlu0 %3443
  %v3445 = vadd.f32 %v2540, %v2542
  %3446 = vadd.xlane.f32.xlu0 %v3445
  %v3447 = vpop.xlane.xlu0 %3446
  %v3448 = vadd.f32 %v2544, %v2546
  %3449 = vadd.xlane.f32.xlu0 %v3448
  %v3450 = vpop.xlane.xlu0 %3449
  %v3451 = vadd.f32 %v2548, %v2550
  %3452 = vadd.xlane.f32.xlu0 %v3451
  %v3453 = vpop.xlane.xlu0 %3452
  %v3454 = vadd.f32 %v2552, %v2554
  %3455 = vadd.xlane.f32.xlu0 %v3454
  %v3456 = vpop.xlane.xlu0 %3455
  %v3457 = vadd.f32 %v2556, %v2558
  %3458 = vadd.xlane.f32.xlu0 %v3457
  %v3459 = vpop.xlane.xlu0 %3458
  %v3460 = vadd.f32 %v2560, %v2562
  %3461 = vadd.xlane.f32.xlu0 %v3460
  %v3462 = vpop.xlane.xlu0 %3461
  %v3463 = vadd.f32 %v2564, %v2566
  %3464 = vadd.xlane.f32.xlu0 %v3463
  %v3465 = vpop.xlane.xlu0 %3464
  %v3466 = vadd.f32 %v2568, %v2570
  %3467 = vadd.xlane.f32.xlu0 %v3466
  %v3468 = vpop.xlane.xlu0 %3467
  %v3469 = vadd.f32 %v2572, %v2574
  %3470 = vadd.xlane.f32.xlu0 %v3469
  %v3471 = vpop.xlane.xlu0 %3470
  %v3472 = vadd.f32 %v2576, %v2578
  %3473 = vadd.xlane.f32.xlu0 %v3472
  %v3474 = vpop.xlane.xlu0 %3473
  %v3475 = vadd.f32 %v2580, %v2582
  %3476 = vadd.xlane.f32.xlu0 %v3475
  %v3477 = vpop.xlane.xlu0 %3476
  %v3478 = vadd.f32 %v2584, %v2586
  %3479 = vadd.xlane.f32.xlu0 %v3478
  %v3480 = vpop.xlane.xlu0 %3479
  %v3481 = vadd.f32 %v2588, %v2590
  %3482 = vadd.xlane.f32.xlu0 %v3481
  %v3483 = vpop.xlane.xlu0 %3482
  %v3484 = vadd.f32 %v2592, %v2594
  %3485 = vadd.xlane.f32.xlu0 %v3484
  %v3486 = vpop.xlane.xlu0 %3485
  %v3487 = vadd.f32 %v2596, %v2598
  %3488 = vadd.xlane.f32.xlu0 %v3487
  %v3489 = vpop.xlane.xlu0 %3488
  %v3490 = vadd.f32 %v2600, %v2602
  %3491 = vadd.xlane.f32.xlu0 %v3490
  %v3492 = vpop.xlane.xlu0 %3491
  %v3493 = vadd.f32 %v2604, %v2606
  %3494 = vadd.xlane.f32.xlu0 %v3493
  %v3495 = vpop.xlane.xlu0 %3494
  %v3496 = vadd.f32 %v2608, %v2610
  %3497 = vadd.xlane.f32.xlu0 %v3496
  %v3498 = vpop.xlane.xlu0 %3497
  %v3499 = vadd.f32 %v2612, %v2614
  %3500 = vadd.xlane.f32.xlu0 %v3499
  %v3501 = vpop.xlane.xlu0 %3500
  %v3502 = vadd.f32 %v2616, %v2618
  %3503 = vadd.xlane.f32.xlu0 %v3502
  %v3504 = vpop.xlane.xlu0 %3503
  %v3505 = vadd.f32 %v2620, %v2622
  %3506 = vadd.xlane.f32.xlu0 %v3505
  %v3507 = vpop.xlane.xlu0 %3506
  %v3508 = vadd.f32 %v2624, %v2626
  %3509 = vadd.xlane.f32.xlu0 %v3508
  %v3510 = vpop.xlane.xlu0 %3509
  %v3511 = vadd.f32 %v2628, %v2630
  %3512 = vadd.xlane.f32.xlu0 %v3511
  %v3513 = vpop.xlane.xlu0 %3512
  %v3514 = vadd.f32 %v2632, %v2634
  %3515 = vadd.xlane.f32.xlu0 %v3514
  %v3516 = vpop.xlane.xlu0 %3515
  %v3517 = vadd.f32 %v2636, %v2638
  %3518 = vadd.xlane.f32.xlu0 %v3517
  %v3519 = vpop.xlane.xlu0 %3518
  %v3520 = vadd.f32 %v2640, %v2642
  %3521 = vadd.xlane.f32.xlu0 %v3520
  %v3522 = vpop.xlane.xlu0 %3521
  %v3523 = vadd.f32 %v2644, %v2646
  %3524 = vadd.xlane.f32.xlu0 %v3523
  %v3525 = vpop.xlane.xlu0 %3524
  %v3526 = vadd.f32 %v2648, %v2650
  %3527 = vadd.xlane.f32.xlu0 %v3526
  %v3528 = vpop.xlane.xlu0 %3527
  %v3529 = vadd.f32 %v2652, %v2654
  %3530 = vadd.xlane.f32.xlu0 %v3529
  %v3531 = vpop.xlane.xlu0 %3530
  %v3532 = vadd.f32 %v2656, %v2658
  %3533 = vadd.xlane.f32.xlu0 %v3532
  %v3534 = vpop.xlane.xlu0 %3533
  %v3535 = vadd.f32 %v2660, %v2662
  %3536 = vadd.xlane.f32.xlu0 %v3535
  %v3537 = vpop.xlane.xlu0 %3536
  %v3538 = vadd.f32 %v2664, %v2666
  %3539 = vadd.xlane.f32.xlu0 %v3538
  %v3540 = vpop.xlane.xlu0 %3539
  %v3541 = vadd.f32 %v2668, %v2670
  %3542 = vadd.xlane.f32.xlu0 %v3541
  %v3543 = vpop.xlane.xlu0 %3542
  %v3544 = vadd.f32 %v2672, %v2674
  %3545 = vadd.xlane.f32.xlu0 %v3544
  %v3546 = vpop.xlane.xlu0 %3545
  %v3547 = vadd.f32 %v2676, %v2678
  %3548 = vadd.xlane.f32.xlu0 %v3547
  %v3549 = vpop.xlane.xlu0 %3548
  %v3550 = vadd.f32 %v2680, %v2682
  %3551 = vadd.xlane.f32.xlu0 %v3550
  %v3552 = vpop.xlane.xlu0 %3551
  %v3553 = vadd.f32 %v2684, %v2686
  %3554 = vadd.xlane.f32.xlu0 %v3553
  %v3555 = vpop.xlane.xlu0 %3554
  %v3556 = vadd.f32 %v2688, %v2690
  %3557 = vadd.xlane.f32.xlu0 %v3556
  %v3558 = vpop.xlane.xlu0 %3557
  %v3559 = vadd.f32 %v2692, %v2694
  %3560 = vadd.xlane.f32.xlu0 %v3559
  %v3561 = vpop.xlane.xlu0 %3560
  %v3562 = vadd.f32 %v2696, %v2698
  %3563 = vadd.xlane.f32.xlu0 %v3562
  %v3564 = vpop.xlane.xlu0 %3563
  %v3565 = vadd.f32 %v2700, %v2702
  %3566 = vadd.xlane.f32.xlu0 %v3565
  %v3567 = vpop.xlane.xlu0 %3566
  %v3568 = vadd.f32 %v2704, %v2706
  %3569 = vadd.xlane.f32.xlu0 %v3568
  %v3570 = vpop.xlane.xlu0 %3569
  %v3571 = vadd.f32 %v2708, %v2710
  %3572 = vadd.xlane.f32.xlu0 %v3571
  %v3573 = vpop.xlane.xlu0 %3572
  %v3574 = vadd.f32 %v2712, %v2714
  %3575 = vadd.xlane.f32.xlu0 %v3574
  %v3576 = vpop.xlane.xlu0 %3575
  %v3577 = vadd.f32 %v2716, %v2718
  %3578 = vadd.xlane.f32.xlu0 %v3577
  %v3579 = vpop.xlane.xlu0 %3578
  %v3580 = vadd.f32 %v2720, %v2722
  %3581 = vadd.xlane.f32.xlu0 %v3580
  %v3582 = vpop.xlane.xlu0 %3581
  %v3583 = vadd.f32 %v2724, %v2726
  %3584 = vadd.xlane.f32.xlu0 %v3583
  %v3585 = vpop.xlane.xlu0 %3584
  %v3586 = vadd.f32 %v2728, %v2730
  %3587 = vadd.xlane.f32.xlu0 %v3586
  %v3588 = vpop.xlane.xlu0 %3587
  %v3589 = vadd.f32 %v2732, %v2734
  %3590 = vadd.xlane.f32.xlu0 %v3589
  %v3591 = vpop.xlane.xlu0 %3590
  %v3592 = vadd.f32 %v2736, %v2738
  %3593 = vadd.xlane.f32.xlu0 %v3592
  %v3594 = vpop.xlane.xlu0 %3593
  %v3595 = vadd.f32 %v2740, %v2742
  %3596 = vadd.xlane.f32.xlu0 %v3595
  %v3597 = vpop.xlane.xlu0 %3596
  %v3598 = vadd.f32 %v2744, %v2746
  %3599 = vadd.xlane.f32.xlu0 %v3598
  %v3600 = vpop.xlane.xlu0 %3599
  %v3601 = vadd.f32 %v2748, %v2750
  %3602 = vadd.xlane.f32.xlu0 %v3601
  %v3603 = vpop.xlane.xlu0 %3602
  %v3604 = vadd.f32 %v2752, %v2754
  %3605 = vadd.xlane.f32.xlu0 %v3604
  %v3606 = vpop.xlane.xlu0 %3605
  %v3607 = vadd.f32 %v2756, %v2758
  %3608 = vadd.xlane.f32.xlu0 %v3607
  %v3609 = vpop.xlane.xlu0 %3608
  %v3610 = vadd.f32 %v2760, %v2762
  %3611 = vadd.xlane.f32.xlu0 %v3610
  %v3612 = vpop.xlane.xlu0 %3611
  %v3613 = vadd.f32 %v2764, %v2766
  %3614 = vadd.xlane.f32.xlu0 %v3613
  %v3615 = vpop.xlane.xlu0 %3614
  %v3616 = vadd.f32 %v2768, %v2770
  %3617 = vadd.xlane.f32.xlu0 %v3616
  %v3618 = vpop.xlane.xlu0 %3617
  %v3619 = vadd.f32 %v2772, %v2774
  %3620 = vadd.xlane.f32.xlu0 %v3619
  %v3621 = vpop.xlane.xlu0 %3620
  %v3622 = vadd.f32 %v2776, %v2778
  %3623 = vadd.xlane.f32.xlu0 %v3622
  %v3624 = vpop.xlane.xlu0 %3623
  %v3625 = vadd.f32 %v2780, %v2782
  %3626 = vadd.xlane.f32.xlu0 %v3625
  %v3627 = vpop.xlane.xlu0 %3626
  %v3628 = vadd.f32 %v2784, %v2786
  %3629 = vadd.xlane.f32.xlu0 %v3628
  %v3630 = vpop.xlane.xlu0 %3629
  %v3631 = vadd.f32 %v2788, %v2790
  %3632 = vadd.xlane.f32.xlu0 %v3631
  %v3633 = vpop.xlane.xlu0 %3632
  %v3634 = vadd.f32 %v2792, %v2794
  %3635 = vadd.xlane.f32.xlu0 %v3634
  %v3636 = vpop.xlane.xlu0 %3635
  %v3637 = vadd.f32 %v2796, %v2798
  %3638 = vadd.xlane.f32.xlu0 %v3637
  %v3639 = vpop.xlane.xlu0 %3638
  %v3640 = vadd.f32 %v2800, %v2802
  %3641 = vadd.xlane.f32.xlu0 %v3640
  %v3642 = vpop.xlane.xlu0 %3641
  %v3643 = vadd.f32 %v2804, %v2806
  %3644 = vadd.xlane.f32.xlu0 %v3643
  %v3645 = vpop.xlane.xlu0 %3644
  %v3646 = vadd.f32 %v2808, %v2810
  %3647 = vadd.xlane.f32.xlu0 %v3646
  %v3648 = vpop.xlane.xlu0 %3647
  %v3649 = vadd.f32 %v2812, %v2814
  %3650 = vadd.xlane.f32.xlu0 %v3649
  %v3651 = vpop.xlane.xlu0 %3650
  %v3652 = vadd.f32 %v2816, %v2818
  %3653 = vadd.xlane.f32.xlu0 %v3652
  %v3654 = vpop.xlane.xlu0 %3653
  %v3655 = vadd.f32 %v2820, %v2822
  %3656 = vadd.xlane.f32.xlu0 %v3655
  %v3657 = vpop.xlane.xlu0 %3656
  %v3658 = vadd.f32 %v2824, %v2826
  %3659 = vadd.xlane.f32.xlu0 %v3658
  %v3660 = vpop.xlane.xlu0 %3659
  %v3661 = vadd.f32 %v2828, %v2830
  %3662 = vadd.xlane.f32.xlu0 %v3661
  %v3663 = vpop.xlane.xlu0 %3662
  %v3664 = vadd.f32 %v2832, %v2834
  %3665 = vadd.xlane.f32.xlu0 %v3664
  %v3666 = vpop.xlane.xlu0 %3665
  %v3667 = vadd.f32 %v2836, %v2838
  %3668 = vadd.xlane.f32.xlu0 %v3667
  %v3669 = vpop.xlane.xlu0 %3668
  %v3670 = vadd.f32 %v2840, %v2842
  %3671 = vadd.xlane.f32.xlu0 %v3670
  %v3672 = vpop.xlane.xlu0 %3671
  %v3673 = vadd.f32 %v2844, %v2846
  %3674 = vadd.xlane.f32.xlu0 %v3673
  %v3675 = vpop.xlane.xlu0 %3674
  %v3676 = vadd.f32 %v2848, %v2850
  %3677 = vadd.xlane.f32.xlu0 %v3676
  %v3678 = vpop.xlane.xlu0 %3677
  %v3679 = vadd.f32 %v2852, %v2854
  %3680 = vadd.xlane.f32.xlu0 %v3679
  %v3681 = vpop.xlane.xlu0 %3680
  %v3682 = vadd.f32 %v2856, %v2858
  %3683 = vadd.xlane.f32.xlu0 %v3682
  %v3684 = vpop.xlane.xlu0 %3683
  %v3685 = vadd.f32 %v2860, %v2862
  %3686 = vadd.xlane.f32.xlu0 %v3685
  %v3687 = vpop.xlane.xlu0 %3686
  %v3688 = vadd.f32 %v2864, %v2866
  %3689 = vadd.xlane.f32.xlu0 %v3688
  %v3690 = vpop.xlane.xlu0 %3689
  %v3691 = vadd.f32 %v2868, %v2870
  %3692 = vadd.xlane.f32.xlu0 %v3691
  %v3693 = vpop.xlane.xlu0 %3692
  %v3694 = vadd.f32 %v2872, %v2874
  %3695 = vadd.xlane.f32.xlu0 %v3694
  %v3696 = vpop.xlane.xlu0 %3695
  %v3697 = vadd.f32 %v2876, %v2878
  %3698 = vadd.xlane.f32.xlu0 %v3697
  %v3699 = vpop.xlane.xlu0 %3698
  %v3700 = vadd.f32 %v2880, %v2882
  %3701 = vadd.xlane.f32.xlu0 %v3700
  %v3702 = vpop.xlane.xlu0 %3701
  %v3703 = vadd.f32 %v2884, %v2886
  %3704 = vadd.xlane.f32.xlu0 %v3703
  %v3705 = vpop.xlane.xlu0 %3704
  %v3706 = vadd.f32 %v2888, %v2890
  %3707 = vadd.xlane.f32.xlu0 %v3706
  %v3708 = vpop.xlane.xlu0 %3707
  %v3709 = vadd.f32 %v2892, %v2894
  %3710 = vadd.xlane.f32.xlu0 %v3709
  %v3711 = vpop.xlane.xlu0 %3710
  %v3712 = vadd.f32 %v2896, %v2898
  %3713 = vadd.xlane.f32.xlu0 %v3712
  %v3714 = vpop.xlane.xlu0 %3713
  %v3715 = vadd.f32 %v2900, %v2902
  %3716 = vadd.xlane.f32.xlu0 %v3715
  %v3717 = vpop.xlane.xlu0 %3716
  %v3718 = vadd.f32 %v2904, %v2906
  %3719 = vadd.xlane.f32.xlu0 %v3718
  %v3720 = vpop.xlane.xlu0 %3719
  %v3721 = vadd.f32 %v2908, %v2910
  %3722 = vadd.xlane.f32.xlu0 %v3721
  %v3723 = vpop.xlane.xlu0 %3722
  %v3724 = vadd.f32 %v2912, %v2914
  %3725 = vadd.xlane.f32.xlu0 %v3724
  %v3726 = vpop.xlane.xlu0 %3725
  %v3727 = vadd.f32 %v2916, %v2918
  %3728 = vadd.xlane.f32.xlu0 %v3727
  %v3729 = vpop.xlane.xlu0 %3728
  %v3730 = vadd.f32 %v2920, %v2922
  %3731 = vadd.xlane.f32.xlu0 %v3730
  %v3732 = vpop.xlane.xlu0 %3731
  %v3733 = vadd.f32 %v2924, %v2926
  %3734 = vadd.xlane.f32.xlu0 %v3733
  %v3735 = vpop.xlane.xlu0 %3734
  %v3736 = vadd.f32 %v2928, %v2930
  %3737 = vadd.xlane.f32.xlu0 %v3736
  %v3738 = vpop.xlane.xlu0 %3737
  %v3739 = vadd.f32 %v2932, %v2934
  %3740 = vadd.xlane.f32.xlu0 %v3739
  %v3741 = vpop.xlane.xlu0 %3740
  %v3742 = vadd.f32 %v2936, %v2938
  %3743 = vadd.xlane.f32.xlu0 %v3742
  %v3744 = vpop.xlane.xlu0 %3743
  %v3745 = vadd.f32 %v2940, %v2942
  %3746 = vadd.xlane.f32.xlu0 %v3745
  %v3747 = vpop.xlane.xlu0 %3746
  %v3748 = vadd.f32 %v2944, %v2946
  %3749 = vadd.xlane.f32.xlu0 %v3748
  %v3750 = vpop.xlane.xlu0 %3749
  %v3751 = vadd.f32 %v2948, %v2950
  %3752 = vadd.xlane.f32.xlu0 %v3751
  %v3753 = vpop.xlane.xlu0 %3752
  %v3754 = vadd.f32 %v2952, %v2954
  %3755 = vadd.xlane.f32.xlu0 %v3754
  %v3756 = vpop.xlane.xlu0 %3755
  %v3757 = vadd.f32 %v2956, %v2958
  %3758 = vadd.xlane.f32.xlu0 %v3757
  %v3759 = vpop.xlane.xlu0 %3758
  %v3760 = vadd.f32 %v2960, %v2962
  %3761 = vadd.xlane.f32.xlu0 %v3760
  %v3762 = vpop.xlane.xlu0 %3761
  %v3763 = vadd.f32 %v2964, %v2966
  %3764 = vadd.xlane.f32.xlu0 %v3763
  %v3765 = vpop.xlane.xlu0 %3764
  %v3766 = vadd.f32 %v2968, %v2970
  %3767 = vadd.xlane.f32.xlu0 %v3766
  %v3768 = vpop.xlane.xlu0 %3767
  %v3769 = vadd.f32 %v2972, %v2974
  %3770 = vadd.xlane.f32.xlu0 %v3769
  %v3771 = vpop.xlane.xlu0 %3770
  %v3772 = vadd.f32 %v2976, %v2978
  %3773 = vadd.xlane.f32.xlu0 %v3772
  %v3774 = vpop.xlane.xlu0 %3773
  %v3775 = vadd.f32 %v2980, %v2982
  %3776 = vadd.xlane.f32.xlu0 %v3775
  %v3777 = vpop.xlane.xlu0 %3776
  %v3778 = vadd.f32 %v2984, %v2986
  %3779 = vadd.xlane.f32.xlu0 %v3778
  %v3780 = vpop.xlane.xlu0 %3779
  %v3781 = vadd.f32 %v2988, %v2990
  %3782 = vadd.xlane.f32.xlu0 %v3781
  %v3783 = vpop.xlane.xlu0 %3782
  %v3784 = vadd.f32 %v2992, %v2994
  %3785 = vadd.xlane.f32.xlu0 %v3784
  %v3786 = vpop.xlane.xlu0 %3785
  %v3787 = vadd.f32 %v2996, %v2998
  %3788 = vadd.xlane.f32.xlu0 %v3787
  %v3789 = vpop.xlane.xlu0 %3788
  %v3790 = vadd.f32 %v3000, %v3002
  %3791 = vadd.xlane.f32.xlu0 %v3790
  %v3792 = vpop.xlane.xlu0 %3791
  %v3793 = vadd.f32 %v3004, %v3006
  %3794 = vadd.xlane.f32.xlu0 %v3793
  %v3795 = vpop.xlane.xlu0 %3794
  %v3796 = vadd.f32 %v3008, %v3010
  %3797 = vadd.xlane.f32.xlu0 %v3796
  %v3798 = vpop.xlane.xlu0 %3797
  %v3799 = vadd.f32 %v3012, %v3014
  %3800 = vadd.xlane.f32.xlu0 %v3799
  %v3801 = vpop.xlane.xlu0 %3800
  %v3802 = vadd.f32 %v3016, %v3018
  %3803 = vadd.xlane.f32.xlu0 %v3802
  %v3804 = vpop.xlane.xlu0 %3803
  %v3805 = vadd.f32 %v3020, %v3022
  %3806 = vadd.xlane.f32.xlu0 %v3805
  %v3807 = vpop.xlane.xlu0 %3806
  %v3808 = vadd.f32 %v3024, %v3026
  %3809 = vadd.xlane.f32.xlu0 %v3808
  %v3810 = vpop.xlane.xlu0 %3809
  %v3811 = vadd.f32 %v3028, %v3030
  %3812 = vadd.xlane.f32.xlu0 %v3811
  %v3813 = vpop.xlane.xlu0 %3812
  %v3814 = vadd.f32 %v3032, %v3034
  %3815 = vadd.xlane.f32.xlu0 %v3814
  %v3816 = vpop.xlane.xlu0 %3815
  %v3817 = vadd.f32 %v3036, %v3038
  %3818 = vadd.xlane.f32.xlu0 %v3817
  %v3819 = vpop.xlane.xlu0 %3818
  %v3820 = vadd.f32 %v3040, %v3042
  %3821 = vadd.xlane.f32.xlu0 %v3820
  %v3822 = vpop.xlane.xlu0 %3821
  %v3823 = vadd.f32 %v3044, %v3046
  %3824 = vadd.xlane.f32.xlu0 %v3823
  %v3825 = vpop.xlane.xlu0 %3824
  %v3826 = vadd.f32 %v3048, %v3050
  %3827 = vadd.xlane.f32.xlu0 %v3826
  %v3828 = vpop.xlane.xlu0 %3827
  %v3829 = vadd.f32 %v3052, %v3054
  %3830 = vadd.xlane.f32.xlu0 %v3829
  %v3831 = vpop.xlane.xlu0 %3830
  %v3832 = vadd.f32 %v3056, %v3058
  %3833 = vadd.xlane.f32.xlu0 %v3832
  %v3834 = vpop.xlane.xlu0 %3833
  %v3835 = vadd.f32 %v3060, %v3062
  %3836 = vadd.xlane.f32.xlu0 %v3835
  %v3837 = vpop.xlane.xlu0 %3836
  %v3838 = vadd.f32 %v3064, %v3066
  %3839 = vadd.xlane.f32.xlu0 %v3838
  %v3840 = vpop.xlane.xlu0 %3839
  %v3841 = vadd.f32 %v3068, %v3070
  %3842 = vadd.xlane.f32.xlu0 %v3841
  %v3843 = vpop.xlane.xlu0 %3842
  %v3844 = vadd.f32 %v3072, %v3074
  %3845 = vadd.xlane.f32.xlu0 %v3844
  %v3846 = vpop.xlane.xlu0 %3845
  %v3847 = vadd.f32 %v3076, %v3078
  %3848 = vadd.xlane.f32.xlu0 %v3847
  %v3849 = vpop.xlane.xlu0 %3848
  %v3850 = vadd.f32 %v3080, %v3082
  %3851 = vadd.xlane.f32.xlu0 %v3850
  %v3852 = vpop.xlane.xlu0 %3851
  %v3853 = vadd.f32 %v3084, %v3086
  %3854 = vadd.xlane.f32.xlu0 %v3853
  %v3855 = vpop.xlane.xlu0 %3854
  %v3856 = vadd.f32 %v3088, %v3090
  %3857 = vadd.xlane.f32.xlu0 %v3856
  %v3858 = vpop.xlane.xlu0 %3857
  %v3859 = vlaneseq
  %v3860 = vand.u32 %v3859, 127
  %v3861 = vadd.s32 %v3860, 128
  %3862 = vset.pattern.permute.xlu0 0
  %3863 = vperm.xlu0 %3862, %v531
  %v3864 = vpop.permute.xlu0 %3863
  %3865 = vset.pattern.permute.xlu0 0
  %3866 = vperm.xlu0 %3865, %v532
  %v3867 = vpop.permute.xlu0 %3866
  %3868 = vset.pattern.permute.xlu0 0
  %3869 = vperm.xlu0 %3868, %v533
  %v3870 = vpop.permute.xlu0 %3869
  %3871 = vset.pattern.permute.xlu0 0
  %3872 = vperm.xlu0 %3871, %v534
  %v3873 = vpop.permute.xlu0 %3872
  %3874 = vset.pattern.permute.xlu0 0
  %3875 = vperm.xlu0 %3874, %v535
  %v3876 = vpop.permute.xlu0 %3875
  %3877 = vset.pattern.permute.xlu0 0
  %3878 = vperm.xlu0 %3877, %v536
  %v3879 = vpop.permute.xlu0 %3878
  %3880 = vset.pattern.permute.xlu0 0
  %3881 = vperm.xlu0 %3880, %v537
  %v3882 = vpop.permute.xlu0 %3881
  %3883 = vset.pattern.permute.xlu0 0
  %3884 = vperm.xlu0 %3883, %v538
  %v3885 = vpop.permute.xlu0 %3884
  %3886 = vset.pattern.permute.xlu0 0
  %3887 = vperm.xlu0 %3886, %v539
  %v3888 = vpop.permute.xlu0 %3887
  %3889 = vset.pattern.permute.xlu0 0
  %3890 = vperm.xlu0 %3889, %v540
  %v3891 = vpop.permute.xlu0 %3890
  %3892 = vset.pattern.permute.xlu0 0
  %3893 = vperm.xlu0 %3892, %v541
  %v3894 = vpop.permute.xlu0 %3893
  %3895 = vset.pattern.permute.xlu0 0
  %3896 = vperm.xlu0 %3895, %v542
  %v3897 = vpop.permute.xlu0 %3896
  %3898 = vset.pattern.permute.xlu0 0
  %3899 = vperm.xlu0 %3898, %v543
  %v3900 = vpop.permute.xlu0 %3899
  %3901 = vset.pattern.permute.xlu0 0
  %3902 = vperm.xlu0 %3901, %v544
  %v3903 = vpop.permute.xlu0 %3902
  %3904 = vset.pattern.permute.xlu0 0
  %3905 = vperm.xlu0 %3904, %v545
  %v3906 = vpop.permute.xlu0 %3905
  %3907 = vset.pattern.permute.xlu0 0
  %3908 = vperm.xlu0 %3907, %v546
  %v3909 = vpop.permute.xlu0 %3908
  %3910 = vset.pattern.permute.xlu0 0
  %3911 = vperm.xlu0 %3910, %v547
  %v3912 = vpop.permute.xlu0 %3911
  %3913 = vset.pattern.permute.xlu0 0
  %3914 = vperm.xlu0 %3913, %v548
  %v3915 = vpop.permute.xlu0 %3914
  %3916 = vset.pattern.permute.xlu0 0
  %3917 = vperm.xlu0 %3916, %v549
  %v3918 = vpop.permute.xlu0 %3917
  %3919 = vset.pattern.permute.xlu0 0
  %3920 = vperm.xlu0 %3919, %v550
  %v3921 = vpop.permute.xlu0 %3920
  %3922 = vset.pattern.permute.xlu0 0
  %3923 = vperm.xlu0 %3922, %v551
  %v3924 = vpop.permute.xlu0 %3923
  %3925 = vset.pattern.permute.xlu0 0
  %3926 = vperm.xlu0 %3925, %v552
  %v3927 = vpop.permute.xlu0 %3926
  %3928 = vset.pattern.permute.xlu0 0
  %3929 = vperm.xlu0 %3928, %v553
  %v3930 = vpop.permute.xlu0 %3929
  %3931 = vset.pattern.permute.xlu0 0
  %3932 = vperm.xlu0 %3931, %v554
  %v3933 = vpop.permute.xlu0 %3932
  %3934 = vset.pattern.permute.xlu0 0
  %3935 = vperm.xlu0 %3934, %v555
  %v3936 = vpop.permute.xlu0 %3935
  %3937 = vset.pattern.permute.xlu0 0
  %3938 = vperm.xlu0 %3937, %v556
  %v3939 = vpop.permute.xlu0 %3938
  %3940 = vset.pattern.permute.xlu0 0
  %3941 = vperm.xlu0 %3940, %v557
  %v3942 = vpop.permute.xlu0 %3941
  %3943 = vset.pattern.permute.xlu0 0
  %3944 = vperm.xlu0 %3943, %v558
  %v3945 = vpop.permute.xlu0 %3944
  %3946 = vset.pattern.permute.xlu0 0
  %3947 = vperm.xlu0 %3946, %v559
  %v3948 = vpop.permute.xlu0 %3947
  %3949 = vset.pattern.permute.xlu0 0
  %3950 = vperm.xlu0 %3949, %v560
  %v3951 = vpop.permute.xlu0 %3950
  %3952 = vset.pattern.permute.xlu0 0
  %3953 = vperm.xlu0 %3952, %v561
  %v3954 = vpop.permute.xlu0 %3953
  %3955 = vset.pattern.permute.xlu0 0
  %3956 = vperm.xlu0 %3955, %v562
  %v3957 = vpop.permute.xlu0 %3956
  %3958 = vset.pattern.permute.xlu0 0
  %3959 = vperm.xlu0 %3958, %v563
  %v3960 = vpop.permute.xlu0 %3959
  %3961 = vset.pattern.permute.xlu0 0
  %3962 = vperm.xlu0 %3961, %v564
  %v3963 = vpop.permute.xlu0 %3962
  %3964 = vset.pattern.permute.xlu0 0
  %3965 = vperm.xlu0 %3964, %v565
  %v3966 = vpop.permute.xlu0 %3965
  %3967 = vset.pattern.permute.xlu0 0
  %3968 = vperm.xlu0 %3967, %v566
  %v3969 = vpop.permute.xlu0 %3968
  %3970 = vset.pattern.permute.xlu0 0
  %3971 = vperm.xlu0 %3970, %v567
  %v3972 = vpop.permute.xlu0 %3971
  %3973 = vset.pattern.permute.xlu0 0
  %3974 = vperm.xlu0 %3973, %v568
  %v3975 = vpop.permute.xlu0 %3974
  %3976 = vset.pattern.permute.xlu0 0
  %3977 = vperm.xlu0 %3976, %v569
  %v3978 = vpop.permute.xlu0 %3977
  %3979 = vset.pattern.permute.xlu0 0
  %3980 = vperm.xlu0 %3979, %v570
  %v3981 = vpop.permute.xlu0 %3980
  %3982 = vset.pattern.permute.xlu0 0
  %3983 = vperm.xlu0 %3982, %v571
  %v3984 = vpop.permute.xlu0 %3983
  %3985 = vset.pattern.permute.xlu0 0
  %3986 = vperm.xlu0 %3985, %v572
  %v3987 = vpop.permute.xlu0 %3986
  %3988 = vset.pattern.permute.xlu0 0
  %3989 = vperm.xlu0 %3988, %v573
  %v3990 = vpop.permute.xlu0 %3989
  %3991 = vset.pattern.permute.xlu0 0
  %3992 = vperm.xlu0 %3991, %v574
  %v3993 = vpop.permute.xlu0 %3992
  %3994 = vset.pattern.permute.xlu0 0
  %3995 = vperm.xlu0 %3994, %v575
  %v3996 = vpop.permute.xlu0 %3995
  %3997 = vset.pattern.permute.xlu0 0
  %3998 = vperm.xlu0 %3997, %v576
  %v3999 = vpop.permute.xlu0 %3998
  %4000 = vset.pattern.permute.xlu0 0
  %4001 = vperm.xlu0 %4000, %v577
  %v4002 = vpop.permute.xlu0 %4001
  %4003 = vset.pattern.permute.xlu0 0
  %4004 = vperm.xlu0 %4003, %v578
  %v4005 = vpop.permute.xlu0 %4004
  %4006 = vset.pattern.permute.xlu0 0
  %4007 = vperm.xlu0 %4006, %v579
  %v4008 = vpop.permute.xlu0 %4007
  %4009 = vset.pattern.permute.xlu0 0
  %4010 = vperm.xlu0 %4009, %v580
  %v4011 = vpop.permute.xlu0 %4010
  %4012 = vset.pattern.permute.xlu0 0
  %4013 = vperm.xlu0 %4012, %v581
  %v4014 = vpop.permute.xlu0 %4013
  %4015 = vset.pattern.permute.xlu0 0
  %4016 = vperm.xlu0 %4015, %v582
  %v4017 = vpop.permute.xlu0 %4016
  %4018 = vset.pattern.permute.xlu0 0
  %4019 = vperm.xlu0 %4018, %v583
  %v4020 = vpop.permute.xlu0 %4019
  %4021 = vset.pattern.permute.xlu0 0
  %4022 = vperm.xlu0 %4021, %v584
  %v4023 = vpop.permute.xlu0 %4022
  %4024 = vset.pattern.permute.xlu0 0
  %4025 = vperm.xlu0 %4024, %v585
  %v4026 = vpop.permute.xlu0 %4025
  %4027 = vset.pattern.permute.xlu0 0
  %4028 = vperm.xlu0 %4027, %v586
  %v4029 = vpop.permute.xlu0 %4028
  %4030 = vset.pattern.permute.xlu0 0
  %4031 = vperm.xlu0 %4030, %v587
  %v4032 = vpop.permute.xlu0 %4031
  %4033 = vset.pattern.permute.xlu0 0
  %4034 = vperm.xlu0 %4033, %v588
  %v4035 = vpop.permute.xlu0 %4034
  %4036 = vset.pattern.permute.xlu0 0
  %4037 = vperm.xlu0 %4036, %v589
  %v4038 = vpop.permute.xlu0 %4037
  %4039 = vset.pattern.permute.xlu0 0
  %4040 = vperm.xlu0 %4039, %v590
  %v4041 = vpop.permute.xlu0 %4040
  %4042 = vset.pattern.permute.xlu0 0
  %4043 = vperm.xlu0 %4042, %v591
  %v4044 = vpop.permute.xlu0 %4043
  %4045 = vset.pattern.permute.xlu0 0
  %4046 = vperm.xlu0 %4045, %v592
  %v4047 = vpop.permute.xlu0 %4046
  %4048 = vset.pattern.permute.xlu0 0
  %4049 = vperm.xlu0 %4048, %v593
  %v4050 = vpop.permute.xlu0 %4049
  %4051 = vset.pattern.permute.xlu0 0
  %4052 = vperm.xlu0 %4051, %v594
  %v4053 = vpop.permute.xlu0 %4052
  %4054 = vset.pattern.permute.xlu0 0
  %4055 = vperm.xlu0 %4054, %v595
  %v4056 = vpop.permute.xlu0 %4055
  %4057 = vset.pattern.permute.xlu0 0
  %4058 = vperm.xlu0 %4057, %v596
  %v4059 = vpop.permute.xlu0 %4058
  %4060 = vset.pattern.permute.xlu0 0
  %4061 = vperm.xlu0 %4060, %v597
  %v4062 = vpop.permute.xlu0 %4061
  %4063 = vset.pattern.permute.xlu0 0
  %4064 = vperm.xlu0 %4063, %v598
  %v4065 = vpop.permute.xlu0 %4064
  %4066 = vset.pattern.permute.xlu0 0
  %4067 = vperm.xlu0 %4066, %v599
  %v4068 = vpop.permute.xlu0 %4067
  %4069 = vset.pattern.permute.xlu0 0
  %4070 = vperm.xlu0 %4069, %v600
  %v4071 = vpop.permute.xlu0 %4070
  %4072 = vset.pattern.permute.xlu0 0
  %4073 = vperm.xlu0 %4072, %v601
  %v4074 = vpop.permute.xlu0 %4073
  %4075 = vset.pattern.permute.xlu0 0
  %4076 = vperm.xlu0 %4075, %v602
  %v4077 = vpop.permute.xlu0 %4076
  %4078 = vset.pattern.permute.xlu0 0
  %4079 = vperm.xlu0 %4078, %v603
  %v4080 = vpop.permute.xlu0 %4079
  %4081 = vset.pattern.permute.xlu0 0
  %4082 = vperm.xlu0 %4081, %v604
  %v4083 = vpop.permute.xlu0 %4082
  %4084 = vset.pattern.permute.xlu0 0
  %4085 = vperm.xlu0 %4084, %v605
  %v4086 = vpop.permute.xlu0 %4085
  %4087 = vset.pattern.permute.xlu0 0
  %4088 = vperm.xlu0 %4087, %v606
  %v4089 = vpop.permute.xlu0 %4088
  %4090 = vset.pattern.permute.xlu0 0
  %4091 = vperm.xlu0 %4090, %v607
  %v4092 = vpop.permute.xlu0 %4091
  %4093 = vset.pattern.permute.xlu0 0
  %4094 = vperm.xlu0 %4093, %v608
  %v4095 = vpop.permute.xlu0 %4094
  %4096 = vset.pattern.permute.xlu0 0
  %4097 = vperm.xlu0 %4096, %v609
  %v4098 = vpop.permute.xlu0 %4097
  %4099 = vset.pattern.permute.xlu0 0
  %4100 = vperm.xlu0 %4099, %v610
  %v4101 = vpop.permute.xlu0 %4100
  %4102 = vset.pattern.permute.xlu0 0
  %4103 = vperm.xlu0 %4102, %v611
  %v4104 = vpop.permute.xlu0 %4103
  %4105 = vset.pattern.permute.xlu0 0
  %4106 = vperm.xlu0 %4105, %v612
  %v4107 = vpop.permute.xlu0 %4106
  %4108 = vset.pattern.permute.xlu0 0
  %4109 = vperm.xlu0 %4108, %v613
  %v4110 = vpop.permute.xlu0 %4109
  %4111 = vset.pattern.permute.xlu0 0
  %4112 = vperm.xlu0 %4111, %v614
  %v4113 = vpop.permute.xlu0 %4112
  %4114 = vset.pattern.permute.xlu0 0
  %4115 = vperm.xlu0 %4114, %v615
  %v4116 = vpop.permute.xlu0 %4115
  %4117 = vset.pattern.permute.xlu0 0
  %4118 = vperm.xlu0 %4117, %v616
  %v4119 = vpop.permute.xlu0 %4118
  %4120 = vset.pattern.permute.xlu0 0
  %4121 = vperm.xlu0 %4120, %v617
  %v4122 = vpop.permute.xlu0 %4121
  %4123 = vset.pattern.permute.xlu0 0
  %4124 = vperm.xlu0 %4123, %v618
  %v4125 = vpop.permute.xlu0 %4124
  %4126 = vset.pattern.permute.xlu0 0
  %4127 = vperm.xlu0 %4126, %v619
  %v4128 = vpop.permute.xlu0 %4127
  %4129 = vset.pattern.permute.xlu0 0
  %4130 = vperm.xlu0 %4129, %v620
  %v4131 = vpop.permute.xlu0 %4130
  %4132 = vset.pattern.permute.xlu0 0
  %4133 = vperm.xlu0 %4132, %v621
  %v4134 = vpop.permute.xlu0 %4133
  %4135 = vset.pattern.permute.xlu0 0
  %4136 = vperm.xlu0 %4135, %v622
  %v4137 = vpop.permute.xlu0 %4136
  %4138 = vset.pattern.permute.xlu0 0
  %4139 = vperm.xlu0 %4138, %v623
  %v4140 = vpop.permute.xlu0 %4139
  %4141 = vset.pattern.permute.xlu0 0
  %4142 = vperm.xlu0 %4141, %v624
  %v4143 = vpop.permute.xlu0 %4142
  %4144 = vset.pattern.permute.xlu0 0
  %4145 = vperm.xlu0 %4144, %v625
  %v4146 = vpop.permute.xlu0 %4145
  %4147 = vset.pattern.permute.xlu0 0
  %4148 = vperm.xlu0 %4147, %v626
  %v4149 = vpop.permute.xlu0 %4148
  %4150 = vset.pattern.permute.xlu0 0
  %4151 = vperm.xlu0 %4150, %v627
  %v4152 = vpop.permute.xlu0 %4151
  %4153 = vset.pattern.permute.xlu0 0
  %4154 = vperm.xlu0 %4153, %v628
  %v4155 = vpop.permute.xlu0 %4154
  %4156 = vset.pattern.permute.xlu0 0
  %4157 = vperm.xlu0 %4156, %v629
  %v4158 = vpop.permute.xlu0 %4157
  %4159 = vset.pattern.permute.xlu0 0
  %4160 = vperm.xlu0 %4159, %v630
  %v4161 = vpop.permute.xlu0 %4160
  %4162 = vset.pattern.permute.xlu0 0
  %4163 = vperm.xlu0 %4162, %v631
  %v4164 = vpop.permute.xlu0 %4163
  %4165 = vset.pattern.permute.xlu0 0
  %4166 = vperm.xlu0 %4165, %v632
  %v4167 = vpop.permute.xlu0 %4166
  %4168 = vset.pattern.permute.xlu0 0
  %4169 = vperm.xlu0 %4168, %v633
  %v4170 = vpop.permute.xlu0 %4169
  %4171 = vset.pattern.permute.xlu0 0
  %4172 = vperm.xlu0 %4171, %v634
  %v4173 = vpop.permute.xlu0 %4172
  %4174 = vset.pattern.permute.xlu0 0
  %4175 = vperm.xlu0 %4174, %v635
  %v4176 = vpop.permute.xlu0 %4175
  %4177 = vset.pattern.permute.xlu0 0
  %4178 = vperm.xlu0 %4177, %v636
  %v4179 = vpop.permute.xlu0 %4178
  %4180 = vset.pattern.permute.xlu0 0
  %4181 = vperm.xlu0 %4180, %v637
  %v4182 = vpop.permute.xlu0 %4181
  %4183 = vset.pattern.permute.xlu0 0
  %4184 = vperm.xlu0 %4183, %v638
  %v4185 = vpop.permute.xlu0 %4184
  %4186 = vset.pattern.permute.xlu0 0
  %4187 = vperm.xlu0 %4186, %v639
  %v4188 = vpop.permute.xlu0 %4187
  %4189 = vset.pattern.permute.xlu0 0
  %4190 = vperm.xlu0 %4189, %v640
  %v4191 = vpop.permute.xlu0 %4190
  %4192 = vset.pattern.permute.xlu0 0
  %4193 = vperm.xlu0 %4192, %v641
  %v4194 = vpop.permute.xlu0 %4193
  %4195 = vset.pattern.permute.xlu0 0
  %4196 = vperm.xlu0 %4195, %v642
  %v4197 = vpop.permute.xlu0 %4196
  %4198 = vset.pattern.permute.xlu0 0
  %4199 = vperm.xlu0 %4198, %v643
  %v4200 = vpop.permute.xlu0 %4199
  %4201 = vset.pattern.permute.xlu0 0
  %4202 = vperm.xlu0 %4201, %v644
  %v4203 = vpop.permute.xlu0 %4202
  %4204 = vset.pattern.permute.xlu0 0
  %4205 = vperm.xlu0 %4204, %v645
  %v4206 = vpop.permute.xlu0 %4205
  %4207 = vset.pattern.permute.xlu0 0
  %4208 = vperm.xlu0 %4207, %v646
  %v4209 = vpop.permute.xlu0 %4208
  %4210 = vset.pattern.permute.xlu0 0
  %4211 = vperm.xlu0 %4210, %v647
  %v4212 = vpop.permute.xlu0 %4211
  %4213 = vset.pattern.permute.xlu0 0
  %4214 = vperm.xlu0 %4213, %v648
  %v4215 = vpop.permute.xlu0 %4214
  %4216 = vset.pattern.permute.xlu0 0
  %4217 = vperm.xlu0 %4216, %v649
  %v4218 = vpop.permute.xlu0 %4217
  %4219 = vset.pattern.permute.xlu0 0
  %4220 = vperm.xlu0 %4219, %v650
  %v4221 = vpop.permute.xlu0 %4220
  %4222 = vset.pattern.permute.xlu0 0
  %4223 = vperm.xlu0 %4222, %v651
  %v4224 = vpop.permute.xlu0 %4223
  %4225 = vset.pattern.permute.xlu0 0
  %4226 = vperm.xlu0 %4225, %v652
  %v4227 = vpop.permute.xlu0 %4226
  %4228 = vset.pattern.permute.xlu0 0
  %4229 = vperm.xlu0 %4228, %v653
  %v4230 = vpop.permute.xlu0 %4229
  %4231 = vset.pattern.permute.xlu0 0
  %4232 = vperm.xlu0 %4231, %v654
  %v4233 = vpop.permute.xlu0 %4232
  %4234 = vset.pattern.permute.xlu0 0
  %4235 = vperm.xlu0 %4234, %v655
  %v4236 = vpop.permute.xlu0 %4235
  %4237 = vset.pattern.permute.xlu0 0
  %4238 = vperm.xlu0 %4237, %v656
  %v4239 = vpop.permute.xlu0 %4238
  %4240 = vset.pattern.permute.xlu0 0
  %4241 = vperm.xlu0 %4240, %v657
  %v4242 = vpop.permute.xlu0 %4241
  %4243 = vset.pattern.permute.xlu0 0
  %4244 = vperm.xlu0 %4243, %v658
  %v4245 = vpop.permute.xlu0 %4244
  %4246 = vset.pattern.permute.xlu0 0
  %4247 = vperm.xlu0 %4246, %v659
  %v4248 = vpop.permute.xlu0 %4247
  %4249 = vset.pattern.permute.xlu0 0
  %4250 = vperm.xlu0 %4249, %v660
  %v4251 = vpop.permute.xlu0 %4250
  %4252 = vset.pattern.permute.xlu0 0
  %4253 = vperm.xlu0 %4252, %v661
  %v4254 = vpop.permute.xlu0 %4253
  %4255 = vset.pattern.permute.xlu0 0
  %4256 = vperm.xlu0 %4255, %v662
  %v4257 = vpop.permute.xlu0 %4256
  %4258 = vset.pattern.permute.xlu0 0
  %4259 = vperm.xlu0 %4258, %v663
  %v4260 = vpop.permute.xlu0 %4259
  %4261 = vset.pattern.permute.xlu0 0
  %4262 = vperm.xlu0 %4261, %v664
  %v4263 = vpop.permute.xlu0 %4262
  %4264 = vset.pattern.permute.xlu0 0
  %4265 = vperm.xlu0 %4264, %v665
  %v4266 = vpop.permute.xlu0 %4265
  %4267 = vset.pattern.permute.xlu0 0
  %4268 = vperm.xlu0 %4267, %v666
  %v4269 = vpop.permute.xlu0 %4268
  %4270 = vset.pattern.permute.xlu0 0
  %4271 = vperm.xlu0 %4270, %v667
  %v4272 = vpop.permute.xlu0 %4271
  %4273 = vset.pattern.permute.xlu0 0
  %4274 = vperm.xlu0 %4273, %v668
  %v4275 = vpop.permute.xlu0 %4274
  %4276 = vset.pattern.permute.xlu0 0
  %4277 = vperm.xlu0 %4276, %v669
  %v4278 = vpop.permute.xlu0 %4277
  %4279 = vset.pattern.permute.xlu0 0
  %4280 = vperm.xlu0 %4279, %v670
  %v4281 = vpop.permute.xlu0 %4280
  %4282 = vset.pattern.permute.xlu0 0
  %4283 = vperm.xlu0 %4282, %v671
  %v4284 = vpop.permute.xlu0 %4283
  %4285 = vset.pattern.permute.xlu0 0
  %4286 = vperm.xlu0 %4285, %v672
  %v4287 = vpop.permute.xlu0 %4286
  %4288 = vset.pattern.permute.xlu0 0
  %4289 = vperm.xlu0 %4288, %v673
  %v4290 = vpop.permute.xlu0 %4289
  %4291 = vset.pattern.permute.xlu0 0
  %4292 = vperm.xlu0 %4291, %v674
  %v4293 = vpop.permute.xlu0 %4292
  %4294 = vset.pattern.permute.xlu0 0
  %4295 = vperm.xlu0 %4294, %v675
  %v4296 = vpop.permute.xlu0 %4295
  %4297 = vset.pattern.permute.xlu0 0
  %4298 = vperm.xlu0 %4297, %v676
  %v4299 = vpop.permute.xlu0 %4298
  %4300 = vset.pattern.permute.xlu0 0
  %4301 = vperm.xlu0 %4300, %v677
  %v4302 = vpop.permute.xlu0 %4301
  %4303 = vset.pattern.permute.xlu0 0
  %4304 = vperm.xlu0 %4303, %v678
  %v4305 = vpop.permute.xlu0 %4304
  %4306 = vset.pattern.permute.xlu0 0
  %4307 = vperm.xlu0 %4306, %v679
  %v4308 = vpop.permute.xlu0 %4307
  %4309 = vset.pattern.permute.xlu0 0
  %4310 = vperm.xlu0 %4309, %v680
  %v4311 = vpop.permute.xlu0 %4310
  %4312 = vset.pattern.permute.xlu0 0
  %4313 = vperm.xlu0 %4312, %v681
  %v4314 = vpop.permute.xlu0 %4313
  %4315 = vset.pattern.permute.xlu0 0
  %4316 = vperm.xlu0 %4315, %v682
  %v4317 = vpop.permute.xlu0 %4316
  %4318 = vset.pattern.permute.xlu0 0
  %4319 = vperm.xlu0 %4318, %v683
  %v4320 = vpop.permute.xlu0 %4319
  %4321 = vset.pattern.permute.xlu0 0
  %4322 = vperm.xlu0 %4321, %v684
  %v4323 = vpop.permute.xlu0 %4322
  %4324 = vset.pattern.permute.xlu0 0
  %4325 = vperm.xlu0 %4324, %v685
  %v4326 = vpop.permute.xlu0 %4325
  %4327 = vset.pattern.permute.xlu0 0
  %4328 = vperm.xlu0 %4327, %v686
  %v4329 = vpop.permute.xlu0 %4328
  %4330 = vset.pattern.permute.xlu0 0
  %4331 = vperm.xlu0 %4330, %v687
  %v4332 = vpop.permute.xlu0 %4331
  %4333 = vset.pattern.permute.xlu0 0
  %4334 = vperm.xlu0 %4333, %v688
  %v4335 = vpop.permute.xlu0 %4334
  %4336 = vset.pattern.permute.xlu0 0
  %4337 = vperm.xlu0 %4336, %v689
  %v4338 = vpop.permute.xlu0 %4337
  %4339 = vset.pattern.permute.xlu0 0
  %4340 = vperm.xlu0 %4339, %v690
  %v4341 = vpop.permute.xlu0 %4340
  %4342 = vset.pattern.permute.xlu0 0
  %4343 = vperm.xlu0 %4342, %v691
  %v4344 = vpop.permute.xlu0 %4343
  %4345 = vset.pattern.permute.xlu0 0
  %4346 = vperm.xlu0 %4345, %v692
  %v4347 = vpop.permute.xlu0 %4346
  %4348 = vset.pattern.permute.xlu0 0
  %4349 = vperm.xlu0 %4348, %v693
  %v4350 = vpop.permute.xlu0 %4349
  %4351 = vset.pattern.permute.xlu0 0
  %4352 = vperm.xlu0 %4351, %v694
  %v4353 = vpop.permute.xlu0 %4352
  %4354 = vset.pattern.permute.xlu0 0
  %4355 = vperm.xlu0 %4354, %v695
  %v4356 = vpop.permute.xlu0 %4355
  %4357 = vset.pattern.permute.xlu0 0
  %4358 = vperm.xlu0 %4357, %v696
  %v4359 = vpop.permute.xlu0 %4358
  %4360 = vset.pattern.permute.xlu0 0
  %4361 = vperm.xlu0 %4360, %v697
  %v4362 = vpop.permute.xlu0 %4361
  %4363 = vset.pattern.permute.xlu0 0
  %4364 = vperm.xlu0 %4363, %v698
  %v4365 = vpop.permute.xlu0 %4364
  %4366 = vset.pattern.permute.xlu0 0
  %4367 = vperm.xlu0 %4366, %v699
  %v4368 = vpop.permute.xlu0 %4367
  %4369 = vset.pattern.permute.xlu0 0
  %4370 = vperm.xlu0 %4369, %v700
  %v4371 = vpop.permute.xlu0 %4370
  %4372 = vset.pattern.permute.xlu0 0
  %4373 = vperm.xlu0 %4372, %v701
  %v4374 = vpop.permute.xlu0 %4373
  %4375 = vset.pattern.permute.xlu0 0
  %4376 = vperm.xlu0 %4375, %v702
  %v4377 = vpop.permute.xlu0 %4376
  %4378 = vset.pattern.permute.xlu0 0
  %4379 = vperm.xlu0 %4378, %v703
  %v4380 = vpop.permute.xlu0 %4379
  %4381 = vset.pattern.permute.xlu0 0
  %4382 = vperm.xlu0 %4381, %v704
  %v4383 = vpop.permute.xlu0 %4382
  %4384 = vset.pattern.permute.xlu0 0
  %4385 = vperm.xlu0 %4384, %v705
  %v4386 = vpop.permute.xlu0 %4385
  %4387 = vset.pattern.permute.xlu0 0
  %4388 = vperm.xlu0 %4387, %v706
  %v4389 = vpop.permute.xlu0 %4388
  %4390 = vset.pattern.permute.xlu0 0
  %4391 = vperm.xlu0 %4390, %v707
  %v4392 = vpop.permute.xlu0 %4391
  %4393 = vset.pattern.permute.xlu0 0
  %4394 = vperm.xlu0 %4393, %v708
  %v4395 = vpop.permute.xlu0 %4394
  %4396 = vset.pattern.permute.xlu0 0
  %4397 = vperm.xlu0 %4396, %v709
  %v4398 = vpop.permute.xlu0 %4397
  %4399 = vset.pattern.permute.xlu0 0
  %4400 = vperm.xlu0 %4399, %v710
  %v4401 = vpop.permute.xlu0 %4400
  %4402 = vset.pattern.permute.xlu0 0
  %4403 = vperm.xlu0 %4402, %v711
  %v4404 = vpop.permute.xlu0 %4403
  %4405 = vset.pattern.permute.xlu0 0
  %4406 = vperm.xlu0 %4405, %v712
  %v4407 = vpop.permute.xlu0 %4406
  %4408 = vset.pattern.permute.xlu0 0
  %4409 = vperm.xlu0 %4408, %v713
  %v4410 = vpop.permute.xlu0 %4409
  %4411 = vset.pattern.permute.xlu0 0
  %4412 = vperm.xlu0 %4411, %v714
  %v4413 = vpop.permute.xlu0 %4412
  %4414 = vset.pattern.permute.xlu0 0
  %4415 = vperm.xlu0 %4414, %v715
  %v4416 = vpop.permute.xlu0 %4415
  %4417 = vset.pattern.permute.xlu0 0
  %4418 = vperm.xlu0 %4417, %v716
  %v4419 = vpop.permute.xlu0 %4418
  %4420 = vset.pattern.permute.xlu0 0
  %4421 = vperm.xlu0 %4420, %v717
  %v4422 = vpop.permute.xlu0 %4421
  %4423 = vset.pattern.permute.xlu0 0
  %4424 = vperm.xlu0 %4423, %v718
  %v4425 = vpop.permute.xlu0 %4424
  %4426 = vset.pattern.permute.xlu0 0
  %4427 = vperm.xlu0 %4426, %v719
  %v4428 = vpop.permute.xlu0 %4427
  %4429 = vset.pattern.permute.xlu0 0
  %4430 = vperm.xlu0 %4429, %v720
  %v4431 = vpop.permute.xlu0 %4430
  %4432 = vset.pattern.permute.xlu0 0
  %4433 = vperm.xlu0 %4432, %v721
  %v4434 = vpop.permute.xlu0 %4433
  %4435 = vset.pattern.permute.xlu0 0
  %4436 = vperm.xlu0 %4435, %v722
  %v4437 = vpop.permute.xlu0 %4436
  %4438 = vset.pattern.permute.xlu0 0
  %4439 = vperm.xlu0 %4438, %v723
  %v4440 = vpop.permute.xlu0 %4439
  %4441 = vset.pattern.permute.xlu0 0
  %4442 = vperm.xlu0 %4441, %v724
  %v4443 = vpop.permute.xlu0 %4442
  %4444 = vset.pattern.permute.xlu0 0
  %4445 = vperm.xlu0 %4444, %v725
  %v4446 = vpop.permute.xlu0 %4445
  %4447 = vset.pattern.permute.xlu0 0
  %4448 = vperm.xlu0 %4447, %v726
  %v4449 = vpop.permute.xlu0 %4448
  %4450 = vset.pattern.permute.xlu0 0
  %4451 = vperm.xlu0 %4450, %v727
  %v4452 = vpop.permute.xlu0 %4451
  %4453 = vset.pattern.permute.xlu0 0
  %4454 = vperm.xlu0 %4453, %v728
  %v4455 = vpop.permute.xlu0 %4454
  %4456 = vset.pattern.permute.xlu0 0
  %4457 = vperm.xlu0 %4456, %v729
  %v4458 = vpop.permute.xlu0 %4457
  %4459 = vset.pattern.permute.xlu0 0
  %4460 = vperm.xlu0 %4459, %v730
  %v4461 = vpop.permute.xlu0 %4460
  %4462 = vset.pattern.permute.xlu0 0
  %4463 = vperm.xlu0 %4462, %v731
  %v4464 = vpop.permute.xlu0 %4463
  %4465 = vset.pattern.permute.xlu0 0
  %4466 = vperm.xlu0 %4465, %v732
  %v4467 = vpop.permute.xlu0 %4466
  %4468 = vset.pattern.permute.xlu0 0
  %4469 = vperm.xlu0 %4468, %v733
  %v4470 = vpop.permute.xlu0 %4469
  %4471 = vset.pattern.permute.xlu0 0
  %4472 = vperm.xlu0 %4471, %v734
  %v4473 = vpop.permute.xlu0 %4472
  %4474 = vset.pattern.permute.xlu0 0
  %4475 = vperm.xlu0 %4474, %v735
  %v4476 = vpop.permute.xlu0 %4475
  %4477 = vset.pattern.permute.xlu0 0
  %4478 = vperm.xlu0 %4477, %v736
  %v4479 = vpop.permute.xlu0 %4478
  %4480 = vset.pattern.permute.xlu0 0
  %4481 = vperm.xlu0 %4480, %v737
  %v4482 = vpop.permute.xlu0 %4481
  %4483 = vset.pattern.permute.xlu0 0
  %4484 = vperm.xlu0 %4483, %v738
  %v4485 = vpop.permute.xlu0 %4484
  %4486 = vset.pattern.permute.xlu0 0
  %4487 = vperm.xlu0 %4486, %v739
  %v4488 = vpop.permute.xlu0 %4487
  %4489 = vset.pattern.permute.xlu0 0
  %4490 = vperm.xlu0 %4489, %v740
  %v4491 = vpop.permute.xlu0 %4490
  %4492 = vset.pattern.permute.xlu0 0
  %4493 = vperm.xlu0 %4492, %v741
  %v4494 = vpop.permute.xlu0 %4493
  %4495 = vset.pattern.permute.xlu0 0
  %4496 = vperm.xlu0 %4495, %v742
  %v4497 = vpop.permute.xlu0 %4496
  %4498 = vset.pattern.permute.xlu0 0
  %4499 = vperm.xlu0 %4498, %v743
  %v4500 = vpop.permute.xlu0 %4499
  %4501 = vset.pattern.permute.xlu0 0
  %4502 = vperm.xlu0 %4501, %v744
  %v4503 = vpop.permute.xlu0 %4502
  %4504 = vset.pattern.permute.xlu0 0
  %4505 = vperm.xlu0 %4504, %v745
  %v4506 = vpop.permute.xlu0 %4505
  %4507 = vset.pattern.permute.xlu0 0
  %4508 = vperm.xlu0 %4507, %v746
  %v4509 = vpop.permute.xlu0 %4508
  %4510 = vset.pattern.permute.xlu0 0
  %4511 = vperm.xlu0 %4510, %v747
  %v4512 = vpop.permute.xlu0 %4511
  %4513 = vset.pattern.permute.xlu0 0
  %4514 = vperm.xlu0 %4513, %v748
  %v4515 = vpop.permute.xlu0 %4514
  %4516 = vset.pattern.permute.xlu0 0
  %4517 = vperm.xlu0 %4516, %v749
  %v4518 = vpop.permute.xlu0 %4517
  %4519 = vset.pattern.permute.xlu0 0
  %4520 = vperm.xlu0 %4519, %v750
  %v4521 = vpop.permute.xlu0 %4520
  %4522 = vset.pattern.permute.xlu0 0
  %4523 = vperm.xlu0 %4522, %v751
  %v4524 = vpop.permute.xlu0 %4523
  %4525 = vset.pattern.permute.xlu0 0
  %4526 = vperm.xlu0 %4525, %v752
  %v4527 = vpop.permute.xlu0 %4526
  %4528 = vset.pattern.permute.xlu0 0
  %4529 = vperm.xlu0 %4528, %v753
  %v4530 = vpop.permute.xlu0 %4529
  %4531 = vset.pattern.permute.xlu0 0
  %4532 = vperm.xlu0 %4531, %v754
  %v4533 = vpop.permute.xlu0 %4532
  %4534 = vset.pattern.permute.xlu0 0
  %4535 = vperm.xlu0 %4534, %v755
  %v4536 = vpop.permute.xlu0 %4535
  %4537 = vset.pattern.permute.xlu0 0
  %4538 = vperm.xlu0 %4537, %v756
  %v4539 = vpop.permute.xlu0 %4538
  %4540 = vset.pattern.permute.xlu0 0
  %4541 = vperm.xlu0 %4540, %v757
  %v4542 = vpop.permute.xlu0 %4541
  %4543 = vset.pattern.permute.xlu0 0
  %4544 = vperm.xlu0 %4543, %v758
  %v4545 = vpop.permute.xlu0 %4544
  %4546 = vset.pattern.permute.xlu0 0
  %4547 = vperm.xlu0 %4546, %v759
  %v4548 = vpop.permute.xlu0 %4547
  %4549 = vset.pattern.permute.xlu0 0
  %4550 = vperm.xlu0 %4549, %v760
  %v4551 = vpop.permute.xlu0 %4550
  %4552 = vset.pattern.permute.xlu0 0
  %4553 = vperm.xlu0 %4552, %v761
  %v4554 = vpop.permute.xlu0 %4553
  %4555 = vset.pattern.permute.xlu0 0
  %4556 = vperm.xlu0 %4555, %v762
  %v4557 = vpop.permute.xlu0 %4556
  %4558 = vset.pattern.permute.xlu0 0
  %4559 = vperm.xlu0 %4558, %v763
  %v4560 = vpop.permute.xlu0 %4559
  %4561 = vset.pattern.permute.xlu0 0
  %4562 = vperm.xlu0 %4561, %v764
  %v4563 = vpop.permute.xlu0 %4562
  %4564 = vset.pattern.permute.xlu0 0
  %4565 = vperm.xlu0 %4564, %v765
  %v4566 = vpop.permute.xlu0 %4565
  %4567 = vset.pattern.permute.xlu0 0
  %4568 = vperm.xlu0 %4567, %v766
  %v4569 = vpop.permute.xlu0 %4568
  %4570 = vset.pattern.permute.xlu0 0
  %4571 = vperm.xlu0 %4570, %v767
  %v4572 = vpop.permute.xlu0 %4571
  %4573 = vset.pattern.permute.xlu0 0
  %4574 = vperm.xlu0 %4573, %v768
  %v4575 = vpop.permute.xlu0 %4574
  %4576 = vset.pattern.permute.xlu0 0
  %4577 = vperm.xlu0 %4576, %v769
  %v4578 = vpop.permute.xlu0 %4577
  %4579 = vset.pattern.permute.xlu0 0
  %4580 = vperm.xlu0 %4579, %v770
  %v4581 = vpop.permute.xlu0 %4580
  %4582 = vset.pattern.permute.xlu0 0
  %4583 = vperm.xlu0 %4582, %v771
  %v4584 = vpop.permute.xlu0 %4583
  %4585 = vset.pattern.permute.xlu0 0
  %4586 = vperm.xlu0 %4585, %v772
  %v4587 = vpop.permute.xlu0 %4586
  %4588 = vset.pattern.permute.xlu0 0
  %4589 = vperm.xlu0 %4588, %v773
  %v4590 = vpop.permute.xlu0 %4589
  %4591 = vset.pattern.permute.xlu0 0
  %4592 = vperm.xlu0 %4591, %v774
  %v4593 = vpop.permute.xlu0 %4592
  %4594 = vset.pattern.permute.xlu0 0
  %4595 = vperm.xlu0 %4594, %v775
  %v4596 = vpop.permute.xlu0 %4595
  %4597 = vset.pattern.permute.xlu0 0
  %4598 = vperm.xlu0 %4597, %v776
  %v4599 = vpop.permute.xlu0 %4598
  %4600 = vset.pattern.permute.xlu0 0
  %4601 = vperm.xlu0 %4600, %v777
  %v4602 = vpop.permute.xlu0 %4601
  %4603 = vset.pattern.permute.xlu0 0
  %4604 = vperm.xlu0 %4603, %v778
  %v4605 = vpop.permute.xlu0 %4604
  %4606 = vset.pattern.permute.xlu0 0
  %4607 = vperm.xlu0 %4606, %v779
  %v4608 = vpop.permute.xlu0 %4607
  %4609 = vset.pattern.permute.xlu0 0
  %4610 = vperm.xlu0 %4609, %v780
  %v4611 = vpop.permute.xlu0 %4610
  %4612 = vset.pattern.permute.xlu0 0
  %4613 = vperm.xlu0 %4612, %v781
  %v4614 = vpop.permute.xlu0 %4613
  %4615 = vset.pattern.permute.xlu0 0
  %4616 = vperm.xlu0 %4615, %v782
  %v4617 = vpop.permute.xlu0 %4616
  %4618 = vset.pattern.permute.xlu0 0
  %4619 = vperm.xlu0 %4618, %v783
  %v4620 = vpop.permute.xlu0 %4619
  %4621 = vset.pattern.permute.xlu0 0
  %4622 = vperm.xlu0 %4621, %v784
  %v4623 = vpop.permute.xlu0 %4622
  %4624 = vset.pattern.permute.xlu0 0
  %4625 = vperm.xlu0 %4624, %v785
  %v4626 = vpop.permute.xlu0 %4625
  %4627 = vset.pattern.permute.xlu0 0
  %4628 = vperm.xlu0 %4627, %v786
  %v4629 = vpop.permute.xlu0 %4628
  %vm4630 = vcmp.eq.s32.totalorder %v3860, %v3864
  %vm4631 = vcmp.eq.s32.totalorder %v3861, %v3864
  %vm4632 = vcmp.eq.s32.totalorder %v3860, %v3867
  %vm4633 = vcmp.eq.s32.totalorder %v3861, %v3867
  %vm4634 = vcmp.eq.s32.totalorder %v3860, %v3870
  %vm4635 = vcmp.eq.s32.totalorder %v3861, %v3870
  %vm4636 = vcmp.eq.s32.totalorder %v3860, %v3873
  %vm4637 = vcmp.eq.s32.totalorder %v3861, %v3873
  %vm4638 = vcmp.eq.s32.totalorder %v3860, %v3876
  %vm4639 = vcmp.eq.s32.totalorder %v3861, %v3876
  %vm4640 = vcmp.eq.s32.totalorder %v3860, %v3879
  %vm4641 = vcmp.eq.s32.totalorder %v3861, %v3879
  %vm4642 = vcmp.eq.s32.totalorder %v3860, %v3882
  %vm4643 = vcmp.eq.s32.totalorder %v3861, %v3882
  %vm4644 = vcmp.eq.s32.totalorder %v3860, %v3885
  %vm4645 = vcmp.eq.s32.totalorder %v3861, %v3885
  %vm4646 = vcmp.eq.s32.totalorder %v3860, %v3888
  %vm4647 = vcmp.eq.s32.totalorder %v3861, %v3888
  %vm4648 = vcmp.eq.s32.totalorder %v3860, %v3891
  %vm4649 = vcmp.eq.s32.totalorder %v3861, %v3891
  %vm4650 = vcmp.eq.s32.totalorder %v3860, %v3894
  %vm4651 = vcmp.eq.s32.totalorder %v3861, %v3894
  %vm4652 = vcmp.eq.s32.totalorder %v3860, %v3897
  %vm4653 = vcmp.eq.s32.totalorder %v3861, %v3897
  %vm4654 = vcmp.eq.s32.totalorder %v3860, %v3900
  %vm4655 = vcmp.eq.s32.totalorder %v3861, %v3900
  %vm4656 = vcmp.eq.s32.totalorder %v3860, %v3903
  %vm4657 = vcmp.eq.s32.totalorder %v3861, %v3903
  %vm4658 = vcmp.eq.s32.totalorder %v3860, %v3906
  %vm4659 = vcmp.eq.s32.totalorder %v3861, %v3906
  %vm4660 = vcmp.eq.s32.totalorder %v3860, %v3909
  %vm4661 = vcmp.eq.s32.totalorder %v3861, %v3909
  %vm4662 = vcmp.eq.s32.totalorder %v3860, %v3912
  %vm4663 = vcmp.eq.s32.totalorder %v3861, %v3912
  %vm4664 = vcmp.eq.s32.totalorder %v3860, %v3915
  %vm4665 = vcmp.eq.s32.totalorder %v3861, %v3915
  %vm4666 = vcmp.eq.s32.totalorder %v3860, %v3918
  %vm4667 = vcmp.eq.s32.totalorder %v3861, %v3918
  %vm4668 = vcmp.eq.s32.totalorder %v3860, %v3921
  %vm4669 = vcmp.eq.s32.totalorder %v3861, %v3921
  %vm4670 = vcmp.eq.s32.totalorder %v3860, %v3924
  %vm4671 = vcmp.eq.s32.totalorder %v3861, %v3924
  %vm4672 = vcmp.eq.s32.totalorder %v3860, %v3927
  %vm4673 = vcmp.eq.s32.totalorder %v3861, %v3927
  %vm4674 = vcmp.eq.s32.totalorder %v3860, %v3930
  %vm4675 = vcmp.eq.s32.totalorder %v3861, %v3930
  %vm4676 = vcmp.eq.s32.totalorder %v3860, %v3933
  %vm4677 = vcmp.eq.s32.totalorder %v3861, %v3933
  %vm4678 = vcmp.eq.s32.totalorder %v3860, %v3936
  %vm4679 = vcmp.eq.s32.totalorder %v3861, %v3936
  %vm4680 = vcmp.eq.s32.totalorder %v3860, %v3939
  %vm4681 = vcmp.eq.s32.totalorder %v3861, %v3939
  %vm4682 = vcmp.eq.s32.totalorder %v3860, %v3942
  %vm4683 = vcmp.eq.s32.totalorder %v3861, %v3942
  %vm4684 = vcmp.eq.s32.totalorder %v3860, %v3945
  %vm4685 = vcmp.eq.s32.totalorder %v3861, %v3945
  %vm4686 = vcmp.eq.s32.totalorder %v3860, %v3948
  %vm4687 = vcmp.eq.s32.totalorder %v3861, %v3948
  %vm4688 = vcmp.eq.s32.totalorder %v3860, %v3951
  %vm4689 = vcmp.eq.s32.totalorder %v3861, %v3951
  %vm4690 = vcmp.eq.s32.totalorder %v3860, %v3954
  %vm4691 = vcmp.eq.s32.totalorder %v3861, %v3954
  %vm4692 = vcmp.eq.s32.totalorder %v3860, %v3957
  %vm4693 = vcmp.eq.s32.totalorder %v3861, %v3957
  %vm4694 = vcmp.eq.s32.totalorder %v3860, %v3960
  %vm4695 = vcmp.eq.s32.totalorder %v3861, %v3960
  %vm4696 = vcmp.eq.s32.totalorder %v3860, %v3963
  %vm4697 = vcmp.eq.s32.totalorder %v3861, %v3963
  %vm4698 = vcmp.eq.s32.totalorder %v3860, %v3966
  %vm4699 = vcmp.eq.s32.totalorder %v3861, %v3966
  %vm4700 = vcmp.eq.s32.totalorder %v3860, %v3969
  %vm4701 = vcmp.eq.s32.totalorder %v3861, %v3969
  %vm4702 = vcmp.eq.s32.totalorder %v3860, %v3972
  %vm4703 = vcmp.eq.s32.totalorder %v3861, %v3972
  %vm4704 = vcmp.eq.s32.totalorder %v3860, %v3975
  %vm4705 = vcmp.eq.s32.totalorder %v3861, %v3975
  %vm4706 = vcmp.eq.s32.totalorder %v3860, %v3978
  %vm4707 = vcmp.eq.s32.totalorder %v3861, %v3978
  %vm4708 = vcmp.eq.s32.totalorder %v3860, %v3981
  %vm4709 = vcmp.eq.s32.totalorder %v3861, %v3981
  %vm4710 = vcmp.eq.s32.totalorder %v3860, %v3984
  %vm4711 = vcmp.eq.s32.totalorder %v3861, %v3984
  %vm4712 = vcmp.eq.s32.totalorder %v3860, %v3987
  %vm4713 = vcmp.eq.s32.totalorder %v3861, %v3987
  %vm4714 = vcmp.eq.s32.totalorder %v3860, %v3990
  %vm4715 = vcmp.eq.s32.totalorder %v3861, %v3990
  %vm4716 = vcmp.eq.s32.totalorder %v3860, %v3993
  %vm4717 = vcmp.eq.s32.totalorder %v3861, %v3993
  %vm4718 = vcmp.eq.s32.totalorder %v3860, %v3996
  %vm4719 = vcmp.eq.s32.totalorder %v3861, %v3996
  %vm4720 = vcmp.eq.s32.totalorder %v3860, %v3999
  %vm4721 = vcmp.eq.s32.totalorder %v3861, %v3999
  %vm4722 = vcmp.eq.s32.totalorder %v3860, %v4002
  %vm4723 = vcmp.eq.s32.totalorder %v3861, %v4002
  %vm4724 = vcmp.eq.s32.totalorder %v3860, %v4005
  %vm4725 = vcmp.eq.s32.totalorder %v3861, %v4005
  %vm4726 = vcmp.eq.s32.totalorder %v3860, %v4008
  %vm4727 = vcmp.eq.s32.totalorder %v3861, %v4008
  %vm4728 = vcmp.eq.s32.totalorder %v3860, %v4011
  %vm4729 = vcmp.eq.s32.totalorder %v3861, %v4011
  %vm4730 = vcmp.eq.s32.totalorder %v3860, %v4014
  %vm4731 = vcmp.eq.s32.totalorder %v3861, %v4014
  %vm4732 = vcmp.eq.s32.totalorder %v3860, %v4017
  %vm4733 = vcmp.eq.s32.totalorder %v3861, %v4017
  %vm4734 = vcmp.eq.s32.totalorder %v3860, %v4020
  %vm4735 = vcmp.eq.s32.totalorder %v3861, %v4020
  %vm4736 = vcmp.eq.s32.totalorder %v3860, %v4023
  %vm4737 = vcmp.eq.s32.totalorder %v3861, %v4023
  %vm4738 = vcmp.eq.s32.totalorder %v3860, %v4026
  %vm4739 = vcmp.eq.s32.totalorder %v3861, %v4026
  %vm4740 = vcmp.eq.s32.totalorder %v3860, %v4029
  %vm4741 = vcmp.eq.s32.totalorder %v3861, %v4029
  %vm4742 = vcmp.eq.s32.totalorder %v3860, %v4032
  %vm4743 = vcmp.eq.s32.totalorder %v3861, %v4032
  %vm4744 = vcmp.eq.s32.totalorder %v3860, %v4035
  %vm4745 = vcmp.eq.s32.totalorder %v3861, %v4035
  %vm4746 = vcmp.eq.s32.totalorder %v3860, %v4038
  %vm4747 = vcmp.eq.s32.totalorder %v3861, %v4038
  %vm4748 = vcmp.eq.s32.totalorder %v3860, %v4041
  %vm4749 = vcmp.eq.s32.totalorder %v3861, %v4041
  %vm4750 = vcmp.eq.s32.totalorder %v3860, %v4044
  %vm4751 = vcmp.eq.s32.totalorder %v3861, %v4044
  %vm4752 = vcmp.eq.s32.totalorder %v3860, %v4047
  %vm4753 = vcmp.eq.s32.totalorder %v3861, %v4047
  %vm4754 = vcmp.eq.s32.totalorder %v3860, %v4050
  %vm4755 = vcmp.eq.s32.totalorder %v3861, %v4050
  %vm4756 = vcmp.eq.s32.totalorder %v3860, %v4053
  %vm4757 = vcmp.eq.s32.totalorder %v3861, %v4053
  %vm4758 = vcmp.eq.s32.totalorder %v3860, %v4056
  %vm4759 = vcmp.eq.s32.totalorder %v3861, %v4056
  %vm4760 = vcmp.eq.s32.totalorder %v3860, %v4059
  %vm4761 = vcmp.eq.s32.totalorder %v3861, %v4059
  %vm4762 = vcmp.eq.s32.totalorder %v3860, %v4062
  %vm4763 = vcmp.eq.s32.totalorder %v3861, %v4062
  %vm4764 = vcmp.eq.s32.totalorder %v3860, %v4065
  %vm4765 = vcmp.eq.s32.totalorder %v3861, %v4065
  %vm4766 = vcmp.eq.s32.totalorder %v3860, %v4068
  %vm4767 = vcmp.eq.s32.totalorder %v3861, %v4068
  %vm4768 = vcmp.eq.s32.totalorder %v3860, %v4071
  %vm4769 = vcmp.eq.s32.totalorder %v3861, %v4071
  %vm4770 = vcmp.eq.s32.totalorder %v3860, %v4074
  %vm4771 = vcmp.eq.s32.totalorder %v3861, %v4074
  %vm4772 = vcmp.eq.s32.totalorder %v3860, %v4077
  %vm4773 = vcmp.eq.s32.totalorder %v3861, %v4077
  %vm4774 = vcmp.eq.s32.totalorder %v3860, %v4080
  %vm4775 = vcmp.eq.s32.totalorder %v3861, %v4080
  %vm4776 = vcmp.eq.s32.totalorder %v3860, %v4083
  %vm4777 = vcmp.eq.s32.totalorder %v3861, %v4083
  %vm4778 = vcmp.eq.s32.totalorder %v3860, %v4086
  %vm4779 = vcmp.eq.s32.totalorder %v3861, %v4086
  %vm4780 = vcmp.eq.s32.totalorder %v3860, %v4089
  %vm4781 = vcmp.eq.s32.totalorder %v3861, %v4089
  %vm4782 = vcmp.eq.s32.totalorder %v3860, %v4092
  %vm4783 = vcmp.eq.s32.totalorder %v3861, %v4092
  %vm4784 = vcmp.eq.s32.totalorder %v3860, %v4095
  %vm4785 = vcmp.eq.s32.totalorder %v3861, %v4095
  %vm4786 = vcmp.eq.s32.totalorder %v3860, %v4098
  %vm4787 = vcmp.eq.s32.totalorder %v3861, %v4098
  %vm4788 = vcmp.eq.s32.totalorder %v3860, %v4101
  %vm4789 = vcmp.eq.s32.totalorder %v3861, %v4101
  %vm4790 = vcmp.eq.s32.totalorder %v3860, %v4104
  %vm4791 = vcmp.eq.s32.totalorder %v3861, %v4104
  %vm4792 = vcmp.eq.s32.totalorder %v3860, %v4107
  %vm4793 = vcmp.eq.s32.totalorder %v3861, %v4107
  %vm4794 = vcmp.eq.s32.totalorder %v3860, %v4110
  %vm4795 = vcmp.eq.s32.totalorder %v3861, %v4110
  %vm4796 = vcmp.eq.s32.totalorder %v3860, %v4113
  %vm4797 = vcmp.eq.s32.totalorder %v3861, %v4113
  %vm4798 = vcmp.eq.s32.totalorder %v3860, %v4116
  %vm4799 = vcmp.eq.s32.totalorder %v3861, %v4116
  %vm4800 = vcmp.eq.s32.totalorder %v3860, %v4119
  %vm4801 = vcmp.eq.s32.totalorder %v3861, %v4119
  %vm4802 = vcmp.eq.s32.totalorder %v3860, %v4122
  %vm4803 = vcmp.eq.s32.totalorder %v3861, %v4122
  %vm4804 = vcmp.eq.s32.totalorder %v3860, %v4125
  %vm4805 = vcmp.eq.s32.totalorder %v3861, %v4125
  %vm4806 = vcmp.eq.s32.totalorder %v3860, %v4128
  %vm4807 = vcmp.eq.s32.totalorder %v3861, %v4128
  %vm4808 = vcmp.eq.s32.totalorder %v3860, %v4131
  %vm4809 = vcmp.eq.s32.totalorder %v3861, %v4131
  %vm4810 = vcmp.eq.s32.totalorder %v3860, %v4134
  %vm4811 = vcmp.eq.s32.totalorder %v3861, %v4134
  %vm4812 = vcmp.eq.s32.totalorder %v3860, %v4137
  %vm4813 = vcmp.eq.s32.totalorder %v3861, %v4137
  %vm4814 = vcmp.eq.s32.totalorder %v3860, %v4140
  %vm4815 = vcmp.eq.s32.totalorder %v3861, %v4140
  %vm4816 = vcmp.eq.s32.totalorder %v3860, %v4143
  %vm4817 = vcmp.eq.s32.totalorder %v3861, %v4143
  %vm4818 = vcmp.eq.s32.totalorder %v3860, %v4146
  %vm4819 = vcmp.eq.s32.totalorder %v3861, %v4146
  %vm4820 = vcmp.eq.s32.totalorder %v3860, %v4149
  %vm4821 = vcmp.eq.s32.totalorder %v3861, %v4149
  %vm4822 = vcmp.eq.s32.totalorder %v3860, %v4152
  %vm4823 = vcmp.eq.s32.totalorder %v3861, %v4152
  %vm4824 = vcmp.eq.s32.totalorder %v3860, %v4155
  %vm4825 = vcmp.eq.s32.totalorder %v3861, %v4155
  %vm4826 = vcmp.eq.s32.totalorder %v3860, %v4158
  %vm4827 = vcmp.eq.s32.totalorder %v3861, %v4158
  %vm4828 = vcmp.eq.s32.totalorder %v3860, %v4161
  %vm4829 = vcmp.eq.s32.totalorder %v3861, %v4161
  %vm4830 = vcmp.eq.s32.totalorder %v3860, %v4164
  %vm4831 = vcmp.eq.s32.totalorder %v3861, %v4164
  %vm4832 = vcmp.eq.s32.totalorder %v3860, %v4167
  %vm4833 = vcmp.eq.s32.totalorder %v3861, %v4167
  %vm4834 = vcmp.eq.s32.totalorder %v3860, %v4170
  %vm4835 = vcmp.eq.s32.totalorder %v3861, %v4170
  %vm4836 = vcmp.eq.s32.totalorder %v3860, %v4173
  %vm4837 = vcmp.eq.s32.totalorder %v3861, %v4173
  %vm4838 = vcmp.eq.s32.totalorder %v3860, %v4176
  %vm4839 = vcmp.eq.s32.totalorder %v3861, %v4176
  %vm4840 = vcmp.eq.s32.totalorder %v3860, %v4179
  %vm4841 = vcmp.eq.s32.totalorder %v3861, %v4179
  %vm4842 = vcmp.eq.s32.totalorder %v3860, %v4182
  %vm4843 = vcmp.eq.s32.totalorder %v3861, %v4182
  %vm4844 = vcmp.eq.s32.totalorder %v3860, %v4185
  %vm4845 = vcmp.eq.s32.totalorder %v3861, %v4185
  %vm4846 = vcmp.eq.s32.totalorder %v3860, %v4188
  %vm4847 = vcmp.eq.s32.totalorder %v3861, %v4188
  %vm4848 = vcmp.eq.s32.totalorder %v3860, %v4191
  %vm4849 = vcmp.eq.s32.totalorder %v3861, %v4191
  %vm4850 = vcmp.eq.s32.totalorder %v3860, %v4194
  %vm4851 = vcmp.eq.s32.totalorder %v3861, %v4194
  %vm4852 = vcmp.eq.s32.totalorder %v3860, %v4197
  %vm4853 = vcmp.eq.s32.totalorder %v3861, %v4197
  %vm4854 = vcmp.eq.s32.totalorder %v3860, %v4200
  %vm4855 = vcmp.eq.s32.totalorder %v3861, %v4200
  %vm4856 = vcmp.eq.s32.totalorder %v3860, %v4203
  %vm4857 = vcmp.eq.s32.totalorder %v3861, %v4203
  %vm4858 = vcmp.eq.s32.totalorder %v3860, %v4206
  %vm4859 = vcmp.eq.s32.totalorder %v3861, %v4206
  %vm4860 = vcmp.eq.s32.totalorder %v3860, %v4209
  %vm4861 = vcmp.eq.s32.totalorder %v3861, %v4209
  %vm4862 = vcmp.eq.s32.totalorder %v3860, %v4212
  %vm4863 = vcmp.eq.s32.totalorder %v3861, %v4212
  %vm4864 = vcmp.eq.s32.totalorder %v3860, %v4215
  %vm4865 = vcmp.eq.s32.totalorder %v3861, %v4215
  %vm4866 = vcmp.eq.s32.totalorder %v3860, %v4218
  %vm4867 = vcmp.eq.s32.totalorder %v3861, %v4218
  %vm4868 = vcmp.eq.s32.totalorder %v3860, %v4221
  %vm4869 = vcmp.eq.s32.totalorder %v3861, %v4221
  %vm4870 = vcmp.eq.s32.totalorder %v3860, %v4224
  %vm4871 = vcmp.eq.s32.totalorder %v3861, %v4224
  %vm4872 = vcmp.eq.s32.totalorder %v3860, %v4227
  %vm4873 = vcmp.eq.s32.totalorder %v3861, %v4227
  %vm4874 = vcmp.eq.s32.totalorder %v3860, %v4230
  %vm4875 = vcmp.eq.s32.totalorder %v3861, %v4230
  %vm4876 = vcmp.eq.s32.totalorder %v3860, %v4233
  %vm4877 = vcmp.eq.s32.totalorder %v3861, %v4233
  %vm4878 = vcmp.eq.s32.totalorder %v3860, %v4236
  %vm4879 = vcmp.eq.s32.totalorder %v3861, %v4236
  %vm4880 = vcmp.eq.s32.totalorder %v3860, %v4239
  %vm4881 = vcmp.eq.s32.totalorder %v3861, %v4239
  %vm4882 = vcmp.eq.s32.totalorder %v3860, %v4242
  %vm4883 = vcmp.eq.s32.totalorder %v3861, %v4242
  %vm4884 = vcmp.eq.s32.totalorder %v3860, %v4245
  %vm4885 = vcmp.eq.s32.totalorder %v3861, %v4245
  %vm4886 = vcmp.eq.s32.totalorder %v3860, %v4248
  %vm4887 = vcmp.eq.s32.totalorder %v3861, %v4248
  %vm4888 = vcmp.eq.s32.totalorder %v3860, %v4251
  %vm4889 = vcmp.eq.s32.totalorder %v3861, %v4251
  %vm4890 = vcmp.eq.s32.totalorder %v3860, %v4254
  %vm4891 = vcmp.eq.s32.totalorder %v3861, %v4254
  %vm4892 = vcmp.eq.s32.totalorder %v3860, %v4257
  %vm4893 = vcmp.eq.s32.totalorder %v3861, %v4257
  %vm4894 = vcmp.eq.s32.totalorder %v3860, %v4260
  %vm4895 = vcmp.eq.s32.totalorder %v3861, %v4260
  %vm4896 = vcmp.eq.s32.totalorder %v3860, %v4263
  %vm4897 = vcmp.eq.s32.totalorder %v3861, %v4263
  %vm4898 = vcmp.eq.s32.totalorder %v3860, %v4266
  %vm4899 = vcmp.eq.s32.totalorder %v3861, %v4266
  %vm4900 = vcmp.eq.s32.totalorder %v3860, %v4269
  %vm4901 = vcmp.eq.s32.totalorder %v3861, %v4269
  %vm4902 = vcmp.eq.s32.totalorder %v3860, %v4272
  %vm4903 = vcmp.eq.s32.totalorder %v3861, %v4272
  %vm4904 = vcmp.eq.s32.totalorder %v3860, %v4275
  %vm4905 = vcmp.eq.s32.totalorder %v3861, %v4275
  %vm4906 = vcmp.eq.s32.totalorder %v3860, %v4278
  %vm4907 = vcmp.eq.s32.totalorder %v3861, %v4278
  %vm4908 = vcmp.eq.s32.totalorder %v3860, %v4281
  %vm4909 = vcmp.eq.s32.totalorder %v3861, %v4281
  %vm4910 = vcmp.eq.s32.totalorder %v3860, %v4284
  %vm4911 = vcmp.eq.s32.totalorder %v3861, %v4284
  %vm4912 = vcmp.eq.s32.totalorder %v3860, %v4287
  %vm4913 = vcmp.eq.s32.totalorder %v3861, %v4287
  %vm4914 = vcmp.eq.s32.totalorder %v3860, %v4290
  %vm4915 = vcmp.eq.s32.totalorder %v3861, %v4290
  %vm4916 = vcmp.eq.s32.totalorder %v3860, %v4293
  %vm4917 = vcmp.eq.s32.totalorder %v3861, %v4293
  %vm4918 = vcmp.eq.s32.totalorder %v3860, %v4296
  %vm4919 = vcmp.eq.s32.totalorder %v3861, %v4296
  %vm4920 = vcmp.eq.s32.totalorder %v3860, %v4299
  %vm4921 = vcmp.eq.s32.totalorder %v3861, %v4299
  %vm4922 = vcmp.eq.s32.totalorder %v3860, %v4302
  %vm4923 = vcmp.eq.s32.totalorder %v3861, %v4302
  %vm4924 = vcmp.eq.s32.totalorder %v3860, %v4305
  %vm4925 = vcmp.eq.s32.totalorder %v3861, %v4305
  %vm4926 = vcmp.eq.s32.totalorder %v3860, %v4308
  %vm4927 = vcmp.eq.s32.totalorder %v3861, %v4308
  %vm4928 = vcmp.eq.s32.totalorder %v3860, %v4311
  %vm4929 = vcmp.eq.s32.totalorder %v3861, %v4311
  %vm4930 = vcmp.eq.s32.totalorder %v3860, %v4314
  %vm4931 = vcmp.eq.s32.totalorder %v3861, %v4314
  %vm4932 = vcmp.eq.s32.totalorder %v3860, %v4317
  %vm4933 = vcmp.eq.s32.totalorder %v3861, %v4317
  %vm4934 = vcmp.eq.s32.totalorder %v3860, %v4320
  %vm4935 = vcmp.eq.s32.totalorder %v3861, %v4320
  %vm4936 = vcmp.eq.s32.totalorder %v3860, %v4323
  %vm4937 = vcmp.eq.s32.totalorder %v3861, %v4323
  %vm4938 = vcmp.eq.s32.totalorder %v3860, %v4326
  %vm4939 = vcmp.eq.s32.totalorder %v3861, %v4326
  %vm4940 = vcmp.eq.s32.totalorder %v3860, %v4329
  %vm4941 = vcmp.eq.s32.totalorder %v3861, %v4329
  %vm4942 = vcmp.eq.s32.totalorder %v3860, %v4332
  %vm4943 = vcmp.eq.s32.totalorder %v3861, %v4332
  %vm4944 = vcmp.eq.s32.totalorder %v3860, %v4335
  %vm4945 = vcmp.eq.s32.totalorder %v3861, %v4335
  %vm4946 = vcmp.eq.s32.totalorder %v3860, %v4338
  %vm4947 = vcmp.eq.s32.totalorder %v3861, %v4338
  %vm4948 = vcmp.eq.s32.totalorder %v3860, %v4341
  %vm4949 = vcmp.eq.s32.totalorder %v3861, %v4341
  %vm4950 = vcmp.eq.s32.totalorder %v3860, %v4344
  %vm4951 = vcmp.eq.s32.totalorder %v3861, %v4344
  %vm4952 = vcmp.eq.s32.totalorder %v3860, %v4347
  %vm4953 = vcmp.eq.s32.totalorder %v3861, %v4347
  %vm4954 = vcmp.eq.s32.totalorder %v3860, %v4350
  %vm4955 = vcmp.eq.s32.totalorder %v3861, %v4350
  %vm4956 = vcmp.eq.s32.totalorder %v3860, %v4353
  %vm4957 = vcmp.eq.s32.totalorder %v3861, %v4353
  %vm4958 = vcmp.eq.s32.totalorder %v3860, %v4356
  %vm4959 = vcmp.eq.s32.totalorder %v3861, %v4356
  %vm4960 = vcmp.eq.s32.totalorder %v3860, %v4359
  %vm4961 = vcmp.eq.s32.totalorder %v3861, %v4359
  %vm4962 = vcmp.eq.s32.totalorder %v3860, %v4362
  %vm4963 = vcmp.eq.s32.totalorder %v3861, %v4362
  %vm4964 = vcmp.eq.s32.totalorder %v3860, %v4365
  %vm4965 = vcmp.eq.s32.totalorder %v3861, %v4365
  %vm4966 = vcmp.eq.s32.totalorder %v3860, %v4368
  %vm4967 = vcmp.eq.s32.totalorder %v3861, %v4368
  %vm4968 = vcmp.eq.s32.totalorder %v3860, %v4371
  %vm4969 = vcmp.eq.s32.totalorder %v3861, %v4371
  %vm4970 = vcmp.eq.s32.totalorder %v3860, %v4374
  %vm4971 = vcmp.eq.s32.totalorder %v3861, %v4374
  %vm4972 = vcmp.eq.s32.totalorder %v3860, %v4377
  %vm4973 = vcmp.eq.s32.totalorder %v3861, %v4377
  %vm4974 = vcmp.eq.s32.totalorder %v3860, %v4380
  %vm4975 = vcmp.eq.s32.totalorder %v3861, %v4380
  %vm4976 = vcmp.eq.s32.totalorder %v3860, %v4383
  %vm4977 = vcmp.eq.s32.totalorder %v3861, %v4383
  %vm4978 = vcmp.eq.s32.totalorder %v3860, %v4386
  %vm4979 = vcmp.eq.s32.totalorder %v3861, %v4386
  %vm4980 = vcmp.eq.s32.totalorder %v3860, %v4389
  %vm4981 = vcmp.eq.s32.totalorder %v3861, %v4389
  %vm4982 = vcmp.eq.s32.totalorder %v3860, %v4392
  %vm4983 = vcmp.eq.s32.totalorder %v3861, %v4392
  %vm4984 = vcmp.eq.s32.totalorder %v3860, %v4395
  %vm4985 = vcmp.eq.s32.totalorder %v3861, %v4395
  %vm4986 = vcmp.eq.s32.totalorder %v3860, %v4398
  %vm4987 = vcmp.eq.s32.totalorder %v3861, %v4398
  %vm4988 = vcmp.eq.s32.totalorder %v3860, %v4401
  %vm4989 = vcmp.eq.s32.totalorder %v3861, %v4401
  %vm4990 = vcmp.eq.s32.totalorder %v3860, %v4404
  %vm4991 = vcmp.eq.s32.totalorder %v3861, %v4404
  %vm4992 = vcmp.eq.s32.totalorder %v3860, %v4407
  %vm4993 = vcmp.eq.s32.totalorder %v3861, %v4407
  %vm4994 = vcmp.eq.s32.totalorder %v3860, %v4410
  %vm4995 = vcmp.eq.s32.totalorder %v3861, %v4410
  %vm4996 = vcmp.eq.s32.totalorder %v3860, %v4413
  %vm4997 = vcmp.eq.s32.totalorder %v3861, %v4413
  %vm4998 = vcmp.eq.s32.totalorder %v3860, %v4416
  %vm4999 = vcmp.eq.s32.totalorder %v3861, %v4416
  %vm5000 = vcmp.eq.s32.totalorder %v3860, %v4419
  %vm5001 = vcmp.eq.s32.totalorder %v3861, %v4419
  %vm5002 = vcmp.eq.s32.totalorder %v3860, %v4422
  %vm5003 = vcmp.eq.s32.totalorder %v3861, %v4422
  %vm5004 = vcmp.eq.s32.totalorder %v3860, %v4425
  %vm5005 = vcmp.eq.s32.totalorder %v3861, %v4425
  %vm5006 = vcmp.eq.s32.totalorder %v3860, %v4428
  %vm5007 = vcmp.eq.s32.totalorder %v3861, %v4428
  %vm5008 = vcmp.eq.s32.totalorder %v3860, %v4431
  %vm5009 = vcmp.eq.s32.totalorder %v3861, %v4431
  %vm5010 = vcmp.eq.s32.totalorder %v3860, %v4434
  %vm5011 = vcmp.eq.s32.totalorder %v3861, %v4434
  %vm5012 = vcmp.eq.s32.totalorder %v3860, %v4437
  %vm5013 = vcmp.eq.s32.totalorder %v3861, %v4437
  %vm5014 = vcmp.eq.s32.totalorder %v3860, %v4440
  %vm5015 = vcmp.eq.s32.totalorder %v3861, %v4440
  %vm5016 = vcmp.eq.s32.totalorder %v3860, %v4443
  %vm5017 = vcmp.eq.s32.totalorder %v3861, %v4443
  %vm5018 = vcmp.eq.s32.totalorder %v3860, %v4446
  %vm5019 = vcmp.eq.s32.totalorder %v3861, %v4446
  %vm5020 = vcmp.eq.s32.totalorder %v3860, %v4449
  %vm5021 = vcmp.eq.s32.totalorder %v3861, %v4449
  %vm5022 = vcmp.eq.s32.totalorder %v3860, %v4452
  %vm5023 = vcmp.eq.s32.totalorder %v3861, %v4452
  %vm5024 = vcmp.eq.s32.totalorder %v3860, %v4455
  %vm5025 = vcmp.eq.s32.totalorder %v3861, %v4455
  %vm5026 = vcmp.eq.s32.totalorder %v3860, %v4458
  %vm5027 = vcmp.eq.s32.totalorder %v3861, %v4458
  %vm5028 = vcmp.eq.s32.totalorder %v3860, %v4461
  %vm5029 = vcmp.eq.s32.totalorder %v3861, %v4461
  %vm5030 = vcmp.eq.s32.totalorder %v3860, %v4464
  %vm5031 = vcmp.eq.s32.totalorder %v3861, %v4464
  %vm5032 = vcmp.eq.s32.totalorder %v3860, %v4467
  %vm5033 = vcmp.eq.s32.totalorder %v3861, %v4467
  %vm5034 = vcmp.eq.s32.totalorder %v3860, %v4470
  %vm5035 = vcmp.eq.s32.totalorder %v3861, %v4470
  %vm5036 = vcmp.eq.s32.totalorder %v3860, %v4473
  %vm5037 = vcmp.eq.s32.totalorder %v3861, %v4473
  %vm5038 = vcmp.eq.s32.totalorder %v3860, %v4476
  %vm5039 = vcmp.eq.s32.totalorder %v3861, %v4476
  %vm5040 = vcmp.eq.s32.totalorder %v3860, %v4479
  %vm5041 = vcmp.eq.s32.totalorder %v3861, %v4479
  %vm5042 = vcmp.eq.s32.totalorder %v3860, %v4482
  %vm5043 = vcmp.eq.s32.totalorder %v3861, %v4482
  %vm5044 = vcmp.eq.s32.totalorder %v3860, %v4485
  %vm5045 = vcmp.eq.s32.totalorder %v3861, %v4485
  %vm5046 = vcmp.eq.s32.totalorder %v3860, %v4488
  %vm5047 = vcmp.eq.s32.totalorder %v3861, %v4488
  %vm5048 = vcmp.eq.s32.totalorder %v3860, %v4491
  %vm5049 = vcmp.eq.s32.totalorder %v3861, %v4491
  %vm5050 = vcmp.eq.s32.totalorder %v3860, %v4494
  %vm5051 = vcmp.eq.s32.totalorder %v3861, %v4494
  %vm5052 = vcmp.eq.s32.totalorder %v3860, %v4497
  %vm5053 = vcmp.eq.s32.totalorder %v3861, %v4497
  %vm5054 = vcmp.eq.s32.totalorder %v3860, %v4500
  %vm5055 = vcmp.eq.s32.totalorder %v3861, %v4500
  %vm5056 = vcmp.eq.s32.totalorder %v3860, %v4503
  %vm5057 = vcmp.eq.s32.totalorder %v3861, %v4503
  %vm5058 = vcmp.eq.s32.totalorder %v3860, %v4506
  %vm5059 = vcmp.eq.s32.totalorder %v3861, %v4506
  %vm5060 = vcmp.eq.s32.totalorder %v3860, %v4509
  %vm5061 = vcmp.eq.s32.totalorder %v3861, %v4509
  %vm5062 = vcmp.eq.s32.totalorder %v3860, %v4512
  %vm5063 = vcmp.eq.s32.totalorder %v3861, %v4512
  %vm5064 = vcmp.eq.s32.totalorder %v3860, %v4515
  %vm5065 = vcmp.eq.s32.totalorder %v3861, %v4515
  %vm5066 = vcmp.eq.s32.totalorder %v3860, %v4518
  %vm5067 = vcmp.eq.s32.totalorder %v3861, %v4518
  %vm5068 = vcmp.eq.s32.totalorder %v3860, %v4521
  %vm5069 = vcmp.eq.s32.totalorder %v3861, %v4521
  %vm5070 = vcmp.eq.s32.totalorder %v3860, %v4524
  %vm5071 = vcmp.eq.s32.totalorder %v3861, %v4524
  %vm5072 = vcmp.eq.s32.totalorder %v3860, %v4527
  %vm5073 = vcmp.eq.s32.totalorder %v3861, %v4527
  %vm5074 = vcmp.eq.s32.totalorder %v3860, %v4530
  %vm5075 = vcmp.eq.s32.totalorder %v3861, %v4530
  %vm5076 = vcmp.eq.s32.totalorder %v3860, %v4533
  %vm5077 = vcmp.eq.s32.totalorder %v3861, %v4533
  %vm5078 = vcmp.eq.s32.totalorder %v3860, %v4536
  %vm5079 = vcmp.eq.s32.totalorder %v3861, %v4536
  %vm5080 = vcmp.eq.s32.totalorder %v3860, %v4539
  %vm5081 = vcmp.eq.s32.totalorder %v3861, %v4539
  %vm5082 = vcmp.eq.s32.totalorder %v3860, %v4542
  %vm5083 = vcmp.eq.s32.totalorder %v3861, %v4542
  %vm5084 = vcmp.eq.s32.totalorder %v3860, %v4545
  %vm5085 = vcmp.eq.s32.totalorder %v3861, %v4545
  %vm5086 = vcmp.eq.s32.totalorder %v3860, %v4548
  %vm5087 = vcmp.eq.s32.totalorder %v3861, %v4548
  %vm5088 = vcmp.eq.s32.totalorder %v3860, %v4551
  %vm5089 = vcmp.eq.s32.totalorder %v3861, %v4551
  %vm5090 = vcmp.eq.s32.totalorder %v3860, %v4554
  %vm5091 = vcmp.eq.s32.totalorder %v3861, %v4554
  %vm5092 = vcmp.eq.s32.totalorder %v3860, %v4557
  %vm5093 = vcmp.eq.s32.totalorder %v3861, %v4557
  %vm5094 = vcmp.eq.s32.totalorder %v3860, %v4560
  %vm5095 = vcmp.eq.s32.totalorder %v3861, %v4560
  %vm5096 = vcmp.eq.s32.totalorder %v3860, %v4563
  %vm5097 = vcmp.eq.s32.totalorder %v3861, %v4563
  %vm5098 = vcmp.eq.s32.totalorder %v3860, %v4566
  %vm5099 = vcmp.eq.s32.totalorder %v3861, %v4566
  %vm5100 = vcmp.eq.s32.totalorder %v3860, %v4569
  %vm5101 = vcmp.eq.s32.totalorder %v3861, %v4569
  %vm5102 = vcmp.eq.s32.totalorder %v3860, %v4572
  %vm5103 = vcmp.eq.s32.totalorder %v3861, %v4572
  %vm5104 = vcmp.eq.s32.totalorder %v3860, %v4575
  %vm5105 = vcmp.eq.s32.totalorder %v3861, %v4575
  %vm5106 = vcmp.eq.s32.totalorder %v3860, %v4578
  %vm5107 = vcmp.eq.s32.totalorder %v3861, %v4578
  %vm5108 = vcmp.eq.s32.totalorder %v3860, %v4581
  %vm5109 = vcmp.eq.s32.totalorder %v3861, %v4581
  %vm5110 = vcmp.eq.s32.totalorder %v3860, %v4584
  %vm5111 = vcmp.eq.s32.totalorder %v3861, %v4584
  %vm5112 = vcmp.eq.s32.totalorder %v3860, %v4587
  %vm5113 = vcmp.eq.s32.totalorder %v3861, %v4587
  %vm5114 = vcmp.eq.s32.totalorder %v3860, %v4590
  %vm5115 = vcmp.eq.s32.totalorder %v3861, %v4590
  %vm5116 = vcmp.eq.s32.totalorder %v3860, %v4593
  %vm5117 = vcmp.eq.s32.totalorder %v3861, %v4593
  %vm5118 = vcmp.eq.s32.totalorder %v3860, %v4596
  %vm5119 = vcmp.eq.s32.totalorder %v3861, %v4596
  %vm5120 = vcmp.eq.s32.totalorder %v3860, %v4599
  %vm5121 = vcmp.eq.s32.totalorder %v3861, %v4599
  %vm5122 = vcmp.eq.s32.totalorder %v3860, %v4602
  %vm5123 = vcmp.eq.s32.totalorder %v3861, %v4602
  %vm5124 = vcmp.eq.s32.totalorder %v3860, %v4605
  %vm5125 = vcmp.eq.s32.totalorder %v3861, %v4605
  %vm5126 = vcmp.eq.s32.totalorder %v3860, %v4608
  %vm5127 = vcmp.eq.s32.totalorder %v3861, %v4608
  %vm5128 = vcmp.eq.s32.totalorder %v3860, %v4611
  %vm5129 = vcmp.eq.s32.totalorder %v3861, %v4611
  %vm5130 = vcmp.eq.s32.totalorder %v3860, %v4614
  %vm5131 = vcmp.eq.s32.totalorder %v3861, %v4614
  %vm5132 = vcmp.eq.s32.totalorder %v3860, %v4617
  %vm5133 = vcmp.eq.s32.totalorder %v3861, %v4617
  %vm5134 = vcmp.eq.s32.totalorder %v3860, %v4620
  %vm5135 = vcmp.eq.s32.totalorder %v3861, %v4620
  %vm5136 = vcmp.eq.s32.totalorder %v3860, %v4623
  %vm5137 = vcmp.eq.s32.totalorder %v3861, %v4623
  %vm5138 = vcmp.eq.s32.totalorder %v3860, %v4626
  %vm5139 = vcmp.eq.s32.totalorder %v3861, %v4626
  %vm5140 = vcmp.eq.s32.totalorder %v3860, %v4629
  %vm5141 = vcmp.eq.s32.totalorder %v3861, %v4629
  %v5142 = vsel %vm4630, %v1555, 0.0
  %v5143 = vsel %vm4631, %v1556, 0.0
  %v5144 = vsel %vm4632, %v1557, 0.0
  %v5145 = vsel %vm4633, %v1558, 0.0
  %v5146 = vsel %vm4634, %v1559, 0.0
  %v5147 = vsel %vm4635, %v1560, 0.0
  %v5148 = vsel %vm4636, %v1561, 0.0
  %v5149 = vsel %vm4637, %v1562, 0.0
  %v5150 = vsel %vm4638, %v1563, 0.0
  %v5151 = vsel %vm4639, %v1564, 0.0
  %v5152 = vsel %vm4640, %v1565, 0.0
  %v5153 = vsel %vm4641, %v1566, 0.0
  %v5154 = vsel %vm4642, %v1567, 0.0
  %v5155 = vsel %vm4643, %v1568, 0.0
  %v5156 = vsel %vm4644, %v1569, 0.0
  %v5157 = vsel %vm4645, %v1570, 0.0
  %v5158 = vsel %vm4646, %v1571, 0.0
  %v5159 = vsel %vm4647, %v1572, 0.0
  %v5160 = vsel %vm4648, %v1573, 0.0
  %v5161 = vsel %vm4649, %v1574, 0.0
  %v5162 = vsel %vm4650, %v1575, 0.0
  %v5163 = vsel %vm4651, %v1576, 0.0
  %v5164 = vsel %vm4652, %v1577, 0.0
  %v5165 = vsel %vm4653, %v1578, 0.0
  %v5166 = vsel %vm4654, %v1579, 0.0
  %v5167 = vsel %vm4655, %v1580, 0.0
  %v5168 = vsel %vm4656, %v1581, 0.0
  %v5169 = vsel %vm4657, %v1582, 0.0
  %v5170 = vsel %vm4658, %v1583, 0.0
  %v5171 = vsel %vm4659, %v1584, 0.0
  %v5172 = vsel %vm4660, %v1585, 0.0
  %v5173 = vsel %vm4661, %v1586, 0.0
  %v5174 = vsel %vm4662, %v1587, 0.0
  %v5175 = vsel %vm4663, %v1588, 0.0
  %v5176 = vsel %vm4664, %v1589, 0.0
  %v5177 = vsel %vm4665, %v1590, 0.0
  %v5178 = vsel %vm4666, %v1591, 0.0
  %v5179 = vsel %vm4667, %v1592, 0.0
  %v5180 = vsel %vm4668, %v1593, 0.0
  %v5181 = vsel %vm4669, %v1594, 0.0
  %v5182 = vsel %vm4670, %v1595, 0.0
  %v5183 = vsel %vm4671, %v1596, 0.0
  %v5184 = vsel %vm4672, %v1597, 0.0
  %v5185 = vsel %vm4673, %v1598, 0.0
  %v5186 = vsel %vm4674, %v1599, 0.0
  %v5187 = vsel %vm4675, %v1600, 0.0
  %v5188 = vsel %vm4676, %v1601, 0.0
  %v5189 = vsel %vm4677, %v1602, 0.0
  %v5190 = vsel %vm4678, %v1603, 0.0
  %v5191 = vsel %vm4679, %v1604, 0.0
  %v5192 = vsel %vm4680, %v1605, 0.0
  %v5193 = vsel %vm4681, %v1606, 0.0
  %v5194 = vsel %vm4682, %v1607, 0.0
  %v5195 = vsel %vm4683, %v1608, 0.0
  %v5196 = vsel %vm4684, %v1609, 0.0
  %v5197 = vsel %vm4685, %v1610, 0.0
  %v5198 = vsel %vm4686, %v1611, 0.0
  %v5199 = vsel %vm4687, %v1612, 0.0
  %v5200 = vsel %vm4688, %v1613, 0.0
  %v5201 = vsel %vm4689, %v1614, 0.0
  %v5202 = vsel %vm4690, %v1615, 0.0
  %v5203 = vsel %vm4691, %v1616, 0.0
  %v5204 = vsel %vm4692, %v1617, 0.0
  %v5205 = vsel %vm4693, %v1618, 0.0
  %v5206 = vsel %vm4694, %v1619, 0.0
  %v5207 = vsel %vm4695, %v1620, 0.0
  %v5208 = vsel %vm4696, %v1621, 0.0
  %v5209 = vsel %vm4697, %v1622, 0.0
  %v5210 = vsel %vm4698, %v1623, 0.0
  %v5211 = vsel %vm4699, %v1624, 0.0
  %v5212 = vsel %vm4700, %v1625, 0.0
  %v5213 = vsel %vm4701, %v1626, 0.0
  %v5214 = vsel %vm4702, %v1627, 0.0
  %v5215 = vsel %vm4703, %v1628, 0.0
  %v5216 = vsel %vm4704, %v1629, 0.0
  %v5217 = vsel %vm4705, %v1630, 0.0
  %v5218 = vsel %vm4706, %v1631, 0.0
  %v5219 = vsel %vm4707, %v1632, 0.0
  %v5220 = vsel %vm4708, %v1633, 0.0
  %v5221 = vsel %vm4709, %v1634, 0.0
  %v5222 = vsel %vm4710, %v1635, 0.0
  %v5223 = vsel %vm4711, %v1636, 0.0
  %v5224 = vsel %vm4712, %v1637, 0.0
  %v5225 = vsel %vm4713, %v1638, 0.0
  %v5226 = vsel %vm4714, %v1639, 0.0
  %v5227 = vsel %vm4715, %v1640, 0.0
  %v5228 = vsel %vm4716, %v1641, 0.0
  %v5229 = vsel %vm4717, %v1642, 0.0
  %v5230 = vsel %vm4718, %v1643, 0.0
  %v5231 = vsel %vm4719, %v1644, 0.0
  %v5232 = vsel %vm4720, %v1645, 0.0
  %v5233 = vsel %vm4721, %v1646, 0.0
  %v5234 = vsel %vm4722, %v1647, 0.0
  %v5235 = vsel %vm4723, %v1648, 0.0
  %v5236 = vsel %vm4724, %v1649, 0.0
  %v5237 = vsel %vm4725, %v1650, 0.0
  %v5238 = vsel %vm4726, %v1651, 0.0
  %v5239 = vsel %vm4727, %v1652, 0.0
  %v5240 = vsel %vm4728, %v1653, 0.0
  %v5241 = vsel %vm4729, %v1654, 0.0
  %v5242 = vsel %vm4730, %v1655, 0.0
  %v5243 = vsel %vm4731, %v1656, 0.0
  %v5244 = vsel %vm4732, %v1657, 0.0
  %v5245 = vsel %vm4733, %v1658, 0.0
  %v5246 = vsel %vm4734, %v1659, 0.0
  %v5247 = vsel %vm4735, %v1660, 0.0
  %v5248 = vsel %vm4736, %v1661, 0.0
  %v5249 = vsel %vm4737, %v1662, 0.0
  %v5250 = vsel %vm4738, %v1663, 0.0
  %v5251 = vsel %vm4739, %v1664, 0.0
  %v5252 = vsel %vm4740, %v1665, 0.0
  %v5253 = vsel %vm4741, %v1666, 0.0
  %v5254 = vsel %vm4742, %v1667, 0.0
  %v5255 = vsel %vm4743, %v1668, 0.0
  %v5256 = vsel %vm4744, %v1669, 0.0
  %v5257 = vsel %vm4745, %v1670, 0.0
  %v5258 = vsel %vm4746, %v1671, 0.0
  %v5259 = vsel %vm4747, %v1672, 0.0
  %v5260 = vsel %vm4748, %v1673, 0.0
  %v5261 = vsel %vm4749, %v1674, 0.0
  %v5262 = vsel %vm4750, %v1675, 0.0
  %v5263 = vsel %vm4751, %v1676, 0.0
  %v5264 = vsel %vm4752, %v1677, 0.0
  %v5265 = vsel %vm4753, %v1678, 0.0
  %v5266 = vsel %vm4754, %v1679, 0.0
  %v5267 = vsel %vm4755, %v1680, 0.0
  %v5268 = vsel %vm4756, %v1681, 0.0
  %v5269 = vsel %vm4757, %v1682, 0.0
  %v5270 = vsel %vm4758, %v1683, 0.0
  %v5271 = vsel %vm4759, %v1684, 0.0
  %v5272 = vsel %vm4760, %v1685, 0.0
  %v5273 = vsel %vm4761, %v1686, 0.0
  %v5274 = vsel %vm4762, %v1687, 0.0
  %v5275 = vsel %vm4763, %v1688, 0.0
  %v5276 = vsel %vm4764, %v1689, 0.0
  %v5277 = vsel %vm4765, %v1690, 0.0
  %v5278 = vsel %vm4766, %v1691, 0.0
  %v5279 = vsel %vm4767, %v1692, 0.0
  %v5280 = vsel %vm4768, %v1693, 0.0
  %v5281 = vsel %vm4769, %v1694, 0.0
  %v5282 = vsel %vm4770, %v1695, 0.0
  %v5283 = vsel %vm4771, %v1696, 0.0
  %v5284 = vsel %vm4772, %v1697, 0.0
  %v5285 = vsel %vm4773, %v1698, 0.0
  %v5286 = vsel %vm4774, %v1699, 0.0
  %v5287 = vsel %vm4775, %v1700, 0.0
  %v5288 = vsel %vm4776, %v1701, 0.0
  %v5289 = vsel %vm4777, %v1702, 0.0
  %v5290 = vsel %vm4778, %v1703, 0.0
  %v5291 = vsel %vm4779, %v1704, 0.0
  %v5292 = vsel %vm4780, %v1705, 0.0
  %v5293 = vsel %vm4781, %v1706, 0.0
  %v5294 = vsel %vm4782, %v1707, 0.0
  %v5295 = vsel %vm4783, %v1708, 0.0
  %v5296 = vsel %vm4784, %v1709, 0.0
  %v5297 = vsel %vm4785, %v1710, 0.0
  %v5298 = vsel %vm4786, %v1711, 0.0
  %v5299 = vsel %vm4787, %v1712, 0.0
  %v5300 = vsel %vm4788, %v1713, 0.0
  %v5301 = vsel %vm4789, %v1714, 0.0
  %v5302 = vsel %vm4790, %v1715, 0.0
  %v5303 = vsel %vm4791, %v1716, 0.0
  %v5304 = vsel %vm4792, %v1717, 0.0
  %v5305 = vsel %vm4793, %v1718, 0.0
  %v5306 = vsel %vm4794, %v1719, 0.0
  %v5307 = vsel %vm4795, %v1720, 0.0
  %v5308 = vsel %vm4796, %v1721, 0.0
  %v5309 = vsel %vm4797, %v1722, 0.0
  %v5310 = vsel %vm4798, %v1723, 0.0
  %v5311 = vsel %vm4799, %v1724, 0.0
  %v5312 = vsel %vm4800, %v1725, 0.0
  %v5313 = vsel %vm4801, %v1726, 0.0
  %v5314 = vsel %vm4802, %v1727, 0.0
  %v5315 = vsel %vm4803, %v1728, 0.0
  %v5316 = vsel %vm4804, %v1729, 0.0
  %v5317 = vsel %vm4805, %v1730, 0.0
  %v5318 = vsel %vm4806, %v1731, 0.0
  %v5319 = vsel %vm4807, %v1732, 0.0
  %v5320 = vsel %vm4808, %v1733, 0.0
  %v5321 = vsel %vm4809, %v1734, 0.0
  %v5322 = vsel %vm4810, %v1735, 0.0
  %v5323 = vsel %vm4811, %v1736, 0.0
  %v5324 = vsel %vm4812, %v1737, 0.0
  %v5325 = vsel %vm4813, %v1738, 0.0
  %v5326 = vsel %vm4814, %v1739, 0.0
  %v5327 = vsel %vm4815, %v1740, 0.0
  %v5328 = vsel %vm4816, %v1741, 0.0
  %v5329 = vsel %vm4817, %v1742, 0.0
  %v5330 = vsel %vm4818, %v1743, 0.0
  %v5331 = vsel %vm4819, %v1744, 0.0
  %v5332 = vsel %vm4820, %v1745, 0.0
  %v5333 = vsel %vm4821, %v1746, 0.0
  %v5334 = vsel %vm4822, %v1747, 0.0
  %v5335 = vsel %vm4823, %v1748, 0.0
  %v5336 = vsel %vm4824, %v1749, 0.0
  %v5337 = vsel %vm4825, %v1750, 0.0
  %v5338 = vsel %vm4826, %v1751, 0.0
  %v5339 = vsel %vm4827, %v1752, 0.0
  %v5340 = vsel %vm4828, %v1753, 0.0
  %v5341 = vsel %vm4829, %v1754, 0.0
  %v5342 = vsel %vm4830, %v1755, 0.0
  %v5343 = vsel %vm4831, %v1756, 0.0
  %v5344 = vsel %vm4832, %v1757, 0.0
  %v5345 = vsel %vm4833, %v1758, 0.0
  %v5346 = vsel %vm4834, %v1759, 0.0
  %v5347 = vsel %vm4835, %v1760, 0.0
  %v5348 = vsel %vm4836, %v1761, 0.0
  %v5349 = vsel %vm4837, %v1762, 0.0
  %v5350 = vsel %vm4838, %v1763, 0.0
  %v5351 = vsel %vm4839, %v1764, 0.0
  %v5352 = vsel %vm4840, %v1765, 0.0
  %v5353 = vsel %vm4841, %v1766, 0.0
  %v5354 = vsel %vm4842, %v1767, 0.0
  %v5355 = vsel %vm4843, %v1768, 0.0
  %v5356 = vsel %vm4844, %v1769, 0.0
  %v5357 = vsel %vm4845, %v1770, 0.0
  %v5358 = vsel %vm4846, %v1771, 0.0
  %v5359 = vsel %vm4847, %v1772, 0.0
  %v5360 = vsel %vm4848, %v1773, 0.0
  %v5361 = vsel %vm4849, %v1774, 0.0
  %v5362 = vsel %vm4850, %v1775, 0.0
  %v5363 = vsel %vm4851, %v1776, 0.0
  %v5364 = vsel %vm4852, %v1777, 0.0
  %v5365 = vsel %vm4853, %v1778, 0.0
  %v5366 = vsel %vm4854, %v1779, 0.0
  %v5367 = vsel %vm4855, %v1780, 0.0
  %v5368 = vsel %vm4856, %v1781, 0.0
  %v5369 = vsel %vm4857, %v1782, 0.0
  %v5370 = vsel %vm4858, %v1783, 0.0
  %v5371 = vsel %vm4859, %v1784, 0.0
  %v5372 = vsel %vm4860, %v1785, 0.0
  %v5373 = vsel %vm4861, %v1786, 0.0
  %v5374 = vsel %vm4862, %v1787, 0.0
  %v5375 = vsel %vm4863, %v1788, 0.0
  %v5376 = vsel %vm4864, %v1789, 0.0
  %v5377 = vsel %vm4865, %v1790, 0.0
  %v5378 = vsel %vm4866, %v1791, 0.0
  %v5379 = vsel %vm4867, %v1792, 0.0
  %v5380 = vsel %vm4868, %v1793, 0.0
  %v5381 = vsel %vm4869, %v1794, 0.0
  %v5382 = vsel %vm4870, %v1795, 0.0
  %v5383 = vsel %vm4871, %v1796, 0.0
  %v5384 = vsel %vm4872, %v1797, 0.0
  %v5385 = vsel %vm4873, %v1798, 0.0
  %v5386 = vsel %vm4874, %v1799, 0.0
  %v5387 = vsel %vm4875, %v1800, 0.0
  %v5388 = vsel %vm4876, %v1801, 0.0
  %v5389 = vsel %vm4877, %v1802, 0.0
  %v5390 = vsel %vm4878, %v1803, 0.0
  %v5391 = vsel %vm4879, %v1804, 0.0
  %v5392 = vsel %vm4880, %v1805, 0.0
  %v5393 = vsel %vm4881, %v1806, 0.0
  %v5394 = vsel %vm4882, %v1807, 0.0
  %v5395 = vsel %vm4883, %v1808, 0.0
  %v5396 = vsel %vm4884, %v1809, 0.0
  %v5397 = vsel %vm4885, %v1810, 0.0
  %v5398 = vsel %vm4886, %v1811, 0.0
  %v5399 = vsel %vm4887, %v1812, 0.0
  %v5400 = vsel %vm4888, %v1813, 0.0
  %v5401 = vsel %vm4889, %v1814, 0.0
  %v5402 = vsel %vm4890, %v1815, 0.0
  %v5403 = vsel %vm4891, %v1816, 0.0
  %v5404 = vsel %vm4892, %v1817, 0.0
  %v5405 = vsel %vm4893, %v1818, 0.0
  %v5406 = vsel %vm4894, %v1819, 0.0
  %v5407 = vsel %vm4895, %v1820, 0.0
  %v5408 = vsel %vm4896, %v1821, 0.0
  %v5409 = vsel %vm4897, %v1822, 0.0
  %v5410 = vsel %vm4898, %v1823, 0.0
  %v5411 = vsel %vm4899, %v1824, 0.0
  %v5412 = vsel %vm4900, %v1825, 0.0
  %v5413 = vsel %vm4901, %v1826, 0.0
  %v5414 = vsel %vm4902, %v1827, 0.0
  %v5415 = vsel %vm4903, %v1828, 0.0
  %v5416 = vsel %vm4904, %v1829, 0.0
  %v5417 = vsel %vm4905, %v1830, 0.0
  %v5418 = vsel %vm4906, %v1831, 0.0
  %v5419 = vsel %vm4907, %v1832, 0.0
  %v5420 = vsel %vm4908, %v1833, 0.0
  %v5421 = vsel %vm4909, %v1834, 0.0
  %v5422 = vsel %vm4910, %v1835, 0.0
  %v5423 = vsel %vm4911, %v1836, 0.0
  %v5424 = vsel %vm4912, %v1837, 0.0
  %v5425 = vsel %vm4913, %v1838, 0.0
  %v5426 = vsel %vm4914, %v1839, 0.0
  %v5427 = vsel %vm4915, %v1840, 0.0
  %v5428 = vsel %vm4916, %v1841, 0.0
  %v5429 = vsel %vm4917, %v1842, 0.0
  %v5430 = vsel %vm4918, %v1843, 0.0
  %v5431 = vsel %vm4919, %v1844, 0.0
  %v5432 = vsel %vm4920, %v1845, 0.0
  %v5433 = vsel %vm4921, %v1846, 0.0
  %v5434 = vsel %vm4922, %v1847, 0.0
  %v5435 = vsel %vm4923, %v1848, 0.0
  %v5436 = vsel %vm4924, %v1849, 0.0
  %v5437 = vsel %vm4925, %v1850, 0.0
  %v5438 = vsel %vm4926, %v1851, 0.0
  %v5439 = vsel %vm4927, %v1852, 0.0
  %v5440 = vsel %vm4928, %v1853, 0.0
  %v5441 = vsel %vm4929, %v1854, 0.0
  %v5442 = vsel %vm4930, %v1855, 0.0
  %v5443 = vsel %vm4931, %v1856, 0.0
  %v5444 = vsel %vm4932, %v1857, 0.0
  %v5445 = vsel %vm4933, %v1858, 0.0
  %v5446 = vsel %vm4934, %v1859, 0.0
  %v5447 = vsel %vm4935, %v1860, 0.0
  %v5448 = vsel %vm4936, %v1861, 0.0
  %v5449 = vsel %vm4937, %v1862, 0.0
  %v5450 = vsel %vm4938, %v1863, 0.0
  %v5451 = vsel %vm4939, %v1864, 0.0
  %v5452 = vsel %vm4940, %v1865, 0.0
  %v5453 = vsel %vm4941, %v1866, 0.0
  %v5454 = vsel %vm4942, %v1867, 0.0
  %v5455 = vsel %vm4943, %v1868, 0.0
  %v5456 = vsel %vm4944, %v1869, 0.0
  %v5457 = vsel %vm4945, %v1870, 0.0
  %v5458 = vsel %vm4946, %v1871, 0.0
  %v5459 = vsel %vm4947, %v1872, 0.0
  %v5460 = vsel %vm4948, %v1873, 0.0
  %v5461 = vsel %vm4949, %v1874, 0.0
  %v5462 = vsel %vm4950, %v1875, 0.0
  %v5463 = vsel %vm4951, %v1876, 0.0
  %v5464 = vsel %vm4952, %v1877, 0.0
  %v5465 = vsel %vm4953, %v1878, 0.0
  %v5466 = vsel %vm4954, %v1879, 0.0
  %v5467 = vsel %vm4955, %v1880, 0.0
  %v5468 = vsel %vm4956, %v1881, 0.0
  %v5469 = vsel %vm4957, %v1882, 0.0
  %v5470 = vsel %vm4958, %v1883, 0.0
  %v5471 = vsel %vm4959, %v1884, 0.0
  %v5472 = vsel %vm4960, %v1885, 0.0
  %v5473 = vsel %vm4961, %v1886, 0.0
  %v5474 = vsel %vm4962, %v1887, 0.0
  %v5475 = vsel %vm4963, %v1888, 0.0
  %v5476 = vsel %vm4964, %v1889, 0.0
  %v5477 = vsel %vm4965, %v1890, 0.0
  %v5478 = vsel %vm4966, %v1891, 0.0
  %v5479 = vsel %vm4967, %v1892, 0.0
  %v5480 = vsel %vm4968, %v1893, 0.0
  %v5481 = vsel %vm4969, %v1894, 0.0
  %v5482 = vsel %vm4970, %v1895, 0.0
  %v5483 = vsel %vm4971, %v1896, 0.0
  %v5484 = vsel %vm4972, %v1897, 0.0
  %v5485 = vsel %vm4973, %v1898, 0.0
  %v5486 = vsel %vm4974, %v1899, 0.0
  %v5487 = vsel %vm4975, %v1900, 0.0
  %v5488 = vsel %vm4976, %v1901, 0.0
  %v5489 = vsel %vm4977, %v1902, 0.0
  %v5490 = vsel %vm4978, %v1903, 0.0
  %v5491 = vsel %vm4979, %v1904, 0.0
  %v5492 = vsel %vm4980, %v1905, 0.0
  %v5493 = vsel %vm4981, %v1906, 0.0
  %v5494 = vsel %vm4982, %v1907, 0.0
  %v5495 = vsel %vm4983, %v1908, 0.0
  %v5496 = vsel %vm4984, %v1909, 0.0
  %v5497 = vsel %vm4985, %v1910, 0.0
  %v5498 = vsel %vm4986, %v1911, 0.0
  %v5499 = vsel %vm4987, %v1912, 0.0
  %v5500 = vsel %vm4988, %v1913, 0.0
  %v5501 = vsel %vm4989, %v1914, 0.0
  %v5502 = vsel %vm4990, %v1915, 0.0
  %v5503 = vsel %vm4991, %v1916, 0.0
  %v5504 = vsel %vm4992, %v1917, 0.0
  %v5505 = vsel %vm4993, %v1918, 0.0
  %v5506 = vsel %vm4994, %v1919, 0.0
  %v5507 = vsel %vm4995, %v1920, 0.0
  %v5508 = vsel %vm4996, %v1921, 0.0
  %v5509 = vsel %vm4997, %v1922, 0.0
  %v5510 = vsel %vm4998, %v1923, 0.0
  %v5511 = vsel %vm4999, %v1924, 0.0
  %v5512 = vsel %vm5000, %v1925, 0.0
  %v5513 = vsel %vm5001, %v1926, 0.0
  %v5514 = vsel %vm5002, %v1927, 0.0
  %v5515 = vsel %vm5003, %v1928, 0.0
  %v5516 = vsel %vm5004, %v1929, 0.0
  %v5517 = vsel %vm5005, %v1930, 0.0
  %v5518 = vsel %vm5006, %v1931, 0.0
  %v5519 = vsel %vm5007, %v1932, 0.0
  %v5520 = vsel %vm5008, %v1933, 0.0
  %v5521 = vsel %vm5009, %v1934, 0.0
  %v5522 = vsel %vm5010, %v1935, 0.0
  %v5523 = vsel %vm5011, %v1936, 0.0
  %v5524 = vsel %vm5012, %v1937, 0.0
  %v5525 = vsel %vm5013, %v1938, 0.0
  %v5526 = vsel %vm5014, %v1939, 0.0
  %v5527 = vsel %vm5015, %v1940, 0.0
  %v5528 = vsel %vm5016, %v1941, 0.0
  %v5529 = vsel %vm5017, %v1942, 0.0
  %v5530 = vsel %vm5018, %v1943, 0.0
  %v5531 = vsel %vm5019, %v1944, 0.0
  %v5532 = vsel %vm5020, %v1945, 0.0
  %v5533 = vsel %vm5021, %v1946, 0.0
  %v5534 = vsel %vm5022, %v1947, 0.0
  %v5535 = vsel %vm5023, %v1948, 0.0
  %v5536 = vsel %vm5024, %v1949, 0.0
  %v5537 = vsel %vm5025, %v1950, 0.0
  %v5538 = vsel %vm5026, %v1951, 0.0
  %v5539 = vsel %vm5027, %v1952, 0.0
  %v5540 = vsel %vm5028, %v1953, 0.0
  %v5541 = vsel %vm5029, %v1954, 0.0
  %v5542 = vsel %vm5030, %v1955, 0.0
  %v5543 = vsel %vm5031, %v1956, 0.0
  %v5544 = vsel %vm5032, %v1957, 0.0
  %v5545 = vsel %vm5033, %v1958, 0.0
  %v5546 = vsel %vm5034, %v1959, 0.0
  %v5547 = vsel %vm5035, %v1960, 0.0
  %v5548 = vsel %vm5036, %v1961, 0.0
  %v5549 = vsel %vm5037, %v1962, 0.0
  %v5550 = vsel %vm5038, %v1963, 0.0
  %v5551 = vsel %vm5039, %v1964, 0.0
  %v5552 = vsel %vm5040, %v1965, 0.0
  %v5553 = vsel %vm5041, %v1966, 0.0
  %v5554 = vsel %vm5042, %v1967, 0.0
  %v5555 = vsel %vm5043, %v1968, 0.0
  %v5556 = vsel %vm5044, %v1969, 0.0
  %v5557 = vsel %vm5045, %v1970, 0.0
  %v5558 = vsel %vm5046, %v1971, 0.0
  %v5559 = vsel %vm5047, %v1972, 0.0
  %v5560 = vsel %vm5048, %v1973, 0.0
  %v5561 = vsel %vm5049, %v1974, 0.0
  %v5562 = vsel %vm5050, %v1975, 0.0
  %v5563 = vsel %vm5051, %v1976, 0.0
  %v5564 = vsel %vm5052, %v1977, 0.0
  %v5565 = vsel %vm5053, %v1978, 0.0
  %v5566 = vsel %vm5054, %v1979, 0.0
  %v5567 = vsel %vm5055, %v1980, 0.0
  %v5568 = vsel %vm5056, %v1981, 0.0
  %v5569 = vsel %vm5057, %v1982, 0.0
  %v5570 = vsel %vm5058, %v1983, 0.0
  %v5571 = vsel %vm5059, %v1984, 0.0
  %v5572 = vsel %vm5060, %v1985, 0.0
  %v5573 = vsel %vm5061, %v1986, 0.0
  %v5574 = vsel %vm5062, %v1987, 0.0
  %v5575 = vsel %vm5063, %v1988, 0.0
  %v5576 = vsel %vm5064, %v1989, 0.0
  %v5577 = vsel %vm5065, %v1990, 0.0
  %v5578 = vsel %vm5066, %v1991, 0.0
  %v5579 = vsel %vm5067, %v1992, 0.0
  %v5580 = vsel %vm5068, %v1993, 0.0
  %v5581 = vsel %vm5069, %v1994, 0.0
  %v5582 = vsel %vm5070, %v1995, 0.0
  %v5583 = vsel %vm5071, %v1996, 0.0
  %v5584 = vsel %vm5072, %v1997, 0.0
  %v5585 = vsel %vm5073, %v1998, 0.0
  %v5586 = vsel %vm5074, %v1999, 0.0
  %v5587 = vsel %vm5075, %v2000, 0.0
  %v5588 = vsel %vm5076, %v2001, 0.0
  %v5589 = vsel %vm5077, %v2002, 0.0
  %v5590 = vsel %vm5078, %v2003, 0.0
  %v5591 = vsel %vm5079, %v2004, 0.0
  %v5592 = vsel %vm5080, %v2005, 0.0
  %v5593 = vsel %vm5081, %v2006, 0.0
  %v5594 = vsel %vm5082, %v2007, 0.0
  %v5595 = vsel %vm5083, %v2008, 0.0
  %v5596 = vsel %vm5084, %v2009, 0.0
  %v5597 = vsel %vm5085, %v2010, 0.0
  %v5598 = vsel %vm5086, %v2011, 0.0
  %v5599 = vsel %vm5087, %v2012, 0.0
  %v5600 = vsel %vm5088, %v2013, 0.0
  %v5601 = vsel %vm5089, %v2014, 0.0
  %v5602 = vsel %vm5090, %v2015, 0.0
  %v5603 = vsel %vm5091, %v2016, 0.0
  %v5604 = vsel %vm5092, %v2017, 0.0
  %v5605 = vsel %vm5093, %v2018, 0.0
  %v5606 = vsel %vm5094, %v2019, 0.0
  %v5607 = vsel %vm5095, %v2020, 0.0
  %v5608 = vsel %vm5096, %v2021, 0.0
  %v5609 = vsel %vm5097, %v2022, 0.0
  %v5610 = vsel %vm5098, %v2023, 0.0
  %v5611 = vsel %vm5099, %v2024, 0.0
  %v5612 = vsel %vm5100, %v2025, 0.0
  %v5613 = vsel %vm5101, %v2026, 0.0
  %v5614 = vsel %vm5102, %v2027, 0.0
  %v5615 = vsel %vm5103, %v2028, 0.0
  %v5616 = vsel %vm5104, %v2029, 0.0
  %v5617 = vsel %vm5105, %v2030, 0.0
  %v5618 = vsel %vm5106, %v2031, 0.0
  %v5619 = vsel %vm5107, %v2032, 0.0
  %v5620 = vsel %vm5108, %v2033, 0.0
  %v5621 = vsel %vm5109, %v2034, 0.0
  %v5622 = vsel %vm5110, %v2035, 0.0
  %v5623 = vsel %vm5111, %v2036, 0.0
  %v5624 = vsel %vm5112, %v2037, 0.0
  %v5625 = vsel %vm5113, %v2038, 0.0
  %v5626 = vsel %vm5114, %v2039, 0.0
  %v5627 = vsel %vm5115, %v2040, 0.0
  %v5628 = vsel %vm5116, %v2041, 0.0
  %v5629 = vsel %vm5117, %v2042, 0.0
  %v5630 = vsel %vm5118, %v2043, 0.0
  %v5631 = vsel %vm5119, %v2044, 0.0
  %v5632 = vsel %vm5120, %v2045, 0.0
  %v5633 = vsel %vm5121, %v2046, 0.0
  %v5634 = vsel %vm5122, %v2047, 0.0
  %v5635 = vsel %vm5123, %v2048, 0.0
  %v5636 = vsel %vm5124, %v2049, 0.0
  %v5637 = vsel %vm5125, %v2050, 0.0
  %v5638 = vsel %vm5126, %v2051, 0.0
  %v5639 = vsel %vm5127, %v2052, 0.0
  %v5640 = vsel %vm5128, %v2053, 0.0
  %v5641 = vsel %vm5129, %v2054, 0.0
  %v5642 = vsel %vm5130, %v2055, 0.0
  %v5643 = vsel %vm5131, %v2056, 0.0
  %v5644 = vsel %vm5132, %v2057, 0.0
  %v5645 = vsel %vm5133, %v2058, 0.0
  %v5646 = vsel %vm5134, %v2059, 0.0
  %v5647 = vsel %vm5135, %v2060, 0.0
  %v5648 = vsel %vm5136, %v2061, 0.0
  %v5649 = vsel %vm5137, %v2062, 0.0
  %v5650 = vsel %vm5138, %v2063, 0.0
  %v5651 = vsel %vm5139, %v2064, 0.0
  %v5652 = vsel %vm5140, %v2065, 0.0
  %v5653 = vsel %vm5141, %v2066, 0.0
  %v5654 = vadd.f32 %v5142, %v5143
  %5655 = vadd.xlane.f32.xlu0 %v5654
  %v5656 = vpop.xlane.xlu0 %5655
  %v5657 = vadd.f32 %v5144, %v5145
  %5658 = vadd.xlane.f32.xlu0 %v5657
  %v5659 = vpop.xlane.xlu0 %5658
  %v5660 = vadd.f32 %v5146, %v5147
  %5661 = vadd.xlane.f32.xlu0 %v5660
  %v5662 = vpop.xlane.xlu0 %5661
  %v5663 = vadd.f32 %v5148, %v5149
  %5664 = vadd.xlane.f32.xlu0 %v5663
  %v5665 = vpop.xlane.xlu0 %5664
  %v5666 = vadd.f32 %v5150, %v5151
  %5667 = vadd.xlane.f32.xlu0 %v5666
  %v5668 = vpop.xlane.xlu0 %5667
  %v5669 = vadd.f32 %v5152, %v5153
  %5670 = vadd.xlane.f32.xlu0 %v5669
  %v5671 = vpop.xlane.xlu0 %5670
  %v5672 = vadd.f32 %v5154, %v5155
  %5673 = vadd.xlane.f32.xlu0 %v5672
  %v5674 = vpop.xlane.xlu0 %5673
  %v5675 = vadd.f32 %v5156, %v5157
  %5676 = vadd.xlane.f32.xlu0 %v5675
  %v5677 = vpop.xlane.xlu0 %5676
  %v5678 = vadd.f32 %v5158, %v5159
  %5679 = vadd.xlane.f32.xlu0 %v5678
  %v5680 = vpop.xlane.xlu0 %5679
  %v5681 = vadd.f32 %v5160, %v5161
  %5682 = vadd.xlane.f32.xlu0 %v5681
  %v5683 = vpop.xlane.xlu0 %5682
  %v5684 = vadd.f32 %v5162, %v5163
  %5685 = vadd.xlane.f32.xlu0 %v5684
  %v5686 = vpop.xlane.xlu0 %5685
  %v5687 = vadd.f32 %v5164, %v5165
  %5688 = vadd.xlane.f32.xlu0 %v5687
  %v5689 = vpop.xlane.xlu0 %5688
  %v5690 = vadd.f32 %v5166, %v5167
  %5691 = vadd.xlane.f32.xlu0 %v5690
  %v5692 = vpop.xlane.xlu0 %5691
  %v5693 = vadd.f32 %v5168, %v5169
  %5694 = vadd.xlane.f32.xlu0 %v5693
  %v5695 = vpop.xlane.xlu0 %5694
  %v5696 = vadd.f32 %v5170, %v5171
  %5697 = vadd.xlane.f32.xlu0 %v5696
  %v5698 = vpop.xlane.xlu0 %5697
  %v5699 = vadd.f32 %v5172, %v5173
  %5700 = vadd.xlane.f32.xlu0 %v5699
  %v5701 = vpop.xlane.xlu0 %5700
  %v5702 = vadd.f32 %v5174, %v5175
  %5703 = vadd.xlane.f32.xlu0 %v5702
  %v5704 = vpop.xlane.xlu0 %5703
  %v5705 = vadd.f32 %v5176, %v5177
  %5706 = vadd.xlane.f32.xlu0 %v5705
  %v5707 = vpop.xlane.xlu0 %5706
  %v5708 = vadd.f32 %v5178, %v5179
  %5709 = vadd.xlane.f32.xlu0 %v5708
  %v5710 = vpop.xlane.xlu0 %5709
  %v5711 = vadd.f32 %v5180, %v5181
  %5712 = vadd.xlane.f32.xlu0 %v5711
  %v5713 = vpop.xlane.xlu0 %5712
  %v5714 = vadd.f32 %v5182, %v5183
  %5715 = vadd.xlane.f32.xlu0 %v5714
  %v5716 = vpop.xlane.xlu0 %5715
  %v5717 = vadd.f32 %v5184, %v5185
  %5718 = vadd.xlane.f32.xlu0 %v5717
  %v5719 = vpop.xlane.xlu0 %5718
  %v5720 = vadd.f32 %v5186, %v5187
  %5721 = vadd.xlane.f32.xlu0 %v5720
  %v5722 = vpop.xlane.xlu0 %5721
  %v5723 = vadd.f32 %v5188, %v5189
  %5724 = vadd.xlane.f32.xlu0 %v5723
  %v5725 = vpop.xlane.xlu0 %5724
  %v5726 = vadd.f32 %v5190, %v5191
  %5727 = vadd.xlane.f32.xlu0 %v5726
  %v5728 = vpop.xlane.xlu0 %5727
  %v5729 = vadd.f32 %v5192, %v5193
  %5730 = vadd.xlane.f32.xlu0 %v5729
  %v5731 = vpop.xlane.xlu0 %5730
  %v5732 = vadd.f32 %v5194, %v5195
  %5733 = vadd.xlane.f32.xlu0 %v5732
  %v5734 = vpop.xlane.xlu0 %5733
  %v5735 = vadd.f32 %v5196, %v5197
  %5736 = vadd.xlane.f32.xlu0 %v5735
  %v5737 = vpop.xlane.xlu0 %5736
  %v5738 = vadd.f32 %v5198, %v5199
  %5739 = vadd.xlane.f32.xlu0 %v5738
  %v5740 = vpop.xlane.xlu0 %5739
  %v5741 = vadd.f32 %v5200, %v5201
  %5742 = vadd.xlane.f32.xlu0 %v5741
  %v5743 = vpop.xlane.xlu0 %5742
  %v5744 = vadd.f32 %v5202, %v5203
  %5745 = vadd.xlane.f32.xlu0 %v5744
  %v5746 = vpop.xlane.xlu0 %5745
  %v5747 = vadd.f32 %v5204, %v5205
  %5748 = vadd.xlane.f32.xlu0 %v5747
  %v5749 = vpop.xlane.xlu0 %5748
  %v5750 = vadd.f32 %v5206, %v5207
  %5751 = vadd.xlane.f32.xlu0 %v5750
  %v5752 = vpop.xlane.xlu0 %5751
  %v5753 = vadd.f32 %v5208, %v5209
  %5754 = vadd.xlane.f32.xlu0 %v5753
  %v5755 = vpop.xlane.xlu0 %5754
  %v5756 = vadd.f32 %v5210, %v5211
  %5757 = vadd.xlane.f32.xlu0 %v5756
  %v5758 = vpop.xlane.xlu0 %5757
  %v5759 = vadd.f32 %v5212, %v5213
  %5760 = vadd.xlane.f32.xlu0 %v5759
  %v5761 = vpop.xlane.xlu0 %5760
  %v5762 = vadd.f32 %v5214, %v5215
  %5763 = vadd.xlane.f32.xlu0 %v5762
  %v5764 = vpop.xlane.xlu0 %5763
  %v5765 = vadd.f32 %v5216, %v5217
  %5766 = vadd.xlane.f32.xlu0 %v5765
  %v5767 = vpop.xlane.xlu0 %5766
  %v5768 = vadd.f32 %v5218, %v5219
  %5769 = vadd.xlane.f32.xlu0 %v5768
  %v5770 = vpop.xlane.xlu0 %5769
  %v5771 = vadd.f32 %v5220, %v5221
  %5772 = vadd.xlane.f32.xlu0 %v5771
  %v5773 = vpop.xlane.xlu0 %5772
  %v5774 = vadd.f32 %v5222, %v5223
  %5775 = vadd.xlane.f32.xlu0 %v5774
  %v5776 = vpop.xlane.xlu0 %5775
  %v5777 = vadd.f32 %v5224, %v5225
  %5778 = vadd.xlane.f32.xlu0 %v5777
  %v5779 = vpop.xlane.xlu0 %5778
  %v5780 = vadd.f32 %v5226, %v5227
  %5781 = vadd.xlane.f32.xlu0 %v5780
  %v5782 = vpop.xlane.xlu0 %5781
  %v5783 = vadd.f32 %v5228, %v5229
  %5784 = vadd.xlane.f32.xlu0 %v5783
  %v5785 = vpop.xlane.xlu0 %5784
  %v5786 = vadd.f32 %v5230, %v5231
  %5787 = vadd.xlane.f32.xlu0 %v5786
  %v5788 = vpop.xlane.xlu0 %5787
  %v5789 = vadd.f32 %v5232, %v5233
  %5790 = vadd.xlane.f32.xlu0 %v5789
  %v5791 = vpop.xlane.xlu0 %5790
  %v5792 = vadd.f32 %v5234, %v5235
  %5793 = vadd.xlane.f32.xlu0 %v5792
  %v5794 = vpop.xlane.xlu0 %5793
  %v5795 = vadd.f32 %v5236, %v5237
  %5796 = vadd.xlane.f32.xlu0 %v5795
  %v5797 = vpop.xlane.xlu0 %5796
  %v5798 = vadd.f32 %v5238, %v5239
  %5799 = vadd.xlane.f32.xlu0 %v5798
  %v5800 = vpop.xlane.xlu0 %5799
  %v5801 = vadd.f32 %v5240, %v5241
  %5802 = vadd.xlane.f32.xlu0 %v5801
  %v5803 = vpop.xlane.xlu0 %5802
  %v5804 = vadd.f32 %v5242, %v5243
  %5805 = vadd.xlane.f32.xlu0 %v5804
  %v5806 = vpop.xlane.xlu0 %5805
  %v5807 = vadd.f32 %v5244, %v5245
  %5808 = vadd.xlane.f32.xlu0 %v5807
  %v5809 = vpop.xlane.xlu0 %5808
  %v5810 = vadd.f32 %v5246, %v5247
  %5811 = vadd.xlane.f32.xlu0 %v5810
  %v5812 = vpop.xlane.xlu0 %5811
  %v5813 = vadd.f32 %v5248, %v5249
  %5814 = vadd.xlane.f32.xlu0 %v5813
  %v5815 = vpop.xlane.xlu0 %5814
  %v5816 = vadd.f32 %v5250, %v5251
  %5817 = vadd.xlane.f32.xlu0 %v5816
  %v5818 = vpop.xlane.xlu0 %5817
  %v5819 = vadd.f32 %v5252, %v5253
  %5820 = vadd.xlane.f32.xlu0 %v5819
  %v5821 = vpop.xlane.xlu0 %5820
  %v5822 = vadd.f32 %v5254, %v5255
  %5823 = vadd.xlane.f32.xlu0 %v5822
  %v5824 = vpop.xlane.xlu0 %5823
  %v5825 = vadd.f32 %v5256, %v5257
  %5826 = vadd.xlane.f32.xlu0 %v5825
  %v5827 = vpop.xlane.xlu0 %5826
  %v5828 = vadd.f32 %v5258, %v5259
  %5829 = vadd.xlane.f32.xlu0 %v5828
  %v5830 = vpop.xlane.xlu0 %5829
  %v5831 = vadd.f32 %v5260, %v5261
  %5832 = vadd.xlane.f32.xlu0 %v5831
  %v5833 = vpop.xlane.xlu0 %5832
  %v5834 = vadd.f32 %v5262, %v5263
  %5835 = vadd.xlane.f32.xlu0 %v5834
  %v5836 = vpop.xlane.xlu0 %5835
  %v5837 = vadd.f32 %v5264, %v5265
  %5838 = vadd.xlane.f32.xlu0 %v5837
  %v5839 = vpop.xlane.xlu0 %5838
  %v5840 = vadd.f32 %v5266, %v5267
  %5841 = vadd.xlane.f32.xlu0 %v5840
  %v5842 = vpop.xlane.xlu0 %5841
  %v5843 = vadd.f32 %v5268, %v5269
  %5844 = vadd.xlane.f32.xlu0 %v5843
  %v5845 = vpop.xlane.xlu0 %5844
  %v5846 = vadd.f32 %v5270, %v5271
  %5847 = vadd.xlane.f32.xlu0 %v5846
  %v5848 = vpop.xlane.xlu0 %5847
  %v5849 = vadd.f32 %v5272, %v5273
  %5850 = vadd.xlane.f32.xlu0 %v5849
  %v5851 = vpop.xlane.xlu0 %5850
  %v5852 = vadd.f32 %v5274, %v5275
  %5853 = vadd.xlane.f32.xlu0 %v5852
  %v5854 = vpop.xlane.xlu0 %5853
  %v5855 = vadd.f32 %v5276, %v5277
  %5856 = vadd.xlane.f32.xlu0 %v5855
  %v5857 = vpop.xlane.xlu0 %5856
  %v5858 = vadd.f32 %v5278, %v5279
  %5859 = vadd.xlane.f32.xlu0 %v5858
  %v5860 = vpop.xlane.xlu0 %5859
  %v5861 = vadd.f32 %v5280, %v5281
  %5862 = vadd.xlane.f32.xlu0 %v5861
  %v5863 = vpop.xlane.xlu0 %5862
  %v5864 = vadd.f32 %v5282, %v5283
  %5865 = vadd.xlane.f32.xlu0 %v5864
  %v5866 = vpop.xlane.xlu0 %5865
  %v5867 = vadd.f32 %v5284, %v5285
  %5868 = vadd.xlane.f32.xlu0 %v5867
  %v5869 = vpop.xlane.xlu0 %5868
  %v5870 = vadd.f32 %v5286, %v5287
  %5871 = vadd.xlane.f32.xlu0 %v5870
  %v5872 = vpop.xlane.xlu0 %5871
  %v5873 = vadd.f32 %v5288, %v5289
  %5874 = vadd.xlane.f32.xlu0 %v5873
  %v5875 = vpop.xlane.xlu0 %5874
  %v5876 = vadd.f32 %v5290, %v5291
  %5877 = vadd.xlane.f32.xlu0 %v5876
  %v5878 = vpop.xlane.xlu0 %5877
  %v5879 = vadd.f32 %v5292, %v5293
  %5880 = vadd.xlane.f32.xlu0 %v5879
  %v5881 = vpop.xlane.xlu0 %5880
  %v5882 = vadd.f32 %v5294, %v5295
  %5883 = vadd.xlane.f32.xlu0 %v5882
  %v5884 = vpop.xlane.xlu0 %5883
  %v5885 = vadd.f32 %v5296, %v5297
  %5886 = vadd.xlane.f32.xlu0 %v5885
  %v5887 = vpop.xlane.xlu0 %5886
  %v5888 = vadd.f32 %v5298, %v5299
  %5889 = vadd.xlane.f32.xlu0 %v5888
  %v5890 = vpop.xlane.xlu0 %5889
  %v5891 = vadd.f32 %v5300, %v5301
  %5892 = vadd.xlane.f32.xlu0 %v5891
  %v5893 = vpop.xlane.xlu0 %5892
  %v5894 = vadd.f32 %v5302, %v5303
  %5895 = vadd.xlane.f32.xlu0 %v5894
  %v5896 = vpop.xlane.xlu0 %5895
  %v5897 = vadd.f32 %v5304, %v5305
  %5898 = vadd.xlane.f32.xlu0 %v5897
  %v5899 = vpop.xlane.xlu0 %5898
  %v5900 = vadd.f32 %v5306, %v5307
  %5901 = vadd.xlane.f32.xlu0 %v5900
  %v5902 = vpop.xlane.xlu0 %5901
  %v5903 = vadd.f32 %v5308, %v5309
  %5904 = vadd.xlane.f32.xlu0 %v5903
  %v5905 = vpop.xlane.xlu0 %5904
  %v5906 = vadd.f32 %v5310, %v5311
  %5907 = vadd.xlane.f32.xlu0 %v5906
  %v5908 = vpop.xlane.xlu0 %5907
  %v5909 = vadd.f32 %v5312, %v5313
  %5910 = vadd.xlane.f32.xlu0 %v5909
  %v5911 = vpop.xlane.xlu0 %5910
  %v5912 = vadd.f32 %v5314, %v5315
  %5913 = vadd.xlane.f32.xlu0 %v5912
  %v5914 = vpop.xlane.xlu0 %5913
  %v5915 = vadd.f32 %v5316, %v5317
  %5916 = vadd.xlane.f32.xlu0 %v5915
  %v5917 = vpop.xlane.xlu0 %5916
  %v5918 = vadd.f32 %v5318, %v5319
  %5919 = vadd.xlane.f32.xlu0 %v5918
  %v5920 = vpop.xlane.xlu0 %5919
  %v5921 = vadd.f32 %v5320, %v5321
  %5922 = vadd.xlane.f32.xlu0 %v5921
  %v5923 = vpop.xlane.xlu0 %5922
  %v5924 = vadd.f32 %v5322, %v5323
  %5925 = vadd.xlane.f32.xlu0 %v5924
  %v5926 = vpop.xlane.xlu0 %5925
  %v5927 = vadd.f32 %v5324, %v5325
  %5928 = vadd.xlane.f32.xlu0 %v5927
  %v5929 = vpop.xlane.xlu0 %5928
  %v5930 = vadd.f32 %v5326, %v5327
  %5931 = vadd.xlane.f32.xlu0 %v5930
  %v5932 = vpop.xlane.xlu0 %5931
  %v5933 = vadd.f32 %v5328, %v5329
  %5934 = vadd.xlane.f32.xlu0 %v5933
  %v5935 = vpop.xlane.xlu0 %5934
  %v5936 = vadd.f32 %v5330, %v5331
  %5937 = vadd.xlane.f32.xlu0 %v5936
  %v5938 = vpop.xlane.xlu0 %5937
  %v5939 = vadd.f32 %v5332, %v5333
  %5940 = vadd.xlane.f32.xlu0 %v5939
  %v5941 = vpop.xlane.xlu0 %5940
  %v5942 = vadd.f32 %v5334, %v5335
  %5943 = vadd.xlane.f32.xlu0 %v5942
  %v5944 = vpop.xlane.xlu0 %5943
  %v5945 = vadd.f32 %v5336, %v5337
  %5946 = vadd.xlane.f32.xlu0 %v5945
  %v5947 = vpop.xlane.xlu0 %5946
  %v5948 = vadd.f32 %v5338, %v5339
  %5949 = vadd.xlane.f32.xlu0 %v5948
  %v5950 = vpop.xlane.xlu0 %5949
  %v5951 = vadd.f32 %v5340, %v5341
  %5952 = vadd.xlane.f32.xlu0 %v5951
  %v5953 = vpop.xlane.xlu0 %5952
  %v5954 = vadd.f32 %v5342, %v5343
  %5955 = vadd.xlane.f32.xlu0 %v5954
  %v5956 = vpop.xlane.xlu0 %5955
  %v5957 = vadd.f32 %v5344, %v5345
  %5958 = vadd.xlane.f32.xlu0 %v5957
  %v5959 = vpop.xlane.xlu0 %5958
  %v5960 = vadd.f32 %v5346, %v5347
  %5961 = vadd.xlane.f32.xlu0 %v5960
  %v5962 = vpop.xlane.xlu0 %5961
  %v5963 = vadd.f32 %v5348, %v5349
  %5964 = vadd.xlane.f32.xlu0 %v5963
  %v5965 = vpop.xlane.xlu0 %5964
  %v5966 = vadd.f32 %v5350, %v5351
  %5967 = vadd.xlane.f32.xlu0 %v5966
  %v5968 = vpop.xlane.xlu0 %5967
  %v5969 = vadd.f32 %v5352, %v5353
  %5970 = vadd.xlane.f32.xlu0 %v5969
  %v5971 = vpop.xlane.xlu0 %5970
  %v5972 = vadd.f32 %v5354, %v5355
  %5973 = vadd.xlane.f32.xlu0 %v5972
  %v5974 = vpop.xlane.xlu0 %5973
  %v5975 = vadd.f32 %v5356, %v5357
  %5976 = vadd.xlane.f32.xlu0 %v5975
  %v5977 = vpop.xlane.xlu0 %5976
  %v5978 = vadd.f32 %v5358, %v5359
  %5979 = vadd.xlane.f32.xlu0 %v5978
  %v5980 = vpop.xlane.xlu0 %5979
  %v5981 = vadd.f32 %v5360, %v5361
  %5982 = vadd.xlane.f32.xlu0 %v5981
  %v5983 = vpop.xlane.xlu0 %5982
  %v5984 = vadd.f32 %v5362, %v5363
  %5985 = vadd.xlane.f32.xlu0 %v5984
  %v5986 = vpop.xlane.xlu0 %5985
  %v5987 = vadd.f32 %v5364, %v5365
  %5988 = vadd.xlane.f32.xlu0 %v5987
  %v5989 = vpop.xlane.xlu0 %5988
  %v5990 = vadd.f32 %v5366, %v5367
  %5991 = vadd.xlane.f32.xlu0 %v5990
  %v5992 = vpop.xlane.xlu0 %5991
  %v5993 = vadd.f32 %v5368, %v5369
  %5994 = vadd.xlane.f32.xlu0 %v5993
  %v5995 = vpop.xlane.xlu0 %5994
  %v5996 = vadd.f32 %v5370, %v5371
  %5997 = vadd.xlane.f32.xlu0 %v5996
  %v5998 = vpop.xlane.xlu0 %5997
  %v5999 = vadd.f32 %v5372, %v5373
  %6000 = vadd.xlane.f32.xlu0 %v5999
  %v6001 = vpop.xlane.xlu0 %6000
  %v6002 = vadd.f32 %v5374, %v5375
  %6003 = vadd.xlane.f32.xlu0 %v6002
  %v6004 = vpop.xlane.xlu0 %6003
  %v6005 = vadd.f32 %v5376, %v5377
  %6006 = vadd.xlane.f32.xlu0 %v6005
  %v6007 = vpop.xlane.xlu0 %6006
  %v6008 = vadd.f32 %v5378, %v5379
  %6009 = vadd.xlane.f32.xlu0 %v6008
  %v6010 = vpop.xlane.xlu0 %6009
  %v6011 = vadd.f32 %v5380, %v5381
  %6012 = vadd.xlane.f32.xlu0 %v6011
  %v6013 = vpop.xlane.xlu0 %6012
  %v6014 = vadd.f32 %v5382, %v5383
  %6015 = vadd.xlane.f32.xlu0 %v6014
  %v6016 = vpop.xlane.xlu0 %6015
  %v6017 = vadd.f32 %v5384, %v5385
  %6018 = vadd.xlane.f32.xlu0 %v6017
  %v6019 = vpop.xlane.xlu0 %6018
  %v6020 = vadd.f32 %v5386, %v5387
  %6021 = vadd.xlane.f32.xlu0 %v6020
  %v6022 = vpop.xlane.xlu0 %6021
  %v6023 = vadd.f32 %v5388, %v5389
  %6024 = vadd.xlane.f32.xlu0 %v6023
  %v6025 = vpop.xlane.xlu0 %6024
  %v6026 = vadd.f32 %v5390, %v5391
  %6027 = vadd.xlane.f32.xlu0 %v6026
  %v6028 = vpop.xlane.xlu0 %6027
  %v6029 = vadd.f32 %v5392, %v5393
  %6030 = vadd.xlane.f32.xlu0 %v6029
  %v6031 = vpop.xlane.xlu0 %6030
  %v6032 = vadd.f32 %v5394, %v5395
  %6033 = vadd.xlane.f32.xlu0 %v6032
  %v6034 = vpop.xlane.xlu0 %6033
  %v6035 = vadd.f32 %v5396, %v5397
  %6036 = vadd.xlane.f32.xlu0 %v6035
  %v6037 = vpop.xlane.xlu0 %6036
  %v6038 = vadd.f32 %v5398, %v5399
  %6039 = vadd.xlane.f32.xlu0 %v6038
  %v6040 = vpop.xlane.xlu0 %6039
  %v6041 = vadd.f32 %v5400, %v5401
  %6042 = vadd.xlane.f32.xlu0 %v6041
  %v6043 = vpop.xlane.xlu0 %6042
  %v6044 = vadd.f32 %v5402, %v5403
  %6045 = vadd.xlane.f32.xlu0 %v6044
  %v6046 = vpop.xlane.xlu0 %6045
  %v6047 = vadd.f32 %v5404, %v5405
  %6048 = vadd.xlane.f32.xlu0 %v6047
  %v6049 = vpop.xlane.xlu0 %6048
  %v6050 = vadd.f32 %v5406, %v5407
  %6051 = vadd.xlane.f32.xlu0 %v6050
  %v6052 = vpop.xlane.xlu0 %6051
  %v6053 = vadd.f32 %v5408, %v5409
  %6054 = vadd.xlane.f32.xlu0 %v6053
  %v6055 = vpop.xlane.xlu0 %6054
  %v6056 = vadd.f32 %v5410, %v5411
  %6057 = vadd.xlane.f32.xlu0 %v6056
  %v6058 = vpop.xlane.xlu0 %6057
  %v6059 = vadd.f32 %v5412, %v5413
  %6060 = vadd.xlane.f32.xlu0 %v6059
  %v6061 = vpop.xlane.xlu0 %6060
  %v6062 = vadd.f32 %v5414, %v5415
  %6063 = vadd.xlane.f32.xlu0 %v6062
  %v6064 = vpop.xlane.xlu0 %6063
  %v6065 = vadd.f32 %v5416, %v5417
  %6066 = vadd.xlane.f32.xlu0 %v6065
  %v6067 = vpop.xlane.xlu0 %6066
  %v6068 = vadd.f32 %v5418, %v5419
  %6069 = vadd.xlane.f32.xlu0 %v6068
  %v6070 = vpop.xlane.xlu0 %6069
  %v6071 = vadd.f32 %v5420, %v5421
  %6072 = vadd.xlane.f32.xlu0 %v6071
  %v6073 = vpop.xlane.xlu0 %6072
  %v6074 = vadd.f32 %v5422, %v5423
  %6075 = vadd.xlane.f32.xlu0 %v6074
  %v6076 = vpop.xlane.xlu0 %6075
  %v6077 = vadd.f32 %v5424, %v5425
  %6078 = vadd.xlane.f32.xlu0 %v6077
  %v6079 = vpop.xlane.xlu0 %6078
  %v6080 = vadd.f32 %v5426, %v5427
  %6081 = vadd.xlane.f32.xlu0 %v6080
  %v6082 = vpop.xlane.xlu0 %6081
  %v6083 = vadd.f32 %v5428, %v5429
  %6084 = vadd.xlane.f32.xlu0 %v6083
  %v6085 = vpop.xlane.xlu0 %6084
  %v6086 = vadd.f32 %v5430, %v5431
  %6087 = vadd.xlane.f32.xlu0 %v6086
  %v6088 = vpop.xlane.xlu0 %6087
  %v6089 = vadd.f32 %v5432, %v5433
  %6090 = vadd.xlane.f32.xlu0 %v6089
  %v6091 = vpop.xlane.xlu0 %6090
  %v6092 = vadd.f32 %v5434, %v5435
  %6093 = vadd.xlane.f32.xlu0 %v6092
  %v6094 = vpop.xlane.xlu0 %6093
  %v6095 = vadd.f32 %v5436, %v5437
  %6096 = vadd.xlane.f32.xlu0 %v6095
  %v6097 = vpop.xlane.xlu0 %6096
  %v6098 = vadd.f32 %v5438, %v5439
  %6099 = vadd.xlane.f32.xlu0 %v6098
  %v6100 = vpop.xlane.xlu0 %6099
  %v6101 = vadd.f32 %v5440, %v5441
  %6102 = vadd.xlane.f32.xlu0 %v6101
  %v6103 = vpop.xlane.xlu0 %6102
  %v6104 = vadd.f32 %v5442, %v5443
  %6105 = vadd.xlane.f32.xlu0 %v6104
  %v6106 = vpop.xlane.xlu0 %6105
  %v6107 = vadd.f32 %v5444, %v5445
  %6108 = vadd.xlane.f32.xlu0 %v6107
  %v6109 = vpop.xlane.xlu0 %6108
  %v6110 = vadd.f32 %v5446, %v5447
  %6111 = vadd.xlane.f32.xlu0 %v6110
  %v6112 = vpop.xlane.xlu0 %6111
  %v6113 = vadd.f32 %v5448, %v5449
  %6114 = vadd.xlane.f32.xlu0 %v6113
  %v6115 = vpop.xlane.xlu0 %6114
  %v6116 = vadd.f32 %v5450, %v5451
  %6117 = vadd.xlane.f32.xlu0 %v6116
  %v6118 = vpop.xlane.xlu0 %6117
  %v6119 = vadd.f32 %v5452, %v5453
  %6120 = vadd.xlane.f32.xlu0 %v6119
  %v6121 = vpop.xlane.xlu0 %6120
  %v6122 = vadd.f32 %v5454, %v5455
  %6123 = vadd.xlane.f32.xlu0 %v6122
  %v6124 = vpop.xlane.xlu0 %6123
  %v6125 = vadd.f32 %v5456, %v5457
  %6126 = vadd.xlane.f32.xlu0 %v6125
  %v6127 = vpop.xlane.xlu0 %6126
  %v6128 = vadd.f32 %v5458, %v5459
  %6129 = vadd.xlane.f32.xlu0 %v6128
  %v6130 = vpop.xlane.xlu0 %6129
  %v6131 = vadd.f32 %v5460, %v5461
  %6132 = vadd.xlane.f32.xlu0 %v6131
  %v6133 = vpop.xlane.xlu0 %6132
  %v6134 = vadd.f32 %v5462, %v5463
  %6135 = vadd.xlane.f32.xlu0 %v6134
  %v6136 = vpop.xlane.xlu0 %6135
  %v6137 = vadd.f32 %v5464, %v5465
  %6138 = vadd.xlane.f32.xlu0 %v6137
  %v6139 = vpop.xlane.xlu0 %6138
  %v6140 = vadd.f32 %v5466, %v5467
  %6141 = vadd.xlane.f32.xlu0 %v6140
  %v6142 = vpop.xlane.xlu0 %6141
  %v6143 = vadd.f32 %v5468, %v5469
  %6144 = vadd.xlane.f32.xlu0 %v6143
  %v6145 = vpop.xlane.xlu0 %6144
  %v6146 = vadd.f32 %v5470, %v5471
  %6147 = vadd.xlane.f32.xlu0 %v6146
  %v6148 = vpop.xlane.xlu0 %6147
  %v6149 = vadd.f32 %v5472, %v5473
  %6150 = vadd.xlane.f32.xlu0 %v6149
  %v6151 = vpop.xlane.xlu0 %6150
  %v6152 = vadd.f32 %v5474, %v5475
  %6153 = vadd.xlane.f32.xlu0 %v6152
  %v6154 = vpop.xlane.xlu0 %6153
  %v6155 = vadd.f32 %v5476, %v5477
  %6156 = vadd.xlane.f32.xlu0 %v6155
  %v6157 = vpop.xlane.xlu0 %6156
  %v6158 = vadd.f32 %v5478, %v5479
  %6159 = vadd.xlane.f32.xlu0 %v6158
  %v6160 = vpop.xlane.xlu0 %6159
  %v6161 = vadd.f32 %v5480, %v5481
  %6162 = vadd.xlane.f32.xlu0 %v6161
  %v6163 = vpop.xlane.xlu0 %6162
  %v6164 = vadd.f32 %v5482, %v5483
  %6165 = vadd.xlane.f32.xlu0 %v6164
  %v6166 = vpop.xlane.xlu0 %6165
  %v6167 = vadd.f32 %v5484, %v5485
  %6168 = vadd.xlane.f32.xlu0 %v6167
  %v6169 = vpop.xlane.xlu0 %6168
  %v6170 = vadd.f32 %v5486, %v5487
  %6171 = vadd.xlane.f32.xlu0 %v6170
  %v6172 = vpop.xlane.xlu0 %6171
  %v6173 = vadd.f32 %v5488, %v5489
  %6174 = vadd.xlane.f32.xlu0 %v6173
  %v6175 = vpop.xlane.xlu0 %6174
  %v6176 = vadd.f32 %v5490, %v5491
  %6177 = vadd.xlane.f32.xlu0 %v6176
  %v6178 = vpop.xlane.xlu0 %6177
  %v6179 = vadd.f32 %v5492, %v5493
  %6180 = vadd.xlane.f32.xlu0 %v6179
  %v6181 = vpop.xlane.xlu0 %6180
  %v6182 = vadd.f32 %v5494, %v5495
  %6183 = vadd.xlane.f32.xlu0 %v6182
  %v6184 = vpop.xlane.xlu0 %6183
  %v6185 = vadd.f32 %v5496, %v5497
  %6186 = vadd.xlane.f32.xlu0 %v6185
  %v6187 = vpop.xlane.xlu0 %6186
  %v6188 = vadd.f32 %v5498, %v5499
  %6189 = vadd.xlane.f32.xlu0 %v6188
  %v6190 = vpop.xlane.xlu0 %6189
  %v6191 = vadd.f32 %v5500, %v5501
  %6192 = vadd.xlane.f32.xlu0 %v6191
  %v6193 = vpop.xlane.xlu0 %6192
  %v6194 = vadd.f32 %v5502, %v5503
  %6195 = vadd.xlane.f32.xlu0 %v6194
  %v6196 = vpop.xlane.xlu0 %6195
  %v6197 = vadd.f32 %v5504, %v5505
  %6198 = vadd.xlane.f32.xlu0 %v6197
  %v6199 = vpop.xlane.xlu0 %6198
  %v6200 = vadd.f32 %v5506, %v5507
  %6201 = vadd.xlane.f32.xlu0 %v6200
  %v6202 = vpop.xlane.xlu0 %6201
  %v6203 = vadd.f32 %v5508, %v5509
  %6204 = vadd.xlane.f32.xlu0 %v6203
  %v6205 = vpop.xlane.xlu0 %6204
  %v6206 = vadd.f32 %v5510, %v5511
  %6207 = vadd.xlane.f32.xlu0 %v6206
  %v6208 = vpop.xlane.xlu0 %6207
  %v6209 = vadd.f32 %v5512, %v5513
  %6210 = vadd.xlane.f32.xlu0 %v6209
  %v6211 = vpop.xlane.xlu0 %6210
  %v6212 = vadd.f32 %v5514, %v5515
  %6213 = vadd.xlane.f32.xlu0 %v6212
  %v6214 = vpop.xlane.xlu0 %6213
  %v6215 = vadd.f32 %v5516, %v5517
  %6216 = vadd.xlane.f32.xlu0 %v6215
  %v6217 = vpop.xlane.xlu0 %6216
  %v6218 = vadd.f32 %v5518, %v5519
  %6219 = vadd.xlane.f32.xlu0 %v6218
  %v6220 = vpop.xlane.xlu0 %6219
  %v6221 = vadd.f32 %v5520, %v5521
  %6222 = vadd.xlane.f32.xlu0 %v6221
  %v6223 = vpop.xlane.xlu0 %6222
  %v6224 = vadd.f32 %v5522, %v5523
  %6225 = vadd.xlane.f32.xlu0 %v6224
  %v6226 = vpop.xlane.xlu0 %6225
  %v6227 = vadd.f32 %v5524, %v5525
  %6228 = vadd.xlane.f32.xlu0 %v6227
  %v6229 = vpop.xlane.xlu0 %6228
  %v6230 = vadd.f32 %v5526, %v5527
  %6231 = vadd.xlane.f32.xlu0 %v6230
  %v6232 = vpop.xlane.xlu0 %6231
  %v6233 = vadd.f32 %v5528, %v5529
  %6234 = vadd.xlane.f32.xlu0 %v6233
  %v6235 = vpop.xlane.xlu0 %6234
  %v6236 = vadd.f32 %v5530, %v5531
  %6237 = vadd.xlane.f32.xlu0 %v6236
  %v6238 = vpop.xlane.xlu0 %6237
  %v6239 = vadd.f32 %v5532, %v5533
  %6240 = vadd.xlane.f32.xlu0 %v6239
  %v6241 = vpop.xlane.xlu0 %6240
  %v6242 = vadd.f32 %v5534, %v5535
  %6243 = vadd.xlane.f32.xlu0 %v6242
  %v6244 = vpop.xlane.xlu0 %6243
  %v6245 = vadd.f32 %v5536, %v5537
  %6246 = vadd.xlane.f32.xlu0 %v6245
  %v6247 = vpop.xlane.xlu0 %6246
  %v6248 = vadd.f32 %v5538, %v5539
  %6249 = vadd.xlane.f32.xlu0 %v6248
  %v6250 = vpop.xlane.xlu0 %6249
  %v6251 = vadd.f32 %v5540, %v5541
  %6252 = vadd.xlane.f32.xlu0 %v6251
  %v6253 = vpop.xlane.xlu0 %6252
  %v6254 = vadd.f32 %v5542, %v5543
  %6255 = vadd.xlane.f32.xlu0 %v6254
  %v6256 = vpop.xlane.xlu0 %6255
  %v6257 = vadd.f32 %v5544, %v5545
  %6258 = vadd.xlane.f32.xlu0 %v6257
  %v6259 = vpop.xlane.xlu0 %6258
  %v6260 = vadd.f32 %v5546, %v5547
  %6261 = vadd.xlane.f32.xlu0 %v6260
  %v6262 = vpop.xlane.xlu0 %6261
  %v6263 = vadd.f32 %v5548, %v5549
  %6264 = vadd.xlane.f32.xlu0 %v6263
  %v6265 = vpop.xlane.xlu0 %6264
  %v6266 = vadd.f32 %v5550, %v5551
  %6267 = vadd.xlane.f32.xlu0 %v6266
  %v6268 = vpop.xlane.xlu0 %6267
  %v6269 = vadd.f32 %v5552, %v5553
  %6270 = vadd.xlane.f32.xlu0 %v6269
  %v6271 = vpop.xlane.xlu0 %6270
  %v6272 = vadd.f32 %v5554, %v5555
  %6273 = vadd.xlane.f32.xlu0 %v6272
  %v6274 = vpop.xlane.xlu0 %6273
  %v6275 = vadd.f32 %v5556, %v5557
  %6276 = vadd.xlane.f32.xlu0 %v6275
  %v6277 = vpop.xlane.xlu0 %6276
  %v6278 = vadd.f32 %v5558, %v5559
  %6279 = vadd.xlane.f32.xlu0 %v6278
  %v6280 = vpop.xlane.xlu0 %6279
  %v6281 = vadd.f32 %v5560, %v5561
  %6282 = vadd.xlane.f32.xlu0 %v6281
  %v6283 = vpop.xlane.xlu0 %6282
  %v6284 = vadd.f32 %v5562, %v5563
  %6285 = vadd.xlane.f32.xlu0 %v6284
  %v6286 = vpop.xlane.xlu0 %6285
  %v6287 = vadd.f32 %v5564, %v5565
  %6288 = vadd.xlane.f32.xlu0 %v6287
  %v6289 = vpop.xlane.xlu0 %6288
  %v6290 = vadd.f32 %v5566, %v5567
  %6291 = vadd.xlane.f32.xlu0 %v6290
  %v6292 = vpop.xlane.xlu0 %6291
  %v6293 = vadd.f32 %v5568, %v5569
  %6294 = vadd.xlane.f32.xlu0 %v6293
  %v6295 = vpop.xlane.xlu0 %6294
  %v6296 = vadd.f32 %v5570, %v5571
  %6297 = vadd.xlane.f32.xlu0 %v6296
  %v6298 = vpop.xlane.xlu0 %6297
  %v6299 = vadd.f32 %v5572, %v5573
  %6300 = vadd.xlane.f32.xlu0 %v6299
  %v6301 = vpop.xlane.xlu0 %6300
  %v6302 = vadd.f32 %v5574, %v5575
  %6303 = vadd.xlane.f32.xlu0 %v6302
  %v6304 = vpop.xlane.xlu0 %6303
  %v6305 = vadd.f32 %v5576, %v5577
  %6306 = vadd.xlane.f32.xlu0 %v6305
  %v6307 = vpop.xlane.xlu0 %6306
  %v6308 = vadd.f32 %v5578, %v5579
  %6309 = vadd.xlane.f32.xlu0 %v6308
  %v6310 = vpop.xlane.xlu0 %6309
  %v6311 = vadd.f32 %v5580, %v5581
  %6312 = vadd.xlane.f32.xlu0 %v6311
  %v6313 = vpop.xlane.xlu0 %6312
  %v6314 = vadd.f32 %v5582, %v5583
  %6315 = vadd.xlane.f32.xlu0 %v6314
  %v6316 = vpop.xlane.xlu0 %6315
  %v6317 = vadd.f32 %v5584, %v5585
  %6318 = vadd.xlane.f32.xlu0 %v6317
  %v6319 = vpop.xlane.xlu0 %6318
  %v6320 = vadd.f32 %v5586, %v5587
  %6321 = vadd.xlane.f32.xlu0 %v6320
  %v6322 = vpop.xlane.xlu0 %6321
  %v6323 = vadd.f32 %v5588, %v5589
  %6324 = vadd.xlane.f32.xlu0 %v6323
  %v6325 = vpop.xlane.xlu0 %6324
  %v6326 = vadd.f32 %v5590, %v5591
  %6327 = vadd.xlane.f32.xlu0 %v6326
  %v6328 = vpop.xlane.xlu0 %6327
  %v6329 = vadd.f32 %v5592, %v5593
  %6330 = vadd.xlane.f32.xlu0 %v6329
  %v6331 = vpop.xlane.xlu0 %6330
  %v6332 = vadd.f32 %v5594, %v5595
  %6333 = vadd.xlane.f32.xlu0 %v6332
  %v6334 = vpop.xlane.xlu0 %6333
  %v6335 = vadd.f32 %v5596, %v5597
  %6336 = vadd.xlane.f32.xlu0 %v6335
  %v6337 = vpop.xlane.xlu0 %6336
  %v6338 = vadd.f32 %v5598, %v5599
  %6339 = vadd.xlane.f32.xlu0 %v6338
  %v6340 = vpop.xlane.xlu0 %6339
  %v6341 = vadd.f32 %v5600, %v5601
  %6342 = vadd.xlane.f32.xlu0 %v6341
  %v6343 = vpop.xlane.xlu0 %6342
  %v6344 = vadd.f32 %v5602, %v5603
  %6345 = vadd.xlane.f32.xlu0 %v6344
  %v6346 = vpop.xlane.xlu0 %6345
  %v6347 = vadd.f32 %v5604, %v5605
  %6348 = vadd.xlane.f32.xlu0 %v6347
  %v6349 = vpop.xlane.xlu0 %6348
  %v6350 = vadd.f32 %v5606, %v5607
  %6351 = vadd.xlane.f32.xlu0 %v6350
  %v6352 = vpop.xlane.xlu0 %6351
  %v6353 = vadd.f32 %v5608, %v5609
  %6354 = vadd.xlane.f32.xlu0 %v6353
  %v6355 = vpop.xlane.xlu0 %6354
  %v6356 = vadd.f32 %v5610, %v5611
  %6357 = vadd.xlane.f32.xlu0 %v6356
  %v6358 = vpop.xlane.xlu0 %6357
  %v6359 = vadd.f32 %v5612, %v5613
  %6360 = vadd.xlane.f32.xlu0 %v6359
  %v6361 = vpop.xlane.xlu0 %6360
  %v6362 = vadd.f32 %v5614, %v5615
  %6363 = vadd.xlane.f32.xlu0 %v6362
  %v6364 = vpop.xlane.xlu0 %6363
  %v6365 = vadd.f32 %v5616, %v5617
  %6366 = vadd.xlane.f32.xlu0 %v6365
  %v6367 = vpop.xlane.xlu0 %6366
  %v6368 = vadd.f32 %v5618, %v5619
  %6369 = vadd.xlane.f32.xlu0 %v6368
  %v6370 = vpop.xlane.xlu0 %6369
  %v6371 = vadd.f32 %v5620, %v5621
  %6372 = vadd.xlane.f32.xlu0 %v6371
  %v6373 = vpop.xlane.xlu0 %6372
  %v6374 = vadd.f32 %v5622, %v5623
  %6375 = vadd.xlane.f32.xlu0 %v6374
  %v6376 = vpop.xlane.xlu0 %6375
  %v6377 = vadd.f32 %v5624, %v5625
  %6378 = vadd.xlane.f32.xlu0 %v6377
  %v6379 = vpop.xlane.xlu0 %6378
  %v6380 = vadd.f32 %v5626, %v5627
  %6381 = vadd.xlane.f32.xlu0 %v6380
  %v6382 = vpop.xlane.xlu0 %6381
  %v6383 = vadd.f32 %v5628, %v5629
  %6384 = vadd.xlane.f32.xlu0 %v6383
  %v6385 = vpop.xlane.xlu0 %6384
  %v6386 = vadd.f32 %v5630, %v5631
  %6387 = vadd.xlane.f32.xlu0 %v6386
  %v6388 = vpop.xlane.xlu0 %6387
  %v6389 = vadd.f32 %v5632, %v5633
  %6390 = vadd.xlane.f32.xlu0 %v6389
  %v6391 = vpop.xlane.xlu0 %6390
  %v6392 = vadd.f32 %v5634, %v5635
  %6393 = vadd.xlane.f32.xlu0 %v6392
  %v6394 = vpop.xlane.xlu0 %6393
  %v6395 = vadd.f32 %v5636, %v5637
  %6396 = vadd.xlane.f32.xlu0 %v6395
  %v6397 = vpop.xlane.xlu0 %6396
  %v6398 = vadd.f32 %v5638, %v5639
  %6399 = vadd.xlane.f32.xlu0 %v6398
  %v6400 = vpop.xlane.xlu0 %6399
  %v6401 = vadd.f32 %v5640, %v5641
  %6402 = vadd.xlane.f32.xlu0 %v6401
  %v6403 = vpop.xlane.xlu0 %6402
  %v6404 = vadd.f32 %v5642, %v5643
  %6405 = vadd.xlane.f32.xlu0 %v6404
  %v6406 = vpop.xlane.xlu0 %6405
  %v6407 = vadd.f32 %v5644, %v5645
  %6408 = vadd.xlane.f32.xlu0 %v6407
  %v6409 = vpop.xlane.xlu0 %6408
  %v6410 = vadd.f32 %v5646, %v5647
  %6411 = vadd.xlane.f32.xlu0 %v6410
  %v6412 = vpop.xlane.xlu0 %6411
  %v6413 = vadd.f32 %v5648, %v5649
  %6414 = vadd.xlane.f32.xlu0 %v6413
  %v6415 = vpop.xlane.xlu0 %6414
  %v6416 = vadd.f32 %v5650, %v5651
  %6417 = vadd.xlane.f32.xlu0 %v6416
  %v6418 = vpop.xlane.xlu0 %6417
  %v6419 = vadd.f32 %v5652, %v5653
  %6420 = vadd.xlane.f32.xlu0 %v6419
  %v6421 = vpop.xlane.xlu0 %6420
  %v6422 = vlog2.pop %v3093
  %v6423 = vmul.f32 %v6422, 0.6931472
  %v6424 = vlog2.pop %v3096
  %v6425 = vmul.f32 %v6424, 0.6931472
  %v6426 = vlog2.pop %v3099
  %v6427 = vmul.f32 %v6426, 0.6931472
  %v6428 = vlog2.pop %v3102
  %v6429 = vmul.f32 %v6428, 0.6931472
  %v6430 = vlog2.pop %v3105
  %v6431 = vmul.f32 %v6430, 0.6931472
  %v6432 = vlog2.pop %v3108
  %v6433 = vmul.f32 %v6432, 0.6931472
  %v6434 = vlog2.pop %v3111
  %v6435 = vmul.f32 %v6434, 0.6931472
  %v6436 = vlog2.pop %v3114
  %v6437 = vmul.f32 %v6436, 0.6931472
  %v6438 = vlog2.pop %v3117
  %v6439 = vmul.f32 %v6438, 0.6931472
  %v6440 = vlog2.pop %v3120
  %v6441 = vmul.f32 %v6440, 0.6931472
  %v6442 = vlog2.pop %v3123
  %v6443 = vmul.f32 %v6442, 0.6931472
  %v6444 = vlog2.pop %v3126
  %v6445 = vmul.f32 %v6444, 0.6931472
  %v6446 = vlog2.pop %v3129
  %v6447 = vmul.f32 %v6446, 0.6931472
  %v6448 = vlog2.pop %v3132
  %v6449 = vmul.f32 %v6448, 0.6931472
  %v6450 = vlog2.pop %v3135
  %v6451 = vmul.f32 %v6450, 0.6931472
  %v6452 = vlog2.pop %v3138
  %v6453 = vmul.f32 %v6452, 0.6931472
  %v6454 = vlog2.pop %v3141
  %v6455 = vmul.f32 %v6454, 0.6931472
  %v6456 = vlog2.pop %v3144
  %v6457 = vmul.f32 %v6456, 0.6931472
  %v6458 = vlog2.pop %v3147
  %v6459 = vmul.f32 %v6458, 0.6931472
  %v6460 = vlog2.pop %v3150
  %v6461 = vmul.f32 %v6460, 0.6931472
  %v6462 = vlog2.pop %v3153
  %v6463 = vmul.f32 %v6462, 0.6931472
  %v6464 = vlog2.pop %v3156
  %v6465 = vmul.f32 %v6464, 0.6931472
  %v6466 = vlog2.pop %v3159
  %v6467 = vmul.f32 %v6466, 0.6931472
  %v6468 = vlog2.pop %v3162
  %v6469 = vmul.f32 %v6468, 0.6931472
  %v6470 = vlog2.pop %v3165
  %v6471 = vmul.f32 %v6470, 0.6931472
  %v6472 = vlog2.pop %v3168
  %v6473 = vmul.f32 %v6472, 0.6931472
  %v6474 = vlog2.pop %v3171
  %v6475 = vmul.f32 %v6474, 0.6931472
  %v6476 = vlog2.pop %v3174
  %v6477 = vmul.f32 %v6476, 0.6931472
  %v6478 = vlog2.pop %v3177
  %v6479 = vmul.f32 %v6478, 0.6931472
  %v6480 = vlog2.pop %v3180
  %v6481 = vmul.f32 %v6480, 0.6931472
  %v6482 = vlog2.pop %v3183
  %v6483 = vmul.f32 %v6482, 0.6931472
  %v6484 = vlog2.pop %v3186
  %v6485 = vmul.f32 %v6484, 0.6931472
  %v6486 = vlog2.pop %v3189
  %v6487 = vmul.f32 %v6486, 0.6931472
  %v6488 = vlog2.pop %v3192
  %v6489 = vmul.f32 %v6488, 0.6931472
  %v6490 = vlog2.pop %v3195
  %v6491 = vmul.f32 %v6490, 0.6931472
  %v6492 = vlog2.pop %v3198
  %v6493 = vmul.f32 %v6492, 0.6931472
  %v6494 = vlog2.pop %v3201
  %v6495 = vmul.f32 %v6494, 0.6931472
  %v6496 = vlog2.pop %v3204
  %v6497 = vmul.f32 %v6496, 0.6931472
  %v6498 = vlog2.pop %v3207
  %v6499 = vmul.f32 %v6498, 0.6931472
  %v6500 = vlog2.pop %v3210
  %v6501 = vmul.f32 %v6500, 0.6931472
  %v6502 = vlog2.pop %v3213
  %v6503 = vmul.f32 %v6502, 0.6931472
  %v6504 = vlog2.pop %v3216
  %v6505 = vmul.f32 %v6504, 0.6931472
  %v6506 = vlog2.pop %v3219
  %v6507 = vmul.f32 %v6506, 0.6931472
  %v6508 = vlog2.pop %v3222
  %v6509 = vmul.f32 %v6508, 0.6931472
  %v6510 = vlog2.pop %v3225
  %v6511 = vmul.f32 %v6510, 0.6931472
  %v6512 = vlog2.pop %v3228
  %v6513 = vmul.f32 %v6512, 0.6931472
  %v6514 = vlog2.pop %v3231
  %v6515 = vmul.f32 %v6514, 0.6931472
  %v6516 = vlog2.pop %v3234
  %v6517 = vmul.f32 %v6516, 0.6931472
  %v6518 = vlog2.pop %v3237
  %v6519 = vmul.f32 %v6518, 0.6931472
  %v6520 = vlog2.pop %v3240
  %v6521 = vmul.f32 %v6520, 0.6931472
  %v6522 = vlog2.pop %v3243
  %v6523 = vmul.f32 %v6522, 0.6931472
  %v6524 = vlog2.pop %v3246
  %v6525 = vmul.f32 %v6524, 0.6931472
  %v6526 = vlog2.pop %v3249
  %v6527 = vmul.f32 %v6526, 0.6931472
  %v6528 = vlog2.pop %v3252
  %v6529 = vmul.f32 %v6528, 0.6931472
  %v6530 = vlog2.pop %v3255
  %v6531 = vmul.f32 %v6530, 0.6931472
  %v6532 = vlog2.pop %v3258
  %v6533 = vmul.f32 %v6532, 0.6931472
  %v6534 = vlog2.pop %v3261
  %v6535 = vmul.f32 %v6534, 0.6931472
  %v6536 = vlog2.pop %v3264
  %v6537 = vmul.f32 %v6536, 0.6931472
  %v6538 = vlog2.pop %v3267
  %v6539 = vmul.f32 %v6538, 0.6931472
  %v6540 = vlog2.pop %v3270
  %v6541 = vmul.f32 %v6540, 0.6931472
  %v6542 = vlog2.pop %v3273
  %v6543 = vmul.f32 %v6542, 0.6931472
  %v6544 = vlog2.pop %v3276
  %v6545 = vmul.f32 %v6544, 0.6931472
  %v6546 = vlog2.pop %v3279
  %v6547 = vmul.f32 %v6546, 0.6931472
  %v6548 = vlog2.pop %v3282
  %v6549 = vmul.f32 %v6548, 0.6931472
  %v6550 = vlog2.pop %v3285
  %v6551 = vmul.f32 %v6550, 0.6931472
  %v6552 = vlog2.pop %v3288
  %v6553 = vmul.f32 %v6552, 0.6931472
  %v6554 = vlog2.pop %v3291
  %v6555 = vmul.f32 %v6554, 0.6931472
  %v6556 = vlog2.pop %v3294
  %v6557 = vmul.f32 %v6556, 0.6931472
  %v6558 = vlog2.pop %v3297
  %v6559 = vmul.f32 %v6558, 0.6931472
  %v6560 = vlog2.pop %v3300
  %v6561 = vmul.f32 %v6560, 0.6931472
  %v6562 = vlog2.pop %v3303
  %v6563 = vmul.f32 %v6562, 0.6931472
  %v6564 = vlog2.pop %v3306
  %v6565 = vmul.f32 %v6564, 0.6931472
  %v6566 = vlog2.pop %v3309
  %v6567 = vmul.f32 %v6566, 0.6931472
  %v6568 = vlog2.pop %v3312
  %v6569 = vmul.f32 %v6568, 0.6931472
  %v6570 = vlog2.pop %v3315
  %v6571 = vmul.f32 %v6570, 0.6931472
  %v6572 = vlog2.pop %v3318
  %v6573 = vmul.f32 %v6572, 0.6931472
  %v6574 = vlog2.pop %v3321
  %v6575 = vmul.f32 %v6574, 0.6931472
  %v6576 = vlog2.pop %v3324
  %v6577 = vmul.f32 %v6576, 0.6931472
  %v6578 = vlog2.pop %v3327
  %v6579 = vmul.f32 %v6578, 0.6931472
  %v6580 = vlog2.pop %v3330
  %v6581 = vmul.f32 %v6580, 0.6931472
  %v6582 = vlog2.pop %v3333
  %v6583 = vmul.f32 %v6582, 0.6931472
  %v6584 = vlog2.pop %v3336
  %v6585 = vmul.f32 %v6584, 0.6931472
  %v6586 = vlog2.pop %v3339
  %v6587 = vmul.f32 %v6586, 0.6931472
  %v6588 = vlog2.pop %v3342
  %v6589 = vmul.f32 %v6588, 0.6931472
  %v6590 = vlog2.pop %v3345
  %v6591 = vmul.f32 %v6590, 0.6931472
  %v6592 = vlog2.pop %v3348
  %v6593 = vmul.f32 %v6592, 0.6931472
  %v6594 = vlog2.pop %v3351
  %v6595 = vmul.f32 %v6594, 0.6931472
  %v6596 = vlog2.pop %v3354
  %v6597 = vmul.f32 %v6596, 0.6931472
  %v6598 = vlog2.pop %v3357
  %v6599 = vmul.f32 %v6598, 0.6931472
  %v6600 = vlog2.pop %v3360
  %v6601 = vmul.f32 %v6600, 0.6931472
  %v6602 = vlog2.pop %v3363
  %v6603 = vmul.f32 %v6602, 0.6931472
  %v6604 = vlog2.pop %v3366
  %v6605 = vmul.f32 %v6604, 0.6931472
  %v6606 = vlog2.pop %v3369
  %v6607 = vmul.f32 %v6606, 0.6931472
  %v6608 = vlog2.pop %v3372
  %v6609 = vmul.f32 %v6608, 0.6931472
  %v6610 = vlog2.pop %v3375
  %v6611 = vmul.f32 %v6610, 0.6931472
  %v6612 = vlog2.pop %v3378
  %v6613 = vmul.f32 %v6612, 0.6931472
  %v6614 = vlog2.pop %v3381
  %v6615 = vmul.f32 %v6614, 0.6931472
  %v6616 = vlog2.pop %v3384
  %v6617 = vmul.f32 %v6616, 0.6931472
  %v6618 = vlog2.pop %v3387
  %v6619 = vmul.f32 %v6618, 0.6931472
  %v6620 = vlog2.pop %v3390
  %v6621 = vmul.f32 %v6620, 0.6931472
  %v6622 = vlog2.pop %v3393
  %v6623 = vmul.f32 %v6622, 0.6931472
  %v6624 = vlog2.pop %v3396
  %v6625 = vmul.f32 %v6624, 0.6931472
  %v6626 = vlog2.pop %v3399
  %v6627 = vmul.f32 %v6626, 0.6931472
  %v6628 = vlog2.pop %v3402
  %v6629 = vmul.f32 %v6628, 0.6931472
  %v6630 = vlog2.pop %v3405
  %v6631 = vmul.f32 %v6630, 0.6931472
  %v6632 = vlog2.pop %v3408
  %v6633 = vmul.f32 %v6632, 0.6931472
  %v6634 = vlog2.pop %v3411
  %v6635 = vmul.f32 %v6634, 0.6931472
  %v6636 = vlog2.pop %v3414
  %v6637 = vmul.f32 %v6636, 0.6931472
  %v6638 = vlog2.pop %v3417
  %v6639 = vmul.f32 %v6638, 0.6931472
  %v6640 = vlog2.pop %v3420
  %v6641 = vmul.f32 %v6640, 0.6931472
  %v6642 = vlog2.pop %v3423
  %v6643 = vmul.f32 %v6642, 0.6931472
  %v6644 = vlog2.pop %v3426
  %v6645 = vmul.f32 %v6644, 0.6931472
  %v6646 = vlog2.pop %v3429
  %v6647 = vmul.f32 %v6646, 0.6931472
  %v6648 = vlog2.pop %v3432
  %v6649 = vmul.f32 %v6648, 0.6931472
  %v6650 = vlog2.pop %v3435
  %v6651 = vmul.f32 %v6650, 0.6931472
  %v6652 = vlog2.pop %v3438
  %v6653 = vmul.f32 %v6652, 0.6931472
  %v6654 = vlog2.pop %v3441
  %v6655 = vmul.f32 %v6654, 0.6931472
  %v6656 = vlog2.pop %v3444
  %v6657 = vmul.f32 %v6656, 0.6931472
  %v6658 = vlog2.pop %v3447
  %v6659 = vmul.f32 %v6658, 0.6931472
  %v6660 = vlog2.pop %v3450
  %v6661 = vmul.f32 %v6660, 0.6931472
  %v6662 = vlog2.pop %v3453
  %v6663 = vmul.f32 %v6662, 0.6931472
  %v6664 = vlog2.pop %v3456
  %v6665 = vmul.f32 %v6664, 0.6931472
  %v6666 = vlog2.pop %v3459
  %v6667 = vmul.f32 %v6666, 0.6931472
  %v6668 = vlog2.pop %v3462
  %v6669 = vmul.f32 %v6668, 0.6931472
  %v6670 = vlog2.pop %v3465
  %v6671 = vmul.f32 %v6670, 0.6931472
  %v6672 = vlog2.pop %v3468
  %v6673 = vmul.f32 %v6672, 0.6931472
  %v6674 = vlog2.pop %v3471
  %v6675 = vmul.f32 %v6674, 0.6931472
  %v6676 = vlog2.pop %v3474
  %v6677 = vmul.f32 %v6676, 0.6931472
  %v6678 = vlog2.pop %v3477
  %v6679 = vmul.f32 %v6678, 0.6931472
  %v6680 = vlog2.pop %v3480
  %v6681 = vmul.f32 %v6680, 0.6931472
  %v6682 = vlog2.pop %v3483
  %v6683 = vmul.f32 %v6682, 0.6931472
  %v6684 = vlog2.pop %v3486
  %v6685 = vmul.f32 %v6684, 0.6931472
  %v6686 = vlog2.pop %v3489
  %v6687 = vmul.f32 %v6686, 0.6931472
  %v6688 = vlog2.pop %v3492
  %v6689 = vmul.f32 %v6688, 0.6931472
  %v6690 = vlog2.pop %v3495
  %v6691 = vmul.f32 %v6690, 0.6931472
  %v6692 = vlog2.pop %v3498
  %v6693 = vmul.f32 %v6692, 0.6931472
  %v6694 = vlog2.pop %v3501
  %v6695 = vmul.f32 %v6694, 0.6931472
  %v6696 = vlog2.pop %v3504
  %v6697 = vmul.f32 %v6696, 0.6931472
  %v6698 = vlog2.pop %v3507
  %v6699 = vmul.f32 %v6698, 0.6931472
  %v6700 = vlog2.pop %v3510
  %v6701 = vmul.f32 %v6700, 0.6931472
  %v6702 = vlog2.pop %v3513
  %v6703 = vmul.f32 %v6702, 0.6931472
  %v6704 = vlog2.pop %v3516
  %v6705 = vmul.f32 %v6704, 0.6931472
  %v6706 = vlog2.pop %v3519
  %v6707 = vmul.f32 %v6706, 0.6931472
  %v6708 = vlog2.pop %v3522
  %v6709 = vmul.f32 %v6708, 0.6931472
  %v6710 = vlog2.pop %v3525
  %v6711 = vmul.f32 %v6710, 0.6931472
  %v6712 = vlog2.pop %v3528
  %v6713 = vmul.f32 %v6712, 0.6931472
  %v6714 = vlog2.pop %v3531
  %v6715 = vmul.f32 %v6714, 0.6931472
  %v6716 = vlog2.pop %v3534
  %v6717 = vmul.f32 %v6716, 0.6931472
  %v6718 = vlog2.pop %v3537
  %v6719 = vmul.f32 %v6718, 0.6931472
  %v6720 = vlog2.pop %v3540
  %v6721 = vmul.f32 %v6720, 0.6931472
  %v6722 = vlog2.pop %v3543
  %v6723 = vmul.f32 %v6722, 0.6931472
  %v6724 = vlog2.pop %v3546
  %v6725 = vmul.f32 %v6724, 0.6931472
  %v6726 = vlog2.pop %v3549
  %v6727 = vmul.f32 %v6726, 0.6931472
  %v6728 = vlog2.pop %v3552
  %v6729 = vmul.f32 %v6728, 0.6931472
  %v6730 = vlog2.pop %v3555
  %v6731 = vmul.f32 %v6730, 0.6931472
  %v6732 = vlog2.pop %v3558
  %v6733 = vmul.f32 %v6732, 0.6931472
  %v6734 = vlog2.pop %v3561
  %v6735 = vmul.f32 %v6734, 0.6931472
  %v6736 = vlog2.pop %v3564
  %v6737 = vmul.f32 %v6736, 0.6931472
  %v6738 = vlog2.pop %v3567
  %v6739 = vmul.f32 %v6738, 0.6931472
  %v6740 = vlog2.pop %v3570
  %v6741 = vmul.f32 %v6740, 0.6931472
  %v6742 = vlog2.pop %v3573
  %v6743 = vmul.f32 %v6742, 0.6931472
  %v6744 = vlog2.pop %v3576
  %v6745 = vmul.f32 %v6744, 0.6931472
  %v6746 = vlog2.pop %v3579
  %v6747 = vmul.f32 %v6746, 0.6931472
  %v6748 = vlog2.pop %v3582
  %v6749 = vmul.f32 %v6748, 0.6931472
  %v6750 = vlog2.pop %v3585
  %v6751 = vmul.f32 %v6750, 0.6931472
  %v6752 = vlog2.pop %v3588
  %v6753 = vmul.f32 %v6752, 0.6931472
  %v6754 = vlog2.pop %v3591
  %v6755 = vmul.f32 %v6754, 0.6931472
  %v6756 = vlog2.pop %v3594
  %v6757 = vmul.f32 %v6756, 0.6931472
  %v6758 = vlog2.pop %v3597
  %v6759 = vmul.f32 %v6758, 0.6931472
  %v6760 = vlog2.pop %v3600
  %v6761 = vmul.f32 %v6760, 0.6931472
  %v6762 = vlog2.pop %v3603
  %v6763 = vmul.f32 %v6762, 0.6931472
  %v6764 = vlog2.pop %v3606
  %v6765 = vmul.f32 %v6764, 0.6931472
  %v6766 = vlog2.pop %v3609
  %v6767 = vmul.f32 %v6766, 0.6931472
  %v6768 = vlog2.pop %v3612
  %v6769 = vmul.f32 %v6768, 0.6931472
  %v6770 = vlog2.pop %v3615
  %v6771 = vmul.f32 %v6770, 0.6931472
  %v6772 = vlog2.pop %v3618
  %v6773 = vmul.f32 %v6772, 0.6931472
  %v6774 = vlog2.pop %v3621
  %v6775 = vmul.f32 %v6774, 0.6931472
  %v6776 = vlog2.pop %v3624
  %v6777 = vmul.f32 %v6776, 0.6931472
  %v6778 = vlog2.pop %v3627
  %v6779 = vmul.f32 %v6778, 0.6931472
  %v6780 = vlog2.pop %v3630
  %v6781 = vmul.f32 %v6780, 0.6931472
  %v6782 = vlog2.pop %v3633
  %v6783 = vmul.f32 %v6782, 0.6931472
  %v6784 = vlog2.pop %v3636
  %v6785 = vmul.f32 %v6784, 0.6931472
  %v6786 = vlog2.pop %v3639
  %v6787 = vmul.f32 %v6786, 0.6931472
  %v6788 = vlog2.pop %v3642
  %v6789 = vmul.f32 %v6788, 0.6931472
  %v6790 = vlog2.pop %v3645
  %v6791 = vmul.f32 %v6790, 0.6931472
  %v6792 = vlog2.pop %v3648
  %v6793 = vmul.f32 %v6792, 0.6931472
  %v6794 = vlog2.pop %v3651
  %v6795 = vmul.f32 %v6794, 0.6931472
  %v6796 = vlog2.pop %v3654
  %v6797 = vmul.f32 %v6796, 0.6931472
  %v6798 = vlog2.pop %v3657
  %v6799 = vmul.f32 %v6798, 0.6931472
  %v6800 = vlog2.pop %v3660
  %v6801 = vmul.f32 %v6800, 0.6931472
  %v6802 = vlog2.pop %v3663
  %v6803 = vmul.f32 %v6802, 0.6931472
  %v6804 = vlog2.pop %v3666
  %v6805 = vmul.f32 %v6804, 0.6931472
  %v6806 = vlog2.pop %v3669
  %v6807 = vmul.f32 %v6806, 0.6931472
  %v6808 = vlog2.pop %v3672
  %v6809 = vmul.f32 %v6808, 0.6931472
  %v6810 = vlog2.pop %v3675
  %v6811 = vmul.f32 %v6810, 0.6931472
  %v6812 = vlog2.pop %v3678
  %v6813 = vmul.f32 %v6812, 0.6931472
  %v6814 = vlog2.pop %v3681
  %v6815 = vmul.f32 %v6814, 0.6931472
  %v6816 = vlog2.pop %v3684
  %v6817 = vmul.f32 %v6816, 0.6931472
  %v6818 = vlog2.pop %v3687
  %v6819 = vmul.f32 %v6818, 0.6931472
  %v6820 = vlog2.pop %v3690
  %v6821 = vmul.f32 %v6820, 0.6931472
  %v6822 = vlog2.pop %v3693
  %v6823 = vmul.f32 %v6822, 0.6931472
  %v6824 = vlog2.pop %v3696
  %v6825 = vmul.f32 %v6824, 0.6931472
  %v6826 = vlog2.pop %v3699
  %v6827 = vmul.f32 %v6826, 0.6931472
  %v6828 = vlog2.pop %v3702
  %v6829 = vmul.f32 %v6828, 0.6931472
  %v6830 = vlog2.pop %v3705
  %v6831 = vmul.f32 %v6830, 0.6931472
  %v6832 = vlog2.pop %v3708
  %v6833 = vmul.f32 %v6832, 0.6931472
  %v6834 = vlog2.pop %v3711
  %v6835 = vmul.f32 %v6834, 0.6931472
  %v6836 = vlog2.pop %v3714
  %v6837 = vmul.f32 %v6836, 0.6931472
  %v6838 = vlog2.pop %v3717
  %v6839 = vmul.f32 %v6838, 0.6931472
  %v6840 = vlog2.pop %v3720
  %v6841 = vmul.f32 %v6840, 0.6931472
  %v6842 = vlog2.pop %v3723
  %v6843 = vmul.f32 %v6842, 0.6931472
  %v6844 = vlog2.pop %v3726
  %v6845 = vmul.f32 %v6844, 0.6931472
  %v6846 = vlog2.pop %v3729
  %v6847 = vmul.f32 %v6846, 0.6931472
  %v6848 = vlog2.pop %v3732
  %v6849 = vmul.f32 %v6848, 0.6931472
  %v6850 = vlog2.pop %v3735
  %v6851 = vmul.f32 %v6850, 0.6931472
  %v6852 = vlog2.pop %v3738
  %v6853 = vmul.f32 %v6852, 0.6931472
  %v6854 = vlog2.pop %v3741
  %v6855 = vmul.f32 %v6854, 0.6931472
  %v6856 = vlog2.pop %v3744
  %v6857 = vmul.f32 %v6856, 0.6931472
  %v6858 = vlog2.pop %v3747
  %v6859 = vmul.f32 %v6858, 0.6931472
  %v6860 = vlog2.pop %v3750
  %v6861 = vmul.f32 %v6860, 0.6931472
  %v6862 = vlog2.pop %v3753
  %v6863 = vmul.f32 %v6862, 0.6931472
  %v6864 = vlog2.pop %v3756
  %v6865 = vmul.f32 %v6864, 0.6931472
  %v6866 = vlog2.pop %v3759
  %v6867 = vmul.f32 %v6866, 0.6931472
  %v6868 = vlog2.pop %v3762
  %v6869 = vmul.f32 %v6868, 0.6931472
  %v6870 = vlog2.pop %v3765
  %v6871 = vmul.f32 %v6870, 0.6931472
  %v6872 = vlog2.pop %v3768
  %v6873 = vmul.f32 %v6872, 0.6931472
  %v6874 = vlog2.pop %v3771
  %v6875 = vmul.f32 %v6874, 0.6931472
  %v6876 = vlog2.pop %v3774
  %v6877 = vmul.f32 %v6876, 0.6931472
  %v6878 = vlog2.pop %v3777
  %v6879 = vmul.f32 %v6878, 0.6931472
  %v6880 = vlog2.pop %v3780
  %v6881 = vmul.f32 %v6880, 0.6931472
  %v6882 = vlog2.pop %v3783
  %v6883 = vmul.f32 %v6882, 0.6931472
  %v6884 = vlog2.pop %v3786
  %v6885 = vmul.f32 %v6884, 0.6931472
  %v6886 = vlog2.pop %v3789
  %v6887 = vmul.f32 %v6886, 0.6931472
  %v6888 = vlog2.pop %v3792
  %v6889 = vmul.f32 %v6888, 0.6931472
  %v6890 = vlog2.pop %v3795
  %v6891 = vmul.f32 %v6890, 0.6931472
  %v6892 = vlog2.pop %v3798
  %v6893 = vmul.f32 %v6892, 0.6931472
  %v6894 = vlog2.pop %v3801
  %v6895 = vmul.f32 %v6894, 0.6931472
  %v6896 = vlog2.pop %v3804
  %v6897 = vmul.f32 %v6896, 0.6931472
  %v6898 = vlog2.pop %v3807
  %v6899 = vmul.f32 %v6898, 0.6931472
  %v6900 = vlog2.pop %v3810
  %v6901 = vmul.f32 %v6900, 0.6931472
  %v6902 = vlog2.pop %v3813
  %v6903 = vmul.f32 %v6902, 0.6931472
  %v6904 = vlog2.pop %v3816
  %v6905 = vmul.f32 %v6904, 0.6931472
  %v6906 = vlog2.pop %v3819
  %v6907 = vmul.f32 %v6906, 0.6931472
  %v6908 = vlog2.pop %v3822
  %v6909 = vmul.f32 %v6908, 0.6931472
  %v6910 = vlog2.pop %v3825
  %v6911 = vmul.f32 %v6910, 0.6931472
  %v6912 = vlog2.pop %v3828
  %v6913 = vmul.f32 %v6912, 0.6931472
  %v6914 = vlog2.pop %v3831
  %v6915 = vmul.f32 %v6914, 0.6931472
  %v6916 = vlog2.pop %v3834
  %v6917 = vmul.f32 %v6916, 0.6931472
  %v6918 = vlog2.pop %v3837
  %v6919 = vmul.f32 %v6918, 0.6931472
  %v6920 = vlog2.pop %v3840
  %v6921 = vmul.f32 %v6920, 0.6931472
  %v6922 = vlog2.pop %v3843
  %v6923 = vmul.f32 %v6922, 0.6931472
  %v6924 = vlog2.pop %v3846
  %v6925 = vmul.f32 %v6924, 0.6931472
  %v6926 = vlog2.pop %v3849
  %v6927 = vmul.f32 %v6926, 0.6931472
  %v6928 = vlog2.pop %v3852
  %v6929 = vmul.f32 %v6928, 0.6931472
  %v6930 = vlog2.pop %v3855
  %v6931 = vmul.f32 %v6930, 0.6931472
  %v6932 = vlog2.pop %v3858
  %v6933 = vmul.f32 %v6932, 0.6931472
  %v6934 = vsub.f32 %v6423, %v5656
  %v6935 = vsub.f32 %v6425, %v5659
  %v6936 = vsub.f32 %v6427, %v5662
  %v6937 = vsub.f32 %v6429, %v5665
  %v6938 = vsub.f32 %v6431, %v5668
  %v6939 = vsub.f32 %v6433, %v5671
  %v6940 = vsub.f32 %v6435, %v5674
  %v6941 = vsub.f32 %v6437, %v5677
  %v6942 = vsub.f32 %v6439, %v5680
  %v6943 = vsub.f32 %v6441, %v5683
  %v6944 = vsub.f32 %v6443, %v5686
  %v6945 = vsub.f32 %v6445, %v5689
  %v6946 = vsub.f32 %v6447, %v5692
  %v6947 = vsub.f32 %v6449, %v5695
  %v6948 = vsub.f32 %v6451, %v5698
  %v6949 = vsub.f32 %v6453, %v5701
  %v6950 = vsub.f32 %v6455, %v5704
  %v6951 = vsub.f32 %v6457, %v5707
  %v6952 = vsub.f32 %v6459, %v5710
  %v6953 = vsub.f32 %v6461, %v5713
  %v6954 = vsub.f32 %v6463, %v5716
  %v6955 = vsub.f32 %v6465, %v5719
  %v6956 = vsub.f32 %v6467, %v5722
  %v6957 = vsub.f32 %v6469, %v5725
  %v6958 = vsub.f32 %v6471, %v5728
  %v6959 = vsub.f32 %v6473, %v5731
  %v6960 = vsub.f32 %v6475, %v5734
  %v6961 = vsub.f32 %v6477, %v5737
  %v6962 = vsub.f32 %v6479, %v5740
  %v6963 = vsub.f32 %v6481, %v5743
  %v6964 = vsub.f32 %v6483, %v5746
  %v6965 = vsub.f32 %v6485, %v5749
  %v6966 = vsub.f32 %v6487, %v5752
  %v6967 = vsub.f32 %v6489, %v5755
  %v6968 = vsub.f32 %v6491, %v5758
  %v6969 = vsub.f32 %v6493, %v5761
  %v6970 = vsub.f32 %v6495, %v5764
  %v6971 = vsub.f32 %v6497, %v5767
  %v6972 = vsub.f32 %v6499, %v5770
  %v6973 = vsub.f32 %v6501, %v5773
  %v6974 = vsub.f32 %v6503, %v5776
  %v6975 = vsub.f32 %v6505, %v5779
  %v6976 = vsub.f32 %v6507, %v5782
  %v6977 = vsub.f32 %v6509, %v5785
  %v6978 = vsub.f32 %v6511, %v5788
  %v6979 = vsub.f32 %v6513, %v5791
  %v6980 = vsub.f32 %v6515, %v5794
  %v6981 = vsub.f32 %v6517, %v5797
  %v6982 = vsub.f32 %v6519, %v5800
  %v6983 = vsub.f32 %v6521, %v5803
  %v6984 = vsub.f32 %v6523, %v5806
  %v6985 = vsub.f32 %v6525, %v5809
  %v6986 = vsub.f32 %v6527, %v5812
  %v6987 = vsub.f32 %v6529, %v5815
  %v6988 = vsub.f32 %v6531, %v5818
  %v6989 = vsub.f32 %v6533, %v5821
  %v6990 = vsub.f32 %v6535, %v5824
  %v6991 = vsub.f32 %v6537, %v5827
  %v6992 = vsub.f32 %v6539, %v5830
  %v6993 = vsub.f32 %v6541, %v5833
  %v6994 = vsub.f32 %v6543, %v5836
  %v6995 = vsub.f32 %v6545, %v5839
  %v6996 = vsub.f32 %v6547, %v5842
  %v6997 = vsub.f32 %v6549, %v5845
  %v6998 = vsub.f32 %v6551, %v5848
  %v6999 = vsub.f32 %v6553, %v5851
  %v7000 = vsub.f32 %v6555, %v5854
  %v7001 = vsub.f32 %v6557, %v5857
  %v7002 = vsub.f32 %v6559, %v5860
  %v7003 = vsub.f32 %v6561, %v5863
  %v7004 = vsub.f32 %v6563, %v5866
  %v7005 = vsub.f32 %v6565, %v5869
  %v7006 = vsub.f32 %v6567, %v5872
  %v7007 = vsub.f32 %v6569, %v5875
  %v7008 = vsub.f32 %v6571, %v5878
  %v7009 = vsub.f32 %v6573, %v5881
  %v7010 = vsub.f32 %v6575, %v5884
  %v7011 = vsub.f32 %v6577, %v5887
  %v7012 = vsub.f32 %v6579, %v5890
  %v7013 = vsub.f32 %v6581, %v5893
  %v7014 = vsub.f32 %v6583, %v5896
  %v7015 = vsub.f32 %v6585, %v5899
  %v7016 = vsub.f32 %v6587, %v5902
  %v7017 = vsub.f32 %v6589, %v5905
  %v7018 = vsub.f32 %v6591, %v5908
  %v7019 = vsub.f32 %v6593, %v5911
  %v7020 = vsub.f32 %v6595, %v5914
  %v7021 = vsub.f32 %v6597, %v5917
  %v7022 = vsub.f32 %v6599, %v5920
  %v7023 = vsub.f32 %v6601, %v5923
  %v7024 = vsub.f32 %v6603, %v5926
  %v7025 = vsub.f32 %v6605, %v5929
  %v7026 = vsub.f32 %v6607, %v5932
  %v7027 = vsub.f32 %v6609, %v5935
  %v7028 = vsub.f32 %v6611, %v5938
  %v7029 = vsub.f32 %v6613, %v5941
  %v7030 = vsub.f32 %v6615, %v5944
  %v7031 = vsub.f32 %v6617, %v5947
  %v7032 = vsub.f32 %v6619, %v5950
  %v7033 = vsub.f32 %v6621, %v5953
  %v7034 = vsub.f32 %v6623, %v5956
  %v7035 = vsub.f32 %v6625, %v5959
  %v7036 = vsub.f32 %v6627, %v5962
  %v7037 = vsub.f32 %v6629, %v5965
  %v7038 = vsub.f32 %v6631, %v5968
  %v7039 = vsub.f32 %v6633, %v5971
  %v7040 = vsub.f32 %v6635, %v5974
  %v7041 = vsub.f32 %v6637, %v5977
  %v7042 = vsub.f32 %v6639, %v5980
  %v7043 = vsub.f32 %v6641, %v5983
  %v7044 = vsub.f32 %v6643, %v5986
  %v7045 = vsub.f32 %v6645, %v5989
  %v7046 = vsub.f32 %v6647, %v5992
  %v7047 = vsub.f32 %v6649, %v5995
  %v7048 = vsub.f32 %v6651, %v5998
  %v7049 = vsub.f32 %v6653, %v6001
  %v7050 = vsub.f32 %v6655, %v6004
  %v7051 = vsub.f32 %v6657, %v6007
  %v7052 = vsub.f32 %v6659, %v6010
  %v7053 = vsub.f32 %v6661, %v6013
  %v7054 = vsub.f32 %v6663, %v6016
  %v7055 = vsub.f32 %v6665, %v6019
  %v7056 = vsub.f32 %v6667, %v6022
  %v7057 = vsub.f32 %v6669, %v6025
  %v7058 = vsub.f32 %v6671, %v6028
  %v7059 = vsub.f32 %v6673, %v6031
  %v7060 = vsub.f32 %v6675, %v6034
  %v7061 = vsub.f32 %v6677, %v6037
  %v7062 = vsub.f32 %v6679, %v6040
  %v7063 = vsub.f32 %v6681, %v6043
  %v7064 = vsub.f32 %v6683, %v6046
  %v7065 = vsub.f32 %v6685, %v6049
  %v7066 = vsub.f32 %v6687, %v6052
  %v7067 = vsub.f32 %v6689, %v6055
  %v7068 = vsub.f32 %v6691, %v6058
  %v7069 = vsub.f32 %v6693, %v6061
  %v7070 = vsub.f32 %v6695, %v6064
  %v7071 = vsub.f32 %v6697, %v6067
  %v7072 = vsub.f32 %v6699, %v6070
  %v7073 = vsub.f32 %v6701, %v6073
  %v7074 = vsub.f32 %v6703, %v6076
  %v7075 = vsub.f32 %v6705, %v6079
  %v7076 = vsub.f32 %v6707, %v6082
  %v7077 = vsub.f32 %v6709, %v6085
  %v7078 = vsub.f32 %v6711, %v6088
  %v7079 = vsub.f32 %v6713, %v6091
  %v7080 = vsub.f32 %v6715, %v6094
  %v7081 = vsub.f32 %v6717, %v6097
  %v7082 = vsub.f32 %v6719, %v6100
  %v7083 = vsub.f32 %v6721, %v6103
  %v7084 = vsub.f32 %v6723, %v6106
  %v7085 = vsub.f32 %v6725, %v6109
  %v7086 = vsub.f32 %v6727, %v6112
  %v7087 = vsub.f32 %v6729, %v6115
  %v7088 = vsub.f32 %v6731, %v6118
  %v7089 = vsub.f32 %v6733, %v6121
  %v7090 = vsub.f32 %v6735, %v6124
  %v7091 = vsub.f32 %v6737, %v6127
  %v7092 = vsub.f32 %v6739, %v6130
  %v7093 = vsub.f32 %v6741, %v6133
  %v7094 = vsub.f32 %v6743, %v6136
  %v7095 = vsub.f32 %v6745, %v6139
  %v7096 = vsub.f32 %v6747, %v6142
  %v7097 = vsub.f32 %v6749, %v6145
  %v7098 = vsub.f32 %v6751, %v6148
  %v7099 = vsub.f32 %v6753, %v6151
  %v7100 = vsub.f32 %v6755, %v6154
  %v7101 = vsub.f32 %v6757, %v6157
  %v7102 = vsub.f32 %v6759, %v6160
  %v7103 = vsub.f32 %v6761, %v6163
  %v7104 = vsub.f32 %v6763, %v6166
  %v7105 = vsub.f32 %v6765, %v6169
  %v7106 = vsub.f32 %v6767, %v6172
  %v7107 = vsub.f32 %v6769, %v6175
  %v7108 = vsub.f32 %v6771, %v6178
  %v7109 = vsub.f32 %v6773, %v6181
  %v7110 = vsub.f32 %v6775, %v6184
  %v7111 = vsub.f32 %v6777, %v6187
  %v7112 = vsub.f32 %v6779, %v6190
  %v7113 = vsub.f32 %v6781, %v6193
  %v7114 = vsub.f32 %v6783, %v6196
  %v7115 = vsub.f32 %v6785, %v6199
  %v7116 = vsub.f32 %v6787, %v6202
  %v7117 = vsub.f32 %v6789, %v6205
  %v7118 = vsub.f32 %v6791, %v6208
  %v7119 = vsub.f32 %v6793, %v6211
  %v7120 = vsub.f32 %v6795, %v6214
  %v7121 = vsub.f32 %v6797, %v6217
  %v7122 = vsub.f32 %v6799, %v6220
  %v7123 = vsub.f32 %v6801, %v6223
  %v7124 = vsub.f32 %v6803, %v6226
  %v7125 = vsub.f32 %v6805, %v6229
  %v7126 = vsub.f32 %v6807, %v6232
  %v7127 = vsub.f32 %v6809, %v6235
  %v7128 = vsub.f32 %v6811, %v6238
  %v7129 = vsub.f32 %v6813, %v6241
  %v7130 = vsub.f32 %v6815, %v6244
  %v7131 = vsub.f32 %v6817, %v6247
  %v7132 = vsub.f32 %v6819, %v6250
  %v7133 = vsub.f32 %v6821, %v6253
  %v7134 = vsub.f32 %v6823, %v6256
  %v7135 = vsub.f32 %v6825, %v6259
  %v7136 = vsub.f32 %v6827, %v6262
  %v7137 = vsub.f32 %v6829, %v6265
  %v7138 = vsub.f32 %v6831, %v6268
  %v7139 = vsub.f32 %v6833, %v6271
  %v7140 = vsub.f32 %v6835, %v6274
  %v7141 = vsub.f32 %v6837, %v6277
  %v7142 = vsub.f32 %v6839, %v6280
  %v7143 = vsub.f32 %v6841, %v6283
  %v7144 = vsub.f32 %v6843, %v6286
  %v7145 = vsub.f32 %v6845, %v6289
  %v7146 = vsub.f32 %v6847, %v6292
  %v7147 = vsub.f32 %v6849, %v6295
  %v7148 = vsub.f32 %v6851, %v6298
  %v7149 = vsub.f32 %v6853, %v6301
  %v7150 = vsub.f32 %v6855, %v6304
  %v7151 = vsub.f32 %v6857, %v6307
  %v7152 = vsub.f32 %v6859, %v6310
  %v7153 = vsub.f32 %v6861, %v6313
  %v7154 = vsub.f32 %v6863, %v6316
  %v7155 = vsub.f32 %v6865, %v6319
  %v7156 = vsub.f32 %v6867, %v6322
  %v7157 = vsub.f32 %v6869, %v6325
  %v7158 = vsub.f32 %v6871, %v6328
  %v7159 = vsub.f32 %v6873, %v6331
  %v7160 = vsub.f32 %v6875, %v6334
  %v7161 = vsub.f32 %v6877, %v6337
  %v7162 = vsub.f32 %v6879, %v6340
  %v7163 = vsub.f32 %v6881, %v6343
  %v7164 = vsub.f32 %v6883, %v6346
  %v7165 = vsub.f32 %v6885, %v6349
  %v7166 = vsub.f32 %v6887, %v6352
  %v7167 = vsub.f32 %v6889, %v6355
  %v7168 = vsub.f32 %v6891, %v6358
  %v7169 = vsub.f32 %v6893, %v6361
  %v7170 = vsub.f32 %v6895, %v6364
  %v7171 = vsub.f32 %v6897, %v6367
  %v7172 = vsub.f32 %v6899, %v6370
  %v7173 = vsub.f32 %v6901, %v6373
  %v7174 = vsub.f32 %v6903, %v6376
  %v7175 = vsub.f32 %v6905, %v6379
  %v7176 = vsub.f32 %v6907, %v6382
  %v7177 = vsub.f32 %v6909, %v6385
  %v7178 = vsub.f32 %v6911, %v6388
  %v7179 = vsub.f32 %v6913, %v6391
  %v7180 = vsub.f32 %v6915, %v6394
  %v7181 = vsub.f32 %v6917, %v6397
  %v7182 = vsub.f32 %v6919, %v6400
  %v7183 = vsub.f32 %v6921, %v6403
  %v7184 = vsub.f32 %v6923, %v6406
  %v7185 = vsub.f32 %v6925, %v6409
  %v7186 = vsub.f32 %v6927, %v6412
  %v7187 = vsub.f32 %v6929, %v6415
  %v7188 = vsub.f32 %v6931, %v6418
  %v7189 = vsub.f32 %v6933, %v6421
  %v7190 = vld [vmem:[%s2] sm:$0xff]
  %v7191 = vld [vmem:[%s2 + $0x8] sm:$0xff]
  %v7192 = vld [vmem:[%s2 + $0x10] sm:$0xff]
  %v7193 = vld [vmem:[%s2 + $0x18] sm:$0xff]
  %v7194 = vld [vmem:[%s2 + $0x20] sm:$0xff]
  %v7195 = vld [vmem:[%s2 + $0x28] sm:$0xff]
  %v7196 = vld [vmem:[%s2 + $0x30] sm:$0xff]
  %v7197 = vld [vmem:[%s2 + $0x38] sm:$0xff]
  %v7198 = vld [vmem:[%s2 + $0x40] sm:$0xff]
  %v7199 = vld [vmem:[%s2 + $0x48] sm:$0xff]
  %v7200 = vld [vmem:[%s2 + $0x50] sm:$0xff]
  %v7201 = vld [vmem:[%s2 + $0x58] sm:$0xff]
  %v7202 = vld [vmem:[%s2 + $0x60] sm:$0xff]
  %v7203 = vld [vmem:[%s2 + $0x68] sm:$0xff]
  %v7204 = vld [vmem:[%s2 + $0x70] sm:$0xff]
  %v7205 = vld [vmem:[%s2 + $0x78] sm:$0xff]
  %v7206 = vld [vmem:[%s2 + $0x80] sm:$0xff]
  %v7207 = vld [vmem:[%s2 + $0x88] sm:$0xff]
  %v7208 = vld [vmem:[%s2 + $0x90] sm:$0xff]
  %v7209 = vld [vmem:[%s2 + $0x98] sm:$0xff]
  %v7210 = vld [vmem:[%s2 + $0xa0] sm:$0xff]
  %v7211 = vld [vmem:[%s2 + $0xa8] sm:$0xff]
  %v7212 = vld [vmem:[%s2 + $0xb0] sm:$0xff]
  %v7213 = vld [vmem:[%s2 + $0xb8] sm:$0xff]
  %v7214 = vld [vmem:[%s2 + $0xc0] sm:$0xff]
  %v7215 = vld [vmem:[%s2 + $0xc8] sm:$0xff]
  %v7216 = vld [vmem:[%s2 + $0xd0] sm:$0xff]
  %v7217 = vld [vmem:[%s2 + $0xd8] sm:$0xff]
  %v7218 = vld [vmem:[%s2 + $0xe0] sm:$0xff]
  %v7219 = vld [vmem:[%s2 + $0xe8] sm:$0xff]
  %v7220 = vld [vmem:[%s2 + $0xf0] sm:$0xff]
  %v7221 = vld [vmem:[%s2 + $0xf8] sm:$0xff]
  %v7222 = vld [vmem:[%s2 + $0x100] sm:$0xff]
  %v7223 = vld [vmem:[%s2 + $0x108] sm:$0xff]
  %v7224 = vld [vmem:[%s2 + $0x110] sm:$0xff]
  %v7225 = vld [vmem:[%s2 + $0x118] sm:$0xff]
  %v7226 = vld [vmem:[%s2 + $0x120] sm:$0xff]
  %v7227 = vld [vmem:[%s2 + $0x128] sm:$0xff]
  %v7228 = vld [vmem:[%s2 + $0x130] sm:$0xff]
  %v7229 = vld [vmem:[%s2 + $0x138] sm:$0xff]
  %v7230 = vld [vmem:[%s2 + $0x140] sm:$0xff]
  %v7231 = vld [vmem:[%s2 + $0x148] sm:$0xff]
  %v7232 = vld [vmem:[%s2 + $0x150] sm:$0xff]
  %v7233 = vld [vmem:[%s2 + $0x158] sm:$0xff]
  %v7234 = vld [vmem:[%s2 + $0x160] sm:$0xff]
  %v7235 = vld [vmem:[%s2 + $0x168] sm:$0xff]
  %v7236 = vld [vmem:[%s2 + $0x170] sm:$0xff]
  %v7237 = vld [vmem:[%s2 + $0x178] sm:$0xff]
  %v7238 = vld [vmem:[%s2 + $0x180] sm:$0xff]
  %v7239 = vld [vmem:[%s2 + $0x188] sm:$0xff]
  %v7240 = vld [vmem:[%s2 + $0x190] sm:$0xff]
  %v7241 = vld [vmem:[%s2 + $0x198] sm:$0xff]
  %v7242 = vld [vmem:[%s2 + $0x1a0] sm:$0xff]
  %v7243 = vld [vmem:[%s2 + $0x1a8] sm:$0xff]
  %v7244 = vld [vmem:[%s2 + $0x1b0] sm:$0xff]
  %v7245 = vld [vmem:[%s2 + $0x1b8] sm:$0xff]
  %v7246 = vld [vmem:[%s2 + $0x1c0] sm:$0xff]
  %v7247 = vld [vmem:[%s2 + $0x1c8] sm:$0xff]
  %v7248 = vld [vmem:[%s2 + $0x1d0] sm:$0xff]
  %v7249 = vld [vmem:[%s2 + $0x1d8] sm:$0xff]
  %v7250 = vld [vmem:[%s2 + $0x1e0] sm:$0xff]
  %v7251 = vld [vmem:[%s2 + $0x1e8] sm:$0xff]
  %v7252 = vld [vmem:[%s2 + $0x1f0] sm:$0xff]
  %v7253 = vld [vmem:[%s2 + $0x1f8] sm:$0xff]
  %v7254 = vld [vmem:[%s2 + $0x200] sm:$0xff]
  %v7255 = vld [vmem:[%s2 + $0x208] sm:$0xff]
  %v7256 = vld [vmem:[%s2 + $0x210] sm:$0xff]
  %v7257 = vld [vmem:[%s2 + $0x218] sm:$0xff]
  %v7258 = vld [vmem:[%s2 + $0x220] sm:$0xff]
  %v7259 = vld [vmem:[%s2 + $0x228] sm:$0xff]
  %v7260 = vld [vmem:[%s2 + $0x230] sm:$0xff]
  %v7261 = vld [vmem:[%s2 + $0x238] sm:$0xff]
  %v7262 = vld [vmem:[%s2 + $0x240] sm:$0xff]
  %v7263 = vld [vmem:[%s2 + $0x248] sm:$0xff]
  %v7264 = vld [vmem:[%s2 + $0x250] sm:$0xff]
  %v7265 = vld [vmem:[%s2 + $0x258] sm:$0xff]
  %v7266 = vld [vmem:[%s2 + $0x260] sm:$0xff]
  %v7267 = vld [vmem:[%s2 + $0x268] sm:$0xff]
  %v7268 = vld [vmem:[%s2 + $0x270] sm:$0xff]
  %v7269 = vld [vmem:[%s2 + $0x278] sm:$0xff]
  %v7270 = vld [vmem:[%s2 + $0x280] sm:$0xff]
  %v7271 = vld [vmem:[%s2 + $0x288] sm:$0xff]
  %v7272 = vld [vmem:[%s2 + $0x290] sm:$0xff]
  %v7273 = vld [vmem:[%s2 + $0x298] sm:$0xff]
  %v7274 = vld [vmem:[%s2 + $0x2a0] sm:$0xff]
  %v7275 = vld [vmem:[%s2 + $0x2a8] sm:$0xff]
  %v7276 = vld [vmem:[%s2 + $0x2b0] sm:$0xff]
  %v7277 = vld [vmem:[%s2 + $0x2b8] sm:$0xff]
  %v7278 = vld [vmem:[%s2 + $0x2c0] sm:$0xff]
  %v7279 = vld [vmem:[%s2 + $0x2c8] sm:$0xff]
  %v7280 = vld [vmem:[%s2 + $0x2d0] sm:$0xff]
  %v7281 = vld [vmem:[%s2 + $0x2d8] sm:$0xff]
  %v7282 = vld [vmem:[%s2 + $0x2e0] sm:$0xff]
  %v7283 = vld [vmem:[%s2 + $0x2e8] sm:$0xff]
  %v7284 = vld [vmem:[%s2 + $0x2f0] sm:$0xff]
  %v7285 = vld [vmem:[%s2 + $0x2f8] sm:$0xff]
  %v7286 = vld [vmem:[%s2 + $0x300] sm:$0xff]
  %v7287 = vld [vmem:[%s2 + $0x308] sm:$0xff]
  %v7288 = vld [vmem:[%s2 + $0x310] sm:$0xff]
  %v7289 = vld [vmem:[%s2 + $0x318] sm:$0xff]
  %v7290 = vld [vmem:[%s2 + $0x320] sm:$0xff]
  %v7291 = vld [vmem:[%s2 + $0x328] sm:$0xff]
  %v7292 = vld [vmem:[%s2 + $0x330] sm:$0xff]
  %v7293 = vld [vmem:[%s2 + $0x338] sm:$0xff]
  %v7294 = vld [vmem:[%s2 + $0x340] sm:$0xff]
  %v7295 = vld [vmem:[%s2 + $0x348] sm:$0xff]
  %v7296 = vld [vmem:[%s2 + $0x350] sm:$0xff]
  %v7297 = vld [vmem:[%s2 + $0x358] sm:$0xff]
  %v7298 = vld [vmem:[%s2 + $0x360] sm:$0xff]
  %v7299 = vld [vmem:[%s2 + $0x368] sm:$0xff]
  %v7300 = vld [vmem:[%s2 + $0x370] sm:$0xff]
  %v7301 = vld [vmem:[%s2 + $0x378] sm:$0xff]
  %v7302 = vld [vmem:[%s2 + $0x380] sm:$0xff]
  %v7303 = vld [vmem:[%s2 + $0x388] sm:$0xff]
  %v7304 = vld [vmem:[%s2 + $0x390] sm:$0xff]
  %v7305 = vld [vmem:[%s2 + $0x398] sm:$0xff]
  %v7306 = vld [vmem:[%s2 + $0x3a0] sm:$0xff]
  %v7307 = vld [vmem:[%s2 + $0x3a8] sm:$0xff]
  %v7308 = vld [vmem:[%s2 + $0x3b0] sm:$0xff]
  %v7309 = vld [vmem:[%s2 + $0x3b8] sm:$0xff]
  %v7310 = vld [vmem:[%s2 + $0x3c0] sm:$0xff]
  %v7311 = vld [vmem:[%s2 + $0x3c8] sm:$0xff]
  %v7312 = vld [vmem:[%s2 + $0x3d0] sm:$0xff]
  %v7313 = vld [vmem:[%s2 + $0x3d8] sm:$0xff]
  %v7314 = vld [vmem:[%s2 + $0x3e0] sm:$0xff]
  %v7315 = vld [vmem:[%s2 + $0x3e8] sm:$0xff]
  %v7316 = vld [vmem:[%s2 + $0x3f0] sm:$0xff]
  %v7317 = vld [vmem:[%s2 + $0x3f8] sm:$0xff]
  %v7318 = vld [vmem:[%s2 + $0x400] sm:$0xff]
  %v7319 = vld [vmem:[%s2 + $0x408] sm:$0xff]
  %v7320 = vld [vmem:[%s2 + $0x410] sm:$0xff]
  %v7321 = vld [vmem:[%s2 + $0x418] sm:$0xff]
  %v7322 = vld [vmem:[%s2 + $0x420] sm:$0xff]
  %v7323 = vld [vmem:[%s2 + $0x428] sm:$0xff]
  %v7324 = vld [vmem:[%s2 + $0x430] sm:$0xff]
  %v7325 = vld [vmem:[%s2 + $0x438] sm:$0xff]
  %v7326 = vld [vmem:[%s2 + $0x440] sm:$0xff]
  %v7327 = vld [vmem:[%s2 + $0x448] sm:$0xff]
  %v7328 = vld [vmem:[%s2 + $0x450] sm:$0xff]
  %v7329 = vld [vmem:[%s2 + $0x458] sm:$0xff]
  %v7330 = vld [vmem:[%s2 + $0x460] sm:$0xff]
  %v7331 = vld [vmem:[%s2 + $0x468] sm:$0xff]
  %v7332 = vld [vmem:[%s2 + $0x470] sm:$0xff]
  %v7333 = vld [vmem:[%s2 + $0x478] sm:$0xff]
  %v7334 = vld [vmem:[%s2 + $0x480] sm:$0xff]
  %v7335 = vld [vmem:[%s2 + $0x488] sm:$0xff]
  %v7336 = vld [vmem:[%s2 + $0x490] sm:$0xff]
  %v7337 = vld [vmem:[%s2 + $0x498] sm:$0xff]
  %v7338 = vld [vmem:[%s2 + $0x4a0] sm:$0xff]
  %v7339 = vld [vmem:[%s2 + $0x4a8] sm:$0xff]
  %v7340 = vld [vmem:[%s2 + $0x4b0] sm:$0xff]
  %v7341 = vld [vmem:[%s2 + $0x4b8] sm:$0xff]
  %v7342 = vld [vmem:[%s2 + $0x4c0] sm:$0xff]
  %v7343 = vld [vmem:[%s2 + $0x4c8] sm:$0xff]
  %v7344 = vld [vmem:[%s2 + $0x4d0] sm:$0xff]
  %v7345 = vld [vmem:[%s2 + $0x4d8] sm:$0xff]
  %v7346 = vld [vmem:[%s2 + $0x4e0] sm:$0xff]
  %v7347 = vld [vmem:[%s2 + $0x4e8] sm:$0xff]
  %v7348 = vld [vmem:[%s2 + $0x4f0] sm:$0xff]
  %v7349 = vld [vmem:[%s2 + $0x4f8] sm:$0xff]
  %v7350 = vld [vmem:[%s2 + $0x500] sm:$0xff]
  %v7351 = vld [vmem:[%s2 + $0x508] sm:$0xff]
  %v7352 = vld [vmem:[%s2 + $0x510] sm:$0xff]
  %v7353 = vld [vmem:[%s2 + $0x518] sm:$0xff]
  %v7354 = vld [vmem:[%s2 + $0x520] sm:$0xff]
  %v7355 = vld [vmem:[%s2 + $0x528] sm:$0xff]
  %v7356 = vld [vmem:[%s2 + $0x530] sm:$0xff]
  %v7357 = vld [vmem:[%s2 + $0x538] sm:$0xff]
  %v7358 = vld [vmem:[%s2 + $0x540] sm:$0xff]
  %v7359 = vld [vmem:[%s2 + $0x548] sm:$0xff]
  %v7360 = vld [vmem:[%s2 + $0x550] sm:$0xff]
  %v7361 = vld [vmem:[%s2 + $0x558] sm:$0xff]
  %v7362 = vld [vmem:[%s2 + $0x560] sm:$0xff]
  %v7363 = vld [vmem:[%s2 + $0x568] sm:$0xff]
  %v7364 = vld [vmem:[%s2 + $0x570] sm:$0xff]
  %v7365 = vld [vmem:[%s2 + $0x578] sm:$0xff]
  %v7366 = vld [vmem:[%s2 + $0x580] sm:$0xff]
  %v7367 = vld [vmem:[%s2 + $0x588] sm:$0xff]
  %v7368 = vld [vmem:[%s2 + $0x590] sm:$0xff]
  %v7369 = vld [vmem:[%s2 + $0x598] sm:$0xff]
  %v7370 = vld [vmem:[%s2 + $0x5a0] sm:$0xff]
  %v7371 = vld [vmem:[%s2 + $0x5a8] sm:$0xff]
  %v7372 = vld [vmem:[%s2 + $0x5b0] sm:$0xff]
  %v7373 = vld [vmem:[%s2 + $0x5b8] sm:$0xff]
  %v7374 = vld [vmem:[%s2 + $0x5c0] sm:$0xff]
  %v7375 = vld [vmem:[%s2 + $0x5c8] sm:$0xff]
  %v7376 = vld [vmem:[%s2 + $0x5d0] sm:$0xff]
  %v7377 = vld [vmem:[%s2 + $0x5d8] sm:$0xff]
  %v7378 = vld [vmem:[%s2 + $0x5e0] sm:$0xff]
  %v7379 = vld [vmem:[%s2 + $0x5e8] sm:$0xff]
  %v7380 = vld [vmem:[%s2 + $0x5f0] sm:$0xff]
  %v7381 = vld [vmem:[%s2 + $0x5f8] sm:$0xff]
  %v7382 = vld [vmem:[%s2 + $0x600] sm:$0xff]
  %v7383 = vld [vmem:[%s2 + $0x608] sm:$0xff]
  %v7384 = vld [vmem:[%s2 + $0x610] sm:$0xff]
  %v7385 = vld [vmem:[%s2 + $0x618] sm:$0xff]
  %v7386 = vld [vmem:[%s2 + $0x620] sm:$0xff]
  %v7387 = vld [vmem:[%s2 + $0x628] sm:$0xff]
  %v7388 = vld [vmem:[%s2 + $0x630] sm:$0xff]
  %v7389 = vld [vmem:[%s2 + $0x638] sm:$0xff]
  %v7390 = vld [vmem:[%s2 + $0x640] sm:$0xff]
  %v7391 = vld [vmem:[%s2 + $0x648] sm:$0xff]
  %v7392 = vld [vmem:[%s2 + $0x650] sm:$0xff]
  %v7393 = vld [vmem:[%s2 + $0x658] sm:$0xff]
  %v7394 = vld [vmem:[%s2 + $0x660] sm:$0xff]
  %v7395 = vld [vmem:[%s2 + $0x668] sm:$0xff]
  %v7396 = vld [vmem:[%s2 + $0x670] sm:$0xff]
  %v7397 = vld [vmem:[%s2 + $0x678] sm:$0xff]
  %v7398 = vld [vmem:[%s2 + $0x680] sm:$0xff]
  %v7399 = vld [vmem:[%s2 + $0x688] sm:$0xff]
  %v7400 = vld [vmem:[%s2 + $0x690] sm:$0xff]
  %v7401 = vld [vmem:[%s2 + $0x698] sm:$0xff]
  %v7402 = vld [vmem:[%s2 + $0x6a0] sm:$0xff]
  %v7403 = vld [vmem:[%s2 + $0x6a8] sm:$0xff]
  %v7404 = vld [vmem:[%s2 + $0x6b0] sm:$0xff]
  %v7405 = vld [vmem:[%s2 + $0x6b8] sm:$0xff]
  %v7406 = vld [vmem:[%s2 + $0x6c0] sm:$0xff]
  %v7407 = vld [vmem:[%s2 + $0x6c8] sm:$0xff]
  %v7408 = vld [vmem:[%s2 + $0x6d0] sm:$0xff]
  %v7409 = vld [vmem:[%s2 + $0x6d8] sm:$0xff]
  %v7410 = vld [vmem:[%s2 + $0x6e0] sm:$0xff]
  %v7411 = vld [vmem:[%s2 + $0x6e8] sm:$0xff]
  %v7412 = vld [vmem:[%s2 + $0x6f0] sm:$0xff]
  %v7413 = vld [vmem:[%s2 + $0x6f8] sm:$0xff]
  %v7414 = vld [vmem:[%s2 + $0x700] sm:$0xff]
  %v7415 = vld [vmem:[%s2 + $0x708] sm:$0xff]
  %v7416 = vld [vmem:[%s2 + $0x710] sm:$0xff]
  %v7417 = vld [vmem:[%s2 + $0x718] sm:$0xff]
  %v7418 = vld [vmem:[%s2 + $0x720] sm:$0xff]
  %v7419 = vld [vmem:[%s2 + $0x728] sm:$0xff]
  %v7420 = vld [vmem:[%s2 + $0x730] sm:$0xff]
  %v7421 = vld [vmem:[%s2 + $0x738] sm:$0xff]
  %v7422 = vld [vmem:[%s2 + $0x740] sm:$0xff]
  %v7423 = vld [vmem:[%s2 + $0x748] sm:$0xff]
  %v7424 = vld [vmem:[%s2 + $0x750] sm:$0xff]
  %v7425 = vld [vmem:[%s2 + $0x758] sm:$0xff]
  %v7426 = vld [vmem:[%s2 + $0x760] sm:$0xff]
  %v7427 = vld [vmem:[%s2 + $0x768] sm:$0xff]
  %v7428 = vld [vmem:[%s2 + $0x770] sm:$0xff]
  %v7429 = vld [vmem:[%s2 + $0x778] sm:$0xff]
  %v7430 = vld [vmem:[%s2 + $0x780] sm:$0xff]
  %v7431 = vld [vmem:[%s2 + $0x788] sm:$0xff]
  %v7432 = vld [vmem:[%s2 + $0x790] sm:$0xff]
  %v7433 = vld [vmem:[%s2 + $0x798] sm:$0xff]
  %v7434 = vld [vmem:[%s2 + $0x7a0] sm:$0xff]
  %v7435 = vld [vmem:[%s2 + $0x7a8] sm:$0xff]
  %v7436 = vld [vmem:[%s2 + $0x7b0] sm:$0xff]
  %v7437 = vld [vmem:[%s2 + $0x7b8] sm:$0xff]
  %v7438 = vld [vmem:[%s2 + $0x7c0] sm:$0xff]
  %v7439 = vld [vmem:[%s2 + $0x7c8] sm:$0xff]
  %v7440 = vld [vmem:[%s2 + $0x7d0] sm:$0xff]
  %v7441 = vld [vmem:[%s2 + $0x7d8] sm:$0xff]
  %v7442 = vld [vmem:[%s2 + $0x7e0] sm:$0xff]
  %v7443 = vld [vmem:[%s2 + $0x7e8] sm:$0xff]
  %v7444 = vld [vmem:[%s2 + $0x7f0] sm:$0xff]
  %v7445 = vld [vmem:[%s2 + $0x7f8] sm:$0xff]
  %v7446 = vmul.f32 %v6934, %v7190
  %v7447 = vmul.f32 %v6935, %v7191
  %v7448 = vmul.f32 %v6936, %v7192
  %v7449 = vmul.f32 %v6937, %v7193
  %v7450 = vmul.f32 %v6938, %v7194
  %v7451 = vmul.f32 %v6939, %v7195
  %v7452 = vmul.f32 %v6940, %v7196
  %v7453 = vmul.f32 %v6941, %v7197
  %v7454 = vmul.f32 %v6942, %v7198
  %v7455 = vmul.f32 %v6943, %v7199
  %v7456 = vmul.f32 %v6944, %v7200
  %v7457 = vmul.f32 %v6945, %v7201
  %v7458 = vmul.f32 %v6946, %v7202
  %v7459 = vmul.f32 %v6947, %v7203
  %v7460 = vmul.f32 %v6948, %v7204
  %v7461 = vmul.f32 %v6949, %v7205
  %v7462 = vmul.f32 %v6950, %v7206
  %v7463 = vmul.f32 %v6951, %v7207
  %v7464 = vmul.f32 %v6952, %v7208
  %v7465 = vmul.f32 %v6953, %v7209
  %v7466 = vmul.f32 %v6954, %v7210
  %v7467 = vmul.f32 %v6955, %v7211
  %v7468 = vmul.f32 %v6956, %v7212
  %v7469 = vmul.f32 %v6957, %v7213
  %v7470 = vmul.f32 %v6958, %v7214
  %v7471 = vmul.f32 %v6959, %v7215
  %v7472 = vmul.f32 %v6960, %v7216
  %v7473 = vmul.f32 %v6961, %v7217
  %v7474 = vmul.f32 %v6962, %v7218
  %v7475 = vmul.f32 %v6963, %v7219
  %v7476 = vmul.f32 %v6964, %v7220
  %v7477 = vmul.f32 %v6965, %v7221
  %v7478 = vmul.f32 %v6966, %v7222
  %v7479 = vmul.f32 %v6967, %v7223
  %v7480 = vmul.f32 %v6968, %v7224
  %v7481 = vmul.f32 %v6969, %v7225
  %v7482 = vmul.f32 %v6970, %v7226
  %v7483 = vmul.f32 %v6971, %v7227
  %v7484 = vmul.f32 %v6972, %v7228
  %v7485 = vmul.f32 %v6973, %v7229
  %v7486 = vmul.f32 %v6974, %v7230
  %v7487 = vmul.f32 %v6975, %v7231
  %v7488 = vmul.f32 %v6976, %v7232
  %v7489 = vmul.f32 %v6977, %v7233
  %v7490 = vmul.f32 %v6978, %v7234
  %v7491 = vmul.f32 %v6979, %v7235
  %v7492 = vmul.f32 %v6980, %v7236
  %v7493 = vmul.f32 %v6981, %v7237
  %v7494 = vmul.f32 %v6982, %v7238
  %v7495 = vmul.f32 %v6983, %v7239
  %v7496 = vmul.f32 %v6984, %v7240
  %v7497 = vmul.f32 %v6985, %v7241
  %v7498 = vmul.f32 %v6986, %v7242
  %v7499 = vmul.f32 %v6987, %v7243
  %v7500 = vmul.f32 %v6988, %v7244
  %v7501 = vmul.f32 %v6989, %v7245
  %v7502 = vmul.f32 %v6990, %v7246
  %v7503 = vmul.f32 %v6991, %v7247
  %v7504 = vmul.f32 %v6992, %v7248
  %v7505 = vmul.f32 %v6993, %v7249
  %v7506 = vmul.f32 %v6994, %v7250
  %v7507 = vmul.f32 %v6995, %v7251
  %v7508 = vmul.f32 %v6996, %v7252
  %v7509 = vmul.f32 %v6997, %v7253
  %v7510 = vmul.f32 %v6998, %v7254
  %v7511 = vmul.f32 %v6999, %v7255
  %v7512 = vmul.f32 %v7000, %v7256
  %v7513 = vmul.f32 %v7001, %v7257
  %v7514 = vmul.f32 %v7002, %v7258
  %v7515 = vmul.f32 %v7003, %v7259
  %v7516 = vmul.f32 %v7004, %v7260
  %v7517 = vmul.f32 %v7005, %v7261
  %v7518 = vmul.f32 %v7006, %v7262
  %v7519 = vmul.f32 %v7007, %v7263
  %v7520 = vmul.f32 %v7008, %v7264
  %v7521 = vmul.f32 %v7009, %v7265
  %v7522 = vmul.f32 %v7010, %v7266
  %v7523 = vmul.f32 %v7011, %v7267
  %v7524 = vmul.f32 %v7012, %v7268
  %v7525 = vmul.f32 %v7013, %v7269
  %v7526 = vmul.f32 %v7014, %v7270
  %v7527 = vmul.f32 %v7015, %v7271
  %v7528 = vmul.f32 %v7016, %v7272
  %v7529 = vmul.f32 %v7017, %v7273
  %v7530 = vmul.f32 %v7018, %v7274
  %v7531 = vmul.f32 %v7019, %v7275
  %v7532 = vmul.f32 %v7020, %v7276
  %v7533 = vmul.f32 %v7021, %v7277
  %v7534 = vmul.f32 %v7022, %v7278
  %v7535 = vmul.f32 %v7023, %v7279
  %v7536 = vmul.f32 %v7024, %v7280
  %v7537 = vmul.f32 %v7025, %v7281
  %v7538 = vmul.f32 %v7026, %v7282
  %v7539 = vmul.f32 %v7027, %v7283
  %v7540 = vmul.f32 %v7028, %v7284
  %v7541 = vmul.f32 %v7029, %v7285
  %v7542 = vmul.f32 %v7030, %v7286
  %v7543 = vmul.f32 %v7031, %v7287
  %v7544 = vmul.f32 %v7032, %v7288
  %v7545 = vmul.f32 %v7033, %v7289
  %v7546 = vmul.f32 %v7034, %v7290
  %v7547 = vmul.f32 %v7035, %v7291
  %v7548 = vmul.f32 %v7036, %v7292
  %v7549 = vmul.f32 %v7037, %v7293
  %v7550 = vmul.f32 %v7038, %v7294
  %v7551 = vmul.f32 %v7039, %v7295
  %v7552 = vmul.f32 %v7040, %v7296
  %v7553 = vmul.f32 %v7041, %v7297
  %v7554 = vmul.f32 %v7042, %v7298
  %v7555 = vmul.f32 %v7043, %v7299
  %v7556 = vmul.f32 %v7044, %v7300
  %v7557 = vmul.f32 %v7045, %v7301
  %v7558 = vmul.f32 %v7046, %v7302
  %v7559 = vmul.f32 %v7047, %v7303
  %v7560 = vmul.f32 %v7048, %v7304
  %v7561 = vmul.f32 %v7049, %v7305
  %v7562 = vmul.f32 %v7050, %v7306
  %v7563 = vmul.f32 %v7051, %v7307
  %v7564 = vmul.f32 %v7052, %v7308
  %v7565 = vmul.f32 %v7053, %v7309
  %v7566 = vmul.f32 %v7054, %v7310
  %v7567 = vmul.f32 %v7055, %v7311
  %v7568 = vmul.f32 %v7056, %v7312
  %v7569 = vmul.f32 %v7057, %v7313
  %v7570 = vmul.f32 %v7058, %v7314
  %v7571 = vmul.f32 %v7059, %v7315
  %v7572 = vmul.f32 %v7060, %v7316
  %v7573 = vmul.f32 %v7061, %v7317
  %v7574 = vmul.f32 %v7062, %v7318
  %v7575 = vmul.f32 %v7063, %v7319
  %v7576 = vmul.f32 %v7064, %v7320
  %v7577 = vmul.f32 %v7065, %v7321
  %v7578 = vmul.f32 %v7066, %v7322
  %v7579 = vmul.f32 %v7067, %v7323
  %v7580 = vmul.f32 %v7068, %v7324
  %v7581 = vmul.f32 %v7069, %v7325
  %v7582 = vmul.f32 %v7070, %v7326
  %v7583 = vmul.f32 %v7071, %v7327
  %v7584 = vmul.f32 %v7072, %v7328
  %v7585 = vmul.f32 %v7073, %v7329
  %v7586 = vmul.f32 %v7074, %v7330
  %v7587 = vmul.f32 %v7075, %v7331
  %v7588 = vmul.f32 %v7076, %v7332
  %v7589 = vmul.f32 %v7077, %v7333
  %v7590 = vmul.f32 %v7078, %v7334
  %v7591 = vmul.f32 %v7079, %v7335
  %v7592 = vmul.f32 %v7080, %v7336
  %v7593 = vmul.f32 %v7081, %v7337
  %v7594 = vmul.f32 %v7082, %v7338
  %v7595 = vmul.f32 %v7083, %v7339
  %v7596 = vmul.f32 %v7084, %v7340
  %v7597 = vmul.f32 %v7085, %v7341
  %v7598 = vmul.f32 %v7086, %v7342
  %v7599 = vmul.f32 %v7087, %v7343
  %v7600 = vmul.f32 %v7088, %v7344
  %v7601 = vmul.f32 %v7089, %v7345
  %v7602 = vmul.f32 %v7090, %v7346
  %v7603 = vmul.f32 %v7091, %v7347
  %v7604 = vmul.f32 %v7092, %v7348
  %v7605 = vmul.f32 %v7093, %v7349
  %v7606 = vmul.f32 %v7094, %v7350
  %v7607 = vmul.f32 %v7095, %v7351
  %v7608 = vmul.f32 %v7096, %v7352
  %v7609 = vmul.f32 %v7097, %v7353
  %v7610 = vmul.f32 %v7098, %v7354
  %v7611 = vmul.f32 %v7099, %v7355
  %v7612 = vmul.f32 %v7100, %v7356
  %v7613 = vmul.f32 %v7101, %v7357
  %v7614 = vmul.f32 %v7102, %v7358
  %v7615 = vmul.f32 %v7103, %v7359
  %v7616 = vmul.f32 %v7104, %v7360
  %v7617 = vmul.f32 %v7105, %v7361
  %v7618 = vmul.f32 %v7106, %v7362
  %v7619 = vmul.f32 %v7107, %v7363
  %v7620 = vmul.f32 %v7108, %v7364
  %v7621 = vmul.f32 %v7109, %v7365
  %v7622 = vmul.f32 %v7110, %v7366
  %v7623 = vmul.f32 %v7111, %v7367
  %v7624 = vmul.f32 %v7112, %v7368
  %v7625 = vmul.f32 %v7113, %v7369
  %v7626 = vmul.f32 %v7114, %v7370
  %v7627 = vmul.f32 %v7115, %v7371
  %v7628 = vmul.f32 %v7116, %v7372
  %v7629 = vmul.f32 %v7117, %v7373
  %v7630 = vmul.f32 %v7118, %v7374
  %v7631 = vmul.f32 %v7119, %v7375
  %v7632 = vmul.f32 %v7120, %v7376
  %v7633 = vmul.f32 %v7121, %v7377
  %v7634 = vmul.f32 %v7122, %v7378
  %v7635 = vmul.f32 %v7123, %v7379
  %v7636 = vmul.f32 %v7124, %v7380
  %v7637 = vmul.f32 %v7125, %v7381
  %v7638 = vmul.f32 %v7126, %v7382
  %v7639 = vmul.f32 %v7127, %v7383
  %v7640 = vmul.f32 %v7128, %v7384
  %v7641 = vmul.f32 %v7129, %v7385
  %v7642 = vmul.f32 %v7130, %v7386
  %v7643 = vmul.f32 %v7131, %v7387
  %v7644 = vmul.f32 %v7132, %v7388
  %v7645 = vmul.f32 %v7133, %v7389
  %v7646 = vmul.f32 %v7134, %v7390
  %v7647 = vmul.f32 %v7135, %v7391
  %v7648 = vmul.f32 %v7136, %v7392
  %v7649 = vmul.f32 %v7137, %v7393
  %v7650 = vmul.f32 %v7138, %v7394
  %v7651 = vmul.f32 %v7139, %v7395
  %v7652 = vmul.f32 %v7140, %v7396
  %v7653 = vmul.f32 %v7141, %v7397
  %v7654 = vmul.f32 %v7142, %v7398
  %v7655 = vmul.f32 %v7143, %v7399
  %v7656 = vmul.f32 %v7144, %v7400
  %v7657 = vmul.f32 %v7145, %v7401
  %v7658 = vmul.f32 %v7146, %v7402
  %v7659 = vmul.f32 %v7147, %v7403
  %v7660 = vmul.f32 %v7148, %v7404
  %v7661 = vmul.f32 %v7149, %v7405
  %v7662 = vmul.f32 %v7150, %v7406
  %v7663 = vmul.f32 %v7151, %v7407
  %v7664 = vmul.f32 %v7152, %v7408
  %v7665 = vmul.f32 %v7153, %v7409
  %v7666 = vmul.f32 %v7154, %v7410
  %v7667 = vmul.f32 %v7155, %v7411
  %v7668 = vmul.f32 %v7156, %v7412
  %v7669 = vmul.f32 %v7157, %v7413
  %v7670 = vmul.f32 %v7158, %v7414
  %v7671 = vmul.f32 %v7159, %v7415
  %v7672 = vmul.f32 %v7160, %v7416
  %v7673 = vmul.f32 %v7161, %v7417
  %v7674 = vmul.f32 %v7162, %v7418
  %v7675 = vmul.f32 %v7163, %v7419
  %v7676 = vmul.f32 %v7164, %v7420
  %v7677 = vmul.f32 %v7165, %v7421
  %v7678 = vmul.f32 %v7166, %v7422
  %v7679 = vmul.f32 %v7167, %v7423
  %v7680 = vmul.f32 %v7168, %v7424
  %v7681 = vmul.f32 %v7169, %v7425
  %v7682 = vmul.f32 %v7170, %v7426
  %v7683 = vmul.f32 %v7171, %v7427
  %v7684 = vmul.f32 %v7172, %v7428
  %v7685 = vmul.f32 %v7173, %v7429
  %v7686 = vmul.f32 %v7174, %v7430
  %v7687 = vmul.f32 %v7175, %v7431
  %v7688 = vmul.f32 %v7176, %v7432
  %v7689 = vmul.f32 %v7177, %v7433
  %v7690 = vmul.f32 %v7178, %v7434
  %v7691 = vmul.f32 %v7179, %v7435
  %v7692 = vmul.f32 %v7180, %v7436
  %v7693 = vmul.f32 %v7181, %v7437
  %v7694 = vmul.f32 %v7182, %v7438
  %v7695 = vmul.f32 %v7183, %v7439
  %v7696 = vmul.f32 %v7184, %v7440
  %v7697 = vmul.f32 %v7185, %v7441
  %v7698 = vmul.f32 %v7186, %v7442
  %v7699 = vmul.f32 %v7187, %v7443
  %v7700 = vmul.f32 %v7188, %v7444
  %v7701 = vmul.f32 %v7189, %v7445
  %v7702 = vld [vmem:[%s3] sm:$0xff]
  %v7703 = vld [vmem:[%s3 + $0x8] sm:$0xff]
  %v7704 = vld [vmem:[%s3 + $0x10] sm:$0xff]
  %v7705 = vld [vmem:[%s3 + $0x18] sm:$0xff]
  %v7706 = vld [vmem:[%s3 + $0x20] sm:$0xff]
  %v7707 = vld [vmem:[%s3 + $0x28] sm:$0xff]
  %v7708 = vld [vmem:[%s3 + $0x30] sm:$0xff]
  %v7709 = vld [vmem:[%s3 + $0x38] sm:$0xff]
  %v7710 = vld [vmem:[%s3 + $0x40] sm:$0xff]
  %v7711 = vld [vmem:[%s3 + $0x48] sm:$0xff]
  %v7712 = vld [vmem:[%s3 + $0x50] sm:$0xff]
  %v7713 = vld [vmem:[%s3 + $0x58] sm:$0xff]
  %v7714 = vld [vmem:[%s3 + $0x60] sm:$0xff]
  %v7715 = vld [vmem:[%s3 + $0x68] sm:$0xff]
  %v7716 = vld [vmem:[%s3 + $0x70] sm:$0xff]
  %v7717 = vld [vmem:[%s3 + $0x78] sm:$0xff]
  %v7718 = vld [vmem:[%s3 + $0x80] sm:$0xff]
  %v7719 = vld [vmem:[%s3 + $0x88] sm:$0xff]
  %v7720 = vld [vmem:[%s3 + $0x90] sm:$0xff]
  %v7721 = vld [vmem:[%s3 + $0x98] sm:$0xff]
  %v7722 = vld [vmem:[%s3 + $0xa0] sm:$0xff]
  %v7723 = vld [vmem:[%s3 + $0xa8] sm:$0xff]
  %v7724 = vld [vmem:[%s3 + $0xb0] sm:$0xff]
  %v7725 = vld [vmem:[%s3 + $0xb8] sm:$0xff]
  %v7726 = vld [vmem:[%s3 + $0xc0] sm:$0xff]
  %v7727 = vld [vmem:[%s3 + $0xc8] sm:$0xff]
  %v7728 = vld [vmem:[%s3 + $0xd0] sm:$0xff]
  %v7729 = vld [vmem:[%s3 + $0xd8] sm:$0xff]
  %v7730 = vld [vmem:[%s3 + $0xe0] sm:$0xff]
  %v7731 = vld [vmem:[%s3 + $0xe8] sm:$0xff]
  %v7732 = vld [vmem:[%s3 + $0xf0] sm:$0xff]
  %v7733 = vld [vmem:[%s3 + $0xf8] sm:$0xff]
  %v7734 = vld [vmem:[%s3 + $0x100] sm:$0xff]
  %v7735 = vld [vmem:[%s3 + $0x108] sm:$0xff]
  %v7736 = vld [vmem:[%s3 + $0x110] sm:$0xff]
  %v7737 = vld [vmem:[%s3 + $0x118] sm:$0xff]
  %v7738 = vld [vmem:[%s3 + $0x120] sm:$0xff]
  %v7739 = vld [vmem:[%s3 + $0x128] sm:$0xff]
  %v7740 = vld [vmem:[%s3 + $0x130] sm:$0xff]
  %v7741 = vld [vmem:[%s3 + $0x138] sm:$0xff]
  %v7742 = vld [vmem:[%s3 + $0x140] sm:$0xff]
  %v7743 = vld [vmem:[%s3 + $0x148] sm:$0xff]
  %v7744 = vld [vmem:[%s3 + $0x150] sm:$0xff]
  %v7745 = vld [vmem:[%s3 + $0x158] sm:$0xff]
  %v7746 = vld [vmem:[%s3 + $0x160] sm:$0xff]
  %v7747 = vld [vmem:[%s3 + $0x168] sm:$0xff]
  %v7748 = vld [vmem:[%s3 + $0x170] sm:$0xff]
  %v7749 = vld [vmem:[%s3 + $0x178] sm:$0xff]
  %v7750 = vld [vmem:[%s3 + $0x180] sm:$0xff]
  %v7751 = vld [vmem:[%s3 + $0x188] sm:$0xff]
  %v7752 = vld [vmem:[%s3 + $0x190] sm:$0xff]
  %v7753 = vld [vmem:[%s3 + $0x198] sm:$0xff]
  %v7754 = vld [vmem:[%s3 + $0x1a0] sm:$0xff]
  %v7755 = vld [vmem:[%s3 + $0x1a8] sm:$0xff]
  %v7756 = vld [vmem:[%s3 + $0x1b0] sm:$0xff]
  %v7757 = vld [vmem:[%s3 + $0x1b8] sm:$0xff]
  %v7758 = vld [vmem:[%s3 + $0x1c0] sm:$0xff]
  %v7759 = vld [vmem:[%s3 + $0x1c8] sm:$0xff]
  %v7760 = vld [vmem:[%s3 + $0x1d0] sm:$0xff]
  %v7761 = vld [vmem:[%s3 + $0x1d8] sm:$0xff]
  %v7762 = vld [vmem:[%s3 + $0x1e0] sm:$0xff]
  %v7763 = vld [vmem:[%s3 + $0x1e8] sm:$0xff]
  %v7764 = vld [vmem:[%s3 + $0x1f0] sm:$0xff]
  %v7765 = vld [vmem:[%s3 + $0x1f8] sm:$0xff]
  %v7766 = vld [vmem:[%s3 + $0x200] sm:$0xff]
  %v7767 = vld [vmem:[%s3 + $0x208] sm:$0xff]
  %v7768 = vld [vmem:[%s3 + $0x210] sm:$0xff]
  %v7769 = vld [vmem:[%s3 + $0x218] sm:$0xff]
  %v7770 = vld [vmem:[%s3 + $0x220] sm:$0xff]
  %v7771 = vld [vmem:[%s3 + $0x228] sm:$0xff]
  %v7772 = vld [vmem:[%s3 + $0x230] sm:$0xff]
  %v7773 = vld [vmem:[%s3 + $0x238] sm:$0xff]
  %v7774 = vld [vmem:[%s3 + $0x240] sm:$0xff]
  %v7775 = vld [vmem:[%s3 + $0x248] sm:$0xff]
  %v7776 = vld [vmem:[%s3 + $0x250] sm:$0xff]
  %v7777 = vld [vmem:[%s3 + $0x258] sm:$0xff]
  %v7778 = vld [vmem:[%s3 + $0x260] sm:$0xff]
  %v7779 = vld [vmem:[%s3 + $0x268] sm:$0xff]
  %v7780 = vld [vmem:[%s3 + $0x270] sm:$0xff]
  %v7781 = vld [vmem:[%s3 + $0x278] sm:$0xff]
  %v7782 = vld [vmem:[%s3 + $0x280] sm:$0xff]
  %v7783 = vld [vmem:[%s3 + $0x288] sm:$0xff]
  %v7784 = vld [vmem:[%s3 + $0x290] sm:$0xff]
  %v7785 = vld [vmem:[%s3 + $0x298] sm:$0xff]
  %v7786 = vld [vmem:[%s3 + $0x2a0] sm:$0xff]
  %v7787 = vld [vmem:[%s3 + $0x2a8] sm:$0xff]
  %v7788 = vld [vmem:[%s3 + $0x2b0] sm:$0xff]
  %v7789 = vld [vmem:[%s3 + $0x2b8] sm:$0xff]
  %v7790 = vld [vmem:[%s3 + $0x2c0] sm:$0xff]
  %v7791 = vld [vmem:[%s3 + $0x2c8] sm:$0xff]
  %v7792 = vld [vmem:[%s3 + $0x2d0] sm:$0xff]
  %v7793 = vld [vmem:[%s3 + $0x2d8] sm:$0xff]
  %v7794 = vld [vmem:[%s3 + $0x2e0] sm:$0xff]
  %v7795 = vld [vmem:[%s3 + $0x2e8] sm:$0xff]
  %v7796 = vld [vmem:[%s3 + $0x2f0] sm:$0xff]
  %v7797 = vld [vmem:[%s3 + $0x2f8] sm:$0xff]
  %v7798 = vld [vmem:[%s3 + $0x300] sm:$0xff]
  %v7799 = vld [vmem:[%s3 + $0x308] sm:$0xff]
  %v7800 = vld [vmem:[%s3 + $0x310] sm:$0xff]
  %v7801 = vld [vmem:[%s3 + $0x318] sm:$0xff]
  %v7802 = vld [vmem:[%s3 + $0x320] sm:$0xff]
  %v7803 = vld [vmem:[%s3 + $0x328] sm:$0xff]
  %v7804 = vld [vmem:[%s3 + $0x330] sm:$0xff]
  %v7805 = vld [vmem:[%s3 + $0x338] sm:$0xff]
  %v7806 = vld [vmem:[%s3 + $0x340] sm:$0xff]
  %v7807 = vld [vmem:[%s3 + $0x348] sm:$0xff]
  %v7808 = vld [vmem:[%s3 + $0x350] sm:$0xff]
  %v7809 = vld [vmem:[%s3 + $0x358] sm:$0xff]
  %v7810 = vld [vmem:[%s3 + $0x360] sm:$0xff]
  %v7811 = vld [vmem:[%s3 + $0x368] sm:$0xff]
  %v7812 = vld [vmem:[%s3 + $0x370] sm:$0xff]
  %v7813 = vld [vmem:[%s3 + $0x378] sm:$0xff]
  %v7814 = vld [vmem:[%s3 + $0x380] sm:$0xff]
  %v7815 = vld [vmem:[%s3 + $0x388] sm:$0xff]
  %v7816 = vld [vmem:[%s3 + $0x390] sm:$0xff]
  %v7817 = vld [vmem:[%s3 + $0x398] sm:$0xff]
  %v7818 = vld [vmem:[%s3 + $0x3a0] sm:$0xff]
  %v7819 = vld [vmem:[%s3 + $0x3a8] sm:$0xff]
  %v7820 = vld [vmem:[%s3 + $0x3b0] sm:$0xff]
  %v7821 = vld [vmem:[%s3 + $0x3b8] sm:$0xff]
  %v7822 = vld [vmem:[%s3 + $0x3c0] sm:$0xff]
  %v7823 = vld [vmem:[%s3 + $0x3c8] sm:$0xff]
  %v7824 = vld [vmem:[%s3 + $0x3d0] sm:$0xff]
  %v7825 = vld [vmem:[%s3 + $0x3d8] sm:$0xff]
  %v7826 = vld [vmem:[%s3 + $0x3e0] sm:$0xff]
  %v7827 = vld [vmem:[%s3 + $0x3e8] sm:$0xff]
  %v7828 = vld [vmem:[%s3 + $0x3f0] sm:$0xff]
  %v7829 = vld [vmem:[%s3 + $0x3f8] sm:$0xff]
  %v7830 = vld [vmem:[%s3 + $0x400] sm:$0xff]
  %v7831 = vld [vmem:[%s3 + $0x408] sm:$0xff]
  %v7832 = vld [vmem:[%s3 + $0x410] sm:$0xff]
  %v7833 = vld [vmem:[%s3 + $0x418] sm:$0xff]
  %v7834 = vld [vmem:[%s3 + $0x420] sm:$0xff]
  %v7835 = vld [vmem:[%s3 + $0x428] sm:$0xff]
  %v7836 = vld [vmem:[%s3 + $0x430] sm:$0xff]
  %v7837 = vld [vmem:[%s3 + $0x438] sm:$0xff]
  %v7838 = vld [vmem:[%s3 + $0x440] sm:$0xff]
  %v7839 = vld [vmem:[%s3 + $0x448] sm:$0xff]
  %v7840 = vld [vmem:[%s3 + $0x450] sm:$0xff]
  %v7841 = vld [vmem:[%s3 + $0x458] sm:$0xff]
  %v7842 = vld [vmem:[%s3 + $0x460] sm:$0xff]
  %v7843 = vld [vmem:[%s3 + $0x468] sm:$0xff]
  %v7844 = vld [vmem:[%s3 + $0x470] sm:$0xff]
  %v7845 = vld [vmem:[%s3 + $0x478] sm:$0xff]
  %v7846 = vld [vmem:[%s3 + $0x480] sm:$0xff]
  %v7847 = vld [vmem:[%s3 + $0x488] sm:$0xff]
  %v7848 = vld [vmem:[%s3 + $0x490] sm:$0xff]
  %v7849 = vld [vmem:[%s3 + $0x498] sm:$0xff]
  %v7850 = vld [vmem:[%s3 + $0x4a0] sm:$0xff]
  %v7851 = vld [vmem:[%s3 + $0x4a8] sm:$0xff]
  %v7852 = vld [vmem:[%s3 + $0x4b0] sm:$0xff]
  %v7853 = vld [vmem:[%s3 + $0x4b8] sm:$0xff]
  %v7854 = vld [vmem:[%s3 + $0x4c0] sm:$0xff]
  %v7855 = vld [vmem:[%s3 + $0x4c8] sm:$0xff]
  %v7856 = vld [vmem:[%s3 + $0x4d0] sm:$0xff]
  %v7857 = vld [vmem:[%s3 + $0x4d8] sm:$0xff]
  %v7858 = vld [vmem:[%s3 + $0x4e0] sm:$0xff]
  %v7859 = vld [vmem:[%s3 + $0x4e8] sm:$0xff]
  %v7860 = vld [vmem:[%s3 + $0x4f0] sm:$0xff]
  %v7861 = vld [vmem:[%s3 + $0x4f8] sm:$0xff]
  %v7862 = vld [vmem:[%s3 + $0x500] sm:$0xff]
  %v7863 = vld [vmem:[%s3 + $0x508] sm:$0xff]
  %v7864 = vld [vmem:[%s3 + $0x510] sm:$0xff]
  %v7865 = vld [vmem:[%s3 + $0x518] sm:$0xff]
  %v7866 = vld [vmem:[%s3 + $0x520] sm:$0xff]
  %v7867 = vld [vmem:[%s3 + $0x528] sm:$0xff]
  %v7868 = vld [vmem:[%s3 + $0x530] sm:$0xff]
  %v7869 = vld [vmem:[%s3 + $0x538] sm:$0xff]
  %v7870 = vld [vmem:[%s3 + $0x540] sm:$0xff]
  %v7871 = vld [vmem:[%s3 + $0x548] sm:$0xff]
  %v7872 = vld [vmem:[%s3 + $0x550] sm:$0xff]
  %v7873 = vld [vmem:[%s3 + $0x558] sm:$0xff]
  %v7874 = vld [vmem:[%s3 + $0x560] sm:$0xff]
  %v7875 = vld [vmem:[%s3 + $0x568] sm:$0xff]
  %v7876 = vld [vmem:[%s3 + $0x570] sm:$0xff]
  %v7877 = vld [vmem:[%s3 + $0x578] sm:$0xff]
  %v7878 = vld [vmem:[%s3 + $0x580] sm:$0xff]
  %v7879 = vld [vmem:[%s3 + $0x588] sm:$0xff]
  %v7880 = vld [vmem:[%s3 + $0x590] sm:$0xff]
  %v7881 = vld [vmem:[%s3 + $0x598] sm:$0xff]
  %v7882 = vld [vmem:[%s3 + $0x5a0] sm:$0xff]
  %v7883 = vld [vmem:[%s3 + $0x5a8] sm:$0xff]
  %v7884 = vld [vmem:[%s3 + $0x5b0] sm:$0xff]
  %v7885 = vld [vmem:[%s3 + $0x5b8] sm:$0xff]
  %v7886 = vld [vmem:[%s3 + $0x5c0] sm:$0xff]
  %v7887 = vld [vmem:[%s3 + $0x5c8] sm:$0xff]
  %v7888 = vld [vmem:[%s3 + $0x5d0] sm:$0xff]
  %v7889 = vld [vmem:[%s3 + $0x5d8] sm:$0xff]
  %v7890 = vld [vmem:[%s3 + $0x5e0] sm:$0xff]
  %v7891 = vld [vmem:[%s3 + $0x5e8] sm:$0xff]
  %v7892 = vld [vmem:[%s3 + $0x5f0] sm:$0xff]
  %v7893 = vld [vmem:[%s3 + $0x5f8] sm:$0xff]
  %v7894 = vld [vmem:[%s3 + $0x600] sm:$0xff]
  %v7895 = vld [vmem:[%s3 + $0x608] sm:$0xff]
  %v7896 = vld [vmem:[%s3 + $0x610] sm:$0xff]
  %v7897 = vld [vmem:[%s3 + $0x618] sm:$0xff]
  %v7898 = vld [vmem:[%s3 + $0x620] sm:$0xff]
  %v7899 = vld [vmem:[%s3 + $0x628] sm:$0xff]
  %v7900 = vld [vmem:[%s3 + $0x630] sm:$0xff]
  %v7901 = vld [vmem:[%s3 + $0x638] sm:$0xff]
  %v7902 = vld [vmem:[%s3 + $0x640] sm:$0xff]
  %v7903 = vld [vmem:[%s3 + $0x648] sm:$0xff]
  %v7904 = vld [vmem:[%s3 + $0x650] sm:$0xff]
  %v7905 = vld [vmem:[%s3 + $0x658] sm:$0xff]
  %v7906 = vld [vmem:[%s3 + $0x660] sm:$0xff]
  %v7907 = vld [vmem:[%s3 + $0x668] sm:$0xff]
  %v7908 = vld [vmem:[%s3 + $0x670] sm:$0xff]
  %v7909 = vld [vmem:[%s3 + $0x678] sm:$0xff]
  %v7910 = vld [vmem:[%s3 + $0x680] sm:$0xff]
  %v7911 = vld [vmem:[%s3 + $0x688] sm:$0xff]
  %v7912 = vld [vmem:[%s3 + $0x690] sm:$0xff]
  %v7913 = vld [vmem:[%s3 + $0x698] sm:$0xff]
  %v7914 = vld [vmem:[%s3 + $0x6a0] sm:$0xff]
  %v7915 = vld [vmem:[%s3 + $0x6a8] sm:$0xff]
  %v7916 = vld [vmem:[%s3 + $0x6b0] sm:$0xff]
  %v7917 = vld [vmem:[%s3 + $0x6b8] sm:$0xff]
  %v7918 = vld [vmem:[%s3 + $0x6c0] sm:$0xff]
  %v7919 = vld [vmem:[%s3 + $0x6c8] sm:$0xff]
  %v7920 = vld [vmem:[%s3 + $0x6d0] sm:$0xff]
  %v7921 = vld [vmem:[%s3 + $0x6d8] sm:$0xff]
  %v7922 = vld [vmem:[%s3 + $0x6e0] sm:$0xff]
  %v7923 = vld [vmem:[%s3 + $0x6e8] sm:$0xff]
  %v7924 = vld [vmem:[%s3 + $0x6f0] sm:$0xff]
  %v7925 = vld [vmem:[%s3 + $0x6f8] sm:$0xff]
  %v7926 = vld [vmem:[%s3 + $0x700] sm:$0xff]
  %v7927 = vld [vmem:[%s3 + $0x708] sm:$0xff]
  %v7928 = vld [vmem:[%s3 + $0x710] sm:$0xff]
  %v7929 = vld [vmem:[%s3 + $0x718] sm:$0xff]
  %v7930 = vld [vmem:[%s3 + $0x720] sm:$0xff]
  %v7931 = vld [vmem:[%s3 + $0x728] sm:$0xff]
  %v7932 = vld [vmem:[%s3 + $0x730] sm:$0xff]
  %v7933 = vld [vmem:[%s3 + $0x738] sm:$0xff]
  %v7934 = vld [vmem:[%s3 + $0x740] sm:$0xff]
  %v7935 = vld [vmem:[%s3 + $0x748] sm:$0xff]
  %v7936 = vld [vmem:[%s3 + $0x750] sm:$0xff]
  %v7937 = vld [vmem:[%s3 + $0x758] sm:$0xff]
  %v7938 = vld [vmem:[%s3 + $0x760] sm:$0xff]
  %v7939 = vld [vmem:[%s3 + $0x768] sm:$0xff]
  %v7940 = vld [vmem:[%s3 + $0x770] sm:$0xff]
  %v7941 = vld [vmem:[%s3 + $0x778] sm:$0xff]
  %v7942 = vld [vmem:[%s3 + $0x780] sm:$0xff]
  %v7943 = vld [vmem:[%s3 + $0x788] sm:$0xff]
  %v7944 = vld [vmem:[%s3 + $0x790] sm:$0xff]
  %v7945 = vld [vmem:[%s3 + $0x798] sm:$0xff]
  %v7946 = vld [vmem:[%s3 + $0x7a0] sm:$0xff]
  %v7947 = vld [vmem:[%s3 + $0x7a8] sm:$0xff]
  %v7948 = vld [vmem:[%s3 + $0x7b0] sm:$0xff]
  %v7949 = vld [vmem:[%s3 + $0x7b8] sm:$0xff]
  %v7950 = vld [vmem:[%s3 + $0x7c0] sm:$0xff]
  %v7951 = vld [vmem:[%s3 + $0x7c8] sm:$0xff]
  %v7952 = vld [vmem:[%s3 + $0x7d0] sm:$0xff]
  %v7953 = vld [vmem:[%s3 + $0x7d8] sm:$0xff]
  %v7954 = vld [vmem:[%s3 + $0x7e0] sm:$0xff]
  %v7955 = vld [vmem:[%s3 + $0x7e8] sm:$0xff]
  %v7956 = vld [vmem:[%s3 + $0x7f0] sm:$0xff]
  %v7957 = vld [vmem:[%s3 + $0x7f8] sm:$0xff]
  %v7958 = vmul.f32 %v6934, %v7702
  %v7959 = vmul.f32 %v6935, %v7703
  %v7960 = vmul.f32 %v6936, %v7704
  %v7961 = vmul.f32 %v6937, %v7705
  %v7962 = vmul.f32 %v6938, %v7706
  %v7963 = vmul.f32 %v6939, %v7707
  %v7964 = vmul.f32 %v6940, %v7708
  %v7965 = vmul.f32 %v6941, %v7709
  %v7966 = vmul.f32 %v6942, %v7710
  %v7967 = vmul.f32 %v6943, %v7711
  %v7968 = vmul.f32 %v6944, %v7712
  %v7969 = vmul.f32 %v6945, %v7713
  %v7970 = vmul.f32 %v6946, %v7714
  %v7971 = vmul.f32 %v6947, %v7715
  %v7972 = vmul.f32 %v6948, %v7716
  %v7973 = vmul.f32 %v6949, %v7717
  %v7974 = vmul.f32 %v6950, %v7718
  %v7975 = vmul.f32 %v6951, %v7719
  %v7976 = vmul.f32 %v6952, %v7720
  %v7977 = vmul.f32 %v6953, %v7721
  %v7978 = vmul.f32 %v6954, %v7722
  %v7979 = vmul.f32 %v6955, %v7723
  %v7980 = vmul.f32 %v6956, %v7724
  %v7981 = vmul.f32 %v6957, %v7725
  %v7982 = vmul.f32 %v6958, %v7726
  %v7983 = vmul.f32 %v6959, %v7727
  %v7984 = vmul.f32 %v6960, %v7728
  %v7985 = vmul.f32 %v6961, %v7729
  %v7986 = vmul.f32 %v6962, %v7730
  %v7987 = vmul.f32 %v6963, %v7731
  %v7988 = vmul.f32 %v6964, %v7732
  %v7989 = vmul.f32 %v6965, %v7733
  %v7990 = vmul.f32 %v6966, %v7734
  %v7991 = vmul.f32 %v6967, %v7735
  %v7992 = vmul.f32 %v6968, %v7736
  %v7993 = vmul.f32 %v6969, %v7737
  %v7994 = vmul.f32 %v6970, %v7738
  %v7995 = vmul.f32 %v6971, %v7739
  %v7996 = vmul.f32 %v6972, %v7740
  %v7997 = vmul.f32 %v6973, %v7741
  %v7998 = vmul.f32 %v6974, %v7742
  %v7999 = vmul.f32 %v6975, %v7743
  %v8000 = vmul.f32 %v6976, %v7744
  %v8001 = vmul.f32 %v6977, %v7745
  %v8002 = vmul.f32 %v6978, %v7746
  %v8003 = vmul.f32 %v6979, %v7747
  %v8004 = vmul.f32 %v6980, %v7748
  %v8005 = vmul.f32 %v6981, %v7749
  %v8006 = vmul.f32 %v6982, %v7750
  %v8007 = vmul.f32 %v6983, %v7751
  %v8008 = vmul.f32 %v6984, %v7752
  %v8009 = vmul.f32 %v6985, %v7753
  %v8010 = vmul.f32 %v6986, %v7754
  %v8011 = vmul.f32 %v6987, %v7755
  %v8012 = vmul.f32 %v6988, %v7756
  %v8013 = vmul.f32 %v6989, %v7757
  %v8014 = vmul.f32 %v6990, %v7758
  %v8015 = vmul.f32 %v6991, %v7759
  %v8016 = vmul.f32 %v6992, %v7760
  %v8017 = vmul.f32 %v6993, %v7761
  %v8018 = vmul.f32 %v6994, %v7762
  %v8019 = vmul.f32 %v6995, %v7763
  %v8020 = vmul.f32 %v6996, %v7764
  %v8021 = vmul.f32 %v6997, %v7765
  %v8022 = vmul.f32 %v6998, %v7766
  %v8023 = vmul.f32 %v6999, %v7767
  %v8024 = vmul.f32 %v7000, %v7768
  %v8025 = vmul.f32 %v7001, %v7769
  %v8026 = vmul.f32 %v7002, %v7770
  %v8027 = vmul.f32 %v7003, %v7771
  %v8028 = vmul.f32 %v7004, %v7772
  %v8029 = vmul.f32 %v7005, %v7773
  %v8030 = vmul.f32 %v7006, %v7774
  %v8031 = vmul.f32 %v7007, %v7775
  %v8032 = vmul.f32 %v7008, %v7776
  %v8033 = vmul.f32 %v7009, %v7777
  %v8034 = vmul.f32 %v7010, %v7778
  %v8035 = vmul.f32 %v7011, %v7779
  %v8036 = vmul.f32 %v7012, %v7780
  %v8037 = vmul.f32 %v7013, %v7781
  %v8038 = vmul.f32 %v7014, %v7782
  %v8039 = vmul.f32 %v7015, %v7783
  %v8040 = vmul.f32 %v7016, %v7784
  %v8041 = vmul.f32 %v7017, %v7785
  %v8042 = vmul.f32 %v7018, %v7786
  %v8043 = vmul.f32 %v7019, %v7787
  %v8044 = vmul.f32 %v7020, %v7788
  %v8045 = vmul.f32 %v7021, %v7789
  %v8046 = vmul.f32 %v7022, %v7790
  %v8047 = vmul.f32 %v7023, %v7791
  %v8048 = vmul.f32 %v7024, %v7792
  %v8049 = vmul.f32 %v7025, %v7793
  %v8050 = vmul.f32 %v7026, %v7794
  %v8051 = vmul.f32 %v7027, %v7795
  %v8052 = vmul.f32 %v7028, %v7796
  %v8053 = vmul.f32 %v7029, %v7797
  %v8054 = vmul.f32 %v7030, %v7798
  %v8055 = vmul.f32 %v7031, %v7799
  %v8056 = vmul.f32 %v7032, %v7800
  %v8057 = vmul.f32 %v7033, %v7801
  %v8058 = vmul.f32 %v7034, %v7802
  %v8059 = vmul.f32 %v7035, %v7803
  %v8060 = vmul.f32 %v7036, %v7804
  %v8061 = vmul.f32 %v7037, %v7805
  %v8062 = vmul.f32 %v7038, %v7806
  %v8063 = vmul.f32 %v7039, %v7807
  %v8064 = vmul.f32 %v7040, %v7808
  %v8065 = vmul.f32 %v7041, %v7809
  %v8066 = vmul.f32 %v7042, %v7810
  %v8067 = vmul.f32 %v7043, %v7811
  %v8068 = vmul.f32 %v7044, %v7812
  %v8069 = vmul.f32 %v7045, %v7813
  %v8070 = vmul.f32 %v7046, %v7814
  %v8071 = vmul.f32 %v7047, %v7815
  %v8072 = vmul.f32 %v7048, %v7816
  %v8073 = vmul.f32 %v7049, %v7817
  %v8074 = vmul.f32 %v7050, %v7818
  %v8075 = vmul.f32 %v7051, %v7819
  %v8076 = vmul.f32 %v7052, %v7820
  %v8077 = vmul.f32 %v7053, %v7821
  %v8078 = vmul.f32 %v7054, %v7822
  %v8079 = vmul.f32 %v7055, %v7823
  %v8080 = vmul.f32 %v7056, %v7824
  %v8081 = vmul.f32 %v7057, %v7825
  %v8082 = vmul.f32 %v7058, %v7826
  %v8083 = vmul.f32 %v7059, %v7827
  %v8084 = vmul.f32 %v7060, %v7828
  %v8085 = vmul.f32 %v7061, %v7829
  %v8086 = vmul.f32 %v7062, %v7830
  %v8087 = vmul.f32 %v7063, %v7831
  %v8088 = vmul.f32 %v7064, %v7832
  %v8089 = vmul.f32 %v7065, %v7833
  %v8090 = vmul.f32 %v7066, %v7834
  %v8091 = vmul.f32 %v7067, %v7835
  %v8092 = vmul.f32 %v7068, %v7836
  %v8093 = vmul.f32 %v7069, %v7837
  %v8094 = vmul.f32 %v7070, %v7838
  %v8095 = vmul.f32 %v7071, %v7839
  %v8096 = vmul.f32 %v7072, %v7840
  %v8097 = vmul.f32 %v7073, %v7841
  %v8098 = vmul.f32 %v7074, %v7842
  %v8099 = vmul.f32 %v7075, %v7843
  %v8100 = vmul.f32 %v7076, %v7844
  %v8101 = vmul.f32 %v7077, %v7845
  %v8102 = vmul.f32 %v7078, %v7846
  %v8103 = vmul.f32 %v7079, %v7847
  %v8104 = vmul.f32 %v7080, %v7848
  %v8105 = vmul.f32 %v7081, %v7849
  %v8106 = vmul.f32 %v7082, %v7850
  %v8107 = vmul.f32 %v7083, %v7851
  %v8108 = vmul.f32 %v7084, %v7852
  %v8109 = vmul.f32 %v7085, %v7853
  %v8110 = vmul.f32 %v7086, %v7854
  %v8111 = vmul.f32 %v7087, %v7855
  %v8112 = vmul.f32 %v7088, %v7856
  %v8113 = vmul.f32 %v7089, %v7857
  %v8114 = vmul.f32 %v7090, %v7858
  %v8115 = vmul.f32 %v7091, %v7859
  %v8116 = vmul.f32 %v7092, %v7860
  %v8117 = vmul.f32 %v7093, %v7861
  %v8118 = vmul.f32 %v7094, %v7862
  %v8119 = vmul.f32 %v7095, %v7863
  %v8120 = vmul.f32 %v7096, %v7864
  %v8121 = vmul.f32 %v7097, %v7865
  %v8122 = vmul.f32 %v7098, %v7866
  %v8123 = vmul.f32 %v7099, %v7867
  %v8124 = vmul.f32 %v7100, %v7868
  %v8125 = vmul.f32 %v7101, %v7869
  %v8126 = vmul.f32 %v7102, %v7870
  %v8127 = vmul.f32 %v7103, %v7871
  %v8128 = vmul.f32 %v7104, %v7872
  %v8129 = vmul.f32 %v7105, %v7873
  %v8130 = vmul.f32 %v7106, %v7874
  %v8131 = vmul.f32 %v7107, %v7875
  %v8132 = vmul.f32 %v7108, %v7876
  %v8133 = vmul.f32 %v7109, %v7877
  %v8134 = vmul.f32 %v7110, %v7878
  %v8135 = vmul.f32 %v7111, %v7879
  %v8136 = vmul.f32 %v7112, %v7880
  %v8137 = vmul.f32 %v7113, %v7881
  %v8138 = vmul.f32 %v7114, %v7882
  %v8139 = vmul.f32 %v7115, %v7883
  %v8140 = vmul.f32 %v7116, %v7884
  %v8141 = vmul.f32 %v7117, %v7885
  %v8142 = vmul.f32 %v7118, %v7886
  %v8143 = vmul.f32 %v7119, %v7887
  %v8144 = vmul.f32 %v7120, %v7888
  %v8145 = vmul.f32 %v7121, %v7889
  %v8146 = vmul.f32 %v7122, %v7890
  %v8147 = vmul.f32 %v7123, %v7891
  %v8148 = vmul.f32 %v7124, %v7892
  %v8149 = vmul.f32 %v7125, %v7893
  %v8150 = vmul.f32 %v7126, %v7894
  %v8151 = vmul.f32 %v7127, %v7895
  %v8152 = vmul.f32 %v7128, %v7896
  %v8153 = vmul.f32 %v7129, %v7897
  %v8154 = vmul.f32 %v7130, %v7898
  %v8155 = vmul.f32 %v7131, %v7899
  %v8156 = vmul.f32 %v7132, %v7900
  %v8157 = vmul.f32 %v7133, %v7901
  %v8158 = vmul.f32 %v7134, %v7902
  %v8159 = vmul.f32 %v7135, %v7903
  %v8160 = vmul.f32 %v7136, %v7904
  %v8161 = vmul.f32 %v7137, %v7905
  %v8162 = vmul.f32 %v7138, %v7906
  %v8163 = vmul.f32 %v7139, %v7907
  %v8164 = vmul.f32 %v7140, %v7908
  %v8165 = vmul.f32 %v7141, %v7909
  %v8166 = vmul.f32 %v7142, %v7910
  %v8167 = vmul.f32 %v7143, %v7911
  %v8168 = vmul.f32 %v7144, %v7912
  %v8169 = vmul.f32 %v7145, %v7913
  %v8170 = vmul.f32 %v7146, %v7914
  %v8171 = vmul.f32 %v7147, %v7915
  %v8172 = vmul.f32 %v7148, %v7916
  %v8173 = vmul.f32 %v7149, %v7917
  %v8174 = vmul.f32 %v7150, %v7918
  %v8175 = vmul.f32 %v7151, %v7919
  %v8176 = vmul.f32 %v7152, %v7920
  %v8177 = vmul.f32 %v7153, %v7921
  %v8178 = vmul.f32 %v7154, %v7922
  %v8179 = vmul.f32 %v7155, %v7923
  %v8180 = vmul.f32 %v7156, %v7924
  %v8181 = vmul.f32 %v7157, %v7925
  %v8182 = vmul.f32 %v7158, %v7926
  %v8183 = vmul.f32 %v7159, %v7927
  %v8184 = vmul.f32 %v7160, %v7928
  %v8185 = vmul.f32 %v7161, %v7929
  %v8186 = vmul.f32 %v7162, %v7930
  %v8187 = vmul.f32 %v7163, %v7931
  %v8188 = vmul.f32 %v7164, %v7932
  %v8189 = vmul.f32 %v7165, %v7933
  %v8190 = vmul.f32 %v7166, %v7934
  %v8191 = vmul.f32 %v7167, %v7935
  %v8192 = vmul.f32 %v7168, %v7936
  %v8193 = vmul.f32 %v7169, %v7937
  %v8194 = vmul.f32 %v7170, %v7938
  %v8195 = vmul.f32 %v7171, %v7939
  %v8196 = vmul.f32 %v7172, %v7940
  %v8197 = vmul.f32 %v7173, %v7941
  %v8198 = vmul.f32 %v7174, %v7942
  %v8199 = vmul.f32 %v7175, %v7943
  %v8200 = vmul.f32 %v7176, %v7944
  %v8201 = vmul.f32 %v7177, %v7945
  %v8202 = vmul.f32 %v7178, %v7946
  %v8203 = vmul.f32 %v7179, %v7947
  %v8204 = vmul.f32 %v7180, %v7948
  %v8205 = vmul.f32 %v7181, %v7949
  %v8206 = vmul.f32 %v7182, %v7950
  %v8207 = vmul.f32 %v7183, %v7951
  %v8208 = vmul.f32 %v7184, %v7952
  %v8209 = vmul.f32 %v7185, %v7953
  %v8210 = vmul.f32 %v7186, %v7954
  %v8211 = vmul.f32 %v7187, %v7955
  %v8212 = vmul.f32 %v7188, %v7956
  %v8213 = vmul.f32 %v7189, %v7957
  %vm8214 = vcmask 7168
  %v8215 = vsel %vm8214, %v7446, 0.0
  %v8216 = vsel %vm8214, %v7447, 0.0
  %v8217 = vadd.f32 %v8215, %v8216
  %v8218 = vsel %vm8214, %v7448, 0.0
  %v8219 = vadd.f32 %v8217, %v8218
  %v8220 = vsel %vm8214, %v7449, 0.0
  %v8221 = vadd.f32 %v8219, %v8220
  %v8222 = vsel %vm8214, %v7450, 0.0
  %v8223 = vadd.f32 %v8221, %v8222
  %v8224 = vsel %vm8214, %v7451, 0.0
  %v8225 = vadd.f32 %v8223, %v8224
  %v8226 = vsel %vm8214, %v7452, 0.0
  %v8227 = vadd.f32 %v8225, %v8226
  %v8228 = vsel %vm8214, %v7453, 0.0
  %v8229 = vadd.f32 %v8227, %v8228
  %v8230 = vsel %vm8214, %v7454, 0.0
  %v8231 = vadd.f32 %v8229, %v8230
  %v8232 = vsel %vm8214, %v7455, 0.0
  %v8233 = vadd.f32 %v8231, %v8232
  %v8234 = vsel %vm8214, %v7456, 0.0
  %v8235 = vadd.f32 %v8233, %v8234
  %v8236 = vsel %vm8214, %v7457, 0.0
  %v8237 = vadd.f32 %v8235, %v8236
  %v8238 = vsel %vm8214, %v7458, 0.0
  %v8239 = vadd.f32 %v8237, %v8238
  %v8240 = vsel %vm8214, %v7459, 0.0
  %v8241 = vadd.f32 %v8239, %v8240
  %v8242 = vsel %vm8214, %v7460, 0.0
  %v8243 = vadd.f32 %v8241, %v8242
  %v8244 = vsel %vm8214, %v7461, 0.0
  %v8245 = vadd.f32 %v8243, %v8244
  %v8246 = vsel %vm8214, %v7462, 0.0
  %v8247 = vadd.f32 %v8245, %v8246
  %v8248 = vsel %vm8214, %v7463, 0.0
  %v8249 = vadd.f32 %v8247, %v8248
  %v8250 = vsel %vm8214, %v7464, 0.0
  %v8251 = vadd.f32 %v8249, %v8250
  %v8252 = vsel %vm8214, %v7465, 0.0
  %v8253 = vadd.f32 %v8251, %v8252
  %v8254 = vsel %vm8214, %v7466, 0.0
  %v8255 = vadd.f32 %v8253, %v8254
  %v8256 = vsel %vm8214, %v7467, 0.0
  %v8257 = vadd.f32 %v8255, %v8256
  %v8258 = vsel %vm8214, %v7468, 0.0
  %v8259 = vadd.f32 %v8257, %v8258
  %v8260 = vsel %vm8214, %v7469, 0.0
  %v8261 = vadd.f32 %v8259, %v8260
  %v8262 = vsel %vm8214, %v7470, 0.0
  %v8263 = vadd.f32 %v8261, %v8262
  %v8264 = vsel %vm8214, %v7471, 0.0
  %v8265 = vadd.f32 %v8263, %v8264
  %v8266 = vsel %vm8214, %v7472, 0.0
  %v8267 = vadd.f32 %v8265, %v8266
  %v8268 = vsel %vm8214, %v7473, 0.0
  %v8269 = vadd.f32 %v8267, %v8268
  %v8270 = vsel %vm8214, %v7474, 0.0
  %v8271 = vadd.f32 %v8269, %v8270
  %v8272 = vsel %vm8214, %v7475, 0.0
  %v8273 = vadd.f32 %v8271, %v8272
  %v8274 = vsel %vm8214, %v7476, 0.0
  %v8275 = vadd.f32 %v8273, %v8274
  %v8276 = vsel %vm8214, %v7477, 0.0
  %v8277 = vadd.f32 %v8275, %v8276
  %v8278 = vsel %vm8214, %v7478, 0.0
  %v8279 = vadd.f32 %v8277, %v8278
  %v8280 = vsel %vm8214, %v7479, 0.0
  %v8281 = vadd.f32 %v8279, %v8280
  %v8282 = vsel %vm8214, %v7480, 0.0
  %v8283 = vadd.f32 %v8281, %v8282
  %v8284 = vsel %vm8214, %v7481, 0.0
  %v8285 = vadd.f32 %v8283, %v8284
  %v8286 = vsel %vm8214, %v7482, 0.0
  %v8287 = vadd.f32 %v8285, %v8286
  %v8288 = vsel %vm8214, %v7483, 0.0
  %v8289 = vadd.f32 %v8287, %v8288
  %v8290 = vsel %vm8214, %v7484, 0.0
  %v8291 = vadd.f32 %v8289, %v8290
  %v8292 = vsel %vm8214, %v7485, 0.0
  %v8293 = vadd.f32 %v8291, %v8292
  %v8294 = vsel %vm8214, %v7486, 0.0
  %v8295 = vadd.f32 %v8293, %v8294
  %v8296 = vsel %vm8214, %v7487, 0.0
  %v8297 = vadd.f32 %v8295, %v8296
  %v8298 = vsel %vm8214, %v7488, 0.0
  %v8299 = vadd.f32 %v8297, %v8298
  %v8300 = vsel %vm8214, %v7489, 0.0
  %v8301 = vadd.f32 %v8299, %v8300
  %v8302 = vsel %vm8214, %v7490, 0.0
  %v8303 = vadd.f32 %v8301, %v8302
  %v8304 = vsel %vm8214, %v7491, 0.0
  %v8305 = vadd.f32 %v8303, %v8304
  %v8306 = vsel %vm8214, %v7492, 0.0
  %v8307 = vadd.f32 %v8305, %v8306
  %v8308 = vsel %vm8214, %v7493, 0.0
  %v8309 = vadd.f32 %v8307, %v8308
  %v8310 = vsel %vm8214, %v7494, 0.0
  %v8311 = vadd.f32 %v8309, %v8310
  %v8312 = vsel %vm8214, %v7495, 0.0
  %v8313 = vadd.f32 %v8311, %v8312
  %v8314 = vsel %vm8214, %v7496, 0.0
  %v8315 = vadd.f32 %v8313, %v8314
  %v8316 = vsel %vm8214, %v7497, 0.0
  %v8317 = vadd.f32 %v8315, %v8316
  %v8318 = vsel %vm8214, %v7498, 0.0
  %v8319 = vadd.f32 %v8317, %v8318
  %v8320 = vsel %vm8214, %v7499, 0.0
  %v8321 = vadd.f32 %v8319, %v8320
  %v8322 = vsel %vm8214, %v7500, 0.0
  %v8323 = vadd.f32 %v8321, %v8322
  %v8324 = vsel %vm8214, %v7501, 0.0
  %v8325 = vadd.f32 %v8323, %v8324
  %v8326 = vsel %vm8214, %v7502, 0.0
  %v8327 = vadd.f32 %v8325, %v8326
  %v8328 = vsel %vm8214, %v7503, 0.0
  %v8329 = vadd.f32 %v8327, %v8328
  %v8330 = vsel %vm8214, %v7504, 0.0
  %v8331 = vadd.f32 %v8329, %v8330
  %v8332 = vsel %vm8214, %v7505, 0.0
  %v8333 = vadd.f32 %v8331, %v8332
  %v8334 = vsel %vm8214, %v7506, 0.0
  %v8335 = vadd.f32 %v8333, %v8334
  %v8336 = vsel %vm8214, %v7507, 0.0
  %v8337 = vadd.f32 %v8335, %v8336
  %v8338 = vsel %vm8214, %v7508, 0.0
  %v8339 = vadd.f32 %v8337, %v8338
  %v8340 = vsel %vm8214, %v7509, 0.0
  %v8341 = vadd.f32 %v8339, %v8340
  %v8342 = vsel %vm8214, %v7510, 0.0
  %v8343 = vadd.f32 %v8341, %v8342
  %v8344 = vsel %vm8214, %v7511, 0.0
  %v8345 = vadd.f32 %v8343, %v8344
  %v8346 = vsel %vm8214, %v7512, 0.0
  %v8347 = vadd.f32 %v8345, %v8346
  %v8348 = vsel %vm8214, %v7513, 0.0
  %v8349 = vadd.f32 %v8347, %v8348
  %v8350 = vsel %vm8214, %v7514, 0.0
  %v8351 = vadd.f32 %v8349, %v8350
  %v8352 = vsel %vm8214, %v7515, 0.0
  %v8353 = vadd.f32 %v8351, %v8352
  %v8354 = vsel %vm8214, %v7516, 0.0
  %v8355 = vadd.f32 %v8353, %v8354
  %v8356 = vsel %vm8214, %v7517, 0.0
  %v8357 = vadd.f32 %v8355, %v8356
  %v8358 = vsel %vm8214, %v7518, 0.0
  %v8359 = vadd.f32 %v8357, %v8358
  %v8360 = vsel %vm8214, %v7519, 0.0
  %v8361 = vadd.f32 %v8359, %v8360
  %v8362 = vsel %vm8214, %v7520, 0.0
  %v8363 = vadd.f32 %v8361, %v8362
  %v8364 = vsel %vm8214, %v7521, 0.0
  %v8365 = vadd.f32 %v8363, %v8364
  %v8366 = vsel %vm8214, %v7522, 0.0
  %v8367 = vadd.f32 %v8365, %v8366
  %v8368 = vsel %vm8214, %v7523, 0.0
  %v8369 = vadd.f32 %v8367, %v8368
  %v8370 = vsel %vm8214, %v7524, 0.0
  %v8371 = vadd.f32 %v8369, %v8370
  %v8372 = vsel %vm8214, %v7525, 0.0
  %v8373 = vadd.f32 %v8371, %v8372
  %v8374 = vsel %vm8214, %v7526, 0.0
  %v8375 = vadd.f32 %v8373, %v8374
  %v8376 = vsel %vm8214, %v7527, 0.0
  %v8377 = vadd.f32 %v8375, %v8376
  %v8378 = vsel %vm8214, %v7528, 0.0
  %v8379 = vadd.f32 %v8377, %v8378
  %v8380 = vsel %vm8214, %v7529, 0.0
  %v8381 = vadd.f32 %v8379, %v8380
  %v8382 = vsel %vm8214, %v7530, 0.0
  %v8383 = vadd.f32 %v8381, %v8382
  %v8384 = vsel %vm8214, %v7531, 0.0
  %v8385 = vadd.f32 %v8383, %v8384
  %v8386 = vsel %vm8214, %v7532, 0.0
  %v8387 = vadd.f32 %v8385, %v8386
  %v8388 = vsel %vm8214, %v7533, 0.0
  %v8389 = vadd.f32 %v8387, %v8388
  %v8390 = vsel %vm8214, %v7534, 0.0
  %v8391 = vadd.f32 %v8389, %v8390
  %v8392 = vsel %vm8214, %v7535, 0.0
  %v8393 = vadd.f32 %v8391, %v8392
  %v8394 = vsel %vm8214, %v7536, 0.0
  %v8395 = vadd.f32 %v8393, %v8394
  %v8396 = vsel %vm8214, %v7537, 0.0
  %v8397 = vadd.f32 %v8395, %v8396
  %v8398 = vsel %vm8214, %v7538, 0.0
  %v8399 = vadd.f32 %v8397, %v8398
  %v8400 = vsel %vm8214, %v7539, 0.0
  %v8401 = vadd.f32 %v8399, %v8400
  %v8402 = vsel %vm8214, %v7540, 0.0
  %v8403 = vadd.f32 %v8401, %v8402
  %v8404 = vsel %vm8214, %v7541, 0.0
  %v8405 = vadd.f32 %v8403, %v8404
  %v8406 = vsel %vm8214, %v7542, 0.0
  %v8407 = vadd.f32 %v8405, %v8406
  %v8408 = vsel %vm8214, %v7543, 0.0
  %v8409 = vadd.f32 %v8407, %v8408
  %v8410 = vsel %vm8214, %v7544, 0.0
  %v8411 = vadd.f32 %v8409, %v8410
  %v8412 = vsel %vm8214, %v7545, 0.0
  %v8413 = vadd.f32 %v8411, %v8412
  %v8414 = vsel %vm8214, %v7546, 0.0
  %v8415 = vadd.f32 %v8413, %v8414
  %v8416 = vsel %vm8214, %v7547, 0.0
  %v8417 = vadd.f32 %v8415, %v8416
  %v8418 = vsel %vm8214, %v7548, 0.0
  %v8419 = vadd.f32 %v8417, %v8418
  %v8420 = vsel %vm8214, %v7549, 0.0
  %v8421 = vadd.f32 %v8419, %v8420
  %v8422 = vsel %vm8214, %v7550, 0.0
  %v8423 = vadd.f32 %v8421, %v8422
  %v8424 = vsel %vm8214, %v7551, 0.0
  %v8425 = vadd.f32 %v8423, %v8424
  %v8426 = vsel %vm8214, %v7552, 0.0
  %v8427 = vadd.f32 %v8425, %v8426
  %v8428 = vsel %vm8214, %v7553, 0.0
  %v8429 = vadd.f32 %v8427, %v8428
  %v8430 = vsel %vm8214, %v7554, 0.0
  %v8431 = vadd.f32 %v8429, %v8430
  %v8432 = vsel %vm8214, %v7555, 0.0
  %v8433 = vadd.f32 %v8431, %v8432
  %v8434 = vsel %vm8214, %v7556, 0.0
  %v8435 = vadd.f32 %v8433, %v8434
  %v8436 = vsel %vm8214, %v7557, 0.0
  %v8437 = vadd.f32 %v8435, %v8436
  %v8438 = vsel %vm8214, %v7558, 0.0
  %v8439 = vadd.f32 %v8437, %v8438
  %v8440 = vsel %vm8214, %v7559, 0.0
  %v8441 = vadd.f32 %v8439, %v8440
  %v8442 = vsel %vm8214, %v7560, 0.0
  %v8443 = vadd.f32 %v8441, %v8442
  %v8444 = vsel %vm8214, %v7561, 0.0
  %v8445 = vadd.f32 %v8443, %v8444
  %v8446 = vsel %vm8214, %v7562, 0.0
  %v8447 = vadd.f32 %v8445, %v8446
  %v8448 = vsel %vm8214, %v7563, 0.0
  %v8449 = vadd.f32 %v8447, %v8448
  %v8450 = vsel %vm8214, %v7564, 0.0
  %v8451 = vadd.f32 %v8449, %v8450
  %v8452 = vsel %vm8214, %v7565, 0.0
  %v8453 = vadd.f32 %v8451, %v8452
  %v8454 = vsel %vm8214, %v7566, 0.0
  %v8455 = vadd.f32 %v8453, %v8454
  %v8456 = vsel %vm8214, %v7567, 0.0
  %v8457 = vadd.f32 %v8455, %v8456
  %v8458 = vsel %vm8214, %v7568, 0.0
  %v8459 = vadd.f32 %v8457, %v8458
  %v8460 = vsel %vm8214, %v7569, 0.0
  %v8461 = vadd.f32 %v8459, %v8460
  %v8462 = vsel %vm8214, %v7570, 0.0
  %v8463 = vadd.f32 %v8461, %v8462
  %v8464 = vsel %vm8214, %v7571, 0.0
  %v8465 = vadd.f32 %v8463, %v8464
  %v8466 = vsel %vm8214, %v7572, 0.0
  %v8467 = vadd.f32 %v8465, %v8466
  %v8468 = vsel %vm8214, %v7573, 0.0
  %v8469 = vadd.f32 %v8467, %v8468
  %v8470 = vsel %vm8214, %v7574, 0.0
  %v8471 = vadd.f32 %v8469, %v8470
  %v8472 = vsel %vm8214, %v7575, 0.0
  %v8473 = vadd.f32 %v8471, %v8472
  %v8474 = vsel %vm8214, %v7576, 0.0
  %v8475 = vadd.f32 %v8473, %v8474
  %v8476 = vsel %vm8214, %v7577, 0.0
  %v8477 = vadd.f32 %v8475, %v8476
  %v8478 = vsel %vm8214, %v7578, 0.0
  %v8479 = vadd.f32 %v8477, %v8478
  %v8480 = vsel %vm8214, %v7579, 0.0
  %v8481 = vadd.f32 %v8479, %v8480
  %v8482 = vsel %vm8214, %v7580, 0.0
  %v8483 = vadd.f32 %v8481, %v8482
  %v8484 = vsel %vm8214, %v7581, 0.0
  %v8485 = vadd.f32 %v8483, %v8484
  %v8486 = vsel %vm8214, %v7582, 0.0
  %v8487 = vadd.f32 %v8485, %v8486
  %v8488 = vsel %vm8214, %v7583, 0.0
  %v8489 = vadd.f32 %v8487, %v8488
  %v8490 = vsel %vm8214, %v7584, 0.0
  %v8491 = vadd.f32 %v8489, %v8490
  %v8492 = vsel %vm8214, %v7585, 0.0
  %v8493 = vadd.f32 %v8491, %v8492
  %v8494 = vsel %vm8214, %v7586, 0.0
  %v8495 = vadd.f32 %v8493, %v8494
  %v8496 = vsel %vm8214, %v7587, 0.0
  %v8497 = vadd.f32 %v8495, %v8496
  %v8498 = vsel %vm8214, %v7588, 0.0
  %v8499 = vadd.f32 %v8497, %v8498
  %v8500 = vsel %vm8214, %v7589, 0.0
  %v8501 = vadd.f32 %v8499, %v8500
  %v8502 = vsel %vm8214, %v7590, 0.0
  %v8503 = vadd.f32 %v8501, %v8502
  %v8504 = vsel %vm8214, %v7591, 0.0
  %v8505 = vadd.f32 %v8503, %v8504
  %v8506 = vsel %vm8214, %v7592, 0.0
  %v8507 = vadd.f32 %v8505, %v8506
  %v8508 = vsel %vm8214, %v7593, 0.0
  %v8509 = vadd.f32 %v8507, %v8508
  %v8510 = vsel %vm8214, %v7594, 0.0
  %v8511 = vadd.f32 %v8509, %v8510
  %v8512 = vsel %vm8214, %v7595, 0.0
  %v8513 = vadd.f32 %v8511, %v8512
  %v8514 = vsel %vm8214, %v7596, 0.0
  %v8515 = vadd.f32 %v8513, %v8514
  %v8516 = vsel %vm8214, %v7597, 0.0
  %v8517 = vadd.f32 %v8515, %v8516
  %v8518 = vsel %vm8214, %v7598, 0.0
  %v8519 = vadd.f32 %v8517, %v8518
  %v8520 = vsel %vm8214, %v7599, 0.0
  %v8521 = vadd.f32 %v8519, %v8520
  %v8522 = vsel %vm8214, %v7600, 0.0
  %v8523 = vadd.f32 %v8521, %v8522
  %v8524 = vsel %vm8214, %v7601, 0.0
  %v8525 = vadd.f32 %v8523, %v8524
  %v8526 = vsel %vm8214, %v7602, 0.0
  %v8527 = vadd.f32 %v8525, %v8526
  %v8528 = vsel %vm8214, %v7603, 0.0
  %v8529 = vadd.f32 %v8527, %v8528
  %v8530 = vsel %vm8214, %v7604, 0.0
  %v8531 = vadd.f32 %v8529, %v8530
  %v8532 = vsel %vm8214, %v7605, 0.0
  %v8533 = vadd.f32 %v8531, %v8532
  %v8534 = vsel %vm8214, %v7606, 0.0
  %v8535 = vadd.f32 %v8533, %v8534
  %v8536 = vsel %vm8214, %v7607, 0.0
  %v8537 = vadd.f32 %v8535, %v8536
  %v8538 = vsel %vm8214, %v7608, 0.0
  %v8539 = vadd.f32 %v8537, %v8538
  %v8540 = vsel %vm8214, %v7609, 0.0
  %v8541 = vadd.f32 %v8539, %v8540
  %v8542 = vsel %vm8214, %v7610, 0.0
  %v8543 = vadd.f32 %v8541, %v8542
  %v8544 = vsel %vm8214, %v7611, 0.0
  %v8545 = vadd.f32 %v8543, %v8544
  %v8546 = vsel %vm8214, %v7612, 0.0
  %v8547 = vadd.f32 %v8545, %v8546
  %v8548 = vsel %vm8214, %v7613, 0.0
  %v8549 = vadd.f32 %v8547, %v8548
  %v8550 = vsel %vm8214, %v7614, 0.0
  %v8551 = vadd.f32 %v8549, %v8550
  %v8552 = vsel %vm8214, %v7615, 0.0
  %v8553 = vadd.f32 %v8551, %v8552
  %v8554 = vsel %vm8214, %v7616, 0.0
  %v8555 = vadd.f32 %v8553, %v8554
  %v8556 = vsel %vm8214, %v7617, 0.0
  %v8557 = vadd.f32 %v8555, %v8556
  %v8558 = vsel %vm8214, %v7618, 0.0
  %v8559 = vadd.f32 %v8557, %v8558
  %v8560 = vsel %vm8214, %v7619, 0.0
  %v8561 = vadd.f32 %v8559, %v8560
  %v8562 = vsel %vm8214, %v7620, 0.0
  %v8563 = vadd.f32 %v8561, %v8562
  %v8564 = vsel %vm8214, %v7621, 0.0
  %v8565 = vadd.f32 %v8563, %v8564
  %v8566 = vsel %vm8214, %v7622, 0.0
  %v8567 = vadd.f32 %v8565, %v8566
  %v8568 = vsel %vm8214, %v7623, 0.0
  %v8569 = vadd.f32 %v8567, %v8568
  %v8570 = vsel %vm8214, %v7624, 0.0
  %v8571 = vadd.f32 %v8569, %v8570
  %v8572 = vsel %vm8214, %v7625, 0.0
  %v8573 = vadd.f32 %v8571, %v8572
  %v8574 = vsel %vm8214, %v7626, 0.0
  %v8575 = vadd.f32 %v8573, %v8574
  %v8576 = vsel %vm8214, %v7627, 0.0
  %v8577 = vadd.f32 %v8575, %v8576
  %v8578 = vsel %vm8214, %v7628, 0.0
  %v8579 = vadd.f32 %v8577, %v8578
  %v8580 = vsel %vm8214, %v7629, 0.0
  %v8581 = vadd.f32 %v8579, %v8580
  %v8582 = vsel %vm8214, %v7630, 0.0
  %v8583 = vadd.f32 %v8581, %v8582
  %v8584 = vsel %vm8214, %v7631, 0.0
  %v8585 = vadd.f32 %v8583, %v8584
  %v8586 = vsel %vm8214, %v7632, 0.0
  %v8587 = vadd.f32 %v8585, %v8586
  %v8588 = vsel %vm8214, %v7633, 0.0
  %v8589 = vadd.f32 %v8587, %v8588
  %v8590 = vsel %vm8214, %v7634, 0.0
  %v8591 = vadd.f32 %v8589, %v8590
  %v8592 = vsel %vm8214, %v7635, 0.0
  %v8593 = vadd.f32 %v8591, %v8592
  %v8594 = vsel %vm8214, %v7636, 0.0
  %v8595 = vadd.f32 %v8593, %v8594
  %v8596 = vsel %vm8214, %v7637, 0.0
  %v8597 = vadd.f32 %v8595, %v8596
  %v8598 = vsel %vm8214, %v7638, 0.0
  %v8599 = vadd.f32 %v8597, %v8598
  %v8600 = vsel %vm8214, %v7639, 0.0
  %v8601 = vadd.f32 %v8599, %v8600
  %v8602 = vsel %vm8214, %v7640, 0.0
  %v8603 = vadd.f32 %v8601, %v8602
  %v8604 = vsel %vm8214, %v7641, 0.0
  %v8605 = vadd.f32 %v8603, %v8604
  %v8606 = vsel %vm8214, %v7642, 0.0
  %v8607 = vadd.f32 %v8605, %v8606
  %v8608 = vsel %vm8214, %v7643, 0.0
  %v8609 = vadd.f32 %v8607, %v8608
  %v8610 = vsel %vm8214, %v7644, 0.0
  %v8611 = vadd.f32 %v8609, %v8610
  %v8612 = vsel %vm8214, %v7645, 0.0
  %v8613 = vadd.f32 %v8611, %v8612
  %v8614 = vsel %vm8214, %v7646, 0.0
  %v8615 = vadd.f32 %v8613, %v8614
  %v8616 = vsel %vm8214, %v7647, 0.0
  %v8617 = vadd.f32 %v8615, %v8616
  %v8618 = vsel %vm8214, %v7648, 0.0
  %v8619 = vadd.f32 %v8617, %v8618
  %v8620 = vsel %vm8214, %v7649, 0.0
  %v8621 = vadd.f32 %v8619, %v8620
  %v8622 = vsel %vm8214, %v7650, 0.0
  %v8623 = vadd.f32 %v8621, %v8622
  %v8624 = vsel %vm8214, %v7651, 0.0
  %v8625 = vadd.f32 %v8623, %v8624
  %v8626 = vsel %vm8214, %v7652, 0.0
  %v8627 = vadd.f32 %v8625, %v8626
  %v8628 = vsel %vm8214, %v7653, 0.0
  %v8629 = vadd.f32 %v8627, %v8628
  %v8630 = vsel %vm8214, %v7654, 0.0
  %v8631 = vadd.f32 %v8629, %v8630
  %v8632 = vsel %vm8214, %v7655, 0.0
  %v8633 = vadd.f32 %v8631, %v8632
  %v8634 = vsel %vm8214, %v7656, 0.0
  %v8635 = vadd.f32 %v8633, %v8634
  %v8636 = vsel %vm8214, %v7657, 0.0
  %v8637 = vadd.f32 %v8635, %v8636
  %v8638 = vsel %vm8214, %v7658, 0.0
  %v8639 = vadd.f32 %v8637, %v8638
  %v8640 = vsel %vm8214, %v7659, 0.0
  %v8641 = vadd.f32 %v8639, %v8640
  %v8642 = vsel %vm8214, %v7660, 0.0
  %v8643 = vadd.f32 %v8641, %v8642
  %v8644 = vsel %vm8214, %v7661, 0.0
  %v8645 = vadd.f32 %v8643, %v8644
  %v8646 = vsel %vm8214, %v7662, 0.0
  %v8647 = vadd.f32 %v8645, %v8646
  %v8648 = vsel %vm8214, %v7663, 0.0
  %v8649 = vadd.f32 %v8647, %v8648
  %v8650 = vsel %vm8214, %v7664, 0.0
  %v8651 = vadd.f32 %v8649, %v8650
  %v8652 = vsel %vm8214, %v7665, 0.0
  %v8653 = vadd.f32 %v8651, %v8652
  %v8654 = vsel %vm8214, %v7666, 0.0
  %v8655 = vadd.f32 %v8653, %v8654
  %v8656 = vsel %vm8214, %v7667, 0.0
  %v8657 = vadd.f32 %v8655, %v8656
  %v8658 = vsel %vm8214, %v7668, 0.0
  %v8659 = vadd.f32 %v8657, %v8658
  %v8660 = vsel %vm8214, %v7669, 0.0
  %v8661 = vadd.f32 %v8659, %v8660
  %v8662 = vsel %vm8214, %v7670, 0.0
  %v8663 = vadd.f32 %v8661, %v8662
  %v8664 = vsel %vm8214, %v7671, 0.0
  %v8665 = vadd.f32 %v8663, %v8664
  %v8666 = vsel %vm8214, %v7672, 0.0
  %v8667 = vadd.f32 %v8665, %v8666
  %v8668 = vsel %vm8214, %v7673, 0.0
  %v8669 = vadd.f32 %v8667, %v8668
  %v8670 = vsel %vm8214, %v7674, 0.0
  %v8671 = vadd.f32 %v8669, %v8670
  %v8672 = vsel %vm8214, %v7675, 0.0
  %v8673 = vadd.f32 %v8671, %v8672
  %v8674 = vsel %vm8214, %v7676, 0.0
  %v8675 = vadd.f32 %v8673, %v8674
  %v8676 = vsel %vm8214, %v7677, 0.0
  %v8677 = vadd.f32 %v8675, %v8676
  %v8678 = vsel %vm8214, %v7678, 0.0
  %v8679 = vadd.f32 %v8677, %v8678
  %v8680 = vsel %vm8214, %v7679, 0.0
  %v8681 = vadd.f32 %v8679, %v8680
  %v8682 = vsel %vm8214, %v7680, 0.0
  %v8683 = vadd.f32 %v8681, %v8682
  %v8684 = vsel %vm8214, %v7681, 0.0
  %v8685 = vadd.f32 %v8683, %v8684
  %v8686 = vsel %vm8214, %v7682, 0.0
  %v8687 = vadd.f32 %v8685, %v8686
  %v8688 = vsel %vm8214, %v7683, 0.0
  %v8689 = vadd.f32 %v8687, %v8688
  %v8690 = vsel %vm8214, %v7684, 0.0
  %v8691 = vadd.f32 %v8689, %v8690
  %v8692 = vsel %vm8214, %v7685, 0.0
  %v8693 = vadd.f32 %v8691, %v8692
  %v8694 = vsel %vm8214, %v7686, 0.0
  %v8695 = vadd.f32 %v8693, %v8694
  %v8696 = vsel %vm8214, %v7687, 0.0
  %v8697 = vadd.f32 %v8695, %v8696
  %v8698 = vsel %vm8214, %v7688, 0.0
  %v8699 = vadd.f32 %v8697, %v8698
  %v8700 = vsel %vm8214, %v7689, 0.0
  %v8701 = vadd.f32 %v8699, %v8700
  %v8702 = vsel %vm8214, %v7690, 0.0
  %v8703 = vadd.f32 %v8701, %v8702
  %v8704 = vsel %vm8214, %v7691, 0.0
  %v8705 = vadd.f32 %v8703, %v8704
  %v8706 = vsel %vm8214, %v7692, 0.0
  %v8707 = vadd.f32 %v8705, %v8706
  %v8708 = vsel %vm8214, %v7693, 0.0
  %v8709 = vadd.f32 %v8707, %v8708
  %v8710 = vsel %vm8214, %v7694, 0.0
  %v8711 = vadd.f32 %v8709, %v8710
  %v8712 = vsel %vm8214, %v7695, 0.0
  %v8713 = vadd.f32 %v8711, %v8712
  %v8714 = vsel %vm8214, %v7696, 0.0
  %v8715 = vadd.f32 %v8713, %v8714
  %v8716 = vsel %vm8214, %v7697, 0.0
  %v8717 = vadd.f32 %v8715, %v8716
  %v8718 = vsel %vm8214, %v7698, 0.0
  %v8719 = vadd.f32 %v8717, %v8718
  %v8720 = vsel %vm8214, %v7699, 0.0
  %v8721 = vadd.f32 %v8719, %v8720
  %v8722 = vsel %vm8214, %v7700, 0.0
  %v8723 = vadd.f32 %v8721, %v8722
  %v8724 = vsel %vm8214, %v7701, 0.0
  %v8725 = vadd.f32 %v8723, %v8724
  %8726 = vadd.xlane.f32.xlu0 %v8725
  %v8727 = vpop.xlane.xlu0 %8726
  %v8728 = vrot.slane %v8727, 4
  %v8729 = vadd.f32 %v8727, %v8728
  %v8730 = vrot.slane %v8729, 2
  %v8731 = vadd.f32 %v8729, %v8730
  %v8732 = vrot.slane %v8731, 1
  %v8733 = vadd.f32 %v8731, %v8732
  %s8734 = vtos %v8733
  %v8735 = vsel %vm8214, %v7958, 0.0
  %v8736 = vsel %vm8214, %v7959, 0.0
  %v8737 = vadd.f32 %v8735, %v8736
  %v8738 = vsel %vm8214, %v7960, 0.0
  %v8739 = vadd.f32 %v8737, %v8738
  %v8740 = vsel %vm8214, %v7961, 0.0
  %v8741 = vadd.f32 %v8739, %v8740
  %v8742 = vsel %vm8214, %v7962, 0.0
  %v8743 = vadd.f32 %v8741, %v8742
  %v8744 = vsel %vm8214, %v7963, 0.0
  %v8745 = vadd.f32 %v8743, %v8744
  %v8746 = vsel %vm8214, %v7964, 0.0
  %v8747 = vadd.f32 %v8745, %v8746
  %v8748 = vsel %vm8214, %v7965, 0.0
  %v8749 = vadd.f32 %v8747, %v8748
  %v8750 = vsel %vm8214, %v7966, 0.0
  %v8751 = vadd.f32 %v8749, %v8750
  %v8752 = vsel %vm8214, %v7967, 0.0
  %v8753 = vadd.f32 %v8751, %v8752
  %v8754 = vsel %vm8214, %v7968, 0.0
  %v8755 = vadd.f32 %v8753, %v8754
  %v8756 = vsel %vm8214, %v7969, 0.0
  %v8757 = vadd.f32 %v8755, %v8756
  %v8758 = vsel %vm8214, %v7970, 0.0
  %v8759 = vadd.f32 %v8757, %v8758
  %v8760 = vsel %vm8214, %v7971, 0.0
  %v8761 = vadd.f32 %v8759, %v8760
  %v8762 = vsel %vm8214, %v7972, 0.0
  %v8763 = vadd.f32 %v8761, %v8762
  %v8764 = vsel %vm8214, %v7973, 0.0
  %v8765 = vadd.f32 %v8763, %v8764
  %v8766 = vsel %vm8214, %v7974, 0.0
  %v8767 = vadd.f32 %v8765, %v8766
  %v8768 = vsel %vm8214, %v7975, 0.0
  %v8769 = vadd.f32 %v8767, %v8768
  %v8770 = vsel %vm8214, %v7976, 0.0
  %v8771 = vadd.f32 %v8769, %v8770
  %v8772 = vsel %vm8214, %v7977, 0.0
  %v8773 = vadd.f32 %v8771, %v8772
  %v8774 = vsel %vm8214, %v7978, 0.0
  %v8775 = vadd.f32 %v8773, %v8774
  %v8776 = vsel %vm8214, %v7979, 0.0
  %v8777 = vadd.f32 %v8775, %v8776
  %v8778 = vsel %vm8214, %v7980, 0.0
  %v8779 = vadd.f32 %v8777, %v8778
  %v8780 = vsel %vm8214, %v7981, 0.0
  %v8781 = vadd.f32 %v8779, %v8780
  %v8782 = vsel %vm8214, %v7982, 0.0
  %v8783 = vadd.f32 %v8781, %v8782
  %v8784 = vsel %vm8214, %v7983, 0.0
  %v8785 = vadd.f32 %v8783, %v8784
  %v8786 = vsel %vm8214, %v7984, 0.0
  %v8787 = vadd.f32 %v8785, %v8786
  %v8788 = vsel %vm8214, %v7985, 0.0
  %v8789 = vadd.f32 %v8787, %v8788
  %v8790 = vsel %vm8214, %v7986, 0.0
  %v8791 = vadd.f32 %v8789, %v8790
  %v8792 = vsel %vm8214, %v7987, 0.0
  %v8793 = vadd.f32 %v8791, %v8792
  %v8794 = vsel %vm8214, %v7988, 0.0
  %v8795 = vadd.f32 %v8793, %v8794
  %v8796 = vsel %vm8214, %v7989, 0.0
  %v8797 = vadd.f32 %v8795, %v8796
  %v8798 = vsel %vm8214, %v7990, 0.0
  %v8799 = vadd.f32 %v8797, %v8798
  %v8800 = vsel %vm8214, %v7991, 0.0
  %v8801 = vadd.f32 %v8799, %v8800
  %v8802 = vsel %vm8214, %v7992, 0.0
  %v8803 = vadd.f32 %v8801, %v8802
  %v8804 = vsel %vm8214, %v7993, 0.0
  %v8805 = vadd.f32 %v8803, %v8804
  %v8806 = vsel %vm8214, %v7994, 0.0
  %v8807 = vadd.f32 %v8805, %v8806
  %v8808 = vsel %vm8214, %v7995, 0.0
  %v8809 = vadd.f32 %v8807, %v8808
  %v8810 = vsel %vm8214, %v7996, 0.0
  %v8811 = vadd.f32 %v8809, %v8810
  %v8812 = vsel %vm8214, %v7997, 0.0
  %v8813 = vadd.f32 %v8811, %v8812
  %v8814 = vsel %vm8214, %v7998, 0.0
  %v8815 = vadd.f32 %v8813, %v8814
  %v8816 = vsel %vm8214, %v7999, 0.0
  %v8817 = vadd.f32 %v8815, %v8816
  %v8818 = vsel %vm8214, %v8000, 0.0
  %v8819 = vadd.f32 %v8817, %v8818
  %v8820 = vsel %vm8214, %v8001, 0.0
  %v8821 = vadd.f32 %v8819, %v8820
  %v8822 = vsel %vm8214, %v8002, 0.0
  %v8823 = vadd.f32 %v8821, %v8822
  %v8824 = vsel %vm8214, %v8003, 0.0
  %v8825 = vadd.f32 %v8823, %v8824
  %v8826 = vsel %vm8214, %v8004, 0.0
  %v8827 = vadd.f32 %v8825, %v8826
  %v8828 = vsel %vm8214, %v8005, 0.0
  %v8829 = vadd.f32 %v8827, %v8828
  %v8830 = vsel %vm8214, %v8006, 0.0
  %v8831 = vadd.f32 %v8829, %v8830
  %v8832 = vsel %vm8214, %v8007, 0.0
  %v8833 = vadd.f32 %v8831, %v8832
  %v8834 = vsel %vm8214, %v8008, 0.0
  %v8835 = vadd.f32 %v8833, %v8834
  %v8836 = vsel %vm8214, %v8009, 0.0
  %v8837 = vadd.f32 %v8835, %v8836
  %v8838 = vsel %vm8214, %v8010, 0.0
  %v8839 = vadd.f32 %v8837, %v8838
  %v8840 = vsel %vm8214, %v8011, 0.0
  %v8841 = vadd.f32 %v8839, %v8840
  %v8842 = vsel %vm8214, %v8012, 0.0
  %v8843 = vadd.f32 %v8841, %v8842
  %v8844 = vsel %vm8214, %v8013, 0.0
  %v8845 = vadd.f32 %v8843, %v8844
  %v8846 = vsel %vm8214, %v8014, 0.0
  %v8847 = vadd.f32 %v8845, %v8846
  %v8848 = vsel %vm8214, %v8015, 0.0
  %v8849 = vadd.f32 %v8847, %v8848
  %v8850 = vsel %vm8214, %v8016, 0.0
  %v8851 = vadd.f32 %v8849, %v8850
  %v8852 = vsel %vm8214, %v8017, 0.0
  %v8853 = vadd.f32 %v8851, %v8852
  %v8854 = vsel %vm8214, %v8018, 0.0
  %v8855 = vadd.f32 %v8853, %v8854
  %v8856 = vsel %vm8214, %v8019, 0.0
  %v8857 = vadd.f32 %v8855, %v8856
  %v8858 = vsel %vm8214, %v8020, 0.0
  %v8859 = vadd.f32 %v8857, %v8858
  %v8860 = vsel %vm8214, %v8021, 0.0
  %v8861 = vadd.f32 %v8859, %v8860
  %v8862 = vsel %vm8214, %v8022, 0.0
  %v8863 = vadd.f32 %v8861, %v8862
  %v8864 = vsel %vm8214, %v8023, 0.0
  %v8865 = vadd.f32 %v8863, %v8864
  %v8866 = vsel %vm8214, %v8024, 0.0
  %v8867 = vadd.f32 %v8865, %v8866
  %v8868 = vsel %vm8214, %v8025, 0.0
  %v8869 = vadd.f32 %v8867, %v8868
  %v8870 = vsel %vm8214, %v8026, 0.0
  %v8871 = vadd.f32 %v8869, %v8870
  %v8872 = vsel %vm8214, %v8027, 0.0
  %v8873 = vadd.f32 %v8871, %v8872
  %v8874 = vsel %vm8214, %v8028, 0.0
  %v8875 = vadd.f32 %v8873, %v8874
  %v8876 = vsel %vm8214, %v8029, 0.0
  %v8877 = vadd.f32 %v8875, %v8876
  %v8878 = vsel %vm8214, %v8030, 0.0
  %v8879 = vadd.f32 %v8877, %v8878
  %v8880 = vsel %vm8214, %v8031, 0.0
  %v8881 = vadd.f32 %v8879, %v8880
  %v8882 = vsel %vm8214, %v8032, 0.0
  %v8883 = vadd.f32 %v8881, %v8882
  %v8884 = vsel %vm8214, %v8033, 0.0
  %v8885 = vadd.f32 %v8883, %v8884
  %v8886 = vsel %vm8214, %v8034, 0.0
  %v8887 = vadd.f32 %v8885, %v8886
  %v8888 = vsel %vm8214, %v8035, 0.0
  %v8889 = vadd.f32 %v8887, %v8888
  %v8890 = vsel %vm8214, %v8036, 0.0
  %v8891 = vadd.f32 %v8889, %v8890
  %v8892 = vsel %vm8214, %v8037, 0.0
  %v8893 = vadd.f32 %v8891, %v8892
  %v8894 = vsel %vm8214, %v8038, 0.0
  %v8895 = vadd.f32 %v8893, %v8894
  %v8896 = vsel %vm8214, %v8039, 0.0
  %v8897 = vadd.f32 %v8895, %v8896
  %v8898 = vsel %vm8214, %v8040, 0.0
  %v8899 = vadd.f32 %v8897, %v8898
  %v8900 = vsel %vm8214, %v8041, 0.0
  %v8901 = vadd.f32 %v8899, %v8900
  %v8902 = vsel %vm8214, %v8042, 0.0
  %v8903 = vadd.f32 %v8901, %v8902
  %v8904 = vsel %vm8214, %v8043, 0.0
  %v8905 = vadd.f32 %v8903, %v8904
  %v8906 = vsel %vm8214, %v8044, 0.0
  %v8907 = vadd.f32 %v8905, %v8906
  %v8908 = vsel %vm8214, %v8045, 0.0
  %v8909 = vadd.f32 %v8907, %v8908
  %v8910 = vsel %vm8214, %v8046, 0.0
  %v8911 = vadd.f32 %v8909, %v8910
  %v8912 = vsel %vm8214, %v8047, 0.0
  %v8913 = vadd.f32 %v8911, %v8912
  %v8914 = vsel %vm8214, %v8048, 0.0
  %v8915 = vadd.f32 %v8913, %v8914
  %v8916 = vsel %vm8214, %v8049, 0.0
  %v8917 = vadd.f32 %v8915, %v8916
  %v8918 = vsel %vm8214, %v8050, 0.0
  %v8919 = vadd.f32 %v8917, %v8918
  %v8920 = vsel %vm8214, %v8051, 0.0
  %v8921 = vadd.f32 %v8919, %v8920
  %v8922 = vsel %vm8214, %v8052, 0.0
  %v8923 = vadd.f32 %v8921, %v8922
  %v8924 = vsel %vm8214, %v8053, 0.0
  %v8925 = vadd.f32 %v8923, %v8924
  %v8926 = vsel %vm8214, %v8054, 0.0
  %v8927 = vadd.f32 %v8925, %v8926
  %v8928 = vsel %vm8214, %v8055, 0.0
  %v8929 = vadd.f32 %v8927, %v8928
  %v8930 = vsel %vm8214, %v8056, 0.0
  %v8931 = vadd.f32 %v8929, %v8930
  %v8932 = vsel %vm8214, %v8057, 0.0
  %v8933 = vadd.f32 %v8931, %v8932
  %v8934 = vsel %vm8214, %v8058, 0.0
  %v8935 = vadd.f32 %v8933, %v8934
  %v8936 = vsel %vm8214, %v8059, 0.0
  %v8937 = vadd.f32 %v8935, %v8936
  %v8938 = vsel %vm8214, %v8060, 0.0
  %v8939 = vadd.f32 %v8937, %v8938
  %v8940 = vsel %vm8214, %v8061, 0.0
  %v8941 = vadd.f32 %v8939, %v8940
  %v8942 = vsel %vm8214, %v8062, 0.0
  %v8943 = vadd.f32 %v8941, %v8942
  %v8944 = vsel %vm8214, %v8063, 0.0
  %v8945 = vadd.f32 %v8943, %v8944
  %v8946 = vsel %vm8214, %v8064, 0.0
  %v8947 = vadd.f32 %v8945, %v8946
  %v8948 = vsel %vm8214, %v8065, 0.0
  %v8949 = vadd.f32 %v8947, %v8948
  %v8950 = vsel %vm8214, %v8066, 0.0
  %v8951 = vadd.f32 %v8949, %v8950
  %v8952 = vsel %vm8214, %v8067, 0.0
  %v8953 = vadd.f32 %v8951, %v8952
  %v8954 = vsel %vm8214, %v8068, 0.0
  %v8955 = vadd.f32 %v8953, %v8954
  %v8956 = vsel %vm8214, %v8069, 0.0
  %v8957 = vadd.f32 %v8955, %v8956
  %v8958 = vsel %vm8214, %v8070, 0.0
  %v8959 = vadd.f32 %v8957, %v8958
  %v8960 = vsel %vm8214, %v8071, 0.0
  %v8961 = vadd.f32 %v8959, %v8960
  %v8962 = vsel %vm8214, %v8072, 0.0
  %v8963 = vadd.f32 %v8961, %v8962
  %v8964 = vsel %vm8214, %v8073, 0.0
  %v8965 = vadd.f32 %v8963, %v8964
  %v8966 = vsel %vm8214, %v8074, 0.0
  %v8967 = vadd.f32 %v8965, %v8966
  %v8968 = vsel %vm8214, %v8075, 0.0
  %v8969 = vadd.f32 %v8967, %v8968
  %v8970 = vsel %vm8214, %v8076, 0.0
  %v8971 = vadd.f32 %v8969, %v8970
  %v8972 = vsel %vm8214, %v8077, 0.0
  %v8973 = vadd.f32 %v8971, %v8972
  %v8974 = vsel %vm8214, %v8078, 0.0
  %v8975 = vadd.f32 %v8973, %v8974
  %v8976 = vsel %vm8214, %v8079, 0.0
  %v8977 = vadd.f32 %v8975, %v8976
  %v8978 = vsel %vm8214, %v8080, 0.0
  %v8979 = vadd.f32 %v8977, %v8978
  %v8980 = vsel %vm8214, %v8081, 0.0
  %v8981 = vadd.f32 %v8979, %v8980
  %v8982 = vsel %vm8214, %v8082, 0.0
  %v8983 = vadd.f32 %v8981, %v8982
  %v8984 = vsel %vm8214, %v8083, 0.0
  %v8985 = vadd.f32 %v8983, %v8984
  %v8986 = vsel %vm8214, %v8084, 0.0
  %v8987 = vadd.f32 %v8985, %v8986
  %v8988 = vsel %vm8214, %v8085, 0.0
  %v8989 = vadd.f32 %v8987, %v8988
  %v8990 = vsel %vm8214, %v8086, 0.0
  %v8991 = vadd.f32 %v8989, %v8990
  %v8992 = vsel %vm8214, %v8087, 0.0
  %v8993 = vadd.f32 %v8991, %v8992
  %v8994 = vsel %vm8214, %v8088, 0.0
  %v8995 = vadd.f32 %v8993, %v8994
  %v8996 = vsel %vm8214, %v8089, 0.0
  %v8997 = vadd.f32 %v8995, %v8996
  %v8998 = vsel %vm8214, %v8090, 0.0
  %v8999 = vadd.f32 %v8997, %v8998
  %v9000 = vsel %vm8214, %v8091, 0.0
  %v9001 = vadd.f32 %v8999, %v9000
  %v9002 = vsel %vm8214, %v8092, 0.0
  %v9003 = vadd.f32 %v9001, %v9002
  %v9004 = vsel %vm8214, %v8093, 0.0
  %v9005 = vadd.f32 %v9003, %v9004
  %v9006 = vsel %vm8214, %v8094, 0.0
  %v9007 = vadd.f32 %v9005, %v9006
  %v9008 = vsel %vm8214, %v8095, 0.0
  %v9009 = vadd.f32 %v9007, %v9008
  %v9010 = vsel %vm8214, %v8096, 0.0
  %v9011 = vadd.f32 %v9009, %v9010
  %v9012 = vsel %vm8214, %v8097, 0.0
  %v9013 = vadd.f32 %v9011, %v9012
  %v9014 = vsel %vm8214, %v8098, 0.0
  %v9015 = vadd.f32 %v9013, %v9014
  %v9016 = vsel %vm8214, %v8099, 0.0
  %v9017 = vadd.f32 %v9015, %v9016
  %v9018 = vsel %vm8214, %v8100, 0.0
  %v9019 = vadd.f32 %v9017, %v9018
  %v9020 = vsel %vm8214, %v8101, 0.0
  %v9021 = vadd.f32 %v9019, %v9020
  %v9022 = vsel %vm8214, %v8102, 0.0
  %v9023 = vadd.f32 %v9021, %v9022
  %v9024 = vsel %vm8214, %v8103, 0.0
  %v9025 = vadd.f32 %v9023, %v9024
  %v9026 = vsel %vm8214, %v8104, 0.0
  %v9027 = vadd.f32 %v9025, %v9026
  %v9028 = vsel %vm8214, %v8105, 0.0
  %v9029 = vadd.f32 %v9027, %v9028
  %v9030 = vsel %vm8214, %v8106, 0.0
  %v9031 = vadd.f32 %v9029, %v9030
  %v9032 = vsel %vm8214, %v8107, 0.0
  %v9033 = vadd.f32 %v9031, %v9032
  %v9034 = vsel %vm8214, %v8108, 0.0
  %v9035 = vadd.f32 %v9033, %v9034
  %v9036 = vsel %vm8214, %v8109, 0.0
  %v9037 = vadd.f32 %v9035, %v9036
  %v9038 = vsel %vm8214, %v8110, 0.0
  %v9039 = vadd.f32 %v9037, %v9038
  %v9040 = vsel %vm8214, %v8111, 0.0
  %v9041 = vadd.f32 %v9039, %v9040
  %v9042 = vsel %vm8214, %v8112, 0.0
  %v9043 = vadd.f32 %v9041, %v9042
  %v9044 = vsel %vm8214, %v8113, 0.0
  %v9045 = vadd.f32 %v9043, %v9044
  %v9046 = vsel %vm8214, %v8114, 0.0
  %v9047 = vadd.f32 %v9045, %v9046
  %v9048 = vsel %vm8214, %v8115, 0.0
  %v9049 = vadd.f32 %v9047, %v9048
  %v9050 = vsel %vm8214, %v8116, 0.0
  %v9051 = vadd.f32 %v9049, %v9050
  %v9052 = vsel %vm8214, %v8117, 0.0
  %v9053 = vadd.f32 %v9051, %v9052
  %v9054 = vsel %vm8214, %v8118, 0.0
  %v9055 = vadd.f32 %v9053, %v9054
  %v9056 = vsel %vm8214, %v8119, 0.0
  %v9057 = vadd.f32 %v9055, %v9056
  %v9058 = vsel %vm8214, %v8120, 0.0
  %v9059 = vadd.f32 %v9057, %v9058
  %v9060 = vsel %vm8214, %v8121, 0.0
  %v9061 = vadd.f32 %v9059, %v9060
  %v9062 = vsel %vm8214, %v8122, 0.0
  %v9063 = vadd.f32 %v9061, %v9062
  %v9064 = vsel %vm8214, %v8123, 0.0
  %v9065 = vadd.f32 %v9063, %v9064
  %v9066 = vsel %vm8214, %v8124, 0.0
  %v9067 = vadd.f32 %v9065, %v9066
  %v9068 = vsel %vm8214, %v8125, 0.0
  %v9069 = vadd.f32 %v9067, %v9068
  %v9070 = vsel %vm8214, %v8126, 0.0
  %v9071 = vadd.f32 %v9069, %v9070
  %v9072 = vsel %vm8214, %v8127, 0.0
  %v9073 = vadd.f32 %v9071, %v9072
  %v9074 = vsel %vm8214, %v8128, 0.0
  %v9075 = vadd.f32 %v9073, %v9074
  %v9076 = vsel %vm8214, %v8129, 0.0
  %v9077 = vadd.f32 %v9075, %v9076
  %v9078 = vsel %vm8214, %v8130, 0.0
  %v9079 = vadd.f32 %v9077, %v9078
  %v9080 = vsel %vm8214, %v8131, 0.0
  %v9081 = vadd.f32 %v9079, %v9080
  %v9082 = vsel %vm8214, %v8132, 0.0
  %v9083 = vadd.f32 %v9081, %v9082
  %v9084 = vsel %vm8214, %v8133, 0.0
  %v9085 = vadd.f32 %v9083, %v9084
  %v9086 = vsel %vm8214, %v8134, 0.0
  %v9087 = vadd.f32 %v9085, %v9086
  %v9088 = vsel %vm8214, %v8135, 0.0
  %v9089 = vadd.f32 %v9087, %v9088
  %v9090 = vsel %vm8214, %v8136, 0.0
  %v9091 = vadd.f32 %v9089, %v9090
  %v9092 = vsel %vm8214, %v8137, 0.0
  %v9093 = vadd.f32 %v9091, %v9092
  %v9094 = vsel %vm8214, %v8138, 0.0
  %v9095 = vadd.f32 %v9093, %v9094
  %v9096 = vsel %vm8214, %v8139, 0.0
  %v9097 = vadd.f32 %v9095, %v9096
  %v9098 = vsel %vm8214, %v8140, 0.0
  %v9099 = vadd.f32 %v9097, %v9098
  %v9100 = vsel %vm8214, %v8141, 0.0
  %v9101 = vadd.f32 %v9099, %v9100
  %v9102 = vsel %vm8214, %v8142, 0.0
  %v9103 = vadd.f32 %v9101, %v9102
  %v9104 = vsel %vm8214, %v8143, 0.0
  %v9105 = vadd.f32 %v9103, %v9104
  %v9106 = vsel %vm8214, %v8144, 0.0
  %v9107 = vadd.f32 %v9105, %v9106
  %v9108 = vsel %vm8214, %v8145, 0.0
  %v9109 = vadd.f32 %v9107, %v9108
  %v9110 = vsel %vm8214, %v8146, 0.0
  %v9111 = vadd.f32 %v9109, %v9110
  %v9112 = vsel %vm8214, %v8147, 0.0
  %v9113 = vadd.f32 %v9111, %v9112
  %v9114 = vsel %vm8214, %v8148, 0.0
  %v9115 = vadd.f32 %v9113, %v9114
  %v9116 = vsel %vm8214, %v8149, 0.0
  %v9117 = vadd.f32 %v9115, %v9116
  %v9118 = vsel %vm8214, %v8150, 0.0
  %v9119 = vadd.f32 %v9117, %v9118
  %v9120 = vsel %vm8214, %v8151, 0.0
  %v9121 = vadd.f32 %v9119, %v9120
  %v9122 = vsel %vm8214, %v8152, 0.0
  %v9123 = vadd.f32 %v9121, %v9122
  %v9124 = vsel %vm8214, %v8153, 0.0
  %v9125 = vadd.f32 %v9123, %v9124
  %v9126 = vsel %vm8214, %v8154, 0.0
  %v9127 = vadd.f32 %v9125, %v9126
  %v9128 = vsel %vm8214, %v8155, 0.0
  %v9129 = vadd.f32 %v9127, %v9128
  %v9130 = vsel %vm8214, %v8156, 0.0
  %v9131 = vadd.f32 %v9129, %v9130
  %v9132 = vsel %vm8214, %v8157, 0.0
  %v9133 = vadd.f32 %v9131, %v9132
  %v9134 = vsel %vm8214, %v8158, 0.0
  %v9135 = vadd.f32 %v9133, %v9134
  %v9136 = vsel %vm8214, %v8159, 0.0
  %v9137 = vadd.f32 %v9135, %v9136
  %v9138 = vsel %vm8214, %v8160, 0.0
  %v9139 = vadd.f32 %v9137, %v9138
  %v9140 = vsel %vm8214, %v8161, 0.0
  %v9141 = vadd.f32 %v9139, %v9140
  %v9142 = vsel %vm8214, %v8162, 0.0
  %v9143 = vadd.f32 %v9141, %v9142
  %v9144 = vsel %vm8214, %v8163, 0.0
  %v9145 = vadd.f32 %v9143, %v9144
  %v9146 = vsel %vm8214, %v8164, 0.0
  %v9147 = vadd.f32 %v9145, %v9146
  %v9148 = vsel %vm8214, %v8165, 0.0
  %v9149 = vadd.f32 %v9147, %v9148
  %v9150 = vsel %vm8214, %v8166, 0.0
  %v9151 = vadd.f32 %v9149, %v9150
  %v9152 = vsel %vm8214, %v8167, 0.0
  %v9153 = vadd.f32 %v9151, %v9152
  %v9154 = vsel %vm8214, %v8168, 0.0
  %v9155 = vadd.f32 %v9153, %v9154
  %v9156 = vsel %vm8214, %v8169, 0.0
  %v9157 = vadd.f32 %v9155, %v9156
  %v9158 = vsel %vm8214, %v8170, 0.0
  %v9159 = vadd.f32 %v9157, %v9158
  %v9160 = vsel %vm8214, %v8171, 0.0
  %v9161 = vadd.f32 %v9159, %v9160
  %v9162 = vsel %vm8214, %v8172, 0.0
  %v9163 = vadd.f32 %v9161, %v9162
  %v9164 = vsel %vm8214, %v8173, 0.0
  %v9165 = vadd.f32 %v9163, %v9164
  %v9166 = vsel %vm8214, %v8174, 0.0
  %v9167 = vadd.f32 %v9165, %v9166
  %v9168 = vsel %vm8214, %v8175, 0.0
  %v9169 = vadd.f32 %v9167, %v9168
  %v9170 = vsel %vm8214, %v8176, 0.0
  %v9171 = vadd.f32 %v9169, %v9170
  %v9172 = vsel %vm8214, %v8177, 0.0
  %v9173 = vadd.f32 %v9171, %v9172
  %v9174 = vsel %vm8214, %v8178, 0.0
  %v9175 = vadd.f32 %v9173, %v9174
  %v9176 = vsel %vm8214, %v8179, 0.0
  %v9177 = vadd.f32 %v9175, %v9176
  %v9178 = vsel %vm8214, %v8180, 0.0
  %v9179 = vadd.f32 %v9177, %v9178
  %v9180 = vsel %vm8214, %v8181, 0.0
  %v9181 = vadd.f32 %v9179, %v9180
  %v9182 = vsel %vm8214, %v8182, 0.0
  %v9183 = vadd.f32 %v9181, %v9182
  %v9184 = vsel %vm8214, %v8183, 0.0
  %v9185 = vadd.f32 %v9183, %v9184
  %v9186 = vsel %vm8214, %v8184, 0.0
  %v9187 = vadd.f32 %v9185, %v9186
  %v9188 = vsel %vm8214, %v8185, 0.0
  %v9189 = vadd.f32 %v9187, %v9188
  %v9190 = vsel %vm8214, %v8186, 0.0
  %v9191 = vadd.f32 %v9189, %v9190
  %v9192 = vsel %vm8214, %v8187, 0.0
  %v9193 = vadd.f32 %v9191, %v9192
  %v9194 = vsel %vm8214, %v8188, 0.0
  %v9195 = vadd.f32 %v9193, %v9194
  %v9196 = vsel %vm8214, %v8189, 0.0
  %v9197 = vadd.f32 %v9195, %v9196
  %v9198 = vsel %vm8214, %v8190, 0.0
  %v9199 = vadd.f32 %v9197, %v9198
  %v9200 = vsel %vm8214, %v8191, 0.0
  %v9201 = vadd.f32 %v9199, %v9200
  %v9202 = vsel %vm8214, %v8192, 0.0
  %v9203 = vadd.f32 %v9201, %v9202
  %v9204 = vsel %vm8214, %v8193, 0.0
  %v9205 = vadd.f32 %v9203, %v9204
  %v9206 = vsel %vm8214, %v8194, 0.0
  %v9207 = vadd.f32 %v9205, %v9206
  %v9208 = vsel %vm8214, %v8195, 0.0
  %v9209 = vadd.f32 %v9207, %v9208
  %v9210 = vsel %vm8214, %v8196, 0.0
  %v9211 = vadd.f32 %v9209, %v9210
  %v9212 = vsel %vm8214, %v8197, 0.0
  %v9213 = vadd.f32 %v9211, %v9212
  %v9214 = vsel %vm8214, %v8198, 0.0
  %v9215 = vadd.f32 %v9213, %v9214
  %v9216 = vsel %vm8214, %v8199, 0.0
  %v9217 = vadd.f32 %v9215, %v9216
  %v9218 = vsel %vm8214, %v8200, 0.0
  %v9219 = vadd.f32 %v9217, %v9218
  %v9220 = vsel %vm8214, %v8201, 0.0
  %v9221 = vadd.f32 %v9219, %v9220
  %v9222 = vsel %vm8214, %v8202, 0.0
  %v9223 = vadd.f32 %v9221, %v9222
  %v9224 = vsel %vm8214, %v8203, 0.0
  %v9225 = vadd.f32 %v9223, %v9224
  %v9226 = vsel %vm8214, %v8204, 0.0
  %v9227 = vadd.f32 %v9225, %v9226
  %v9228 = vsel %vm8214, %v8205, 0.0
  %v9229 = vadd.f32 %v9227, %v9228
  %v9230 = vsel %vm8214, %v8206, 0.0
  %v9231 = vadd.f32 %v9229, %v9230
  %v9232 = vsel %vm8214, %v8207, 0.0
  %v9233 = vadd.f32 %v9231, %v9232
  %v9234 = vsel %vm8214, %v8208, 0.0
  %v9235 = vadd.f32 %v9233, %v9234
  %v9236 = vsel %vm8214, %v8209, 0.0
  %v9237 = vadd.f32 %v9235, %v9236
  %v9238 = vsel %vm8214, %v8210, 0.0
  %v9239 = vadd.f32 %v9237, %v9238
  %v9240 = vsel %vm8214, %v8211, 0.0
  %v9241 = vadd.f32 %v9239, %v9240
  %v9242 = vsel %vm8214, %v8212, 0.0
  %v9243 = vadd.f32 %v9241, %v9242
  %v9244 = vsel %vm8214, %v8213, 0.0
  %v9245 = vadd.f32 %v9243, %v9244
  %9246 = vadd.xlane.f32.xlu0 %v9245
  %v9247 = vpop.xlane.xlu0 %9246
  %v9248 = vrot.slane %v9247, 4
  %v9249 = vadd.f32 %v9247, %v9248
  %v9250 = vrot.slane %v9249, 2
  %v9251 = vadd.f32 %v9249, %v9250
  %v9252 = vrot.slane %v9251, 1
  %v9253 = vadd.f32 %v9251, %v9252
  %s9254 = vtos %v9253
  %v9255 = vstv %s8734
  %9256 = vst [vmem:[%s4] sm:$0xff] %v9255
  %v9257 = vstv %s9254
  %9258 = vst [vmem:[%s5] sm:$0xff] %v9257
  // Predicated region
  $region18: #{_weighted_ce_sums.1} parent=0 // pred_check
    _
  $region19: #{_weighted_ce_sums.1} parent=0 // pred_check_branch
    %9260 = sbr.rel (0) target = $region21
  $region20: #{_weighted_ce_sums.1} parent=0 // pred_region
    _
  $region21: #{_weighted_ce_sums.1} parent=0 // pred_fallthru
    _
  // Predicated region
  $region22: #{_weighted_ce_sums.1} parent=0 // pred_check
    _
  $region23: #{_weighted_ce_sums.1} parent=0 // pred_check_branch
    %9262 = sbr.rel (0) target = $region25
  $region24: #{_weighted_ce_sums.1} parent=0 // pred_region
    _
  $region25: #{_weighted_ce_sums.1} parent=0 // pred_fallthru
    _
  // Predicated region
  $region26: #{_weighted_ce_sums.1} parent=0 // pred_check
    _
  $region27: #{_weighted_ce_sums.1} parent=0 // pred_check_branch
    %9264 = sbr.rel (0) target = $region29
  $region28: #{_weighted_ce_sums.1} parent=0 // pred_region
    _
  $region29: #{_weighted_ce_sums.1} parent=0 // pred_fallthru
    _
  // Predicated region
  $region30: #{_weighted_ce_sums.1} parent=0 // pred_check
    _
  $region31: #{_weighted_ce_sums.1} parent=0 // pred_check_branch
    %9266 = sbr.rel (0) target = $region33
  $region32: #{_weighted_ce_sums.1} parent=0 // pred_region
    _
  $region33: #{_weighted_ce_sums.1} parent=0 // pred_fallthru
    _

</llo_original>
